<compile_context>
chip_gen: v6e
topology: v6e:2x2x1
jax: 0.10.0
libtpu: 0.0.40
codegen_flags: <defaults>
</compile_context>

<pallas_src>
import numpy as np
import jax
import jax.numpy as jnp
from jax import lax
from jax.experimental import pallas as pl
from jax.experimental.pallas import tpu as pltpu

LANE = 128


def _round_up(x, m):
    return (x + m - 1) // m * m


def _frame_geometry(H, W):
    """Flat zero-padded frame: pixel (y, x) lives at frame row BASE + y*Wp + x."""
    Wp = W + 2
    HWp = H * Wp
    base = _round_up(Wp + 1, 8)                 # aligned interior offset, >= Wp+1
    fr = _round_up(base + HWp + Wp + 1, 8)      # covers the max tap read offset
    return Wp, HWp, base, fr


def _make_fused_kernel(H, W, Cp):
    Wp, HWp, BASE, FR = _frame_geometry(H, W)

    def conv9(frame_ref, w_ref):
        """3x3 conv = 9 shifted-row MXU matmuls; register accumulation."""
        acc = None
        for ky in range(3):
            for kx in range(3):
                off = BASE + (ky - 1) * Wp + (kx - 1)
                t = jnp.dot(frame_ref[pl.ds(off, HWp), :], w_ref[ky * 3 + kx],
                            preferred_element_type=jnp.float32)
                acc = t if acc is None else acc + t
        return acc

    def kernel(xf_ref, w1_ref, w2_ref, s1_ref, b1_ref, s2_ref, b2_ref,
               cmask_ref, o_ref, slab2_ref):
        x_frame = xf_ref.at[0]                              # (FR, Cp) bf16 ref view

        # conv1 + bn1 + relu (frame already built, lane-dense, in the wrapper).
        acc1 = conv9(x_frame, w1_ref)
        mid = jnp.maximum(acc1 * s1_ref[...] + b1_ref[...], 0.0)
        mid = mid * cmask_ref[...]          # zero inter-row halo columns (VPU)

        # Build the conv2 frame: halo-only zeroing (done every step so it stays
        # correct if the batch axis is split across TensorCores) + ONE aligned
        # contiguous interior store.
        slab2_ref[0:BASE, :] = jnp.zeros((BASE, Cp), jnp.bfloat16)
        slab2_ref[BASE + HWp:FR, :] = jnp.zeros((FR - BASE - HWp, Cp), jnp.bfloat16)
        slab2_ref[pl.ds(BASE, HWp), :] = mid.astype(jnp.bfloat16)

        # conv2 + bn2 + residual + relu.
        acc2 = conv9(slab2_ref, w2_ref)
        res = x_frame[pl.ds(BASE, HWp), :].astype(jnp.float32)   # skip connection
        out = jnp.maximum(acc2 * s2_ref[...] + b2_ref[...] + res, 0.0)
        o_ref[0] = out.astype(jnp.bfloat16)   # lane-dense bf16 frame-layout output

    return kernel


def _vmem_limit_bytes():
    # Re-derive per generation (v5e/v6e: 128 MiB, v7x: 64 MiB) vs. hardcoding.
    try:
        cap = pltpu.get_tpu_info().vmem_capacity_bytes
    except Exception:
        cap = 64 * 1024 * 1024
    return int(min(cap // 2, 64 * 1024 * 1024))


def basic_block_fused_call(xf, w1, w2, s1, b1, s2, b2, cmask, H, W):
    """xf: (N, FR, Cp) bf16 flat padded frames; w*: (9, Cp, Cp) bf16;
    s*/b*: (1, Cp) f32; cmask: (H*(W+2), 1) f32."""
    N, FR, Cp = xf.shape
    Wp, HWp, BASE, FR2 = _frame_geometry(H, W)
    assert FR == FR2
    kernel = _make_fused_kernel(H, W, Cp)
    return pl.pallas_call(
        kernel,
        out_shape=jax.ShapeDtypeStruct((N, HWp, Cp), jnp.bfloat16),
        grid=(N,),
        in_specs=[
            pl.BlockSpec((1, FR, Cp), lambda n: (n, 0, 0)),
            pl.BlockSpec((9, Cp, Cp), lambda n: (0, 0, 0)),
            pl.BlockSpec((9, Cp, Cp), lambda n: (0, 0, 0)),
            pl.BlockSpec((1, Cp), lambda n: (0, 0)),
            pl.BlockSpec((1, Cp), lambda n: (0, 0)),
            pl.BlockSpec((1, Cp), lambda n: (0, 0)),
            pl.BlockSpec((1, Cp), lambda n: (0, 0)),
            pl.BlockSpec((HWp, 1), lambda n: (0, 0)),
        ],
        out_specs=pl.BlockSpec((1, HWp, Cp), lambda n: (n, 0, 0)),
        scratch_shapes=[
            pltpu.VMEM((FR, Cp), jnp.bfloat16),      # conv2 zero-padded flat frame
        ],
        compiler_params=pltpu.CompilerParams(
            dimension_semantics=("parallel",),
            vmem_limit_bytes=_vmem_limit_bytes(),
        ),
    )(xf, w1, w2, s1, b1, s2, b2, cmask)


def _fold_bn(gamma, beta, mean, var, eps=1e-5):
    scale = gamma / jnp.sqrt(var + eps)
    shift = beta - mean * scale
    return scale, shift


def _pad_channel_vec(v, Cp, value=0.0):
    C = v.shape[0]
    return jnp.pad(v, (0, Cp - C), constant_values=value).reshape(1, Cp)


def basic_block_forward(x_nchw, params):
    """BasicBlock.forward (stride=1, downsample=None). NCHW in/out like PyTorch."""
    x = jnp.transpose(x_nchw, (0, 2, 3, 1)).astype(jnp.float32)   # -> NHWC
    N, H, W, C = x.shape
    Cp = _round_up(C, LANE)
    Wp, HWp, BASE, FR = _frame_geometry(H, W)

    s1, b1 = _fold_bn(params["bn1_gamma"], params["bn1_beta"],
                      params["bn1_mean"], params["bn1_var"])
    s2, b2 = _fold_bn(params["bn2_gamma"], params["bn2_beta"],
                      params["bn2_mean"], params["bn2_var"])

    # Lane-dense channels + flat zero-padded frame built wrapper-side (layout
    # plumbing; the kernel never copies halos for conv1).
    xp = jnp.pad(x, ((0, 0), (0, 0), (0, 0), (0, Cp - C))).astype(jnp.bfloat16)
    xw = jnp.pad(xp, ((0, 0), (0, 0), (0, 2), (0, 0)))            # W halo columns
    xf = xw.reshape(N, HWp, Cp)
    xf = jnp.pad(xf, ((0, 0), (BASE, FR - BASE - HWp), (0, 0)))   # top/bottom halo

    def prep_w(w_hwio):   # (3,3,C,C) HWIO -> (9, Cp, Cp) bf16 per-tap matrices
        wp = jnp.pad(w_hwio, ((0, 0), (0, 0), (0, Cp - C), (0, Cp - C)))
        return wp.astype(jnp.bfloat16).reshape(9, Cp, Cp)

    # Padded-channel invariant: padded weight rows/cols are zero, scale=1,
    # shift=0, so padded output channels stay exactly zero through both convs.
    cmask = ((jnp.arange(HWp) % Wp) < W).astype(jnp.float32).reshape(HWp, 1)

    out_f = basic_block_fused_call(
        xf, prep_w(params["w1"]), prep_w(params["w2"]),
        _pad_channel_vec(s1, Cp, 1.0), _pad_channel_vec(b1, Cp, 0.0),
        _pad_channel_vec(s2, Cp, 1.0), _pad_channel_vec(b2, Cp, 0.0),
        cmask, H, W)

    out = out_f.reshape(N, H, Wp, Cp)[:, :, :W, :C].astype(jnp.float32)
    return jnp.transpose(out, (0, 3, 1, 2))                       # -> NCHW


def _reference_forward(x_nchw, params, matmul_dtype=jnp.float32):
    """Pure-JAX reference (lax.conv). matmul_dtype=bf16 mirrors the kernel's MXU."""
    x = jnp.transpose(x_nchw, (0, 2, 3, 1)).astype(jnp.float32)
    w1 = params["w1"].astype(matmul_dtype)
    w2 = params["w2"].astype(matmul_dtype)
    dn = lax.conv_dimension_numbers(x.shape, params["w1"].shape,
                                    ("NHWC", "HWIO", "NHWC"))

    def conv(inp, w):
        return lax.conv_general_dilated(
            inp.astype(matmul_dtype), w, (1, 1), ((1, 1), (1, 1)),
            dimension_numbers=dn, preferred_element_type=jnp.float32)

    s1, b1 = _fold_bn(params["bn1_gamma"], params["bn1_beta"],
                      params["bn1_mean"], params["bn1_var"])
    s2, b2 = _fold_bn(params["bn2_gamma"], params["bn2_beta"],
                      params["bn2_mean"], params["bn2_var"])

    residual = x.astype(matmul_dtype).astype(jnp.float32)
    mid = jnp.maximum(conv(x, w1) * s1 + b1, 0.0)
    out = jnp.maximum(conv(mid, w2) * s2 + b2 + residual, 0.0)
    if matmul_dtype == jnp.bfloat16:
        out = out.astype(jnp.bfloat16).astype(jnp.float32)   # kernel emits bf16
    return jnp.transpose(out, (0, 3, 1, 2))


if __name__ == "__main__":
    N, C, H, W = 2, 4, 16, 16  # inplanes == planes == 4, stride=1, downsample=None
    k = jax.random.split(jax.random.PRNGKey(0), 9)

    params = {
        "w1": jax.random.normal(k[0], (3, 3, C, C), jnp.float32) * 0.1,
        "w2": jax.random.normal(k[1], (3, 3, C, C), jnp.float32) * 0.1,
        "bn1_gamma": 1.0 + 0.1 * jax.random.normal(k[2], (C,), jnp.float32),
        "bn1_beta": 0.1 * jax.random.normal(k[3], (C,), jnp.float32),
        "bn1_mean": 0.05 * jax.random.normal(k[4], (C,), jnp.float32),
        "bn1_var": jnp.abs(jax.random.normal(k[5], (C,), jnp.float32)) + 0.5,
        "bn2_gamma": 1.0 + 0.1 * jax.random.normal(k[6], (C,), jnp.float32),
        "bn2_beta": 0.1 * jax.random.normal(k[7], (C,), jnp.float32),
        "bn2_mean": jnp.zeros((C,), jnp.float32),
        "bn2_var": jnp.ones((C,), jnp.float32),
    }
    x = jax.random.normal(k[8], (N, C, H, W), jnp.float32)

    out = jax.block_until_ready(basic_block_forward(x, params))
    assert out.shape == (N, C, H, W)

    # Check vs. a reference matched to the kernel's precision (bf16 MXU + bf16 out).
    ref_bf16 = jax.block_until_ready(_reference_forward(x, params, jnp.bfloat16))
    np.testing.assert_allclose(np.asarray(out), np.asarray(ref_bf16),
                               rtol=2e-2, atol=2e-2)

    # Loose sanity check vs. the pure-f32 reference (only bf16 quantization noise).
    ref_f32 = jax.block_until_ready(_reference_forward(x, params, jnp.float32))
    np.testing.assert_allclose(np.asarray(out), np.asarray(ref_f32),
                               rtol=1e-1, atol=1e-1)

    print("KERNEL_OK")
</pallas_src>

<mosaic_0001>
module attributes {stable_mosaic.version = 11 : i64} {
  func.func @kernel(%arg0: i32, %arg1: memref<1x336x128xbf16, #tpu.memory_space<vmem>>, %arg2: memref<9x128x128xbf16, #tpu.memory_space<vmem>>, %arg3: memref<9x128x128xbf16, #tpu.memory_space<vmem>>, %arg4: memref<1x128xf32, #tpu.memory_space<vmem>>, %arg5: memref<1x128xf32, #tpu.memory_space<vmem>>, %arg6: memref<1x128xf32, #tpu.memory_space<vmem>>, %arg7: memref<1x128xf32, #tpu.memory_space<vmem>>, %arg8: memref<288x1xf32, #tpu.memory_space<vmem>>, %arg9: memref<1x288x128xbf16, #tpu.memory_space<vmem>>, %arg10: memref<336x128xbf16, #tpu.memory_space<vmem>>) attributes {dimension_semantics = [#tpu.dimension_semantics<parallel>], iteration_bounds = array<i64: 2>, scalar_prefetch = 0 : i64, scratch_operands = 1 : i64, tpu.core_type = #tpu.core_type<tc>, window_params = [{transform_indices = @transform_0, window_bounds = array<i64: 1, 336, 128>}, {pipeline_mode = #tpu.pipeline_mode<synchronous>, transform_indices = @transform_1, window_bounds = array<i64: 9, 128, 128>}, {pipeline_mode = #tpu.pipeline_mode<synchronous>, transform_indices = @transform_2, window_bounds = array<i64: 9, 128, 128>}, {pipeline_mode = #tpu.pipeline_mode<synchronous>, transform_indices = @transform_3, window_bounds = array<i64: 1, 128>}, {pipeline_mode = #tpu.pipeline_mode<synchronous>, transform_indices = @transform_4, window_bounds = array<i64: 1, 128>}, {pipeline_mode = #tpu.pipeline_mode<synchronous>, transform_indices = @transform_5, window_bounds = array<i64: 1, 128>}, {pipeline_mode = #tpu.pipeline_mode<synchronous>, transform_indices = @transform_6, window_bounds = array<i64: 1, 128>}, {pipeline_mode = #tpu.pipeline_mode<synchronous>, transform_indices = @transform_7, window_bounds = array<i64: 288, 1>}, {transform_indices = @transform_8, window_bounds = array<i64: 1, 288, 128>}]} {
    %c0_i32 = arith.constant 0 : i32
    %c0_i32_0 = arith.constant 0 : i32
    %c0_i32_1 = arith.constant 0 : i32
    %0 = tpu.memref_slice %arg1[%c0_i32, %c0_i32_0, %c0_i32_1] : memref<1x336x128xbf16, #tpu.memory_space<vmem>> -> memref<1x336x128xbf16, #tpu.memory_space<vmem>>
    %1 = tpu.memref_squeeze %0 : memref<1x336x128xbf16, #tpu.memory_space<vmem>> -> memref<336x128xbf16, #tpu.memory_space<vmem>>
    %c5 = arith.constant 5 : index
    %c0 = arith.constant 0 : index
    %2 = vector.load %1[%c5, %c0] : memref<336x128xbf16, #tpu.memory_space<vmem>>, vector<288x128xbf16>
    %c0_2 = arith.constant 0 : index
    %c0_3 = arith.constant 0 : index
    %c0_4 = arith.constant 0 : index
    %3 = vector.load %arg2[%c0_2, %c0_3, %c0_4] : memref<9x128x128xbf16, #tpu.memory_space<vmem>>, vector<1x128x128xbf16>
    %4 = vector.shape_cast %3 : vector<1x128x128xbf16> to vector<128x128xbf16>
    %cst = arith.constant dense<0.000000e+00> : vector<288x128xf32>
    %5 = tpu.matmul %2, %4, %cst {dimension_numbers = #tpu.dot_dimension_numbers<[1], [0], [0], [1], [0, 0, 1, 1], [], []>} : vector<288x128xbf16>, vector<128x128xbf16>, vector<288x128xf32> -> vector<288x128xf32>
    %c0_i32_5 = arith.constant 0 : i32
    %c0_i32_6 = arith.constant 0 : i32
    %c0_i32_7 = arith.constant 0 : i32
    %6 = tpu.memref_slice %arg1[%c0_i32_5, %c0_i32_6, %c0_i32_7] : memref<1x336x128xbf16, #tpu.memory_space<vmem>> -> memref<1x336x128xbf16, #tpu.memory_space<vmem>>
    %7 = tpu.memref_squeeze %6 : memref<1x336x128xbf16, #tpu.memory_space<vmem>> -> memref<336x128xbf16, #tpu.memory_space<vmem>>
    %c6 = arith.constant 6 : index
    %c0_8 = arith.constant 0 : index
    %8 = vector.load %7[%c6, %c0_8] : memref<336x128xbf16, #tpu.memory_space<vmem>>, vector<288x128xbf16>
    %c1 = arith.constant 1 : index
    %c0_9 = arith.constant 0 : index
    %c0_10 = arith.constant 0 : index
    %9 = vector.load %arg2[%c1, %c0_9, %c0_10] : memref<9x128x128xbf16, #tpu.memory_space<vmem>>, vector<1x128x128xbf16>
    %10 = vector.shape_cast %9 : vector<1x128x128xbf16> to vector<128x128xbf16>
    %cst_11 = arith.constant dense<0.000000e+00> : vector<288x128xf32>
    %11 = tpu.matmul %8, %10, %cst_11 {dimension_numbers = #tpu.dot_dimension_numbers<[1], [0], [0], [1], [0, 0, 1, 1], [], []>} : vector<288x128xbf16>, vector<128x128xbf16>, vector<288x128xf32> -> vector<288x128xf32>
    %12 = arith.addf %5, %11 : vector<288x128xf32>
    %c0_i32_12 = arith.constant 0 : i32
    %c0_i32_13 = arith.constant 0 : i32
    %c0_i32_14 = arith.constant 0 : i32
    %13 = tpu.memref_slice %arg1[%c0_i32_12, %c0_i32_13, %c0_i32_14] : memref<1x336x128xbf16, #tpu.memory_space<vmem>> -> memref<1x336x128xbf16, #tpu.memory_space<vmem>>
    %14 = tpu.memref_squeeze %13 : memref<1x336x128xbf16, #tpu.memory_space<vmem>> -> memref<336x128xbf16, #tpu.memory_space<vmem>>
    %c7 = arith.constant 7 : index
    %c0_15 = arith.constant 0 : index
    %15 = vector.load %14[%c7, %c0_15] : memref<336x128xbf16, #tpu.memory_space<vmem>>, vector<288x128xbf16>
    %c2 = arith.constant 2 : index
    %c0_16 = arith.constant 0 : index
    %c0_17 = arith.constant 0 : index
    %16 = vector.load %arg2[%c2, %c0_16, %c0_17] : memref<9x128x128xbf16, #tpu.memory_space<vmem>>, vector<1x128x128xbf16>
    %17 = vector.shape_cast %16 : vector<1x128x128xbf16> to vector<128x128xbf16>
    %cst_18 = arith.constant dense<0.000000e+00> : vector<288x128xf32>
    %18 = tpu.matmul %15, %17, %cst_18 {dimension_numbers = #tpu.dot_dimension_numbers<[1], [0], [0], [1], [0, 0, 1, 1], [], []>} : vector<288x128xbf16>, vector<128x128xbf16>, vector<288x128xf32> -> vector<288x128xf32>
    %19 = arith.addf %12, %18 : vector<288x128xf32>
    %c0_i32_19 = arith.constant 0 : i32
    %c0_i32_20 = arith.constant 0 : i32
    %c0_i32_21 = arith.constant 0 : i32
    %20 = tpu.memref_slice %arg1[%c0_i32_19, %c0_i32_20, %c0_i32_21] : memref<1x336x128xbf16, #tpu.memory_space<vmem>> -> memref<1x336x128xbf16, #tpu.memory_space<vmem>>
    %21 = tpu.memref_squeeze %20 : memref<1x336x128xbf16, #tpu.memory_space<vmem>> -> memref<336x128xbf16, #tpu.memory_space<vmem>>
    %c23 = arith.constant 23 : index
    %c0_22 = arith.constant 0 : index
    %22 = vector.load %21[%c23, %c0_22] : memref<336x128xbf16, #tpu.memory_space<vmem>>, vector<288x128xbf16>
    %c3 = arith.constant 3 : index
    %c0_23 = arith.constant 0 : index
    %c0_24 = arith.constant 0 : index
    %23 = vector.load %arg2[%c3, %c0_23, %c0_24] : memref<9x128x128xbf16, #tpu.memory_space<vmem>>, vector<1x128x128xbf16>
    %24 = vector.shape_cast %23 : vector<1x128x128xbf16> to vector<128x128xbf16>
    %cst_25 = arith.constant dense<0.000000e+00> : vector<288x128xf32>
    %25 = tpu.matmul %22, %24, %cst_25 {dimension_numbers = #tpu.dot_dimension_numbers<[1], [0], [0], [1], [0, 0, 1, 1], [], []>} : vector<288x128xbf16>, vector<128x128xbf16>, vector<288x128xf32> -> vector<288x128xf32>
    %26 = arith.addf %19, %25 : vector<288x128xf32>
    %c0_i32_26 = arith.constant 0 : i32
    %c0_i32_27 = arith.constant 0 : i32
    %c0_i32_28 = arith.constant 0 : i32
    %27 = tpu.memref_slice %arg1[%c0_i32_26, %c0_i32_27, %c0_i32_28] : memref<1x336x128xbf16, #tpu.memory_space<vmem>> -> memref<1x336x128xbf16, #tpu.memory_space<vmem>>
    %28 = tpu.memref_squeeze %27 : memref<1x336x128xbf16, #tpu.memory_space<vmem>> -> memref<336x128xbf16, #tpu.memory_space<vmem>>
    %c24 = arith.constant 24 : index
    %c0_29 = arith.constant 0 : index
    %29 = vector.load %28[%c24, %c0_29] : memref<336x128xbf16, #tpu.memory_space<vmem>>, vector<288x128xbf16>
    %c4 = arith.constant 4 : index
    %c0_30 = arith.constant 0 : index
    %c0_31 = arith.constant 0 : index
    %30 = vector.load %arg2[%c4, %c0_30, %c0_31] : memref<9x128x128xbf16, #tpu.memory_space<vmem>>, vector<1x128x128xbf16>
    %31 = vector.shape_cast %30 : vector<1x128x128xbf16> to vector<128x128xbf16>
    %cst_32 = arith.constant dense<0.000000e+00> : vector<288x128xf32>
    %32 = tpu.matmul %29, %31, %cst_32 {dimension_numbers = #tpu.dot_dimension_numbers<[1], [0], [0], [1], [0, 0, 1, 1], [], []>} : vector<288x128xbf16>, vector<128x128xbf16>, vector<288x128xf32> -> vector<288x128xf32>
    %33 = arith.addf %26, %32 : vector<288x128xf32>
    %c0_i32_33 = arith.constant 0 : i32
    %c0_i32_34 = arith.constant 0 : i32
    %c0_i32_35 = arith.constant 0 : i32
    %34 = tpu.memref_slice %arg1[%c0_i32_33, %c0_i32_34, %c0_i32_35] : memref<1x336x128xbf16, #tpu.memory_space<vmem>> -> memref<1x336x128xbf16, #tpu.memory_space<vmem>>
    %35 = tpu.memref_squeeze %34 : memref<1x336x128xbf16, #tpu.memory_space<vmem>> -> memref<336x128xbf16, #tpu.memory_space<vmem>>
    %c25 = arith.constant 25 : index
    %c0_36 = arith.constant 0 : index
    %36 = vector.load %35[%c25, %c0_36] : memref<336x128xbf16, #tpu.memory_space<vmem>>, vector<288x128xbf16>
    %c5_37 = arith.constant 5 : index
    %c0_38 = arith.constant 0 : index
    %c0_39 = arith.constant 0 : index
    %37 = vector.load %arg2[%c5_37, %c0_38, %c0_39] : memref<9x128x128xbf16, #tpu.memory_space<vmem>>, vector<1x128x128xbf16>
    %38 = vector.shape_cast %37 : vector<1x128x128xbf16> to vector<128x128xbf16>
    %cst_40 = arith.constant dense<0.000000e+00> : vector<288x128xf32>
    %39 = tpu.matmul %36, %38, %cst_40 {dimension_numbers = #tpu.dot_dimension_numbers<[1], [0], [0], [1], [0, 0, 1, 1], [], []>} : vector<288x128xbf16>, vector<128x128xbf16>, vector<288x128xf32> -> vector<288x128xf32>
    %40 = arith.addf %33, %39 : vector<288x128xf32>
    %c0_i32_41 = arith.constant 0 : i32
    %c0_i32_42 = arith.constant 0 : i32
    %c0_i32_43 = arith.constant 0 : i32
    %41 = tpu.memref_slice %arg1[%c0_i32_41, %c0_i32_42, %c0_i32_43] : memref<1x336x128xbf16, #tpu.memory_space<vmem>> -> memref<1x336x128xbf16, #tpu.memory_space<vmem>>
    %42 = tpu.memref_squeeze %41 : memref<1x336x128xbf16, #tpu.memory_space<vmem>> -> memref<336x128xbf16, #tpu.memory_space<vmem>>
    %c41 = arith.constant 41 : index
    %c0_44 = arith.constant 0 : index
    %43 = vector.load %42[%c41, %c0_44] : memref<336x128xbf16, #tpu.memory_space<vmem>>, vector<288x128xbf16>
    %c6_45 = arith.constant 6 : index
    %c0_46 = arith.constant 0 : index
    %c0_47 = arith.constant 0 : index
    %44 = vector.load %arg2[%c6_45, %c0_46, %c0_47] : memref<9x128x128xbf16, #tpu.memory_space<vmem>>, vector<1x128x128xbf16>
    %45 = vector.shape_cast %44 : vector<1x128x128xbf16> to vector<128x128xbf16>
    %cst_48 = arith.constant dense<0.000000e+00> : vector<288x128xf32>
    %46 = tpu.matmul %43, %45, %cst_48 {dimension_numbers = #tpu.dot_dimension_numbers<[1], [0], [0], [1], [0, 0, 1, 1], [], []>} : vector<288x128xbf16>, vector<128x128xbf16>, vector<288x128xf32> -> vector<288x128xf32>
    %47 = arith.addf %40, %46 : vector<288x128xf32>
    %c0_i32_49 = arith.constant 0 : i32
    %c0_i32_50 = arith.constant 0 : i32
    %c0_i32_51 = arith.constant 0 : i32
    %48 = tpu.memref_slice %arg1[%c0_i32_49, %c0_i32_50, %c0_i32_51] : memref<1x336x128xbf16, #tpu.memory_space<vmem>> -> memref<1x336x128xbf16, #tpu.memory_space<vmem>>
    %49 = tpu.memref_squeeze %48 : memref<1x336x128xbf16, #tpu.memory_space<vmem>> -> memref<336x128xbf16, #tpu.memory_space<vmem>>
    %c42 = arith.constant 42 : index
    %c0_52 = arith.constant 0 : index
    %50 = vector.load %49[%c42, %c0_52] : memref<336x128xbf16, #tpu.memory_space<vmem>>, vector<288x128xbf16>
    %c7_53 = arith.constant 7 : index
    %c0_54 = arith.constant 0 : index
    %c0_55 = arith.constant 0 : index
    %51 = vector.load %arg2[%c7_53, %c0_54, %c0_55] : memref<9x128x128xbf16, #tpu.memory_space<vmem>>, vector<1x128x128xbf16>
    %52 = vector.shape_cast %51 : vector<1x128x128xbf16> to vector<128x128xbf16>
    %cst_56 = arith.constant dense<0.000000e+00> : vector<288x128xf32>
    %53 = tpu.matmul %50, %52, %cst_56 {dimension_numbers = #tpu.dot_dimension_numbers<[1], [0], [0], [1], [0, 0, 1, 1], [], []>} : vector<288x128xbf16>, vector<128x128xbf16>, vector<288x128xf32> -> vector<288x128xf32>
    %54 = arith.addf %47, %53 : vector<288x128xf32>
    %c0_i32_57 = arith.constant 0 : i32
    %c0_i32_58 = arith.constant 0 : i32
    %c0_i32_59 = arith.constant 0 : i32
    %55 = tpu.memref_slice %arg1[%c0_i32_57, %c0_i32_58, %c0_i32_59] : memref<1x336x128xbf16, #tpu.memory_space<vmem>> -> memref<1x336x128xbf16, #tpu.memory_space<vmem>>
    %56 = tpu.memref_squeeze %55 : memref<1x336x128xbf16, #tpu.memory_space<vmem>> -> memref<336x128xbf16, #tpu.memory_space<vmem>>
    %c43 = arith.constant 43 : index
    %c0_60 = arith.constant 0 : index
    %57 = vector.load %56[%c43, %c0_60] : memref<336x128xbf16, #tpu.memory_space<vmem>>, vector<288x128xbf16>
    %c8 = arith.constant 8 : index
    %c0_61 = arith.constant 0 : index
    %c0_62 = arith.constant 0 : index
    %58 = vector.load %arg2[%c8, %c0_61, %c0_62] : memref<9x128x128xbf16, #tpu.memory_space<vmem>>, vector<1x128x128xbf16>
    %59 = vector.shape_cast %58 : vector<1x128x128xbf16> to vector<128x128xbf16>
    %cst_63 = arith.constant dense<0.000000e+00> : vector<288x128xf32>
    %60 = tpu.matmul %57, %59, %cst_63 {dimension_numbers = #tpu.dot_dimension_numbers<[1], [0], [0], [1], [0, 0, 1, 1], [], []>} : vector<288x128xbf16>, vector<128x128xbf16>, vector<288x128xf32> -> vector<288x128xf32>
    %61 = arith.addf %54, %60 : vector<288x128xf32>
    %c0_64 = arith.constant 0 : index
    %c0_65 = arith.constant 0 : index
    %62 = vector.load %arg4[%c0_64, %c0_65] : memref<1x128xf32, #tpu.memory_space<vmem>>, vector<1x128xf32>
    %63 = vector.broadcast %62 : vector<1x128xf32> to vector<288x128xf32>
    %64 = arith.mulf %61, %63 : vector<288x128xf32>
    %c0_66 = arith.constant 0 : index
    %c0_67 = arith.constant 0 : index
    %65 = vector.load %arg5[%c0_66, %c0_67] : memref<1x128xf32, #tpu.memory_space<vmem>>, vector<1x128xf32>
    %66 = vector.broadcast %65 : vector<1x128xf32> to vector<288x128xf32>
    %67 = arith.addf %64, %66 : vector<288x128xf32>
    %cst_68 = arith.constant 0.000000e+00 : f32
    %68 = vector.broadcast %cst_68 : f32 to vector<288x128xf32>
    %69 = arith.maximumf %67, %68 : vector<288x128xf32>
    %c0_69 = arith.constant 0 : index
    %c0_70 = arith.constant 0 : index
    %70 = vector.load %arg8[%c0_69, %c0_70] : memref<288x1xf32, #tpu.memory_space<vmem>>, vector<288x1xf32>
    %71 = vector.broadcast %70 : vector<288x1xf32> to vector<288x128xf32>
    %72 = arith.mulf %69, %71 : vector<288x128xf32>
    %cst_71 = arith.constant 0.000000e+00 : bf16
    %73 = vector.broadcast %cst_71 : bf16 to vector<24x128xbf16>
    %c0_72 = arith.constant 0 : index
    %c0_73 = arith.constant 0 : index
    %74 = vector.load %arg10[%c0_72, %c0_73] : memref<336x128xbf16, #tpu.memory_space<vmem>>, vector<24x128xbf16>
    tpu.vector_store %arg10[%c0_72, %c0_73], %73 {strides = array<i32>} : memref<336x128xbf16, #tpu.memory_space<vmem>>, vector<24x128xbf16>,
    %cst_74 = arith.constant 0.000000e+00 : bf16
    %75 = vector.broadcast %cst_74 : bf16 to vector<24x128xbf16>
    %c312 = arith.constant 312 : index
    %c0_75 = arith.constant 0 : index
    %76 = vector.load %arg10[%c312, %c0_75] : memref<336x128xbf16, #tpu.memory_space<vmem>>, vector<24x128xbf16>
    tpu.vector_store %arg10[%c312, %c0_75], %75 {strides = array<i32>} : memref<336x128xbf16, #tpu.memory_space<vmem>>, vector<24x128xbf16>,
    %77 = arith.truncf %72 : vector<288x128xf32> to vector<288x128xbf16>
    %c24_76 = arith.constant 24 : index
    %c0_77 = arith.constant 0 : index
    %78 = vector.load %arg10[%c24_76, %c0_77] : memref<336x128xbf16, #tpu.memory_space<vmem>>, vector<288x128xbf16>
    tpu.vector_store %arg10[%c24_76, %c0_77], %77 {strides = array<i32>} : memref<336x128xbf16, #tpu.memory_space<vmem>>, vector<288x128xbf16>,
    %c5_78 = arith.constant 5 : index
    %c0_79 = arith.constant 0 : index
    %79 = vector.load %arg10[%c5_78, %c0_79] : memref<336x128xbf16, #tpu.memory_space<vmem>>, vector<288x128xbf16>
    %c0_80 = arith.constant 0 : index
    %c0_81 = arith.constant 0 : index
    %c0_82 = arith.constant 0 : index
    %80 = vector.load %arg3[%c0_80, %c0_81, %c0_82] : memref<9x128x128xbf16, #tpu.memory_space<vmem>>, vector<1x128x128xbf16>
    %81 = vector.shape_cast %80 : vector<1x128x128xbf16> to vector<128x128xbf16>
    %cst_83 = arith.constant dense<0.000000e+00> : vector<288x128xf32>
    %82 = tpu.matmul %79, %81, %cst_83 {dimension_numbers = #tpu.dot_dimension_numbers<[1], [0], [0], [1], [0, 0, 1, 1], [], []>} : vector<288x128xbf16>, vector<128x128xbf16>, vector<288x128xf32> -> vector<288x128xf32>
    %c6_84 = arith.constant 6 : index
    %c0_85 = arith.constant 0 : index
    %83 = vector.load %arg10[%c6_84, %c0_85] : memref<336x128xbf16, #tpu.memory_space<vmem>>, vector<288x128xbf16>
    %c1_86 = arith.constant 1 : index
    %c0_87 = arith.constant 0 : index
    %c0_88 = arith.constant 0 : index
    %84 = vector.load %arg3[%c1_86, %c0_87, %c0_88] : memref<9x128x128xbf16, #tpu.memory_space<vmem>>, vector<1x128x128xbf16>
    %85 = vector.shape_cast %84 : vector<1x128x128xbf16> to vector<128x128xbf16>
    %cst_89 = arith.constant dense<0.000000e+00> : vector<288x128xf32>
    %86 = tpu.matmul %83, %85, %cst_89 {dimension_numbers = #tpu.dot_dimension_numbers<[1], [0], [0], [1], [0, 0, 1, 1], [], []>} : vector<288x128xbf16>, vector<128x128xbf16>, vector<288x128xf32> -> vector<288x128xf32>
    %87 = arith.addf %82, %86 : vector<288x128xf32>
    %c7_90 = arith.constant 7 : index
    %c0_91 = arith.constant 0 : index
    %88 = vector.load %arg10[%c7_90, %c0_91] : memref<336x128xbf16, #tpu.memory_space<vmem>>, vector<288x128xbf16>
    %c2_92 = arith.constant 2 : index
    %c0_93 = arith.constant 0 : index
    %c0_94 = arith.constant 0 : index
    %89 = vector.load %arg3[%c2_92, %c0_93, %c0_94] : memref<9x128x128xbf16, #tpu.memory_space<vmem>>, vector<1x128x128xbf16>
    %90 = vector.shape_cast %89 : vector<1x128x128xbf16> to vector<128x128xbf16>
    %cst_95 = arith.constant dense<0.000000e+00> : vector<288x128xf32>
    %91 = tpu.matmul %88, %90, %cst_95 {dimension_numbers = #tpu.dot_dimension_numbers<[1], [0], [0], [1], [0, 0, 1, 1], [], []>} : vector<288x128xbf16>, vector<128x128xbf16>, vector<288x128xf32> -> vector<288x128xf32>
    %92 = arith.addf %87, %91 : vector<288x128xf32>
    %c23_96 = arith.constant 23 : index
    %c0_97 = arith.constant 0 : index
    %93 = vector.load %arg10[%c23_96, %c0_97] : memref<336x128xbf16, #tpu.memory_space<vmem>>, vector<288x128xbf16>
    %c3_98 = arith.constant 3 : index
    %c0_99 = arith.constant 0 : index
    %c0_100 = arith.constant 0 : index
    %94 = vector.load %arg3[%c3_98, %c0_99, %c0_100] : memref<9x128x128xbf16, #tpu.memory_space<vmem>>, vector<1x128x128xbf16>
    %95 = vector.shape_cast %94 : vector<1x128x128xbf16> to vector<128x128xbf16>
    %cst_101 = arith.constant dense<0.000000e+00> : vector<288x128xf32>
    %96 = tpu.matmul %93, %95, %cst_101 {dimension_numbers = #tpu.dot_dimension_numbers<[1], [0], [0], [1], [0, 0, 1, 1], [], []>} : vector<288x128xbf16>, vector<128x128xbf16>, vector<288x128xf32> -> vector<288x128xf32>
    %97 = arith.addf %92, %96 : vector<288x128xf32>
    %c24_102 = arith.constant 24 : index
    %c0_103 = arith.constant 0 : index
    %98 = vector.load %arg10[%c24_102, %c0_103] : memref<336x128xbf16, #tpu.memory_space<vmem>>, vector<288x128xbf16>
    %c4_104 = arith.constant 4 : index
    %c0_105 = arith.constant 0 : index
    %c0_106 = arith.constant 0 : index
    %99 = vector.load %arg3[%c4_104, %c0_105, %c0_106] : memref<9x128x128xbf16, #tpu.memory_space<vmem>>, vector<1x128x128xbf16>
    %100 = vector.shape_cast %99 : vector<1x128x128xbf16> to vector<128x128xbf16>
    %cst_107 = arith.constant dense<0.000000e+00> : vector<288x128xf32>
    %101 = tpu.matmul %98, %100, %cst_107 {dimension_numbers = #tpu.dot_dimension_numbers<[1], [0], [0], [1], [0, 0, 1, 1], [], []>} : vector<288x128xbf16>, vector<128x128xbf16>, vector<288x128xf32> -> vector<288x128xf32>
    %102 = arith.addf %97, %101 : vector<288x128xf32>
    %c25_108 = arith.constant 25 : index
    %c0_109 = arith.constant 0 : index
    %103 = vector.load %arg10[%c25_108, %c0_109] : memref<336x128xbf16, #tpu.memory_space<vmem>>, vector<288x128xbf16>
    %c5_110 = arith.constant 5 : index
    %c0_111 = arith.constant 0 : index
    %c0_112 = arith.constant 0 : index
    %104 = vector.load %arg3[%c5_110, %c0_111, %c0_112] : memref<9x128x128xbf16, #tpu.memory_space<vmem>>, vector<1x128x128xbf16>
    %105 = vector.shape_cast %104 : vector<1x128x128xbf16> to vector<128x128xbf16>
    %cst_113 = arith.constant dense<0.000000e+00> : vector<288x128xf32>
    %106 = tpu.matmul %103, %105, %cst_113 {dimension_numbers = #tpu.dot_dimension_numbers<[1], [0], [0], [1], [0, 0, 1, 1], [], []>} : vector<288x128xbf16>, vector<128x128xbf16>, vector<288x128xf32> -> vector<288x128xf32>
    %107 = arith.addf %102, %106 : vector<288x128xf32>
    %c41_114 = arith.constant 41 : index
    %c0_115 = arith.constant 0 : index
    %108 = vector.load %arg10[%c41_114, %c0_115] : memref<336x128xbf16, #tpu.memory_space<vmem>>, vector<288x128xbf16>
    %c6_116 = arith.constant 6 : index
    %c0_117 = arith.constant 0 : index
    %c0_118 = arith.constant 0 : index
    %109 = vector.load %arg3[%c6_116, %c0_117, %c0_118] : memref<9x128x128xbf16, #tpu.memory_space<vmem>>, vector<1x128x128xbf16>
    %110 = vector.shape_cast %109 : vector<1x128x128xbf16> to vector<128x128xbf16>
    %cst_119 = arith.constant dense<0.000000e+00> : vector<288x128xf32>
    %111 = tpu.matmul %108, %110, %cst_119 {dimension_numbers = #tpu.dot_dimension_numbers<[1], [0], [0], [1], [0, 0, 1, 1], [], []>} : vector<288x128xbf16>, vector<128x128xbf16>, vector<288x128xf32> -> vector<288x128xf32>
    %112 = arith.addf %107, %111 : vector<288x128xf32>
    %c42_120 = arith.constant 42 : index
    %c0_121 = arith.constant 0 : index
    %113 = vector.load %arg10[%c42_120, %c0_121] : memref<336x128xbf16, #tpu.memory_space<vmem>>, vector<288x128xbf16>
    %c7_122 = arith.constant 7 : index
    %c0_123 = arith.constant 0 : index
    %c0_124 = arith.constant 0 : index
    %114 = vector.load %arg3[%c7_122, %c0_123, %c0_124] : memref<9x128x128xbf16, #tpu.memory_space<vmem>>, vector<1x128x128xbf16>
    %115 = vector.shape_cast %114 : vector<1x128x128xbf16> to vector<128x128xbf16>
    %cst_125 = arith.constant dense<0.000000e+00> : vector<288x128xf32>
    %116 = tpu.matmul %113, %115, %cst_125 {dimension_numbers = #tpu.dot_dimension_numbers<[1], [0], [0], [1], [0, 0, 1, 1], [], []>} : vector<288x128xbf16>, vector<128x128xbf16>, vector<288x128xf32> -> vector<288x128xf32>
    %117 = arith.addf %112, %116 : vector<288x128xf32>
    %c43_126 = arith.constant 43 : index
    %c0_127 = arith.constant 0 : index
    %118 = vector.load %arg10[%c43_126, %c0_127] : memref<336x128xbf16, #tpu.memory_space<vmem>>, vector<288x128xbf16>
    %c8_128 = arith.constant 8 : index
    %c0_129 = arith.constant 0 : index
    %c0_130 = arith.constant 0 : index
    %119 = vector.load %arg3[%c8_128, %c0_129, %c0_130] : memref<9x128x128xbf16, #tpu.memory_space<vmem>>, vector<1x128x128xbf16>
    %120 = vector.shape_cast %119 : vector<1x128x128xbf16> to vector<128x128xbf16>
    %cst_131 = arith.constant dense<0.000000e+00> : vector<288x128xf32>
    %121 = tpu.matmul %118, %120, %cst_131 {dimension_numbers = #tpu.dot_dimension_numbers<[1], [0], [0], [1], [0, 0, 1, 1], [], []>} : vector<288x128xbf16>, vector<128x128xbf16>, vector<288x128xf32> -> vector<288x128xf32>
    %122 = arith.addf %117, %121 : vector<288x128xf32>
    %c0_i32_132 = arith.constant 0 : i32
    %c0_i32_133 = arith.constant 0 : i32
    %c0_i32_134 = arith.constant 0 : i32
    %123 = tpu.memref_slice %arg1[%c0_i32_132, %c0_i32_133, %c0_i32_134] : memref<1x336x128xbf16, #tpu.memory_space<vmem>> -> memref<1x336x128xbf16, #tpu.memory_space<vmem>>
    %124 = tpu.memref_squeeze %123 : memref<1x336x128xbf16, #tpu.memory_space<vmem>> -> memref<336x128xbf16, #tpu.memory_space<vmem>>
    %c24_135 = arith.constant 24 : index
    %c0_136 = arith.constant 0 : index
    %125 = vector.load %124[%c24_135, %c0_136] : memref<336x128xbf16, #tpu.memory_space<vmem>>, vector<288x128xbf16>
    %126 = arith.extf %125 : vector<288x128xbf16> to vector<288x128xf32>
    %c0_137 = arith.constant 0 : index
    %c0_138 = arith.constant 0 : index
    %127 = vector.load %arg6[%c0_137, %c0_138] : memref<1x128xf32, #tpu.memory_space<vmem>>, vector<1x128xf32>
    %128 = vector.broadcast %127 : vector<1x128xf32> to vector<288x128xf32>
    %129 = arith.mulf %122, %128 : vector<288x128xf32>
    %c0_139 = arith.constant 0 : index
    %c0_140 = arith.constant 0 : index
    %130 = vector.load %arg7[%c0_139, %c0_140] : memref<1x128xf32, #tpu.memory_space<vmem>>, vector<1x128xf32>
    %131 = vector.broadcast %130 : vector<1x128xf32> to vector<288x128xf32>
    %132 = arith.addf %129, %131 : vector<288x128xf32>
    %133 = arith.addf %132, %126 : vector<288x128xf32>
    %cst_141 = arith.constant 0.000000e+00 : f32
    %134 = vector.broadcast %cst_141 : f32 to vector<288x128xf32>
    %135 = arith.maximumf %133, %134 : vector<288x128xf32>
    %136 = arith.truncf %135 : vector<288x128xf32> to vector<288x128xbf16>
    %c0_142 = arith.constant 0 : index
    %c0_143 = arith.constant 0 : index
    %c0_144 = arith.constant 0 : index
    %137 = vector.load %arg9[%c0_142, %c0_143, %c0_144] : memref<1x288x128xbf16, #tpu.memory_space<vmem>>, vector<1x288x128xbf16>
    %138 = vector.shape_cast %137 : vector<1x288x128xbf16> to vector<288x128xbf16>
    %139 = vector.shape_cast %136 : vector<288x128xbf16> to vector<1x288x128xbf16>
    tpu.vector_store %arg9[%c0_142, %c0_143, %c0_144], %139 {strides = array<i32>} : memref<1x288x128xbf16, #tpu.memory_space<vmem>>, vector<1x288x128xbf16>,
    return
  }
  func.func @transform_0(%arg0: i32) -> (i32, i32, i32) {
    %c0_i32 = arith.constant 0 : i32
    %c0_i32_0 = arith.constant 0 : i32
    %c0_i32_1 = arith.constant 0 : i32
    return %arg0, %c0_i32, %c0_i32_0 : i32, i32, i32
  }
  func.func @transform_1(%arg0: i32) -> (i32, i32, i32) {
    %c0_i32 = arith.constant 0 : i32
    %c0_i32_0 = arith.constant 0 : i32
    %c0_i32_1 = arith.constant 0 : i32
    %c0_i32_2 = arith.constant 0 : i32
    return %c0_i32, %c0_i32_0, %c0_i32_1 : i32, i32, i32
  }
  func.func @transform_2(%arg0: i32) -> (i32, i32, i32) {
    %c0_i32 = arith.constant 0 : i32
    %c0_i32_0 = arith.constant 0 : i32
    %c0_i32_1 = arith.constant 0 : i32
    %c0_i32_2 = arith.constant 0 : i32
    return %c0_i32, %c0_i32_0, %c0_i32_1 : i32, i32, i32
  }
  func.func @transform_3(%arg0: i32) -> (i32, i32) {
    %c0_i32 = arith.constant 0 : i32
    %c0_i32_0 = arith.constant 0 : i32
    %c0_i32_1 = arith.constant 0 : i32
    return %c0_i32, %c0_i32_0 : i32, i32
  }
  func.func @transform_4(%arg0: i32) -> (i32, i32) {
    %c0_i32 = arith.constant 0 : i32
    %c0_i32_0 = arith.constant 0 : i32
    %c0_i32_1 = arith.constant 0 : i32
    return %c0_i32, %c0_i32_0 : i32, i32
  }
  func.func @transform_5(%arg0: i32) -> (i32, i32) {
    %c0_i32 = arith.constant 0 : i32
    %c0_i32_0 = arith.constant 0 : i32
    %c0_i32_1 = arith.constant 0 : i32
    return %c0_i32, %c0_i32_0 : i32, i32
  }
  func.func @transform_6(%arg0: i32) -> (i32, i32) {
    %c0_i32 = arith.constant 0 : i32
    %c0_i32_0 = arith.constant 0 : i32
    %c0_i32_1 = arith.constant 0 : i32
    return %c0_i32, %c0_i32_0 : i32, i32
  }
  func.func @transform_7(%arg0: i32) -> (i32, i32) {
    %c0_i32 = arith.constant 0 : i32
    %c0_i32_0 = arith.constant 0 : i32
    %c0_i32_1 = arith.constant 0 : i32
    return %c0_i32, %c0_i32_0 : i32, i32
  }
  func.func @transform_8(%arg0: i32) -> (i32, i32, i32) {
    %c0_i32 = arith.constant 0 : i32
    %c0_i32_0 = arith.constant 0 : i32
    %c0_i32_1 = arith.constant 0 : i32
    return %arg0, %c0_i32, %c0_i32_0 : i32, i32, i32
  }
}

</mosaic_0001>

<llo_original>
// kernel: tpu_custom_call.1
$region0: #{tpu_custom_call.1}
  #allocation0 [shape = 'u32[]', space=smem, size = 0x4, offset = 0x4, fixed_abs, tag = 'smem constant byte address 0x4 - core index']
  #allocation1 [shape = 'u32[144,128]{1,0:T(1,128)}', space=vmem, size = 0x12000, scoped, tag = 'internal scratch']
  #allocation2 [shape = 'bf16[336,128]{1,0:T(8,128)(2,1)}', space=vmem, size = 0x15000, scoped, tag = 'scratch operand']
  %s0 = inlined_call_operand.hbm [shape: bf16[2,336,128], index: 0, kind: input, shape index: {}]
  %s1 = inlined_call_operand.hbm [shape: bf16[9,128,128], index: 1, kind: input, shape index: {}]
  %s2 = inlined_call_operand.hbm [shape: bf16[9,128,128], index: 2, kind: input, shape index: {}]
  %s3 = inlined_call_operand.vmem [shape: f32[1,128], index: 3, kind: input, shape index: {}]
  %s4 = inlined_call_operand.vmem [shape: f32[1,128], index: 4, kind: input, shape index: {}]
  %s5 = inlined_call_operand.vmem [shape: f32[1,128], index: 5, kind: input, shape index: {}]
  %s6 = inlined_call_operand.vmem [shape: f32[1,128], index: 6, kind: input, shape index: {}]
  %s7 = inlined_call_operand.vmem [shape: f32[288,1], index: 7, kind: input, shape index: {}]
  %s8 = inlined_call_operand.hbm [shape: bf16[2,288,128], index: 8, kind: output, shape index: {}]
  %s9 = sld [smem:[#allocation0]]
  $region77: #{tpu_custom_call.1} parent=0
    _
  %s11 = ssub.s32 1, %s9
  %s12 = scalar_select 0, %s11, %s9
  $region1: #{tpu_custom_call.1} parent=0
    #allocation3 [shape = 'u8[172032]{0}', space=vmem, size = 0x2a000, scoped, tag = 'input window, operand 0']
    #allocation4 [shape = 's32[2]{0}', space=sflag, size = 0x8, scoped, tag = 'scoped memory for tpu_custom_call.1']
    #allocation5 [shape = 's32[2]{0}', space=sflag, size = 0x8, scoped, tag = 'scoped memory for tpu_custom_call.1']
    #allocation6 [shape = 'u8[294912]{0}', space=vmem, size = 0x48000, scoped, tag = 'input window, operand 1, single buffered']
    #allocation7 [shape = 's32[1]{0}', space=sflag, size = 0x4, scoped, tag = 'scoped memory for tpu_custom_call.1']
    #allocation8 [shape = 'u8[294912]{0}', space=vmem, size = 0x48000, scoped, tag = 'input window, operand 2, single buffered']
    #allocation9 [shape = 'u8[147456]{0}', space=vmem, size = 0x24000, scoped, tag = 'output window, operand 0']
    %13 = vsyncpa [#allocation4], 0
    %s14 = scalar_lea.sflag [#allocation4], 1
    %15 = vsyncpa %s14, 0
    %16 = vsyncpa [#allocation7], 0
    %17 = vsyncpa [#allocation5], 0
    %s18 = scalar_lea.sflag [#allocation5], 1
    %19 = vsyncpa %s18, 0
    loop: start=0, step=1, limit=4
    $region2: #{tpu_custom_call.1} parent=1 // loop_pre_header
      _
    $region3: #{tpu_custom_call.1} parent=1 // loop_header
      %s21 = sphi 0, %s25
      %p22 = scmp.ge.s32.totalorder %s21, 4
      %s31 = sphi 0, %s33
      %s34 = sphi 0, %s31
      %s35 = sphi 0, %s34
      %s51 = sphi 0, %s35
      %s55 = sphi 0, %s55
      %s57 = sphi 0, %s55
      %s58 = sphi 0, %s57
      %s72 = sphi 0, %s58
      %s76 = sphi 0, %s76
      %s78 = sphi 0, %s76
      %s79 = sphi 0, %s78
      %s93 = sphi 0, %s79
      %s97 = sphi 0, %s97
      %s99 = sphi 0, %s97
      %s100 = sphi 0, %s99
      %s114 = sphi 0, %s100
      %s118 = sphi 0, %s118
      %s120 = sphi 0, %s118
      %s121 = sphi 0, %s120
      %s135 = sphi 0, %s121
      %s139 = sphi 0, %s139
      %s141 = sphi 0, %s139
      %s142 = sphi 0, %s141
      %s156 = sphi 0, %s142
      %s160 = sphi 0, %s160
      %s162 = sphi 0, %s160
      %s163 = sphi 0, %s162
      %s177 = sphi 0, %s163
      %s181 = sphi 0, %s181
      %s183 = sphi 0, %s181
      %s184 = sphi 0, %s183
      %s198 = sphi 0, %s184
      %s204 = sphi 0, %s206
      %s207 = sphi 0, %s204
      %s208 = sphi 0, %s207
      %s224 = sphi 0, %s208
    $region4: #{tpu_custom_call.1} parent=1 // loop_header_branch
      %24 = sbr.rel (%p22) target = $region8
    $region5: #{tpu_custom_call.1} parent=1 // loop_body
      %s26 = ssub.s32 %s21, 1
      %s27 = ssub.s32 %s21, 2
      %s28 = sadd.s32 %s21, 1
      %s29 = ssub.s32 %s21, %s28
      %p30 = scmp.eq.s32.totalorder %s29, 0
      %s32 = sadd.s32 %s31, 1
      %s33 = scalar_select %p30, %s31, %s32
      %p36 = pneg %p30
      %p37 = scmp.eq.s32.totalorder %s21, 1
      %p38 = por %p36, %p37
      %p39 = scmp.ne.s32.totalorder %s31, %s34
      %p40 = scmp.eq.s32.totalorder %s21, 0
      %p41 = por %p39, %p40
      %p42 = scmp.ne.s32.totalorder %s31, %s34
      %p43 = scmp.eq.s32.totalorder %s26, 1
      %p44 = por %p42, %p43
      %p45 = scmp.ne.s32.totalorder %s34, %s35
      %p46 = scmp.eq.s32.totalorder %s26, 0
      %p47 = por %p45, %p46
      %p48 = scmp.ne.s32.totalorder %s34, %s35
      %p49 = scmp.eq.s32.totalorder %s27, 1
      %p50 = por %p48, %p49
      %p52 = scmp.ne.s32.totalorder %s35, %s51
      %p53 = scmp.eq.s32.totalorder %s27, 0
      %p54 = por %p52, %p53
      %s56 = sadd.s32 %s55, 1
      %p59 = scmp.eq.s32.totalorder %s21, 1
      %p60 = scmp.ne.s32.totalorder %s55, %s57
      %p61 = scmp.eq.s32.totalorder %s21, 0
      %p62 = por %p60, %p61
      %p63 = scmp.ne.s32.totalorder %s55, %s57
      %p64 = scmp.eq.s32.totalorder %s26, 1
      %p65 = por %p63, %p64
      %p66 = scmp.ne.s32.totalorder %s57, %s58
      %p67 = scmp.eq.s32.totalorder %s26, 0
      %p68 = por %p66, %p67
      %p69 = scmp.ne.s32.totalorder %s57, %s58
      %p70 = scmp.eq.s32.totalorder %s27, 1
      %p71 = por %p69, %p70
      %p73 = scmp.ne.s32.totalorder %s58, %s72
      %p74 = scmp.eq.s32.totalorder %s27, 0
      %p75 = por %p73, %p74
      %s77 = sadd.s32 %s76, 1
      %p80 = scmp.eq.s32.totalorder %s21, 1
      %p81 = scmp.ne.s32.totalorder %s76, %s78
      %p82 = scmp.eq.s32.totalorder %s21, 0
      %p83 = por %p81, %p82
      %p84 = scmp.ne.s32.totalorder %s76, %s78
      %p85 = scmp.eq.s32.totalorder %s26, 1
      %p86 = por %p84, %p85
      %p87 = scmp.ne.s32.totalorder %s78, %s79
      %p88 = scmp.eq.s32.totalorder %s26, 0
      %p89 = por %p87, %p88
      %p90 = scmp.ne.s32.totalorder %s78, %s79
      %p91 = scmp.eq.s32.totalorder %s27, 1
      %p92 = por %p90, %p91
      %p94 = scmp.ne.s32.totalorder %s79, %s93
      %p95 = scmp.eq.s32.totalorder %s27, 0
      %p96 = por %p94, %p95
      %s98 = sadd.s32 %s97, 1
      %p101 = scmp.eq.s32.totalorder %s21, 1
      %p102 = scmp.ne.s32.totalorder %s97, %s99
      %p103 = scmp.eq.s32.totalorder %s21, 0
      %p104 = por %p102, %p103
      %p105 = scmp.ne.s32.totalorder %s97, %s99
      %p106 = scmp.eq.s32.totalorder %s26, 1
      %p107 = por %p105, %p106
      %p108 = scmp.ne.s32.totalorder %s99, %s100
      %p109 = scmp.eq.s32.totalorder %s26, 0
      %p110 = por %p108, %p109
      %p111 = scmp.ne.s32.totalorder %s99, %s100
      %p112 = scmp.eq.s32.totalorder %s27, 1
      %p113 = por %p111, %p112
      %p115 = scmp.ne.s32.totalorder %s100, %s114
      %p116 = scmp.eq.s32.totalorder %s27, 0
      %p117 = por %p115, %p116
      %s119 = sadd.s32 %s118, 1
      %p122 = scmp.eq.s32.totalorder %s21, 1
      %p123 = scmp.ne.s32.totalorder %s118, %s120
      %p124 = scmp.eq.s32.totalorder %s21, 0
      %p125 = por %p123, %p124
      %p126 = scmp.ne.s32.totalorder %s118, %s120
      %p127 = scmp.eq.s32.totalorder %s26, 1
      %p128 = por %p126, %p127
      %p129 = scmp.ne.s32.totalorder %s120, %s121
      %p130 = scmp.eq.s32.totalorder %s26, 0
      %p131 = por %p129, %p130
      %p132 = scmp.ne.s32.totalorder %s120, %s121
      %p133 = scmp.eq.s32.totalorder %s27, 1
      %p134 = por %p132, %p133
      %p136 = scmp.ne.s32.totalorder %s121, %s135
      %p137 = scmp.eq.s32.totalorder %s27, 0
      %p138 = por %p136, %p137
      %s140 = sadd.s32 %s139, 1
      %p143 = scmp.eq.s32.totalorder %s21, 1
      %p144 = scmp.ne.s32.totalorder %s139, %s141
      %p145 = scmp.eq.s32.totalorder %s21, 0
      %p146 = por %p144, %p145
      %p147 = scmp.ne.s32.totalorder %s139, %s141
      %p148 = scmp.eq.s32.totalorder %s26, 1
      %p149 = por %p147, %p148
      %p150 = scmp.ne.s32.totalorder %s141, %s142
      %p151 = scmp.eq.s32.totalorder %s26, 0
      %p152 = por %p150, %p151
      %p153 = scmp.ne.s32.totalorder %s141, %s142
      %p154 = scmp.eq.s32.totalorder %s27, 1
      %p155 = por %p153, %p154
      %p157 = scmp.ne.s32.totalorder %s142, %s156
      %p158 = scmp.eq.s32.totalorder %s27, 0
      %p159 = por %p157, %p158
      %s161 = sadd.s32 %s160, 1
      %p164 = scmp.eq.s32.totalorder %s21, 1
      %p165 = scmp.ne.s32.totalorder %s160, %s162
      %p166 = scmp.eq.s32.totalorder %s21, 0
      %p167 = por %p165, %p166
      %p168 = scmp.ne.s32.totalorder %s160, %s162
      %p169 = scmp.eq.s32.totalorder %s26, 1
      %p170 = por %p168, %p169
      %p171 = scmp.ne.s32.totalorder %s162, %s163
      %p172 = scmp.eq.s32.totalorder %s26, 0
      %p173 = por %p171, %p172
      %p174 = scmp.ne.s32.totalorder %s162, %s163
      %p175 = scmp.eq.s32.totalorder %s27, 1
      %p176 = por %p174, %p175
      %p178 = scmp.ne.s32.totalorder %s163, %s177
      %p179 = scmp.eq.s32.totalorder %s27, 0
      %p180 = por %p178, %p179
      %s182 = sadd.s32 %s181, 1
      %p185 = scmp.eq.s32.totalorder %s21, 1
      %p186 = scmp.ne.s32.totalorder %s181, %s183
      %p187 = scmp.eq.s32.totalorder %s21, 0
      %p188 = por %p186, %p187
      %p189 = scmp.ne.s32.totalorder %s181, %s183
      %p190 = scmp.eq.s32.totalorder %s26, 1
      %p191 = por %p189, %p190
      %p192 = scmp.ne.s32.totalorder %s183, %s184
      %p193 = scmp.eq.s32.totalorder %s26, 0
      %p194 = por %p192, %p193
      %p195 = scmp.ne.s32.totalorder %s183, %s184
      %p196 = scmp.eq.s32.totalorder %s27, 1
      %p197 = por %p195, %p196
      %p199 = scmp.ne.s32.totalorder %s184, %s198
      %p200 = scmp.eq.s32.totalorder %s27, 0
      %p201 = por %p199, %p200
      %s202 = ssub.s32 %s21, %s28
      %p203 = scmp.eq.s32.totalorder %s202, 0
      %s205 = sadd.s32 %s204, 1
      %s206 = scalar_select %p203, %s204, %s205
      %p209 = pneg %p203
      %p210 = scmp.eq.s32.totalorder %s21, 1
      %p211 = por %p209, %p210
      %p212 = scmp.ne.s32.totalorder %s204, %s207
      %p213 = scmp.eq.s32.totalorder %s21, 0
      %p214 = por %p212, %p213
      %p215 = scmp.ne.s32.totalorder %s204, %s207
      %p216 = scmp.eq.s32.totalorder %s26, 1
      %p217 = por %p215, %p216
      %p218 = scmp.ne.s32.totalorder %s207, %s208
      %p219 = scmp.eq.s32.totalorder %s26, 0
      %p220 = por %p218, %p219
      %p221 = scmp.ne.s32.totalorder %s207, %s208
      %p222 = scmp.eq.s32.totalorder %s27, 1
      %p223 = por %p221, %p222
      %p225 = scmp.ne.s32.totalorder %s208, %s224
      %p226 = scmp.eq.s32.totalorder %s27, 0
      %p227 = por %p225, %p226
      %p228 = scmp.le.s32.totalorder 1, %s21
      %p229 = scmp.lt.s32.totalorder %s21, 3
      %p230 = pnand %p228, %p229
      %p231 = pneg %p230
      // Predicated region
      $region9: #{tpu_custom_call.1} parent=5 // pred_check
        _
      $region10: #{tpu_custom_call.1} parent=5 // pred_check_branch
        %233 = sbr.rel (%p230) target = $region12
      $region11: #{tpu_custom_call.1} parent=5 // pred_region
        %s234 = ssub.s32 %s21, 1
        // Predicated region
        $region13: #{tpu_custom_call.1} parent=11 // pred_check
          %p235 = pneg %p68
        $region14: #{tpu_custom_call.1} parent=11 // pred_check_branch
          %237 = sbr.rel (%p235) target = $region16
        $region15: #{tpu_custom_call.1} parent=11 // pred_region
          %s239 = ssub.s32 9216, 9216
          %240 = vsyncadd [#allocation7], %s239
          %s241 = sshll.u32 [#allocation6], 4
          %s242 = int_to_ptr.vmem [resolvable:$true] %s241
          %247 = dma.hbm_to_vmem [thread:$0]  %s1, 9216, %s242, [#allocation7], 64, 64, 4
        $region16: #{tpu_custom_call.1} parent=11 // pred_fallthru
          _
        // Predicated region
        $region17: #{tpu_custom_call.1} parent=11 // pred_check
          %p248 = pneg %p89
        $region18: #{tpu_custom_call.1} parent=11 // pred_check_branch
          %250 = sbr.rel (%p248) target = $region20
        $region19: #{tpu_custom_call.1} parent=11 // pred_region
          %s252 = ssub.s32 9216, 9216
          %253 = vsyncadd [#allocation7], %s252
          %s254 = sshll.u32 [#allocation8], 4
          %s255 = int_to_ptr.vmem [resolvable:$true] %s254
          %260 = dma.hbm_to_vmem [thread:$0]  %s2, 9216, %s255, [#allocation7], 64, 64, 4
        $region20: #{tpu_custom_call.1} parent=11 // pred_fallthru
          _
        // Predicated region
        $region21: #{tpu_custom_call.1} parent=11 // pred_check
          %p261 = pneg %p110
        $region22: #{tpu_custom_call.1} parent=11 // pred_check_branch
          %263 = sbr.rel (%p261) target = $region24
        $region23: #{tpu_custom_call.1} parent=11 // pred_region
          _
        $region24: #{tpu_custom_call.1} parent=11 // pred_fallthru
          _
        // Predicated region
        $region25: #{tpu_custom_call.1} parent=11 // pred_check
          %p264 = pneg %p131
        $region26: #{tpu_custom_call.1} parent=11 // pred_check_branch
          %266 = sbr.rel (%p264) target = $region28
        $region27: #{tpu_custom_call.1} parent=11 // pred_region
          _
        $region28: #{tpu_custom_call.1} parent=11 // pred_fallthru
          _
        // Predicated region
        $region29: #{tpu_custom_call.1} parent=11 // pred_check
          %p267 = pneg %p152
        $region30: #{tpu_custom_call.1} parent=11 // pred_check_branch
          %269 = sbr.rel (%p267) target = $region32
        $region31: #{tpu_custom_call.1} parent=11 // pred_region
          _
        $region32: #{tpu_custom_call.1} parent=11 // pred_fallthru
          _
        // Predicated region
        $region33: #{tpu_custom_call.1} parent=11 // pred_check
          %p270 = pneg %p173
        $region34: #{tpu_custom_call.1} parent=11 // pred_check_branch
          %272 = sbr.rel (%p270) target = $region36
        $region35: #{tpu_custom_call.1} parent=11 // pred_region
          _
        $region36: #{tpu_custom_call.1} parent=11 // pred_fallthru
          _
        // Predicated region
        $region37: #{tpu_custom_call.1} parent=11 // pred_check
          %p273 = pneg %p194
        $region38: #{tpu_custom_call.1} parent=11 // pred_check_branch
          %275 = sbr.rel (%p273) target = $region40
        $region39: #{tpu_custom_call.1} parent=11 // pred_region
          _
        $region40: #{tpu_custom_call.1} parent=11 // pred_fallthru
          _
      $region12: #{tpu_custom_call.1} parent=5 // pred_fallthru
        _
      %p276 = scmp.lt.s32.totalorder %s21, 2
      // Predicated region
      $region41: #{tpu_custom_call.1} parent=5 // pred_check
        %p277 = pneg %p276
      $region42: #{tpu_custom_call.1} parent=5 // pred_check_branch
        %279 = sbr.rel (%p277) target = $region44
      $region43: #{tpu_custom_call.1} parent=5 // pred_region
        // Predicated region
        $region45: #{tpu_custom_call.1} parent=43 // pred_check
          %p280 = pneg %p41
        $region46: #{tpu_custom_call.1} parent=43 // pred_check_branch
          %282 = sbr.rel (%p280) target = $region48
        $region47: #{tpu_custom_call.1} parent=43 // pred_region
          %s283 = sand.u32 %s31, 1
          %s284 = scalar_lea.sflag [#allocation4], %s283
          %s285 = sand.u32 %s31, 1
          %s286 = smul.addr %s285, 168
          %s287 = scalar_lea.vmem [#allocation3], %s286
          %s289 = ssub.s32 2688, 2688
          %290 = vsyncadd %s284, %s289
          %s291 = smul.addr %s21, 42
          %s292 = smul.addr %s291, 64
          %s293 = scalar_lea.hbm %s0, %s292
          %s294 = sshll.u32 %s287, 4
          %s295 = int_to_ptr.vmem [resolvable:$true] %s294
          %300 = dma.hbm_to_vmem [thread:$0]  %s293, 2688, %s295, %s284, 64, 64, 4
        $region48: #{tpu_custom_call.1} parent=43 // pred_fallthru
          _
      $region44: #{tpu_custom_call.1} parent=5 // pred_fallthru
        _
      %p301 = scmp.le.s32.totalorder 1, %s21
      %p302 = scmp.lt.s32.totalorder %s21, 3
      %p303 = pnand %p301, %p302
      %p304 = pneg %p303
      // Predicated region
      $region49: #{tpu_custom_call.1} parent=5 // pred_check
        _
      $region50: #{tpu_custom_call.1} parent=5 // pred_check_branch
        %306 = sbr.rel (%p303) target = $region52
      $region51: #{tpu_custom_call.1} parent=5 // pred_region
        %s307 = ssub.s32 %s21, 1
        %s308 = sand.u32 %s34, 1
        %s309 = scalar_lea.sflag [#allocation4], %s308
        %s310 = sand.u32 %s34, 1
        %s311 = smul.addr %s310, 168
        %s312 = scalar_lea.vmem [#allocation3], %s311
        // Predicated region
        $region53: #{tpu_custom_call.1} parent=51 // pred_check
          %p313 = pneg %p47
        $region54: #{tpu_custom_call.1} parent=51 // pred_check_branch
          %315 = sbr.rel (%p313) target = $region56
        $region55: #{tpu_custom_call.1} parent=51 // pred_region
          %316 = dma.done %s309, 2688
        $region56: #{tpu_custom_call.1} parent=51 // pred_fallthru
          _
        // Predicated region
        $region57: #{tpu_custom_call.1} parent=51 // pred_check
          %p317 = pneg %p68
        $region58: #{tpu_custom_call.1} parent=51 // pred_check_branch
          %319 = sbr.rel (%p317) target = $region60
        $region59: #{tpu_custom_call.1} parent=51 // pred_region
          %320 = dma.done [#allocation7], 9216
        $region60: #{tpu_custom_call.1} parent=51 // pred_fallthru
          _
        // Predicated region
        $region61: #{tpu_custom_call.1} parent=51 // pred_check
          %p321 = pneg %p89
        $region62: #{tpu_custom_call.1} parent=51 // pred_check_branch
          %323 = sbr.rel (%p321) target = $region64
        $region63: #{tpu_custom_call.1} parent=51 // pred_region
          %324 = dma.done [#allocation7], 9216
        $region64: #{tpu_custom_call.1} parent=51 // pred_fallthru
          _
        %s325 = sand.u32 %s34, 1
        %s326 = scalar_lea.sflag [#allocation4], %s325
        %s327 = sand.u32 %s34, 1
        %s328 = smul.addr %s327, 168
        %s329 = scalar_lea.vmem [#allocation3], %s328
        %p330 = pneg %p47
        %p331 = pneg %p44
        %p332 = pneg %p68
        %p333 = pneg %p65
        %p334 = pneg %p89
        %p335 = pneg %p86
        %p336 = pneg %p110
        %p337 = pneg %p107
        %p338 = pneg %p131
        %p339 = pneg %p128
        %p340 = pneg %p152
        %p341 = pneg %p149
        %p342 = pneg %p173
        %p343 = pneg %p170
        %p344 = pneg %p194
        %p345 = pneg %p191
        %p346 = pneg %p220
        %p347 = pneg %p217
        %s348 = sand.u32 %s207, 1
        %s349 = scalar_lea.sflag [#allocation5], %s348
        %s350 = sand.u32 %s207, 1
        %s351 = smul.addr %s350, 144
        %s352 = scalar_lea.vmem [#allocation9], %s351
        %v354 = vld [vmem:[%s312] sm:$0xc]
        %v355 = vld [vmem:[%s312 + $0x4] sm:$0xf]
        %v356 = vld [vmem:[%s312 + $0x8] sm:$0xf]
        %v357 = vld [vmem:[%s312 + $0xc] sm:$0xf]
        %v358 = vld [vmem:[%s312 + $0x10] sm:$0xf]
        %v359 = vld [vmem:[%s312 + $0x14] sm:$0xf]
        %v360 = vld [vmem:[%s312 + $0x18] sm:$0xf]
        %v361 = vld [vmem:[%s312 + $0x1c] sm:$0xf]
        %v362 = vld [vmem:[%s312 + $0x20] sm:$0xf]
        %v363 = vld [vmem:[%s312 + $0x24] sm:$0xf]
        %v364 = vld [vmem:[%s312 + $0x28] sm:$0xf]
        %v365 = vld [vmem:[%s312 + $0x2c] sm:$0xf]
        %v366 = vld [vmem:[%s312 + $0x30] sm:$0xf]
        %v367 = vld [vmem:[%s312 + $0x34] sm:$0xf]
        %v368 = vld [vmem:[%s312 + $0x38] sm:$0xf]
        %v369 = vld [vmem:[%s312 + $0x3c] sm:$0xf]
        %v370 = vld [vmem:[%s312 + $0x40] sm:$0xf]
        %v371 = vld [vmem:[%s312 + $0x44] sm:$0xf]
        %v372 = vld [vmem:[%s312 + $0x48] sm:$0xf]
        %v373 = vld [vmem:[%s312 + $0x4c] sm:$0xf]
        %v374 = vld [vmem:[%s312 + $0x50] sm:$0xf]
        %v375 = vld [vmem:[%s312 + $0x54] sm:$0xf]
        %v376 = vld [vmem:[%s312 + $0x58] sm:$0xf]
        %v377 = vld [vmem:[%s312 + $0x5c] sm:$0xf]
        %v378 = vld [vmem:[%s312 + $0x60] sm:$0xf]
        %v379 = vld [vmem:[%s312 + $0x64] sm:$0xf]
        %v380 = vld [vmem:[%s312 + $0x68] sm:$0xf]
        %v381 = vld [vmem:[%s312 + $0x6c] sm:$0xf]
        %v382 = vld [vmem:[%s312 + $0x70] sm:$0xf]
        %v383 = vld [vmem:[%s312 + $0x74] sm:$0xf]
        %v384 = vld [vmem:[%s312 + $0x78] sm:$0xf]
        %v385 = vld [vmem:[%s312 + $0x7c] sm:$0xf]
        %v386 = vld [vmem:[%s312 + $0x80] sm:$0xf]
        %v387 = vld [vmem:[%s312 + $0x84] sm:$0xf]
        %v388 = vld [vmem:[%s312 + $0x88] sm:$0xf]
        %v389 = vld [vmem:[%s312 + $0x8c] sm:$0xf]
        %v390 = vld [vmem:[%s312 + $0x90] sm:$0x7]
        %v391 = vld [vmem:[#allocation6] sm:$0xf]
        %v392 = vld [vmem:[#allocation6 + $0x4] sm:$0xf]
        %v393 = vld [vmem:[#allocation6 + $0x8] sm:$0xf]
        %v394 = vld [vmem:[#allocation6 + $0xc] sm:$0xf]
        %v395 = vld [vmem:[#allocation6 + $0x10] sm:$0xf]
        %v396 = vld [vmem:[#allocation6 + $0x14] sm:$0xf]
        %v397 = vld [vmem:[#allocation6 + $0x18] sm:$0xf]
        %v398 = vld [vmem:[#allocation6 + $0x1c] sm:$0xf]
        %v399 = vld [vmem:[#allocation6 + $0x20] sm:$0xf]
        %v400 = vld [vmem:[#allocation6 + $0x24] sm:$0xf]
        %v401 = vld [vmem:[#allocation6 + $0x28] sm:$0xf]
        %v402 = vld [vmem:[#allocation6 + $0x2c] sm:$0xf]
        %v403 = vld [vmem:[#allocation6 + $0x30] sm:$0xf]
        %v404 = vld [vmem:[#allocation6 + $0x34] sm:$0xf]
        %v405 = vld [vmem:[#allocation6 + $0x38] sm:$0xf]
        %v406 = vld [vmem:[#allocation6 + $0x3c] sm:$0xf]
        %v407 = vld [vmem:[%s312] sm:$0x8]
        %s408 = scalar_lea.vmem [#allocation6], 64
        %v409 = vld [vmem:[%s408] sm:$0xf]
        %v410 = vld [vmem:[%s408 + $0x4] sm:$0xf]
        %v411 = vld [vmem:[%s408 + $0x8] sm:$0xf]
        %v412 = vld [vmem:[%s408 + $0xc] sm:$0xf]
        %v413 = vld [vmem:[%s408 + $0x10] sm:$0xf]
        %v414 = vld [vmem:[%s408 + $0x14] sm:$0xf]
        %v415 = vld [vmem:[%s408 + $0x18] sm:$0xf]
        %v416 = vld [vmem:[%s408 + $0x1c] sm:$0xf]
        %v417 = vld [vmem:[%s408 + $0x20] sm:$0xf]
        %v418 = vld [vmem:[%s408 + $0x24] sm:$0xf]
        %v419 = vld [vmem:[%s408 + $0x28] sm:$0xf]
        %v420 = vld [vmem:[%s408 + $0x2c] sm:$0xf]
        %v421 = vld [vmem:[%s408 + $0x30] sm:$0xf]
        %v422 = vld [vmem:[%s408 + $0x34] sm:$0xf]
        %v423 = vld [vmem:[%s408 + $0x38] sm:$0xf]
        %v424 = vld [vmem:[%s408 + $0x3c] sm:$0xf]
        %v462 = vunpack.c.l.b16 %v407
        %v463 = vunpack.c.l.b16 %v355
        %v464 = vunpack.c.l.b16 %v356
        %v465 = vunpack.c.l.b16 %v357
        %v466 = vunpack.c.l.b16 %v358
        %v467 = vunpack.c.l.b16 %v359
        %v468 = vunpack.c.l.b16 %v360
        %v469 = vunpack.c.l.b16 %v361
        %v470 = vunpack.c.l.b16 %v362
        %v471 = vunpack.c.l.b16 %v363
        %v472 = vunpack.c.l.b16 %v364
        %v473 = vunpack.c.l.b16 %v365
        %v474 = vunpack.c.l.b16 %v366
        %v475 = vunpack.c.l.b16 %v367
        %v476 = vunpack.c.l.b16 %v368
        %v477 = vunpack.c.l.b16 %v369
        %v478 = vunpack.c.l.b16 %v370
        %v479 = vunpack.c.l.b16 %v371
        %v480 = vunpack.c.l.b16 %v372
        %v481 = vunpack.c.l.b16 %v373
        %v482 = vunpack.c.l.b16 %v374
        %v483 = vunpack.c.l.b16 %v375
        %v484 = vunpack.c.l.b16 %v376
        %v485 = vunpack.c.l.b16 %v377
        %v486 = vunpack.c.l.b16 %v378
        %v487 = vunpack.c.l.b16 %v379
        %v488 = vunpack.c.l.b16 %v380
        %v489 = vunpack.c.l.b16 %v381
        %v490 = vunpack.c.l.b16 %v382
        %v491 = vunpack.c.l.b16 %v383
        %v492 = vunpack.c.l.b16 %v384
        %v493 = vunpack.c.l.b16 %v385
        %v494 = vunpack.c.l.b16 %v386
        %v495 = vunpack.c.l.b16 %v387
        %v496 = vunpack.c.l.b16 %v388
        %v497 = vunpack.c.l.b16 %v389
        %v498 = vunpack.c.l.b16 %v390
        %v499 = vpack.c.b16 %v463, %v462
        %v500 = vpack.c.b16 %v465, %v464
        %v501 = vpack.c.b16 %v467, %v466
        %v502 = vpack.c.b16 %v469, %v468
        %v503 = vpack.c.b16 %v471, %v470
        %v504 = vpack.c.b16 %v473, %v472
        %v505 = vpack.c.b16 %v475, %v474
        %v506 = vpack.c.b16 %v477, %v476
        %v507 = vpack.c.b16 %v479, %v478
        %v508 = vpack.c.b16 %v481, %v480
        %v509 = vpack.c.b16 %v483, %v482
        %v510 = vpack.c.b16 %v485, %v484
        %v511 = vpack.c.b16 %v487, %v486
        %v512 = vpack.c.b16 %v489, %v488
        %v513 = vpack.c.b16 %v491, %v490
        %v514 = vpack.c.b16 %v493, %v492
        %v515 = vpack.c.b16 %v495, %v494
        %v516 = vpack.c.b16 %v497, %v496
        %v517 = vpack.c.b16 %v498, %v498
        %vm518 = vcmask 1044480
        %v519 = vrot.slane %v499, 3
        %v520 = vrot.slane %v500, 3
        %v521 = vsel %vm518, %v519, %v520
        %v522 = vrot.slane %v501, 3
        %v523 = vsel %vm518, %v520, %v522
        %v524 = vrot.slane %v502, 3
        %v525 = vsel %vm518, %v522, %v524
        %v526 = vrot.slane %v503, 3
        %v527 = vsel %vm518, %v524, %v526
        %v528 = vrot.slane %v504, 3
        %v529 = vsel %vm518, %v526, %v528
        %v530 = vrot.slane %v505, 3
        %v531 = vsel %vm518, %v528, %v530
        %v532 = vrot.slane %v506, 3
        %v533 = vsel %vm518, %v530, %v532
        %v534 = vrot.slane %v507, 3
        %v535 = vsel %vm518, %v532, %v534
        %v536 = vrot.slane %v508, 3
        %v537 = vsel %vm518, %v534, %v536
        %v538 = vrot.slane %v509, 3
        %v539 = vsel %vm518, %v536, %v538
        %v540 = vrot.slane %v510, 3
        %v541 = vsel %vm518, %v538, %v540
        %v542 = vrot.slane %v511, 3
        %v543 = vsel %vm518, %v540, %v542
        %v544 = vrot.slane %v512, 3
        %v545 = vsel %vm518, %v542, %v544
        %v546 = vrot.slane %v513, 3
        %v547 = vsel %vm518, %v544, %v546
        %v548 = vrot.slane %v514, 3
        %v549 = vsel %vm518, %v546, %v548
        %v550 = vrot.slane %v515, 3
        %v551 = vsel %vm518, %v548, %v550
        %v552 = vrot.slane %v516, 3
        %v553 = vsel %vm518, %v550, %v552
        %v554 = vrot.slane %v517, 3
        %v555 = vsel %vm518, %v552, %v554
        %v590 = vunpack.c.l.b16 %v409
        %v591 = vunpack.c.l.b16 %v410
        %v592 = vunpack.c.l.b16 %v411
        %v593 = vunpack.c.l.b16 %v412
        %v594 = vunpack.c.l.b16 %v413
        %v595 = vunpack.c.l.b16 %v414
        %v596 = vunpack.c.l.b16 %v415
        %v597 = vunpack.c.l.b16 %v416
        %v598 = vunpack.c.l.b16 %v417
        %v599 = vunpack.c.l.b16 %v418
        %v600 = vunpack.c.l.b16 %v419
        %v601 = vunpack.c.l.b16 %v420
        %v602 = vunpack.c.l.b16 %v421
        %v603 = vunpack.c.l.b16 %v422
        %v604 = vunpack.c.l.b16 %v423
        %v605 = vunpack.c.l.b16 %v424
        %v606 = vpack.c.b16 %v591, %v590
        %v607 = vpack.c.b16 %v593, %v592
        %v608 = vpack.c.b16 %v595, %v594
        %v609 = vpack.c.b16 %v597, %v596
        %v610 = vpack.c.b16 %v599, %v598
        %v611 = vpack.c.b16 %v601, %v600
        %v612 = vpack.c.b16 %v603, %v602
        %v613 = vpack.c.b16 %v605, %v604
        %622 = vmatprep.subr.bf16.mxu0 0
        %623 = vmatpush1.bf16.msra.mxu0 %v613
        %624 = vmatprep.subr.bf16.mxu0 0
        %625 = vmatpush1.bf16.msra.mxu0 %v612
        %626 = vmatprep.subr.bf16.mxu0 0
        %627 = vmatpush1.bf16.msra.mxu0 %v611
        %628 = vmatprep.subr.bf16.mxu0 0
        %629 = vmatpush1.bf16.msra.mxu0 %v610
        %630 = vmatprep.subr.bf16.mxu0 0
        %631 = vmatpush1.bf16.msra.mxu0 %v609
        %632 = vmatprep.subr.bf16.mxu0 0
        %633 = vmatpush1.bf16.msra.mxu0 %v608
        %634 = vmatprep.subr.bf16.mxu0 0
        %635 = vmatpush1.bf16.msra.mxu0 %v607
        %636 = vmatprep.subr.bf16.mxu0 0
        %637 = vmatpush1.bf16.msra.mxu0 %v606
        %638 = vmatprep.subr.bf16.mxu0 0
        %639 = vmatpush2.bf16.msra.mxu0 0
        %640 = vmatprep.subr.bf16.mxu0 0
        %641 = vmatpush2.bf16.msra.mxu0 0
        %642 = vmatprep.subr.bf16.mxu0 0
        %643 = vmatpush2.bf16.msra.mxu0 0
        %644 = vmatprep.subr.bf16.mxu0 0
        %645 = vmatpush2.bf16.msra.mxu0 0
        %646 = vmatprep.subr.bf16.mxu0 0
        %647 = vmatpush2.bf16.msra.mxu0 0
        %648 = vmatprep.subr.bf16.mxu0 0
        %649 = vmatpush2.bf16.msra.mxu0 0
        %650 = vmatprep.subr.bf16.mxu0 0
        %651 = vmatpush2.bf16.msra.mxu0 0
        %652 = vmatprep.subr.bf16.mxu0 0
        %653 = vmatpush2.bf16.msra.mxu0 0
        %654 = vmatprep.mubr.bf16.mxu0 0
        %655 = vmatmul.mubr.bf16.gmra.mxu0 %v521
        %v656 = vpop.f32.mrf.mxu0
        %v657 = vadd.f32 0.0, %v656
        %v658 = vpop.f32.mrf.mxu0
        %v659 = vpop.f32.mrf.mxu0
        %v660 = vadd.f32 0.0, %v659
        %v661 = vpop.f32.mrf.mxu0
        %662 = vmatprep.mubr.bf16.mxu0 0
        %663 = vmatmul.mubr.bf16.gmra.mxu0 %v523
        %v664 = vpop.f32.mrf.mxu0
        %v665 = vadd.f32 0.0, %v664
        %v666 = vpop.f32.mrf.mxu0
        %v667 = vpop.f32.mrf.mxu0
        %v668 = vadd.f32 0.0, %v667
        %v669 = vpop.f32.mrf.mxu0
        %670 = vmatprep.mubr.bf16.mxu0 0
        %671 = vmatmul.mubr.bf16.gmra.mxu0 %v525
        %v672 = vpop.f32.mrf.mxu0
        %v673 = vadd.f32 0.0, %v672
        %v674 = vpop.f32.mrf.mxu0
        %v675 = vpop.f32.mrf.mxu0
        %v676 = vadd.f32 0.0, %v675
        %v677 = vpop.f32.mrf.mxu0
        %678 = vmatprep.mubr.bf16.mxu0 0
        %679 = vmatmul.mubr.bf16.gmra.mxu0 %v527
        %v680 = vpop.f32.mrf.mxu0
        %v681 = vadd.f32 0.0, %v680
        %v682 = vpop.f32.mrf.mxu0
        %v683 = vpop.f32.mrf.mxu0
        %v684 = vadd.f32 0.0, %v683
        %v685 = vpop.f32.mrf.mxu0
        %686 = vmatprep.mubr.bf16.mxu0 0
        %687 = vmatmul.mubr.bf16.gmra.mxu0 %v529
        %v688 = vpop.f32.mrf.mxu0
        %v689 = vadd.f32 0.0, %v688
        %v690 = vpop.f32.mrf.mxu0
        %v691 = vpop.f32.mrf.mxu0
        %v692 = vadd.f32 0.0, %v691
        %v693 = vpop.f32.mrf.mxu0
        %694 = vmatprep.mubr.bf16.mxu0 0
        %695 = vmatmul.mubr.bf16.gmra.mxu0 %v531
        %v696 = vpop.f32.mrf.mxu0
        %v697 = vadd.f32 0.0, %v696
        %v698 = vpop.f32.mrf.mxu0
        %v699 = vpop.f32.mrf.mxu0
        %v700 = vadd.f32 0.0, %v699
        %v701 = vpop.f32.mrf.mxu0
        %702 = vmatprep.mubr.bf16.mxu0 0
        %703 = vmatmul.mubr.bf16.gmra.mxu0 %v533
        %v704 = vpop.f32.mrf.mxu0
        %v705 = vadd.f32 0.0, %v704
        %v706 = vpop.f32.mrf.mxu0
        %v707 = vpop.f32.mrf.mxu0
        %v708 = vadd.f32 0.0, %v707
        %v709 = vpop.f32.mrf.mxu0
        %710 = vmatprep.mubr.bf16.mxu0 0
        %711 = vmatmul.mubr.bf16.gmra.mxu0 %v535
        %v712 = vpop.f32.mrf.mxu0
        %v713 = vadd.f32 0.0, %v712
        %v714 = vpop.f32.mrf.mxu0
        %v715 = vpop.f32.mrf.mxu0
        %v716 = vadd.f32 0.0, %v715
        %v717 = vpop.f32.mrf.mxu0
        %718 = vmatprep.mubr.bf16.mxu0 0
        %719 = vmatmul.mubr.bf16.gmra.mxu0 %v537
        %v720 = vpop.f32.mrf.mxu0
        %v721 = vadd.f32 0.0, %v720
        %v722 = vpop.f32.mrf.mxu0
        %v723 = vpop.f32.mrf.mxu0
        %v724 = vadd.f32 0.0, %v723
        %v725 = vpop.f32.mrf.mxu0
        %726 = vmatprep.mubr.bf16.mxu0 0
        %727 = vmatmul.mubr.bf16.gmra.mxu0 %v539
        %v728 = vpop.f32.mrf.mxu0
        %v729 = vadd.f32 0.0, %v728
        %v730 = vpop.f32.mrf.mxu0
        %v731 = vpop.f32.mrf.mxu0
        %v732 = vadd.f32 0.0, %v731
        %v733 = vpop.f32.mrf.mxu0
        %734 = vmatprep.mubr.bf16.mxu0 0
        %735 = vmatmul.mubr.bf16.gmra.mxu0 %v541
        %v736 = vpop.f32.mrf.mxu0
        %v737 = vadd.f32 0.0, %v736
        %v738 = vpop.f32.mrf.mxu0
        %v739 = vpop.f32.mrf.mxu0
        %v740 = vadd.f32 0.0, %v739
        %v741 = vpop.f32.mrf.mxu0
        %742 = vmatprep.mubr.bf16.mxu0 0
        %743 = vmatmul.mubr.bf16.gmra.mxu0 %v543
        %v744 = vpop.f32.mrf.mxu0
        %v745 = vadd.f32 0.0, %v744
        %v746 = vpop.f32.mrf.mxu0
        %v747 = vpop.f32.mrf.mxu0
        %v748 = vadd.f32 0.0, %v747
        %v749 = vpop.f32.mrf.mxu0
        %750 = vmatprep.mubr.bf16.mxu0 0
        %751 = vmatmul.mubr.bf16.gmra.mxu0 %v545
        %v752 = vpop.f32.mrf.mxu0
        %v753 = vadd.f32 0.0, %v752
        %v754 = vpop.f32.mrf.mxu0
        %v755 = vpop.f32.mrf.mxu0
        %v756 = vadd.f32 0.0, %v755
        %v757 = vpop.f32.mrf.mxu0
        %758 = vmatprep.mubr.bf16.mxu0 0
        %759 = vmatmul.mubr.bf16.gmra.mxu0 %v547
        %v760 = vpop.f32.mrf.mxu0
        %v761 = vadd.f32 0.0, %v760
        %v762 = vpop.f32.mrf.mxu0
        %v763 = vpop.f32.mrf.mxu0
        %v764 = vadd.f32 0.0, %v763
        %v765 = vpop.f32.mrf.mxu0
        %766 = vmatprep.mubr.bf16.mxu0 0
        %767 = vmatmul.mubr.bf16.gmra.mxu0 %v549
        %v768 = vpop.f32.mrf.mxu0
        %v769 = vadd.f32 0.0, %v768
        %v770 = vpop.f32.mrf.mxu0
        %v771 = vpop.f32.mrf.mxu0
        %v772 = vadd.f32 0.0, %v771
        %v773 = vpop.f32.mrf.mxu0
        %774 = vmatprep.mubr.bf16.mxu0 0
        %775 = vmatmul.mubr.bf16.gmra.mxu0 %v551
        %v776 = vpop.f32.mrf.mxu0
        %v777 = vadd.f32 0.0, %v776
        %v778 = vpop.f32.mrf.mxu0
        %v779 = vpop.f32.mrf.mxu0
        %v780 = vadd.f32 0.0, %v779
        %v781 = vpop.f32.mrf.mxu0
        %782 = vmatprep.mubr.bf16.mxu0 0
        %783 = vmatmul.mubr.bf16.gmra.mxu0 %v553
        %v784 = vpop.f32.mrf.mxu0
        %v785 = vadd.f32 0.0, %v784
        %v786 = vpop.f32.mrf.mxu0
        %v787 = vpop.f32.mrf.mxu0
        %v788 = vadd.f32 0.0, %v787
        %v789 = vpop.f32.mrf.mxu0
        %790 = vmatprep.mubr.bf16.mxu0 0
        %791 = vmatmul.mubr.bf16.gmra.mxu0 %v555
        %v792 = vpop.f32.mrf.mxu0
        %v793 = vadd.f32 0.0, %v792
        %v794 = vpop.f32.mrf.mxu0
        %v795 = vpop.f32.mrf.mxu0
        %v796 = vadd.f32 0.0, %v795
        %v797 = vpop.f32.mrf.mxu0
        %798 = vdwg.mxu0
        %v800 = vunpack.c.l.b16 %v354
        %v801 = vpack.c.b16 %v463, %v800
        %vm802 = vsmask.f32 5376
        %v804 = vshrl.u32 %v801, 16
        %v806 = vrot.slane %v804, 2
        %v807 = vshll.u32 %v801, 16
        %v809 = vrot.slane %v807, 3
        %v810 = vor.u32 %v806, %v809
        %v812 = vshrl.u32 %v500, 16
        %v814 = vrot.slane %v812, 2
        %v815 = vshll.u32 %v500, 16
        %v817 = vrot.slane %v815, 3
        %v818 = vor.u32 %v814, %v817
        %v819 = vsel %vm802, %v810, %v818
        %v821 = vshrl.u32 %v501, 16
        %v823 = vrot.slane %v821, 2
        %v824 = vshll.u32 %v501, 16
        %v826 = vrot.slane %v824, 3
        %v827 = vor.u32 %v823, %v826
        %v828 = vsel %vm802, %v818, %v827
        %v830 = vshrl.u32 %v502, 16
        %v832 = vrot.slane %v830, 2
        %v833 = vshll.u32 %v502, 16
        %v835 = vrot.slane %v833, 3
        %v836 = vor.u32 %v832, %v835
        %v837 = vsel %vm802, %v827, %v836
        %v839 = vshrl.u32 %v503, 16
        %v841 = vrot.slane %v839, 2
        %v842 = vshll.u32 %v503, 16
        %v844 = vrot.slane %v842, 3
        %v845 = vor.u32 %v841, %v844
        %v846 = vsel %vm802, %v836, %v845
        %v848 = vshrl.u32 %v504, 16
        %v850 = vrot.slane %v848, 2
        %v851 = vshll.u32 %v504, 16
        %v853 = vrot.slane %v851, 3
        %v854 = vor.u32 %v850, %v853
        %v855 = vsel %vm802, %v845, %v854
        %v857 = vshrl.u32 %v505, 16
        %v859 = vrot.slane %v857, 2
        %v860 = vshll.u32 %v505, 16
        %v862 = vrot.slane %v860, 3
        %v863 = vor.u32 %v859, %v862
        %v864 = vsel %vm802, %v854, %v863
        %v866 = vshrl.u32 %v506, 16
        %v868 = vrot.slane %v866, 2
        %v869 = vshll.u32 %v506, 16
        %v871 = vrot.slane %v869, 3
        %v872 = vor.u32 %v868, %v871
        %v873 = vsel %vm802, %v863, %v872
        %v875 = vshrl.u32 %v507, 16
        %v877 = vrot.slane %v875, 2
        %v878 = vshll.u32 %v507, 16
        %v880 = vrot.slane %v878, 3
        %v881 = vor.u32 %v877, %v880
        %v882 = vsel %vm802, %v872, %v881
        %v884 = vshrl.u32 %v508, 16
        %v886 = vrot.slane %v884, 2
        %v887 = vshll.u32 %v508, 16
        %v889 = vrot.slane %v887, 3
        %v890 = vor.u32 %v886, %v889
        %v891 = vsel %vm802, %v881, %v890
        %v893 = vshrl.u32 %v509, 16
        %v895 = vrot.slane %v893, 2
        %v896 = vshll.u32 %v509, 16
        %v898 = vrot.slane %v896, 3
        %v899 = vor.u32 %v895, %v898
        %v900 = vsel %vm802, %v890, %v899
        %v902 = vshrl.u32 %v510, 16
        %v904 = vrot.slane %v902, 2
        %v905 = vshll.u32 %v510, 16
        %v907 = vrot.slane %v905, 3
        %v908 = vor.u32 %v904, %v907
        %v909 = vsel %vm802, %v899, %v908
        %v911 = vshrl.u32 %v511, 16
        %v913 = vrot.slane %v911, 2
        %v914 = vshll.u32 %v511, 16
        %v916 = vrot.slane %v914, 3
        %v917 = vor.u32 %v913, %v916
        %v918 = vsel %vm802, %v908, %v917
        %v920 = vshrl.u32 %v512, 16
        %v922 = vrot.slane %v920, 2
        %v923 = vshll.u32 %v512, 16
        %v925 = vrot.slane %v923, 3
        %v926 = vor.u32 %v922, %v925
        %v927 = vsel %vm802, %v917, %v926
        %v929 = vshrl.u32 %v513, 16
        %v931 = vrot.slane %v929, 2
        %v932 = vshll.u32 %v513, 16
        %v934 = vrot.slane %v932, 3
        %v935 = vor.u32 %v931, %v934
        %v936 = vsel %vm802, %v926, %v935
        %v938 = vshrl.u32 %v514, 16
        %v940 = vrot.slane %v938, 2
        %v941 = vshll.u32 %v514, 16
        %v943 = vrot.slane %v941, 3
        %v944 = vor.u32 %v940, %v943
        %v945 = vsel %vm802, %v935, %v944
        %v947 = vshrl.u32 %v515, 16
        %v949 = vrot.slane %v947, 2
        %v950 = vshll.u32 %v515, 16
        %v952 = vrot.slane %v950, 3
        %v953 = vor.u32 %v949, %v952
        %v954 = vsel %vm802, %v944, %v953
        %v956 = vshrl.u32 %v516, 16
        %v958 = vrot.slane %v956, 2
        %v959 = vshll.u32 %v516, 16
        %v961 = vrot.slane %v959, 3
        %v962 = vor.u32 %v958, %v961
        %v963 = vsel %vm802, %v953, %v962
        %v965 = vshrl.u32 %v517, 16
        %v967 = vrot.slane %v965, 2
        %v968 = vshll.u32 %v517, 16
        %v970 = vrot.slane %v968, 3
        %v971 = vor.u32 %v967, %v970
        %v972 = vsel %vm802, %v962, %v971
        %v1007 = vunpack.c.l.b16 %v391
        %v1008 = vunpack.c.l.b16 %v392
        %v1009 = vunpack.c.l.b16 %v393
        %v1010 = vunpack.c.l.b16 %v394
        %v1011 = vunpack.c.l.b16 %v395
        %v1012 = vunpack.c.l.b16 %v396
        %v1013 = vunpack.c.l.b16 %v397
        %v1014 = vunpack.c.l.b16 %v398
        %v1015 = vunpack.c.l.b16 %v399
        %v1016 = vunpack.c.l.b16 %v400
        %v1017 = vunpack.c.l.b16 %v401
        %v1018 = vunpack.c.l.b16 %v402
        %v1019 = vunpack.c.l.b16 %v403
        %v1020 = vunpack.c.l.b16 %v404
        %v1021 = vunpack.c.l.b16 %v405
        %v1022 = vunpack.c.l.b16 %v406
        %v1023 = vpack.c.b16 %v1008, %v1007
        %v1024 = vpack.c.b16 %v1010, %v1009
        %v1025 = vpack.c.b16 %v1012, %v1011
        %v1026 = vpack.c.b16 %v1014, %v1013
        %v1027 = vpack.c.b16 %v1016, %v1015
        %v1028 = vpack.c.b16 %v1018, %v1017
        %v1029 = vpack.c.b16 %v1020, %v1019
        %v1030 = vpack.c.b16 %v1022, %v1021
        %1039 = vmatprep.subr.bf16.mxu0 0
        %1040 = vmatpush1.bf16.msra.mxu0 %v1030
        %1041 = vmatprep.subr.bf16.mxu0 0
        %1042 = vmatpush1.bf16.msra.mxu0 %v1029
        %1043 = vmatprep.subr.bf16.mxu0 0
        %1044 = vmatpush1.bf16.msra.mxu0 %v1028
        %1045 = vmatprep.subr.bf16.mxu0 0
        %1046 = vmatpush1.bf16.msra.mxu0 %v1027
        %1047 = vmatprep.subr.bf16.mxu0 0
        %1048 = vmatpush1.bf16.msra.mxu0 %v1026
        %1049 = vmatprep.subr.bf16.mxu0 0
        %1050 = vmatpush1.bf16.msra.mxu0 %v1025
        %1051 = vmatprep.subr.bf16.mxu0 0
        %1052 = vmatpush1.bf16.msra.mxu0 %v1024
        %1053 = vmatprep.subr.bf16.mxu0 0
        %1054 = vmatpush1.bf16.msra.mxu0 %v1023
        %1055 = vmatprep.subr.bf16.mxu0 0
        %1056 = vmatpush2.bf16.msra.mxu0 0
        %1057 = vmatprep.subr.bf16.mxu0 0
        %1058 = vmatpush2.bf16.msra.mxu0 0
        %1059 = vmatprep.subr.bf16.mxu0 0
        %1060 = vmatpush2.bf16.msra.mxu0 0
        %1061 = vmatprep.subr.bf16.mxu0 0
        %1062 = vmatpush2.bf16.msra.mxu0 0
        %1063 = vmatprep.subr.bf16.mxu0 0
        %1064 = vmatpush2.bf16.msra.mxu0 0
        %1065 = vmatprep.subr.bf16.mxu0 0
        %1066 = vmatpush2.bf16.msra.mxu0 0
        %1067 = vmatprep.subr.bf16.mxu0 0
        %1068 = vmatpush2.bf16.msra.mxu0 0
        %1069 = vmatprep.subr.bf16.mxu0 0
        %1070 = vmatpush2.bf16.msra.mxu0 0
        %1071 = vmatprep.mubr.bf16.mxu0 0
        %1072 = vmatmul.mubr.bf16.gmra.mxu0 %v819
        %v1073 = vpop.f32.mrf.mxu0
        %v1074 = vadd.f32 %v657, %v1073
        %v1075 = vpop.f32.mrf.mxu0
        %v1076 = vpop.f32.mrf.mxu0
        %v1077 = vadd.f32 %v660, %v1076
        %v1078 = vpop.f32.mrf.mxu0
        %1079 = vmatprep.mubr.bf16.mxu0 0
        %1080 = vmatmul.mubr.bf16.gmra.mxu0 %v828
        %v1081 = vpop.f32.mrf.mxu0
        %v1082 = vadd.f32 %v665, %v1081
        %v1083 = vpop.f32.mrf.mxu0
        %v1084 = vpop.f32.mrf.mxu0
        %v1085 = vadd.f32 %v668, %v1084
        %v1086 = vpop.f32.mrf.mxu0
        %1087 = vmatprep.mubr.bf16.mxu0 0
        %1088 = vmatmul.mubr.bf16.gmra.mxu0 %v837
        %v1089 = vpop.f32.mrf.mxu0
        %v1090 = vadd.f32 %v673, %v1089
        %v1091 = vpop.f32.mrf.mxu0
        %v1092 = vpop.f32.mrf.mxu0
        %v1093 = vadd.f32 %v676, %v1092
        %v1094 = vpop.f32.mrf.mxu0
        %1095 = vmatprep.mubr.bf16.mxu0 0
        %1096 = vmatmul.mubr.bf16.gmra.mxu0 %v846
        %v1097 = vpop.f32.mrf.mxu0
        %v1098 = vadd.f32 %v681, %v1097
        %v1099 = vpop.f32.mrf.mxu0
        %v1100 = vpop.f32.mrf.mxu0
        %v1101 = vadd.f32 %v684, %v1100
        %v1102 = vpop.f32.mrf.mxu0
        %1103 = vmatprep.mubr.bf16.mxu0 0
        %1104 = vmatmul.mubr.bf16.gmra.mxu0 %v855
        %v1105 = vpop.f32.mrf.mxu0
        %v1106 = vadd.f32 %v689, %v1105
        %v1107 = vpop.f32.mrf.mxu0
        %v1108 = vpop.f32.mrf.mxu0
        %v1109 = vadd.f32 %v692, %v1108
        %v1110 = vpop.f32.mrf.mxu0
        %1111 = vmatprep.mubr.bf16.mxu0 0
        %1112 = vmatmul.mubr.bf16.gmra.mxu0 %v864
        %v1113 = vpop.f32.mrf.mxu0
        %v1114 = vadd.f32 %v697, %v1113
        %v1115 = vpop.f32.mrf.mxu0
        %v1116 = vpop.f32.mrf.mxu0
        %v1117 = vadd.f32 %v700, %v1116
        %v1118 = vpop.f32.mrf.mxu0
        %1119 = vmatprep.mubr.bf16.mxu0 0
        %1120 = vmatmul.mubr.bf16.gmra.mxu0 %v873
        %v1121 = vpop.f32.mrf.mxu0
        %v1122 = vadd.f32 %v705, %v1121
        %v1123 = vpop.f32.mrf.mxu0
        %v1124 = vpop.f32.mrf.mxu0
        %v1125 = vadd.f32 %v708, %v1124
        %v1126 = vpop.f32.mrf.mxu0
        %1127 = vmatprep.mubr.bf16.mxu0 0
        %1128 = vmatmul.mubr.bf16.gmra.mxu0 %v882
        %v1129 = vpop.f32.mrf.mxu0
        %v1130 = vadd.f32 %v713, %v1129
        %v1131 = vpop.f32.mrf.mxu0
        %v1132 = vpop.f32.mrf.mxu0
        %v1133 = vadd.f32 %v716, %v1132
        %v1134 = vpop.f32.mrf.mxu0
        %1135 = vmatprep.mubr.bf16.mxu0 0
        %1136 = vmatmul.mubr.bf16.gmra.mxu0 %v891
        %v1137 = vpop.f32.mrf.mxu0
        %v1138 = vadd.f32 %v721, %v1137
        %v1139 = vpop.f32.mrf.mxu0
        %v1140 = vpop.f32.mrf.mxu0
        %v1141 = vadd.f32 %v724, %v1140
        %v1142 = vpop.f32.mrf.mxu0
        %1143 = vmatprep.mubr.bf16.mxu0 0
        %1144 = vmatmul.mubr.bf16.gmra.mxu0 %v900
        %v1145 = vpop.f32.mrf.mxu0
        %v1146 = vadd.f32 %v729, %v1145
        %v1147 = vpop.f32.mrf.mxu0
        %v1148 = vpop.f32.mrf.mxu0
        %v1149 = vadd.f32 %v732, %v1148
        %v1150 = vpop.f32.mrf.mxu0
        %1151 = vmatprep.mubr.bf16.mxu0 0
        %1152 = vmatmul.mubr.bf16.gmra.mxu0 %v909
        %v1153 = vpop.f32.mrf.mxu0
        %v1154 = vadd.f32 %v737, %v1153
        %v1155 = vpop.f32.mrf.mxu0
        %v1156 = vpop.f32.mrf.mxu0
        %v1157 = vadd.f32 %v740, %v1156
        %v1158 = vpop.f32.mrf.mxu0
        %1159 = vmatprep.mubr.bf16.mxu0 0
        %1160 = vmatmul.mubr.bf16.gmra.mxu0 %v918
        %v1161 = vpop.f32.mrf.mxu0
        %v1162 = vadd.f32 %v745, %v1161
        %v1163 = vpop.f32.mrf.mxu0
        %v1164 = vpop.f32.mrf.mxu0
        %v1165 = vadd.f32 %v748, %v1164
        %v1166 = vpop.f32.mrf.mxu0
        %1167 = vmatprep.mubr.bf16.mxu0 0
        %1168 = vmatmul.mubr.bf16.gmra.mxu0 %v927
        %v1169 = vpop.f32.mrf.mxu0
        %v1170 = vadd.f32 %v753, %v1169
        %v1171 = vpop.f32.mrf.mxu0
        %v1172 = vpop.f32.mrf.mxu0
        %v1173 = vadd.f32 %v756, %v1172
        %v1174 = vpop.f32.mrf.mxu0
        %1175 = vmatprep.mubr.bf16.mxu0 0
        %1176 = vmatmul.mubr.bf16.gmra.mxu0 %v936
        %v1177 = vpop.f32.mrf.mxu0
        %v1178 = vadd.f32 %v761, %v1177
        %v1179 = vpop.f32.mrf.mxu0
        %v1180 = vpop.f32.mrf.mxu0
        %v1181 = vadd.f32 %v764, %v1180
        %v1182 = vpop.f32.mrf.mxu0
        %1183 = vmatprep.mubr.bf16.mxu0 0
        %1184 = vmatmul.mubr.bf16.gmra.mxu0 %v945
        %v1185 = vpop.f32.mrf.mxu0
        %v1186 = vadd.f32 %v769, %v1185
        %v1187 = vpop.f32.mrf.mxu0
        %v1188 = vpop.f32.mrf.mxu0
        %v1189 = vadd.f32 %v772, %v1188
        %v1190 = vpop.f32.mrf.mxu0
        %1191 = vmatprep.mubr.bf16.mxu0 0
        %1192 = vmatmul.mubr.bf16.gmra.mxu0 %v954
        %v1193 = vpop.f32.mrf.mxu0
        %v1194 = vadd.f32 %v777, %v1193
        %v1195 = vpop.f32.mrf.mxu0
        %v1196 = vpop.f32.mrf.mxu0
        %v1197 = vadd.f32 %v780, %v1196
        %v1198 = vpop.f32.mrf.mxu0
        %1199 = vmatprep.mubr.bf16.mxu0 0
        %1200 = vmatmul.mubr.bf16.gmra.mxu0 %v963
        %v1201 = vpop.f32.mrf.mxu0
        %v1202 = vadd.f32 %v785, %v1201
        %v1203 = vpop.f32.mrf.mxu0
        %v1204 = vpop.f32.mrf.mxu0
        %v1205 = vadd.f32 %v788, %v1204
        %v1206 = vpop.f32.mrf.mxu0
        %1207 = vmatprep.mubr.bf16.mxu0 0
        %1208 = vmatmul.mubr.bf16.gmra.mxu0 %v972
        %v1209 = vpop.f32.mrf.mxu0
        %v1210 = vadd.f32 %v793, %v1209
        %v1211 = vpop.f32.mrf.mxu0
        %v1212 = vpop.f32.mrf.mxu0
        %v1213 = vadd.f32 %v796, %v1212
        %v1214 = vpop.f32.mrf.mxu0
        %1215 = vdwg.mxu0
        %v1216 = vld [vmem:[%s312 + $0x90] sm:$0xf]
        %s1217 = scalar_lea.vmem [#allocation6], 128
        %v1218 = vld [vmem:[%s1217] sm:$0xf]
        %v1219 = vld [vmem:[%s1217 + $0x4] sm:$0xf]
        %v1220 = vld [vmem:[%s1217 + $0x8] sm:$0xf]
        %v1221 = vld [vmem:[%s1217 + $0xc] sm:$0xf]
        %v1222 = vld [vmem:[%s1217 + $0x10] sm:$0xf]
        %v1223 = vld [vmem:[%s1217 + $0x14] sm:$0xf]
        %v1224 = vld [vmem:[%s1217 + $0x18] sm:$0xf]
        %v1225 = vld [vmem:[%s1217 + $0x1c] sm:$0xf]
        %v1226 = vld [vmem:[%s1217 + $0x20] sm:$0xf]
        %v1227 = vld [vmem:[%s1217 + $0x24] sm:$0xf]
        %v1228 = vld [vmem:[%s1217 + $0x28] sm:$0xf]
        %v1229 = vld [vmem:[%s1217 + $0x2c] sm:$0xf]
        %v1230 = vld [vmem:[%s1217 + $0x30] sm:$0xf]
        %v1231 = vld [vmem:[%s1217 + $0x34] sm:$0xf]
        %v1232 = vld [vmem:[%s1217 + $0x38] sm:$0xf]
        %v1233 = vld [vmem:[%s1217 + $0x3c] sm:$0xf]
        %v1235 = vunpack.c.l.b16 %v1216
        %v1236 = vpack.c.b16 %v1235, %v1235
        %vm1237 = vsmask.f32 4352
        %v1239 = vshrl.u32 %v499, 16
        %v1241 = vrot.slane %v1239, 3
        %v1242 = vshll.u32 %v499, 16
        %v1244 = vrot.slane %v1242, 4
        %v1245 = vor.u32 %v1241, %v1244
        %v1246 = vrot.slane %v812, 3
        %v1247 = vrot.slane %v815, 4
        %v1248 = vor.u32 %v1246, %v1247
        %v1249 = vsel %vm1237, %v1245, %v1248
        %v1250 = vrot.slane %v821, 3
        %v1251 = vrot.slane %v824, 4
        %v1252 = vor.u32 %v1250, %v1251
        %v1253 = vsel %vm1237, %v1248, %v1252
        %v1254 = vrot.slane %v830, 3
        %v1255 = vrot.slane %v833, 4
        %v1256 = vor.u32 %v1254, %v1255
        %v1257 = vsel %vm1237, %v1252, %v1256
        %v1258 = vrot.slane %v839, 3
        %v1259 = vrot.slane %v842, 4
        %v1260 = vor.u32 %v1258, %v1259
        %v1261 = vsel %vm1237, %v1256, %v1260
        %v1262 = vrot.slane %v848, 3
        %v1263 = vrot.slane %v851, 4
        %v1264 = vor.u32 %v1262, %v1263
        %v1265 = vsel %vm1237, %v1260, %v1264
        %v1266 = vrot.slane %v857, 3
        %v1267 = vrot.slane %v860, 4
        %v1268 = vor.u32 %v1266, %v1267
        %v1269 = vsel %vm1237, %v1264, %v1268
        %v1270 = vrot.slane %v866, 3
        %v1271 = vrot.slane %v869, 4
        %v1272 = vor.u32 %v1270, %v1271
        %v1273 = vsel %vm1237, %v1268, %v1272
        %v1274 = vrot.slane %v875, 3
        %v1275 = vrot.slane %v878, 4
        %v1276 = vor.u32 %v1274, %v1275
        %v1277 = vsel %vm1237, %v1272, %v1276
        %v1278 = vrot.slane %v884, 3
        %v1279 = vrot.slane %v887, 4
        %v1280 = vor.u32 %v1278, %v1279
        %v1281 = vsel %vm1237, %v1276, %v1280
        %v1282 = vrot.slane %v893, 3
        %v1283 = vrot.slane %v896, 4
        %v1284 = vor.u32 %v1282, %v1283
        %v1285 = vsel %vm1237, %v1280, %v1284
        %v1286 = vrot.slane %v902, 3
        %v1287 = vrot.slane %v905, 4
        %v1288 = vor.u32 %v1286, %v1287
        %v1289 = vsel %vm1237, %v1284, %v1288
        %v1290 = vrot.slane %v911, 3
        %v1291 = vrot.slane %v914, 4
        %v1292 = vor.u32 %v1290, %v1291
        %v1293 = vsel %vm1237, %v1288, %v1292
        %v1294 = vrot.slane %v920, 3
        %v1295 = vrot.slane %v923, 4
        %v1296 = vor.u32 %v1294, %v1295
        %v1297 = vsel %vm1237, %v1292, %v1296
        %v1298 = vrot.slane %v929, 3
        %v1299 = vrot.slane %v932, 4
        %v1300 = vor.u32 %v1298, %v1299
        %v1301 = vsel %vm1237, %v1296, %v1300
        %v1302 = vrot.slane %v938, 3
        %v1303 = vrot.slane %v941, 4
        %v1304 = vor.u32 %v1302, %v1303
        %v1305 = vsel %vm1237, %v1300, %v1304
        %v1306 = vrot.slane %v947, 3
        %v1307 = vrot.slane %v950, 4
        %v1308 = vor.u32 %v1306, %v1307
        %v1309 = vsel %vm1237, %v1304, %v1308
        %v1310 = vrot.slane %v956, 3
        %v1311 = vrot.slane %v959, 4
        %v1312 = vor.u32 %v1310, %v1311
        %v1313 = vsel %vm1237, %v1308, %v1312
        %v1315 = vshrl.u32 %v1236, 16
        %v1317 = vrot.slane %v1315, 3
        %v1318 = vshll.u32 %v1236, 16
        %v1320 = vrot.slane %v1318, 4
        %v1321 = vor.u32 %v1317, %v1320
        %v1322 = vsel %vm1237, %v1312, %v1321
        %v1357 = vunpack.c.l.b16 %v1218
        %v1358 = vunpack.c.l.b16 %v1219
        %v1359 = vunpack.c.l.b16 %v1220
        %v1360 = vunpack.c.l.b16 %v1221
        %v1361 = vunpack.c.l.b16 %v1222
        %v1362 = vunpack.c.l.b16 %v1223
        %v1363 = vunpack.c.l.b16 %v1224
        %v1364 = vunpack.c.l.b16 %v1225
        %v1365 = vunpack.c.l.b16 %v1226
        %v1366 = vunpack.c.l.b16 %v1227
        %v1367 = vunpack.c.l.b16 %v1228
        %v1368 = vunpack.c.l.b16 %v1229
        %v1369 = vunpack.c.l.b16 %v1230
        %v1370 = vunpack.c.l.b16 %v1231
        %v1371 = vunpack.c.l.b16 %v1232
        %v1372 = vunpack.c.l.b16 %v1233
        %v1373 = vpack.c.b16 %v1358, %v1357
        %v1374 = vpack.c.b16 %v1360, %v1359
        %v1375 = vpack.c.b16 %v1362, %v1361
        %v1376 = vpack.c.b16 %v1364, %v1363
        %v1377 = vpack.c.b16 %v1366, %v1365
        %v1378 = vpack.c.b16 %v1368, %v1367
        %v1379 = vpack.c.b16 %v1370, %v1369
        %v1380 = vpack.c.b16 %v1372, %v1371
        %1389 = vmatprep.subr.bf16.mxu0 0
        %1390 = vmatpush1.bf16.msra.mxu0 %v1380
        %1391 = vmatprep.subr.bf16.mxu0 0
        %1392 = vmatpush1.bf16.msra.mxu0 %v1379
        %1393 = vmatprep.subr.bf16.mxu0 0
        %1394 = vmatpush1.bf16.msra.mxu0 %v1378
        %1395 = vmatprep.subr.bf16.mxu0 0
        %1396 = vmatpush1.bf16.msra.mxu0 %v1377
        %1397 = vmatprep.subr.bf16.mxu0 0
        %1398 = vmatpush1.bf16.msra.mxu0 %v1376
        %1399 = vmatprep.subr.bf16.mxu0 0
        %1400 = vmatpush1.bf16.msra.mxu0 %v1375
        %1401 = vmatprep.subr.bf16.mxu0 0
        %1402 = vmatpush1.bf16.msra.mxu0 %v1374
        %1403 = vmatprep.subr.bf16.mxu0 0
        %1404 = vmatpush1.bf16.msra.mxu0 %v1373
        %1405 = vmatprep.subr.bf16.mxu0 0
        %1406 = vmatpush2.bf16.msra.mxu0 0
        %1407 = vmatprep.subr.bf16.mxu0 0
        %1408 = vmatpush2.bf16.msra.mxu0 0
        %1409 = vmatprep.subr.bf16.mxu0 0
        %1410 = vmatpush2.bf16.msra.mxu0 0
        %1411 = vmatprep.subr.bf16.mxu0 0
        %1412 = vmatpush2.bf16.msra.mxu0 0
        %1413 = vmatprep.subr.bf16.mxu0 0
        %1414 = vmatpush2.bf16.msra.mxu0 0
        %1415 = vmatprep.subr.bf16.mxu0 0
        %1416 = vmatpush2.bf16.msra.mxu0 0
        %1417 = vmatprep.subr.bf16.mxu0 0
        %1418 = vmatpush2.bf16.msra.mxu0 0
        %1419 = vmatprep.subr.bf16.mxu0 0
        %1420 = vmatpush2.bf16.msra.mxu0 0
        %1421 = vmatprep.mubr.bf16.mxu0 0
        %1422 = vmatmul.mubr.bf16.gmra.mxu0 %v1249
        %v1423 = vpop.f32.mrf.mxu0
        %v1424 = vadd.f32 0.0, %v1423
        %v1425 = vpop.f32.mrf.mxu0
        %v1426 = vpop.f32.mrf.mxu0
        %v1427 = vadd.f32 0.0, %v1426
        %v1428 = vpop.f32.mrf.mxu0
        %1429 = vmatprep.mubr.bf16.mxu0 0
        %1430 = vmatmul.mubr.bf16.gmra.mxu0 %v1253
        %v1431 = vpop.f32.mrf.mxu0
        %v1432 = vadd.f32 0.0, %v1431
        %v1433 = vpop.f32.mrf.mxu0
        %v1434 = vpop.f32.mrf.mxu0
        %v1435 = vadd.f32 0.0, %v1434
        %v1436 = vpop.f32.mrf.mxu0
        %1437 = vmatprep.mubr.bf16.mxu0 0
        %1438 = vmatmul.mubr.bf16.gmra.mxu0 %v1257
        %v1439 = vpop.f32.mrf.mxu0
        %v1440 = vadd.f32 0.0, %v1439
        %v1441 = vpop.f32.mrf.mxu0
        %v1442 = vpop.f32.mrf.mxu0
        %v1443 = vadd.f32 0.0, %v1442
        %v1444 = vpop.f32.mrf.mxu0
        %1445 = vmatprep.mubr.bf16.mxu0 0
        %1446 = vmatmul.mubr.bf16.gmra.mxu0 %v1261
        %v1447 = vpop.f32.mrf.mxu0
        %v1448 = vadd.f32 0.0, %v1447
        %v1449 = vpop.f32.mrf.mxu0
        %v1450 = vpop.f32.mrf.mxu0
        %v1451 = vadd.f32 0.0, %v1450
        %v1452 = vpop.f32.mrf.mxu0
        %1453 = vmatprep.mubr.bf16.mxu0 0
        %1454 = vmatmul.mubr.bf16.gmra.mxu0 %v1265
        %v1455 = vpop.f32.mrf.mxu0
        %v1456 = vadd.f32 0.0, %v1455
        %v1457 = vpop.f32.mrf.mxu0
        %v1458 = vpop.f32.mrf.mxu0
        %v1459 = vadd.f32 0.0, %v1458
        %v1460 = vpop.f32.mrf.mxu0
        %1461 = vmatprep.mubr.bf16.mxu0 0
        %1462 = vmatmul.mubr.bf16.gmra.mxu0 %v1269
        %v1463 = vpop.f32.mrf.mxu0
        %v1464 = vadd.f32 0.0, %v1463
        %v1465 = vpop.f32.mrf.mxu0
        %v1466 = vpop.f32.mrf.mxu0
        %v1467 = vadd.f32 0.0, %v1466
        %v1468 = vpop.f32.mrf.mxu0
        %1469 = vmatprep.mubr.bf16.mxu0 0
        %1470 = vmatmul.mubr.bf16.gmra.mxu0 %v1273
        %v1471 = vpop.f32.mrf.mxu0
        %v1472 = vadd.f32 0.0, %v1471
        %v1473 = vpop.f32.mrf.mxu0
        %v1474 = vpop.f32.mrf.mxu0
        %v1475 = vadd.f32 0.0, %v1474
        %v1476 = vpop.f32.mrf.mxu0
        %1477 = vmatprep.mubr.bf16.mxu0 0
        %1478 = vmatmul.mubr.bf16.gmra.mxu0 %v1277
        %v1479 = vpop.f32.mrf.mxu0
        %v1480 = vadd.f32 0.0, %v1479
        %v1481 = vpop.f32.mrf.mxu0
        %v1482 = vpop.f32.mrf.mxu0
        %v1483 = vadd.f32 0.0, %v1482
        %v1484 = vpop.f32.mrf.mxu0
        %1485 = vmatprep.mubr.bf16.mxu0 0
        %1486 = vmatmul.mubr.bf16.gmra.mxu0 %v1281
        %v1487 = vpop.f32.mrf.mxu0
        %v1488 = vadd.f32 0.0, %v1487
        %v1489 = vpop.f32.mrf.mxu0
        %v1490 = vpop.f32.mrf.mxu0
        %v1491 = vadd.f32 0.0, %v1490
        %v1492 = vpop.f32.mrf.mxu0
        %1493 = vmatprep.mubr.bf16.mxu0 0
        %1494 = vmatmul.mubr.bf16.gmra.mxu0 %v1285
        %v1495 = vpop.f32.mrf.mxu0
        %v1496 = vadd.f32 0.0, %v1495
        %v1497 = vpop.f32.mrf.mxu0
        %v1498 = vpop.f32.mrf.mxu0
        %v1499 = vadd.f32 0.0, %v1498
        %v1500 = vpop.f32.mrf.mxu0
        %1501 = vmatprep.mubr.bf16.mxu0 0
        %1502 = vmatmul.mubr.bf16.gmra.mxu0 %v1289
        %v1503 = vpop.f32.mrf.mxu0
        %v1504 = vadd.f32 0.0, %v1503
        %v1505 = vpop.f32.mrf.mxu0
        %v1506 = vpop.f32.mrf.mxu0
        %v1507 = vadd.f32 0.0, %v1506
        %v1508 = vpop.f32.mrf.mxu0
        %1509 = vmatprep.mubr.bf16.mxu0 0
        %1510 = vmatmul.mubr.bf16.gmra.mxu0 %v1293
        %v1511 = vpop.f32.mrf.mxu0
        %v1512 = vadd.f32 0.0, %v1511
        %v1513 = vpop.f32.mrf.mxu0
        %v1514 = vpop.f32.mrf.mxu0
        %v1515 = vadd.f32 0.0, %v1514
        %v1516 = vpop.f32.mrf.mxu0
        %1517 = vmatprep.mubr.bf16.mxu0 0
        %1518 = vmatmul.mubr.bf16.gmra.mxu0 %v1297
        %v1519 = vpop.f32.mrf.mxu0
        %v1520 = vadd.f32 0.0, %v1519
        %v1521 = vpop.f32.mrf.mxu0
        %v1522 = vpop.f32.mrf.mxu0
        %v1523 = vadd.f32 0.0, %v1522
        %v1524 = vpop.f32.mrf.mxu0
        %1525 = vmatprep.mubr.bf16.mxu0 0
        %1526 = vmatmul.mubr.bf16.gmra.mxu0 %v1301
        %v1527 = vpop.f32.mrf.mxu0
        %v1528 = vadd.f32 0.0, %v1527
        %v1529 = vpop.f32.mrf.mxu0
        %v1530 = vpop.f32.mrf.mxu0
        %v1531 = vadd.f32 0.0, %v1530
        %v1532 = vpop.f32.mrf.mxu0
        %1533 = vmatprep.mubr.bf16.mxu0 0
        %1534 = vmatmul.mubr.bf16.gmra.mxu0 %v1305
        %v1535 = vpop.f32.mrf.mxu0
        %v1536 = vadd.f32 0.0, %v1535
        %v1537 = vpop.f32.mrf.mxu0
        %v1538 = vpop.f32.mrf.mxu0
        %v1539 = vadd.f32 0.0, %v1538
        %v1540 = vpop.f32.mrf.mxu0
        %1541 = vmatprep.mubr.bf16.mxu0 0
        %1542 = vmatmul.mubr.bf16.gmra.mxu0 %v1309
        %v1543 = vpop.f32.mrf.mxu0
        %v1544 = vadd.f32 0.0, %v1543
        %v1545 = vpop.f32.mrf.mxu0
        %v1546 = vpop.f32.mrf.mxu0
        %v1547 = vadd.f32 0.0, %v1546
        %v1548 = vpop.f32.mrf.mxu0
        %1549 = vmatprep.mubr.bf16.mxu0 0
        %1550 = vmatmul.mubr.bf16.gmra.mxu0 %v1313
        %v1551 = vpop.f32.mrf.mxu0
        %v1552 = vadd.f32 0.0, %v1551
        %v1553 = vpop.f32.mrf.mxu0
        %v1554 = vpop.f32.mrf.mxu0
        %v1555 = vadd.f32 0.0, %v1554
        %v1556 = vpop.f32.mrf.mxu0
        %1557 = vmatprep.mubr.bf16.mxu0 0
        %1558 = vmatmul.mubr.bf16.gmra.mxu0 %v1322
        %v1559 = vpop.f32.mrf.mxu0
        %v1560 = vadd.f32 0.0, %v1559
        %v1561 = vpop.f32.mrf.mxu0
        %v1562 = vpop.f32.mrf.mxu0
        %v1563 = vadd.f32 0.0, %v1562
        %v1564 = vpop.f32.mrf.mxu0
        %1565 = vdwg.mxu0
        %v1566 = vadd.f32 %v1074, %v1424
        %v1567 = vadd.f32 %v1077, %v1427
        %v1568 = vadd.f32 %v1082, %v1432
        %v1569 = vadd.f32 %v1085, %v1435
        %v1570 = vadd.f32 %v1090, %v1440
        %v1571 = vadd.f32 %v1093, %v1443
        %v1572 = vadd.f32 %v1098, %v1448
        %v1573 = vadd.f32 %v1101, %v1451
        %v1574 = vadd.f32 %v1106, %v1456
        %v1575 = vadd.f32 %v1109, %v1459
        %v1576 = vadd.f32 %v1114, %v1464
        %v1577 = vadd.f32 %v1117, %v1467
        %v1578 = vadd.f32 %v1122, %v1472
        %v1579 = vadd.f32 %v1125, %v1475
        %v1580 = vadd.f32 %v1130, %v1480
        %v1581 = vadd.f32 %v1133, %v1483
        %v1582 = vadd.f32 %v1138, %v1488
        %v1583 = vadd.f32 %v1141, %v1491
        %v1584 = vadd.f32 %v1146, %v1496
        %v1585 = vadd.f32 %v1149, %v1499
        %v1586 = vadd.f32 %v1154, %v1504
        %v1587 = vadd.f32 %v1157, %v1507
        %v1588 = vadd.f32 %v1162, %v1512
        %v1589 = vadd.f32 %v1165, %v1515
        %v1590 = vadd.f32 %v1170, %v1520
        %v1591 = vadd.f32 %v1173, %v1523
        %v1592 = vadd.f32 %v1178, %v1528
        %v1593 = vadd.f32 %v1181, %v1531
        %v1594 = vadd.f32 %v1186, %v1536
        %v1595 = vadd.f32 %v1189, %v1539
        %v1596 = vadd.f32 %v1194, %v1544
        %v1597 = vadd.f32 %v1197, %v1547
        %v1598 = vadd.f32 %v1202, %v1552
        %v1599 = vadd.f32 %v1205, %v1555
        %v1600 = vadd.f32 %v1210, %v1560
        %v1601 = vadd.f32 %v1213, %v1563
        %v1602 = vld [vmem:[%s312 + $0x8] sm:$0x8]
        %v1603 = vld [vmem:[%s312 + $0xc] sm:$0xf]
        %v1604 = vld [vmem:[%s312 + $0x10] sm:$0xf]
        %v1605 = vld [vmem:[%s312 + $0x14] sm:$0xf]
        %v1606 = vld [vmem:[%s312 + $0x18] sm:$0xf]
        %v1607 = vld [vmem:[%s312 + $0x1c] sm:$0xf]
        %v1608 = vld [vmem:[%s312 + $0x20] sm:$0xf]
        %v1609 = vld [vmem:[%s312 + $0x24] sm:$0xf]
        %v1610 = vld [vmem:[%s312 + $0x28] sm:$0xf]
        %v1611 = vld [vmem:[%s312 + $0x2c] sm:$0xf]
        %v1612 = vld [vmem:[%s312 + $0x30] sm:$0xf]
        %v1613 = vld [vmem:[%s312 + $0x34] sm:$0xf]
        %v1614 = vld [vmem:[%s312 + $0x38] sm:$0xf]
        %v1615 = vld [vmem:[%s312 + $0x3c] sm:$0xf]
        %v1616 = vld [vmem:[%s312 + $0x40] sm:$0xf]
        %v1617 = vld [vmem:[%s312 + $0x44] sm:$0xf]
        %v1618 = vld [vmem:[%s312 + $0x48] sm:$0xf]
        %v1619 = vld [vmem:[%s312 + $0x4c] sm:$0xf]
        %v1620 = vld [vmem:[%s312 + $0x50] sm:$0xf]
        %v1621 = vld [vmem:[%s312 + $0x54] sm:$0xf]
        %v1622 = vld [vmem:[%s312 + $0x58] sm:$0xf]
        %v1623 = vld [vmem:[%s312 + $0x5c] sm:$0xf]
        %v1624 = vld [vmem:[%s312 + $0x60] sm:$0xf]
        %v1625 = vld [vmem:[%s312 + $0x64] sm:$0xf]
        %v1626 = vld [vmem:[%s312 + $0x68] sm:$0xf]
        %v1627 = vld [vmem:[%s312 + $0x6c] sm:$0xf]
        %v1628 = vld [vmem:[%s312 + $0x70] sm:$0xf]
        %v1629 = vld [vmem:[%s312 + $0x74] sm:$0xf]
        %v1630 = vld [vmem:[%s312 + $0x78] sm:$0xf]
        %v1631 = vld [vmem:[%s312 + $0x7c] sm:$0xf]
        %v1632 = vld [vmem:[%s312 + $0x80] sm:$0xf]
        %v1633 = vld [vmem:[%s312 + $0x84] sm:$0xf]
        %v1634 = vld [vmem:[%s312 + $0x88] sm:$0xf]
        %v1635 = vld [vmem:[%s312 + $0x8c] sm:$0xf]
        %v1636 = vld [vmem:[%s312 + $0x90] sm:$0xf]
        %v1637 = vld [vmem:[%s312 + $0x94] sm:$0xf]
        %v1638 = vld [vmem:[%s312 + $0x98] sm:$0xf]
        %s1639 = scalar_lea.vmem [#allocation6], 192
        %v1640 = vld [vmem:[%s1639] sm:$0xf]
        %v1641 = vld [vmem:[%s1639 + $0x4] sm:$0xf]
        %v1642 = vld [vmem:[%s1639 + $0x8] sm:$0xf]
        %v1643 = vld [vmem:[%s1639 + $0xc] sm:$0xf]
        %v1644 = vld [vmem:[%s1639 + $0x10] sm:$0xf]
        %v1645 = vld [vmem:[%s1639 + $0x14] sm:$0xf]
        %v1646 = vld [vmem:[%s1639 + $0x18] sm:$0xf]
        %v1647 = vld [vmem:[%s1639 + $0x1c] sm:$0xf]
        %v1648 = vld [vmem:[%s1639 + $0x20] sm:$0xf]
        %v1649 = vld [vmem:[%s1639 + $0x24] sm:$0xf]
        %v1650 = vld [vmem:[%s1639 + $0x28] sm:$0xf]
        %v1651 = vld [vmem:[%s1639 + $0x2c] sm:$0xf]
        %v1652 = vld [vmem:[%s1639 + $0x30] sm:$0xf]
        %v1653 = vld [vmem:[%s1639 + $0x34] sm:$0xf]
        %v1654 = vld [vmem:[%s1639 + $0x38] sm:$0xf]
        %v1655 = vld [vmem:[%s1639 + $0x3c] sm:$0xf]
        %v1693 = vunpack.c.l.b16 %v1602
        %v1694 = vunpack.c.l.b16 %v1603
        %v1695 = vunpack.c.l.b16 %v1604
        %v1696 = vunpack.c.l.b16 %v1605
        %v1697 = vunpack.c.l.b16 %v1606
        %v1698 = vunpack.c.l.b16 %v1607
        %v1699 = vunpack.c.l.b16 %v1608
        %v1700 = vunpack.c.l.b16 %v1609
        %v1701 = vunpack.c.l.b16 %v1610
        %v1702 = vunpack.c.l.b16 %v1611
        %v1703 = vunpack.c.l.b16 %v1612
        %v1704 = vunpack.c.l.b16 %v1613
        %v1705 = vunpack.c.l.b16 %v1614
        %v1706 = vunpack.c.l.b16 %v1615
        %v1707 = vunpack.c.l.b16 %v1616
        %v1708 = vunpack.c.l.b16 %v1617
        %v1709 = vunpack.c.l.b16 %v1618
        %v1710 = vunpack.c.l.b16 %v1619
        %v1711 = vunpack.c.l.b16 %v1620
        %v1712 = vunpack.c.l.b16 %v1621
        %v1713 = vunpack.c.l.b16 %v1622
        %v1714 = vunpack.c.l.b16 %v1623
        %v1715 = vunpack.c.l.b16 %v1624
        %v1716 = vunpack.c.l.b16 %v1625
        %v1717 = vunpack.c.l.b16 %v1626
        %v1718 = vunpack.c.l.b16 %v1627
        %v1719 = vunpack.c.l.b16 %v1628
        %v1720 = vunpack.c.l.b16 %v1629
        %v1721 = vunpack.c.l.b16 %v1630
        %v1722 = vunpack.c.l.b16 %v1631
        %v1723 = vunpack.c.l.b16 %v1632
        %v1724 = vunpack.c.l.b16 %v1633
        %v1725 = vunpack.c.l.b16 %v1634
        %v1726 = vunpack.c.l.b16 %v1635
        %v1727 = vunpack.c.l.b16 %v1636
        %v1728 = vunpack.c.l.b16 %v1637
        %v1729 = vunpack.c.l.b16 %v1638
        %v1730 = vpack.c.b16 %v1694, %v1693
        %v1731 = vpack.c.b16 %v1696, %v1695
        %v1732 = vpack.c.b16 %v1698, %v1697
        %v1733 = vpack.c.b16 %v1700, %v1699
        %v1734 = vpack.c.b16 %v1702, %v1701
        %v1735 = vpack.c.b16 %v1704, %v1703
        %v1736 = vpack.c.b16 %v1706, %v1705
        %v1737 = vpack.c.b16 %v1708, %v1707
        %v1738 = vpack.c.b16 %v1710, %v1709
        %v1739 = vpack.c.b16 %v1712, %v1711
        %v1740 = vpack.c.b16 %v1714, %v1713
        %v1741 = vpack.c.b16 %v1716, %v1715
        %v1742 = vpack.c.b16 %v1718, %v1717
        %v1743 = vpack.c.b16 %v1720, %v1719
        %v1744 = vpack.c.b16 %v1722, %v1721
        %v1745 = vpack.c.b16 %v1724, %v1723
        %v1746 = vpack.c.b16 %v1726, %v1725
        %v1747 = vpack.c.b16 %v1728, %v1727
        %v1748 = vpack.c.b16 %v1729, %v1729
        %v1750 = vshrl.u32 %v1730, 16
        %v1752 = vrot.slane %v1750, 3
        %v1753 = vshll.u32 %v1730, 16
        %v1755 = vrot.slane %v1753, 4
        %v1756 = vor.u32 %v1752, %v1755
        %v1758 = vshrl.u32 %v1731, 16
        %v1760 = vrot.slane %v1758, 3
        %v1761 = vshll.u32 %v1731, 16
        %v1763 = vrot.slane %v1761, 4
        %v1764 = vor.u32 %v1760, %v1763
        %v1765 = vsel %vm1237, %v1756, %v1764
        %v1767 = vshrl.u32 %v1732, 16
        %v1769 = vrot.slane %v1767, 3
        %v1770 = vshll.u32 %v1732, 16
        %v1772 = vrot.slane %v1770, 4
        %v1773 = vor.u32 %v1769, %v1772
        %v1774 = vsel %vm1237, %v1764, %v1773
        %v1776 = vshrl.u32 %v1733, 16
        %v1778 = vrot.slane %v1776, 3
        %v1779 = vshll.u32 %v1733, 16
        %v1781 = vrot.slane %v1779, 4
        %v1782 = vor.u32 %v1778, %v1781
        %v1783 = vsel %vm1237, %v1773, %v1782
        %v1785 = vshrl.u32 %v1734, 16
        %v1787 = vrot.slane %v1785, 3
        %v1788 = vshll.u32 %v1734, 16
        %v1790 = vrot.slane %v1788, 4
        %v1791 = vor.u32 %v1787, %v1790
        %v1792 = vsel %vm1237, %v1782, %v1791
        %v1794 = vshrl.u32 %v1735, 16
        %v1796 = vrot.slane %v1794, 3
        %v1797 = vshll.u32 %v1735, 16
        %v1799 = vrot.slane %v1797, 4
        %v1800 = vor.u32 %v1796, %v1799
        %v1801 = vsel %vm1237, %v1791, %v1800
        %v1803 = vshrl.u32 %v1736, 16
        %v1805 = vrot.slane %v1803, 3
        %v1806 = vshll.u32 %v1736, 16
        %v1808 = vrot.slane %v1806, 4
        %v1809 = vor.u32 %v1805, %v1808
        %v1810 = vsel %vm1237, %v1800, %v1809
        %v1812 = vshrl.u32 %v1737, 16
        %v1814 = vrot.slane %v1812, 3
        %v1815 = vshll.u32 %v1737, 16
        %v1817 = vrot.slane %v1815, 4
        %v1818 = vor.u32 %v1814, %v1817
        %v1819 = vsel %vm1237, %v1809, %v1818
        %v1821 = vshrl.u32 %v1738, 16
        %v1823 = vrot.slane %v1821, 3
        %v1824 = vshll.u32 %v1738, 16
        %v1826 = vrot.slane %v1824, 4
        %v1827 = vor.u32 %v1823, %v1826
        %v1828 = vsel %vm1237, %v1818, %v1827
        %v1830 = vshrl.u32 %v1739, 16
        %v1832 = vrot.slane %v1830, 3
        %v1833 = vshll.u32 %v1739, 16
        %v1835 = vrot.slane %v1833, 4
        %v1836 = vor.u32 %v1832, %v1835
        %v1837 = vsel %vm1237, %v1827, %v1836
        %v1839 = vshrl.u32 %v1740, 16
        %v1841 = vrot.slane %v1839, 3
        %v1842 = vshll.u32 %v1740, 16
        %v1844 = vrot.slane %v1842, 4
        %v1845 = vor.u32 %v1841, %v1844
        %v1846 = vsel %vm1237, %v1836, %v1845
        %v1848 = vshrl.u32 %v1741, 16
        %v1850 = vrot.slane %v1848, 3
        %v1851 = vshll.u32 %v1741, 16
        %v1853 = vrot.slane %v1851, 4
        %v1854 = vor.u32 %v1850, %v1853
        %v1855 = vsel %vm1237, %v1845, %v1854
        %v1857 = vshrl.u32 %v1742, 16
        %v1859 = vrot.slane %v1857, 3
        %v1860 = vshll.u32 %v1742, 16
        %v1862 = vrot.slane %v1860, 4
        %v1863 = vor.u32 %v1859, %v1862
        %v1864 = vsel %vm1237, %v1854, %v1863
        %v1866 = vshrl.u32 %v1743, 16
        %v1868 = vrot.slane %v1866, 3
        %v1869 = vshll.u32 %v1743, 16
        %v1871 = vrot.slane %v1869, 4
        %v1872 = vor.u32 %v1868, %v1871
        %v1873 = vsel %vm1237, %v1863, %v1872
        %v1875 = vshrl.u32 %v1744, 16
        %v1877 = vrot.slane %v1875, 3
        %v1878 = vshll.u32 %v1744, 16
        %v1880 = vrot.slane %v1878, 4
        %v1881 = vor.u32 %v1877, %v1880
        %v1882 = vsel %vm1237, %v1872, %v1881
        %v1884 = vshrl.u32 %v1745, 16
        %v1886 = vrot.slane %v1884, 3
        %v1887 = vshll.u32 %v1745, 16
        %v1889 = vrot.slane %v1887, 4
        %v1890 = vor.u32 %v1886, %v1889
        %v1891 = vsel %vm1237, %v1881, %v1890
        %v1893 = vshrl.u32 %v1746, 16
        %v1895 = vrot.slane %v1893, 3
        %v1896 = vshll.u32 %v1746, 16
        %v1898 = vrot.slane %v1896, 4
        %v1899 = vor.u32 %v1895, %v1898
        %v1900 = vsel %vm1237, %v1890, %v1899
        %v1902 = vshrl.u32 %v1747, 16
        %v1904 = vrot.slane %v1902, 3
        %v1905 = vshll.u32 %v1747, 16
        %v1907 = vrot.slane %v1905, 4
        %v1908 = vor.u32 %v1904, %v1907
        %v1909 = vsel %vm1237, %v1899, %v1908
        %v1911 = vshrl.u32 %v1748, 16
        %v1913 = vrot.slane %v1911, 3
        %v1914 = vshll.u32 %v1748, 16
        %v1916 = vrot.slane %v1914, 4
        %v1917 = vor.u32 %v1913, %v1916
        %v1918 = vsel %vm1237, %v1908, %v1917
        %v1953 = vunpack.c.l.b16 %v1640
        %v1954 = vunpack.c.l.b16 %v1641
        %v1955 = vunpack.c.l.b16 %v1642
        %v1956 = vunpack.c.l.b16 %v1643
        %v1957 = vunpack.c.l.b16 %v1644
        %v1958 = vunpack.c.l.b16 %v1645
        %v1959 = vunpack.c.l.b16 %v1646
        %v1960 = vunpack.c.l.b16 %v1647
        %v1961 = vunpack.c.l.b16 %v1648
        %v1962 = vunpack.c.l.b16 %v1649
        %v1963 = vunpack.c.l.b16 %v1650
        %v1964 = vunpack.c.l.b16 %v1651
        %v1965 = vunpack.c.l.b16 %v1652
        %v1966 = vunpack.c.l.b16 %v1653
        %v1967 = vunpack.c.l.b16 %v1654
        %v1968 = vunpack.c.l.b16 %v1655
        %v1969 = vpack.c.b16 %v1954, %v1953
        %v1970 = vpack.c.b16 %v1956, %v1955
        %v1971 = vpack.c.b16 %v1958, %v1957
        %v1972 = vpack.c.b16 %v1960, %v1959
        %v1973 = vpack.c.b16 %v1962, %v1961
        %v1974 = vpack.c.b16 %v1964, %v1963
        %v1975 = vpack.c.b16 %v1966, %v1965
        %v1976 = vpack.c.b16 %v1968, %v1967
        %1985 = vmatprep.subr.bf16.mxu0 0
        %1986 = vmatpush1.bf16.msra.mxu0 %v1976
        %1987 = vmatprep.subr.bf16.mxu0 0
        %1988 = vmatpush1.bf16.msra.mxu0 %v1975
        %1989 = vmatprep.subr.bf16.mxu0 0
        %1990 = vmatpush1.bf16.msra.mxu0 %v1974
        %1991 = vmatprep.subr.bf16.mxu0 0
        %1992 = vmatpush1.bf16.msra.mxu0 %v1973
        %1993 = vmatprep.subr.bf16.mxu0 0
        %1994 = vmatpush1.bf16.msra.mxu0 %v1972
        %1995 = vmatprep.subr.bf16.mxu0 0
        %1996 = vmatpush1.bf16.msra.mxu0 %v1971
        %1997 = vmatprep.subr.bf16.mxu0 0
        %1998 = vmatpush1.bf16.msra.mxu0 %v1970
        %1999 = vmatprep.subr.bf16.mxu0 0
        %2000 = vmatpush1.bf16.msra.mxu0 %v1969
        %2001 = vmatprep.subr.bf16.mxu0 0
        %2002 = vmatpush2.bf16.msra.mxu0 0
        %2003 = vmatprep.subr.bf16.mxu0 0
        %2004 = vmatpush2.bf16.msra.mxu0 0
        %2005 = vmatprep.subr.bf16.mxu0 0
        %2006 = vmatpush2.bf16.msra.mxu0 0
        %2007 = vmatprep.subr.bf16.mxu0 0
        %2008 = vmatpush2.bf16.msra.mxu0 0
        %2009 = vmatprep.subr.bf16.mxu0 0
        %2010 = vmatpush2.bf16.msra.mxu0 0
        %2011 = vmatprep.subr.bf16.mxu0 0
        %2012 = vmatpush2.bf16.msra.mxu0 0
        %2013 = vmatprep.subr.bf16.mxu0 0
        %2014 = vmatpush2.bf16.msra.mxu0 0
        %2015 = vmatprep.subr.bf16.mxu0 0
        %2016 = vmatpush2.bf16.msra.mxu0 0
        %2017 = vmatprep.mubr.bf16.mxu0 0
        %2018 = vmatmul.mubr.bf16.gmra.mxu0 %v1765
        %v2019 = vpop.f32.mrf.mxu0
        %v2020 = vadd.f32 0.0, %v2019
        %v2021 = vpop.f32.mrf.mxu0
        %v2022 = vpop.f32.mrf.mxu0
        %v2023 = vadd.f32 0.0, %v2022
        %v2024 = vpop.f32.mrf.mxu0
        %2025 = vmatprep.mubr.bf16.mxu0 0
        %2026 = vmatmul.mubr.bf16.gmra.mxu0 %v1774
        %v2027 = vpop.f32.mrf.mxu0
        %v2028 = vadd.f32 0.0, %v2027
        %v2029 = vpop.f32.mrf.mxu0
        %v2030 = vpop.f32.mrf.mxu0
        %v2031 = vadd.f32 0.0, %v2030
        %v2032 = vpop.f32.mrf.mxu0
        %2033 = vmatprep.mubr.bf16.mxu0 0
        %2034 = vmatmul.mubr.bf16.gmra.mxu0 %v1783
        %v2035 = vpop.f32.mrf.mxu0
        %v2036 = vadd.f32 0.0, %v2035
        %v2037 = vpop.f32.mrf.mxu0
        %v2038 = vpop.f32.mrf.mxu0
        %v2039 = vadd.f32 0.0, %v2038
        %v2040 = vpop.f32.mrf.mxu0
        %2041 = vmatprep.mubr.bf16.mxu0 0
        %2042 = vmatmul.mubr.bf16.gmra.mxu0 %v1792
        %v2043 = vpop.f32.mrf.mxu0
        %v2044 = vadd.f32 0.0, %v2043
        %v2045 = vpop.f32.mrf.mxu0
        %v2046 = vpop.f32.mrf.mxu0
        %v2047 = vadd.f32 0.0, %v2046
        %v2048 = vpop.f32.mrf.mxu0
        %2049 = vmatprep.mubr.bf16.mxu0 0
        %2050 = vmatmul.mubr.bf16.gmra.mxu0 %v1801
        %v2051 = vpop.f32.mrf.mxu0
        %v2052 = vadd.f32 0.0, %v2051
        %v2053 = vpop.f32.mrf.mxu0
        %v2054 = vpop.f32.mrf.mxu0
        %v2055 = vadd.f32 0.0, %v2054
        %v2056 = vpop.f32.mrf.mxu0
        %2057 = vmatprep.mubr.bf16.mxu0 0
        %2058 = vmatmul.mubr.bf16.gmra.mxu0 %v1810
        %v2059 = vpop.f32.mrf.mxu0
        %v2060 = vadd.f32 0.0, %v2059
        %v2061 = vpop.f32.mrf.mxu0
        %v2062 = vpop.f32.mrf.mxu0
        %v2063 = vadd.f32 0.0, %v2062
        %v2064 = vpop.f32.mrf.mxu0
        %2065 = vmatprep.mubr.bf16.mxu0 0
        %2066 = vmatmul.mubr.bf16.gmra.mxu0 %v1819
        %v2067 = vpop.f32.mrf.mxu0
        %v2068 = vadd.f32 0.0, %v2067
        %v2069 = vpop.f32.mrf.mxu0
        %v2070 = vpop.f32.mrf.mxu0
        %v2071 = vadd.f32 0.0, %v2070
        %v2072 = vpop.f32.mrf.mxu0
        %2073 = vmatprep.mubr.bf16.mxu0 0
        %2074 = vmatmul.mubr.bf16.gmra.mxu0 %v1828
        %v2075 = vpop.f32.mrf.mxu0
        %v2076 = vadd.f32 0.0, %v2075
        %v2077 = vpop.f32.mrf.mxu0
        %v2078 = vpop.f32.mrf.mxu0
        %v2079 = vadd.f32 0.0, %v2078
        %v2080 = vpop.f32.mrf.mxu0
        %2081 = vmatprep.mubr.bf16.mxu0 0
        %2082 = vmatmul.mubr.bf16.gmra.mxu0 %v1837
        %v2083 = vpop.f32.mrf.mxu0
        %v2084 = vadd.f32 0.0, %v2083
        %v2085 = vpop.f32.mrf.mxu0
        %v2086 = vpop.f32.mrf.mxu0
        %v2087 = vadd.f32 0.0, %v2086
        %v2088 = vpop.f32.mrf.mxu0
        %2089 = vmatprep.mubr.bf16.mxu0 0
        %2090 = vmatmul.mubr.bf16.gmra.mxu0 %v1846
        %v2091 = vpop.f32.mrf.mxu0
        %v2092 = vadd.f32 0.0, %v2091
        %v2093 = vpop.f32.mrf.mxu0
        %v2094 = vpop.f32.mrf.mxu0
        %v2095 = vadd.f32 0.0, %v2094
        %v2096 = vpop.f32.mrf.mxu0
        %2097 = vmatprep.mubr.bf16.mxu0 0
        %2098 = vmatmul.mubr.bf16.gmra.mxu0 %v1855
        %v2099 = vpop.f32.mrf.mxu0
        %v2100 = vadd.f32 0.0, %v2099
        %v2101 = vpop.f32.mrf.mxu0
        %v2102 = vpop.f32.mrf.mxu0
        %v2103 = vadd.f32 0.0, %v2102
        %v2104 = vpop.f32.mrf.mxu0
        %2105 = vmatprep.mubr.bf16.mxu0 0
        %2106 = vmatmul.mubr.bf16.gmra.mxu0 %v1864
        %v2107 = vpop.f32.mrf.mxu0
        %v2108 = vadd.f32 0.0, %v2107
        %v2109 = vpop.f32.mrf.mxu0
        %v2110 = vpop.f32.mrf.mxu0
        %v2111 = vadd.f32 0.0, %v2110
        %v2112 = vpop.f32.mrf.mxu0
        %2113 = vmatprep.mubr.bf16.mxu0 0
        %2114 = vmatmul.mubr.bf16.gmra.mxu0 %v1873
        %v2115 = vpop.f32.mrf.mxu0
        %v2116 = vadd.f32 0.0, %v2115
        %v2117 = vpop.f32.mrf.mxu0
        %v2118 = vpop.f32.mrf.mxu0
        %v2119 = vadd.f32 0.0, %v2118
        %v2120 = vpop.f32.mrf.mxu0
        %2121 = vmatprep.mubr.bf16.mxu0 0
        %2122 = vmatmul.mubr.bf16.gmra.mxu0 %v1882
        %v2123 = vpop.f32.mrf.mxu0
        %v2124 = vadd.f32 0.0, %v2123
        %v2125 = vpop.f32.mrf.mxu0
        %v2126 = vpop.f32.mrf.mxu0
        %v2127 = vadd.f32 0.0, %v2126
        %v2128 = vpop.f32.mrf.mxu0
        %2129 = vmatprep.mubr.bf16.mxu0 0
        %2130 = vmatmul.mubr.bf16.gmra.mxu0 %v1891
        %v2131 = vpop.f32.mrf.mxu0
        %v2132 = vadd.f32 0.0, %v2131
        %v2133 = vpop.f32.mrf.mxu0
        %v2134 = vpop.f32.mrf.mxu0
        %v2135 = vadd.f32 0.0, %v2134
        %v2136 = vpop.f32.mrf.mxu0
        %2137 = vmatprep.mubr.bf16.mxu0 0
        %2138 = vmatmul.mubr.bf16.gmra.mxu0 %v1900
        %v2139 = vpop.f32.mrf.mxu0
        %v2140 = vadd.f32 0.0, %v2139
        %v2141 = vpop.f32.mrf.mxu0
        %v2142 = vpop.f32.mrf.mxu0
        %v2143 = vadd.f32 0.0, %v2142
        %v2144 = vpop.f32.mrf.mxu0
        %2145 = vmatprep.mubr.bf16.mxu0 0
        %2146 = vmatmul.mubr.bf16.gmra.mxu0 %v1909
        %v2147 = vpop.f32.mrf.mxu0
        %v2148 = vadd.f32 0.0, %v2147
        %v2149 = vpop.f32.mrf.mxu0
        %v2150 = vpop.f32.mrf.mxu0
        %v2151 = vadd.f32 0.0, %v2150
        %v2152 = vpop.f32.mrf.mxu0
        %2153 = vmatprep.mubr.bf16.mxu0 0
        %2154 = vmatmul.mubr.bf16.gmra.mxu0 %v1918
        %v2155 = vpop.f32.mrf.mxu0
        %v2156 = vadd.f32 0.0, %v2155
        %v2157 = vpop.f32.mrf.mxu0
        %v2158 = vpop.f32.mrf.mxu0
        %v2159 = vadd.f32 0.0, %v2158
        %v2160 = vpop.f32.mrf.mxu0
        %2161 = vdwg.mxu0
        %v2162 = vadd.f32 %v1566, %v2020
        %v2163 = vadd.f32 %v1567, %v2023
        %v2164 = vadd.f32 %v1568, %v2028
        %v2165 = vadd.f32 %v1569, %v2031
        %v2166 = vadd.f32 %v1570, %v2036
        %v2167 = vadd.f32 %v1571, %v2039
        %v2168 = vadd.f32 %v1572, %v2044
        %v2169 = vadd.f32 %v1573, %v2047
        %v2170 = vadd.f32 %v1574, %v2052
        %v2171 = vadd.f32 %v1575, %v2055
        %v2172 = vadd.f32 %v1576, %v2060
        %v2173 = vadd.f32 %v1577, %v2063
        %v2174 = vadd.f32 %v1578, %v2068
        %v2175 = vadd.f32 %v1579, %v2071
        %v2176 = vadd.f32 %v1580, %v2076
        %v2177 = vadd.f32 %v1581, %v2079
        %v2178 = vadd.f32 %v1582, %v2084
        %v2179 = vadd.f32 %v1583, %v2087
        %v2180 = vadd.f32 %v1584, %v2092
        %v2181 = vadd.f32 %v1585, %v2095
        %v2182 = vadd.f32 %v1586, %v2100
        %v2183 = vadd.f32 %v1587, %v2103
        %v2184 = vadd.f32 %v1588, %v2108
        %v2185 = vadd.f32 %v1589, %v2111
        %v2186 = vadd.f32 %v1590, %v2116
        %v2187 = vadd.f32 %v1591, %v2119
        %v2188 = vadd.f32 %v1592, %v2124
        %v2189 = vadd.f32 %v1593, %v2127
        %v2190 = vadd.f32 %v1594, %v2132
        %v2191 = vadd.f32 %v1595, %v2135
        %v2192 = vadd.f32 %v1596, %v2140
        %v2193 = vadd.f32 %v1597, %v2143
        %v2194 = vadd.f32 %v1598, %v2148
        %v2195 = vadd.f32 %v1599, %v2151
        %v2196 = vadd.f32 %v1600, %v2156
        %v2197 = vadd.f32 %v1601, %v2159
        %s2198 = scalar_lea.vmem [#allocation6], 256
        %v2199 = vld [vmem:[%s2198] sm:$0xf]
        %v2200 = vld [vmem:[%s2198 + $0x4] sm:$0xf]
        %v2201 = vld [vmem:[%s2198 + $0x8] sm:$0xf]
        %v2202 = vld [vmem:[%s2198 + $0xc] sm:$0xf]
        %v2203 = vld [vmem:[%s2198 + $0x10] sm:$0xf]
        %v2204 = vld [vmem:[%s2198 + $0x14] sm:$0xf]
        %v2205 = vld [vmem:[%s2198 + $0x18] sm:$0xf]
        %v2206 = vld [vmem:[%s2198 + $0x1c] sm:$0xf]
        %v2207 = vld [vmem:[%s2198 + $0x20] sm:$0xf]
        %v2208 = vld [vmem:[%s2198 + $0x24] sm:$0xf]
        %v2209 = vld [vmem:[%s2198 + $0x28] sm:$0xf]
        %v2210 = vld [vmem:[%s2198 + $0x2c] sm:$0xf]
        %v2211 = vld [vmem:[%s2198 + $0x30] sm:$0xf]
        %v2212 = vld [vmem:[%s2198 + $0x34] sm:$0xf]
        %v2213 = vld [vmem:[%s2198 + $0x38] sm:$0xf]
        %v2214 = vld [vmem:[%s2198 + $0x3c] sm:$0xf]
        %v2215 = vpack.c.b16 %v1695, %v1694
        %v2216 = vpack.c.b16 %v1697, %v1696
        %v2217 = vpack.c.b16 %v1699, %v1698
        %v2218 = vpack.c.b16 %v1701, %v1700
        %v2219 = vpack.c.b16 %v1703, %v1702
        %v2220 = vpack.c.b16 %v1705, %v1704
        %v2221 = vpack.c.b16 %v1707, %v1706
        %v2222 = vpack.c.b16 %v1709, %v1708
        %v2223 = vpack.c.b16 %v1711, %v1710
        %v2224 = vpack.c.b16 %v1713, %v1712
        %v2225 = vpack.c.b16 %v1715, %v1714
        %v2226 = vpack.c.b16 %v1717, %v1716
        %v2227 = vpack.c.b16 %v1719, %v1718
        %v2228 = vpack.c.b16 %v1721, %v1720
        %v2229 = vpack.c.b16 %v1723, %v1722
        %v2230 = vpack.c.b16 %v1725, %v1724
        %v2231 = vpack.c.b16 %v1727, %v1726
        %v2232 = vpack.c.b16 %v1729, %v1728
        %v2267 = vunpack.c.l.b16 %v2199
        %v2268 = vunpack.c.l.b16 %v2200
        %v2269 = vunpack.c.l.b16 %v2201
        %v2270 = vunpack.c.l.b16 %v2202
        %v2271 = vunpack.c.l.b16 %v2203
        %v2272 = vunpack.c.l.b16 %v2204
        %v2273 = vunpack.c.l.b16 %v2205
        %v2274 = vunpack.c.l.b16 %v2206
        %v2275 = vunpack.c.l.b16 %v2207
        %v2276 = vunpack.c.l.b16 %v2208
        %v2277 = vunpack.c.l.b16 %v2209
        %v2278 = vunpack.c.l.b16 %v2210
        %v2279 = vunpack.c.l.b16 %v2211
        %v2280 = vunpack.c.l.b16 %v2212
        %v2281 = vunpack.c.l.b16 %v2213
        %v2282 = vunpack.c.l.b16 %v2214
        %v2283 = vpack.c.b16 %v2268, %v2267
        %v2284 = vpack.c.b16 %v2270, %v2269
        %v2285 = vpack.c.b16 %v2272, %v2271
        %v2286 = vpack.c.b16 %v2274, %v2273
        %v2287 = vpack.c.b16 %v2276, %v2275
        %v2288 = vpack.c.b16 %v2278, %v2277
        %v2289 = vpack.c.b16 %v2280, %v2279
        %v2290 = vpack.c.b16 %v2282, %v2281
        %2299 = vmatprep.subr.bf16.mxu0 0
        %2300 = vmatpush1.bf16.msra.mxu0 %v2290
        %2301 = vmatprep.subr.bf16.mxu0 0
        %2302 = vmatpush1.bf16.msra.mxu0 %v2289
        %2303 = vmatprep.subr.bf16.mxu0 0
        %2304 = vmatpush1.bf16.msra.mxu0 %v2288
        %2305 = vmatprep.subr.bf16.mxu0 0
        %2306 = vmatpush1.bf16.msra.mxu0 %v2287
        %2307 = vmatprep.subr.bf16.mxu0 0
        %2308 = vmatpush1.bf16.msra.mxu0 %v2286
        %2309 = vmatprep.subr.bf16.mxu0 0
        %2310 = vmatpush1.bf16.msra.mxu0 %v2285
        %2311 = vmatprep.subr.bf16.mxu0 0
        %2312 = vmatpush1.bf16.msra.mxu0 %v2284
        %2313 = vmatprep.subr.bf16.mxu0 0
        %2314 = vmatpush1.bf16.msra.mxu0 %v2283
        %2315 = vmatprep.subr.bf16.mxu0 0
        %2316 = vmatpush2.bf16.msra.mxu0 0
        %2317 = vmatprep.subr.bf16.mxu0 0
        %2318 = vmatpush2.bf16.msra.mxu0 0
        %2319 = vmatprep.subr.bf16.mxu0 0
        %2320 = vmatpush2.bf16.msra.mxu0 0
        %2321 = vmatprep.subr.bf16.mxu0 0
        %2322 = vmatpush2.bf16.msra.mxu0 0
        %2323 = vmatprep.subr.bf16.mxu0 0
        %2324 = vmatpush2.bf16.msra.mxu0 0
        %2325 = vmatprep.subr.bf16.mxu0 0
        %2326 = vmatpush2.bf16.msra.mxu0 0
        %2327 = vmatprep.subr.bf16.mxu0 0
        %2328 = vmatpush2.bf16.msra.mxu0 0
        %2329 = vmatprep.subr.bf16.mxu0 0
        %2330 = vmatpush2.bf16.msra.mxu0 0
        %2331 = vmatprep.mubr.bf16.mxu0 0
        %2332 = vmatmul.mubr.bf16.gmra.mxu0 %v2215
        %v2333 = vpop.f32.mrf.mxu0
        %v2334 = vadd.f32 0.0, %v2333
        %v2335 = vpop.f32.mrf.mxu0
        %v2336 = vpop.f32.mrf.mxu0
        %v2337 = vadd.f32 0.0, %v2336
        %v2338 = vpop.f32.mrf.mxu0
        %2339 = vmatprep.mubr.bf16.mxu0 0
        %2340 = vmatmul.mubr.bf16.gmra.mxu0 %v2216
        %v2341 = vpop.f32.mrf.mxu0
        %v2342 = vadd.f32 0.0, %v2341
        %v2343 = vpop.f32.mrf.mxu0
        %v2344 = vpop.f32.mrf.mxu0
        %v2345 = vadd.f32 0.0, %v2344
        %v2346 = vpop.f32.mrf.mxu0
        %2347 = vmatprep.mubr.bf16.mxu0 0
        %2348 = vmatmul.mubr.bf16.gmra.mxu0 %v2217
        %v2349 = vpop.f32.mrf.mxu0
        %v2350 = vadd.f32 0.0, %v2349
        %v2351 = vpop.f32.mrf.mxu0
        %v2352 = vpop.f32.mrf.mxu0
        %v2353 = vadd.f32 0.0, %v2352
        %v2354 = vpop.f32.mrf.mxu0
        %2355 = vmatprep.mubr.bf16.mxu0 0
        %2356 = vmatmul.mubr.bf16.gmra.mxu0 %v2218
        %v2357 = vpop.f32.mrf.mxu0
        %v2358 = vadd.f32 0.0, %v2357
        %v2359 = vpop.f32.mrf.mxu0
        %v2360 = vpop.f32.mrf.mxu0
        %v2361 = vadd.f32 0.0, %v2360
        %v2362 = vpop.f32.mrf.mxu0
        %2363 = vmatprep.mubr.bf16.mxu0 0
        %2364 = vmatmul.mubr.bf16.gmra.mxu0 %v2219
        %v2365 = vpop.f32.mrf.mxu0
        %v2366 = vadd.f32 0.0, %v2365
        %v2367 = vpop.f32.mrf.mxu0
        %v2368 = vpop.f32.mrf.mxu0
        %v2369 = vadd.f32 0.0, %v2368
        %v2370 = vpop.f32.mrf.mxu0
        %2371 = vmatprep.mubr.bf16.mxu0 0
        %2372 = vmatmul.mubr.bf16.gmra.mxu0 %v2220
        %v2373 = vpop.f32.mrf.mxu0
        %v2374 = vadd.f32 0.0, %v2373
        %v2375 = vpop.f32.mrf.mxu0
        %v2376 = vpop.f32.mrf.mxu0
        %v2377 = vadd.f32 0.0, %v2376
        %v2378 = vpop.f32.mrf.mxu0
        %2379 = vmatprep.mubr.bf16.mxu0 0
        %2380 = vmatmul.mubr.bf16.gmra.mxu0 %v2221
        %v2381 = vpop.f32.mrf.mxu0
        %v2382 = vadd.f32 0.0, %v2381
        %v2383 = vpop.f32.mrf.mxu0
        %v2384 = vpop.f32.mrf.mxu0
        %v2385 = vadd.f32 0.0, %v2384
        %v2386 = vpop.f32.mrf.mxu0
        %2387 = vmatprep.mubr.bf16.mxu0 0
        %2388 = vmatmul.mubr.bf16.gmra.mxu0 %v2222
        %v2389 = vpop.f32.mrf.mxu0
        %v2390 = vadd.f32 0.0, %v2389
        %v2391 = vpop.f32.mrf.mxu0
        %v2392 = vpop.f32.mrf.mxu0
        %v2393 = vadd.f32 0.0, %v2392
        %v2394 = vpop.f32.mrf.mxu0
        %2395 = vmatprep.mubr.bf16.mxu0 0
        %2396 = vmatmul.mubr.bf16.gmra.mxu0 %v2223
        %v2397 = vpop.f32.mrf.mxu0
        %v2398 = vadd.f32 0.0, %v2397
        %v2399 = vpop.f32.mrf.mxu0
        %v2400 = vpop.f32.mrf.mxu0
        %v2401 = vadd.f32 0.0, %v2400
        %v2402 = vpop.f32.mrf.mxu0
        %2403 = vmatprep.mubr.bf16.mxu0 0
        %2404 = vmatmul.mubr.bf16.gmra.mxu0 %v2224
        %v2405 = vpop.f32.mrf.mxu0
        %v2406 = vadd.f32 0.0, %v2405
        %v2407 = vpop.f32.mrf.mxu0
        %v2408 = vpop.f32.mrf.mxu0
        %v2409 = vadd.f32 0.0, %v2408
        %v2410 = vpop.f32.mrf.mxu0
        %2411 = vmatprep.mubr.bf16.mxu0 0
        %2412 = vmatmul.mubr.bf16.gmra.mxu0 %v2225
        %v2413 = vpop.f32.mrf.mxu0
        %v2414 = vadd.f32 0.0, %v2413
        %v2415 = vpop.f32.mrf.mxu0
        %v2416 = vpop.f32.mrf.mxu0
        %v2417 = vadd.f32 0.0, %v2416
        %v2418 = vpop.f32.mrf.mxu0
        %2419 = vmatprep.mubr.bf16.mxu0 0
        %2420 = vmatmul.mubr.bf16.gmra.mxu0 %v2226
        %v2421 = vpop.f32.mrf.mxu0
        %v2422 = vadd.f32 0.0, %v2421
        %v2423 = vpop.f32.mrf.mxu0
        %v2424 = vpop.f32.mrf.mxu0
        %v2425 = vadd.f32 0.0, %v2424
        %v2426 = vpop.f32.mrf.mxu0
        %2427 = vmatprep.mubr.bf16.mxu0 0
        %2428 = vmatmul.mubr.bf16.gmra.mxu0 %v2227
        %v2429 = vpop.f32.mrf.mxu0
        %v2430 = vadd.f32 0.0, %v2429
        %v2431 = vpop.f32.mrf.mxu0
        %v2432 = vpop.f32.mrf.mxu0
        %v2433 = vadd.f32 0.0, %v2432
        %v2434 = vpop.f32.mrf.mxu0
        %2435 = vmatprep.mubr.bf16.mxu0 0
        %2436 = vmatmul.mubr.bf16.gmra.mxu0 %v2228
        %v2437 = vpop.f32.mrf.mxu0
        %v2438 = vadd.f32 0.0, %v2437
        %v2439 = vpop.f32.mrf.mxu0
        %v2440 = vpop.f32.mrf.mxu0
        %v2441 = vadd.f32 0.0, %v2440
        %v2442 = vpop.f32.mrf.mxu0
        %2443 = vmatprep.mubr.bf16.mxu0 0
        %2444 = vmatmul.mubr.bf16.gmra.mxu0 %v2229
        %v2445 = vpop.f32.mrf.mxu0
        %v2446 = vadd.f32 0.0, %v2445
        %v2447 = vpop.f32.mrf.mxu0
        %v2448 = vpop.f32.mrf.mxu0
        %v2449 = vadd.f32 0.0, %v2448
        %v2450 = vpop.f32.mrf.mxu0
        %2451 = vmatprep.mubr.bf16.mxu0 0
        %2452 = vmatmul.mubr.bf16.gmra.mxu0 %v2230
        %v2453 = vpop.f32.mrf.mxu0
        %v2454 = vadd.f32 0.0, %v2453
        %v2455 = vpop.f32.mrf.mxu0
        %v2456 = vpop.f32.mrf.mxu0
        %v2457 = vadd.f32 0.0, %v2456
        %v2458 = vpop.f32.mrf.mxu0
        %2459 = vmatprep.mubr.bf16.mxu0 0
        %2460 = vmatmul.mubr.bf16.gmra.mxu0 %v2231
        %v2461 = vpop.f32.mrf.mxu0
        %v2462 = vadd.f32 0.0, %v2461
        %v2463 = vpop.f32.mrf.mxu0
        %v2464 = vpop.f32.mrf.mxu0
        %v2465 = vadd.f32 0.0, %v2464
        %v2466 = vpop.f32.mrf.mxu0
        %2467 = vmatprep.mubr.bf16.mxu0 0
        %2468 = vmatmul.mubr.bf16.gmra.mxu0 %v2232
        %v2469 = vpop.f32.mrf.mxu0
        %v2470 = vadd.f32 0.0, %v2469
        %v2471 = vpop.f32.mrf.mxu0
        %v2472 = vpop.f32.mrf.mxu0
        %v2473 = vadd.f32 0.0, %v2472
        %v2474 = vpop.f32.mrf.mxu0
        %2475 = vdwg.mxu0
        %v2476 = vadd.f32 %v2162, %v2334
        %v2477 = vadd.f32 %v2163, %v2337
        %v2478 = vadd.f32 %v2164, %v2342
        %v2479 = vadd.f32 %v2165, %v2345
        %v2480 = vadd.f32 %v2166, %v2350
        %v2481 = vadd.f32 %v2167, %v2353
        %v2482 = vadd.f32 %v2168, %v2358
        %v2483 = vadd.f32 %v2169, %v2361
        %v2484 = vadd.f32 %v2170, %v2366
        %v2485 = vadd.f32 %v2171, %v2369
        %v2486 = vadd.f32 %v2172, %v2374
        %v2487 = vadd.f32 %v2173, %v2377
        %v2488 = vadd.f32 %v2174, %v2382
        %v2489 = vadd.f32 %v2175, %v2385
        %v2490 = vadd.f32 %v2176, %v2390
        %v2491 = vadd.f32 %v2177, %v2393
        %v2492 = vadd.f32 %v2178, %v2398
        %v2493 = vadd.f32 %v2179, %v2401
        %v2494 = vadd.f32 %v2180, %v2406
        %v2495 = vadd.f32 %v2181, %v2409
        %v2496 = vadd.f32 %v2182, %v2414
        %v2497 = vadd.f32 %v2183, %v2417
        %v2498 = vadd.f32 %v2184, %v2422
        %v2499 = vadd.f32 %v2185, %v2425
        %v2500 = vadd.f32 %v2186, %v2430
        %v2501 = vadd.f32 %v2187, %v2433
        %v2502 = vadd.f32 %v2188, %v2438
        %v2503 = vadd.f32 %v2189, %v2441
        %v2504 = vadd.f32 %v2190, %v2446
        %v2505 = vadd.f32 %v2191, %v2449
        %v2506 = vadd.f32 %v2192, %v2454
        %v2507 = vadd.f32 %v2193, %v2457
        %v2508 = vadd.f32 %v2194, %v2462
        %v2509 = vadd.f32 %v2195, %v2465
        %v2510 = vadd.f32 %v2196, %v2470
        %v2511 = vadd.f32 %v2197, %v2473
        %v2512 = vld [vmem:[%s312 + $0xc] sm:$0xf]
        %v2513 = vld [vmem:[%s312 + $0x10] sm:$0xf]
        %v2514 = vld [vmem:[%s312 + $0x14] sm:$0xf]
        %v2515 = vld [vmem:[%s312 + $0x18] sm:$0xf]
        %v2516 = vld [vmem:[%s312 + $0x1c] sm:$0xf]
        %v2517 = vld [vmem:[%s312 + $0x20] sm:$0xf]
        %v2518 = vld [vmem:[%s312 + $0x24] sm:$0xf]
        %v2519 = vld [vmem:[%s312 + $0x28] sm:$0xf]
        %v2520 = vld [vmem:[%s312 + $0x2c] sm:$0xf]
        %v2521 = vld [vmem:[%s312 + $0x30] sm:$0xf]
        %v2522 = vld [vmem:[%s312 + $0x34] sm:$0xf]
        %v2523 = vld [vmem:[%s312 + $0x38] sm:$0xf]
        %v2524 = vld [vmem:[%s312 + $0x3c] sm:$0xf]
        %v2525 = vld [vmem:[%s312 + $0x40] sm:$0xf]
        %v2526 = vld [vmem:[%s312 + $0x44] sm:$0xf]
        %v2527 = vld [vmem:[%s312 + $0x48] sm:$0xf]
        %v2528 = vld [vmem:[%s312 + $0x4c] sm:$0xf]
        %v2529 = vld [vmem:[%s312 + $0x50] sm:$0xf]
        %v2530 = vld [vmem:[%s312 + $0x54] sm:$0xf]
        %v2531 = vld [vmem:[%s312 + $0x58] sm:$0xf]
        %v2532 = vld [vmem:[%s312 + $0x5c] sm:$0xf]
        %v2533 = vld [vmem:[%s312 + $0x60] sm:$0xf]
        %v2534 = vld [vmem:[%s312 + $0x64] sm:$0xf]
        %v2535 = vld [vmem:[%s312 + $0x68] sm:$0xf]
        %v2536 = vld [vmem:[%s312 + $0x6c] sm:$0xf]
        %v2537 = vld [vmem:[%s312 + $0x70] sm:$0xf]
        %v2538 = vld [vmem:[%s312 + $0x74] sm:$0xf]
        %v2539 = vld [vmem:[%s312 + $0x78] sm:$0xf]
        %v2540 = vld [vmem:[%s312 + $0x7c] sm:$0xf]
        %v2541 = vld [vmem:[%s312 + $0x80] sm:$0xf]
        %v2542 = vld [vmem:[%s312 + $0x84] sm:$0xf]
        %v2543 = vld [vmem:[%s312 + $0x88] sm:$0xf]
        %v2544 = vld [vmem:[%s312 + $0x8c] sm:$0xf]
        %v2545 = vld [vmem:[%s312 + $0x90] sm:$0xf]
        %v2546 = vld [vmem:[%s312 + $0x94] sm:$0xf]
        %v2547 = vld [vmem:[%s312 + $0x98] sm:$0xf]
        %v2548 = vld [vmem:[%s312 + $0x9c] sm:$0x1]
        %s2549 = scalar_lea.vmem [#allocation6], 320
        %v2550 = vld [vmem:[%s2549] sm:$0xf]
        %v2551 = vld [vmem:[%s2549 + $0x4] sm:$0xf]
        %v2552 = vld [vmem:[%s2549 + $0x8] sm:$0xf]
        %v2553 = vld [vmem:[%s2549 + $0xc] sm:$0xf]
        %v2554 = vld [vmem:[%s2549 + $0x10] sm:$0xf]
        %v2555 = vld [vmem:[%s2549 + $0x14] sm:$0xf]
        %v2556 = vld [vmem:[%s2549 + $0x18] sm:$0xf]
        %v2557 = vld [vmem:[%s2549 + $0x1c] sm:$0xf]
        %v2558 = vld [vmem:[%s2549 + $0x20] sm:$0xf]
        %v2559 = vld [vmem:[%s2549 + $0x24] sm:$0xf]
        %v2560 = vld [vmem:[%s2549 + $0x28] sm:$0xf]
        %v2561 = vld [vmem:[%s2549 + $0x2c] sm:$0xf]
        %v2562 = vld [vmem:[%s2549 + $0x30] sm:$0xf]
        %v2563 = vld [vmem:[%s2549 + $0x34] sm:$0xf]
        %v2564 = vld [vmem:[%s2549 + $0x38] sm:$0xf]
        %v2565 = vld [vmem:[%s2549 + $0x3c] sm:$0xf]
        %v2603 = vunpack.c.l.b16 %v2512
        %v2604 = vunpack.c.l.b16 %v2513
        %v2605 = vunpack.c.l.b16 %v2514
        %v2606 = vunpack.c.l.b16 %v2515
        %v2607 = vunpack.c.l.b16 %v2516
        %v2608 = vunpack.c.l.b16 %v2517
        %v2609 = vunpack.c.l.b16 %v2518
        %v2610 = vunpack.c.l.b16 %v2519
        %v2611 = vunpack.c.l.b16 %v2520
        %v2612 = vunpack.c.l.b16 %v2521
        %v2613 = vunpack.c.l.b16 %v2522
        %v2614 = vunpack.c.l.b16 %v2523
        %v2615 = vunpack.c.l.b16 %v2524
        %v2616 = vunpack.c.l.b16 %v2525
        %v2617 = vunpack.c.l.b16 %v2526
        %v2618 = vunpack.c.l.b16 %v2527
        %v2619 = vunpack.c.l.b16 %v2528
        %v2620 = vunpack.c.l.b16 %v2529
        %v2621 = vunpack.c.l.b16 %v2530
        %v2622 = vunpack.c.l.b16 %v2531
        %v2623 = vunpack.c.l.b16 %v2532
        %v2624 = vunpack.c.l.b16 %v2533
        %v2625 = vunpack.c.l.b16 %v2534
        %v2626 = vunpack.c.l.b16 %v2535
        %v2627 = vunpack.c.l.b16 %v2536
        %v2628 = vunpack.c.l.b16 %v2537
        %v2629 = vunpack.c.l.b16 %v2538
        %v2630 = vunpack.c.l.b16 %v2539
        %v2631 = vunpack.c.l.b16 %v2540
        %v2632 = vunpack.c.l.b16 %v2541
        %v2633 = vunpack.c.l.b16 %v2542
        %v2634 = vunpack.c.l.b16 %v2543
        %v2635 = vunpack.c.l.b16 %v2544
        %v2636 = vunpack.c.l.b16 %v2545
        %v2637 = vunpack.c.l.b16 %v2546
        %v2638 = vunpack.c.l.b16 %v2547
        %v2639 = vunpack.c.l.b16 %v2548
        %v2640 = vpack.c.b16 %v2604, %v2603
        %v2641 = vpack.c.b16 %v2606, %v2605
        %v2642 = vpack.c.b16 %v2608, %v2607
        %v2643 = vpack.c.b16 %v2610, %v2609
        %v2644 = vpack.c.b16 %v2612, %v2611
        %v2645 = vpack.c.b16 %v2614, %v2613
        %v2646 = vpack.c.b16 %v2616, %v2615
        %v2647 = vpack.c.b16 %v2618, %v2617
        %v2648 = vpack.c.b16 %v2620, %v2619
        %v2649 = vpack.c.b16 %v2622, %v2621
        %v2650 = vpack.c.b16 %v2624, %v2623
        %v2651 = vpack.c.b16 %v2626, %v2625
        %v2652 = vpack.c.b16 %v2628, %v2627
        %v2653 = vpack.c.b16 %v2630, %v2629
        %v2654 = vpack.c.b16 %v2632, %v2631
        %v2655 = vpack.c.b16 %v2634, %v2633
        %v2656 = vpack.c.b16 %v2636, %v2635
        %v2657 = vpack.c.b16 %v2638, %v2637
        %v2658 = vpack.c.b16 %v2639, %v2639
        %vm2659 = vsmask.f32 7424
        %v2661 = vshrl.u32 %v2640, 16
        %v2663 = vshll.u32 %v2640, 16
        %v2665 = vrot.slane %v2663, 1
        %v2666 = vor.u32 %v2661, %v2665
        %v2668 = vshll.u32 %v2641, 16
        %v2670 = vrot.slane %v2668, 1
        %v2671 = vsel %vm2659, %v2666, %v2670
        %v2672 = vshrl.u32 %v2641, 16
        %v2674 = vor.u32 %v2672, %v2670
        %v2676 = vshll.u32 %v2642, 16
        %v2678 = vrot.slane %v2676, 1
        %v2679 = vsel %vm2659, %v2674, %v2678
        %v2680 = vshrl.u32 %v2642, 16
        %v2682 = vor.u32 %v2680, %v2678
        %v2684 = vshll.u32 %v2643, 16
        %v2686 = vrot.slane %v2684, 1
        %v2687 = vsel %vm2659, %v2682, %v2686
        %v2688 = vshrl.u32 %v2643, 16
        %v2690 = vor.u32 %v2688, %v2686
        %v2692 = vshll.u32 %v2644, 16
        %v2694 = vrot.slane %v2692, 1
        %v2695 = vsel %vm2659, %v2690, %v2694
        %v2696 = vshrl.u32 %v2644, 16
        %v2698 = vor.u32 %v2696, %v2694
        %v2700 = vshll.u32 %v2645, 16
        %v2702 = vrot.slane %v2700, 1
        %v2703 = vsel %vm2659, %v2698, %v2702
        %v2704 = vshrl.u32 %v2645, 16
        %v2706 = vor.u32 %v2704, %v2702
        %v2708 = vshll.u32 %v2646, 16
        %v2710 = vrot.slane %v2708, 1
        %v2711 = vsel %vm2659, %v2706, %v2710
        %v2712 = vshrl.u32 %v2646, 16
        %v2714 = vor.u32 %v2712, %v2710
        %v2716 = vshll.u32 %v2647, 16
        %v2718 = vrot.slane %v2716, 1
        %v2719 = vsel %vm2659, %v2714, %v2718
        %v2720 = vshrl.u32 %v2647, 16
        %v2722 = vor.u32 %v2720, %v2718
        %v2724 = vshll.u32 %v2648, 16
        %v2726 = vrot.slane %v2724, 1
        %v2727 = vsel %vm2659, %v2722, %v2726
        %v2728 = vshrl.u32 %v2648, 16
        %v2730 = vor.u32 %v2728, %v2726
        %v2732 = vshll.u32 %v2649, 16
        %v2734 = vrot.slane %v2732, 1
        %v2735 = vsel %vm2659, %v2730, %v2734
        %v2736 = vshrl.u32 %v2649, 16
        %v2738 = vor.u32 %v2736, %v2734
        %v2740 = vshll.u32 %v2650, 16
        %v2742 = vrot.slane %v2740, 1
        %v2743 = vsel %vm2659, %v2738, %v2742
        %v2744 = vshrl.u32 %v2650, 16
        %v2746 = vor.u32 %v2744, %v2742
        %v2748 = vshll.u32 %v2651, 16
        %v2750 = vrot.slane %v2748, 1
        %v2751 = vsel %vm2659, %v2746, %v2750
        %v2752 = vshrl.u32 %v2651, 16
        %v2754 = vor.u32 %v2752, %v2750
        %v2756 = vshll.u32 %v2652, 16
        %v2758 = vrot.slane %v2756, 1
        %v2759 = vsel %vm2659, %v2754, %v2758
        %v2760 = vshrl.u32 %v2652, 16
        %v2762 = vor.u32 %v2760, %v2758
        %v2764 = vshll.u32 %v2653, 16
        %v2766 = vrot.slane %v2764, 1
        %v2767 = vsel %vm2659, %v2762, %v2766
        %v2768 = vshrl.u32 %v2653, 16
        %v2770 = vor.u32 %v2768, %v2766
        %v2772 = vshll.u32 %v2654, 16
        %v2774 = vrot.slane %v2772, 1
        %v2775 = vsel %vm2659, %v2770, %v2774
        %v2776 = vshrl.u32 %v2654, 16
        %v2778 = vor.u32 %v2776, %v2774
        %v2780 = vshll.u32 %v2655, 16
        %v2782 = vrot.slane %v2780, 1
        %v2783 = vsel %vm2659, %v2778, %v2782
        %v2784 = vshrl.u32 %v2655, 16
        %v2786 = vor.u32 %v2784, %v2782
        %v2788 = vshll.u32 %v2656, 16
        %v2790 = vrot.slane %v2788, 1
        %v2791 = vsel %vm2659, %v2786, %v2790
        %v2792 = vshrl.u32 %v2656, 16
        %v2794 = vor.u32 %v2792, %v2790
        %v2796 = vshll.u32 %v2657, 16
        %v2798 = vrot.slane %v2796, 1
        %v2799 = vsel %vm2659, %v2794, %v2798
        %v2800 = vshrl.u32 %v2657, 16
        %v2802 = vor.u32 %v2800, %v2798
        %v2804 = vshll.u32 %v2658, 16
        %v2806 = vrot.slane %v2804, 1
        %v2807 = vsel %vm2659, %v2802, %v2806
        %v2842 = vunpack.c.l.b16 %v2550
        %v2843 = vunpack.c.l.b16 %v2551
        %v2844 = vunpack.c.l.b16 %v2552
        %v2845 = vunpack.c.l.b16 %v2553
        %v2846 = vunpack.c.l.b16 %v2554
        %v2847 = vunpack.c.l.b16 %v2555
        %v2848 = vunpack.c.l.b16 %v2556
        %v2849 = vunpack.c.l.b16 %v2557
        %v2850 = vunpack.c.l.b16 %v2558
        %v2851 = vunpack.c.l.b16 %v2559
        %v2852 = vunpack.c.l.b16 %v2560
        %v2853 = vunpack.c.l.b16 %v2561
        %v2854 = vunpack.c.l.b16 %v2562
        %v2855 = vunpack.c.l.b16 %v2563
        %v2856 = vunpack.c.l.b16 %v2564
        %v2857 = vunpack.c.l.b16 %v2565
        %v2858 = vpack.c.b16 %v2843, %v2842
        %v2859 = vpack.c.b16 %v2845, %v2844
        %v2860 = vpack.c.b16 %v2847, %v2846
        %v2861 = vpack.c.b16 %v2849, %v2848
        %v2862 = vpack.c.b16 %v2851, %v2850
        %v2863 = vpack.c.b16 %v2853, %v2852
        %v2864 = vpack.c.b16 %v2855, %v2854
        %v2865 = vpack.c.b16 %v2857, %v2856
        %2874 = vmatprep.subr.bf16.mxu0 0
        %2875 = vmatpush1.bf16.msra.mxu0 %v2865
        %2876 = vmatprep.subr.bf16.mxu0 0
        %2877 = vmatpush1.bf16.msra.mxu0 %v2864
        %2878 = vmatprep.subr.bf16.mxu0 0
        %2879 = vmatpush1.bf16.msra.mxu0 %v2863
        %2880 = vmatprep.subr.bf16.mxu0 0
        %2881 = vmatpush1.bf16.msra.mxu0 %v2862
        %2882 = vmatprep.subr.bf16.mxu0 0
        %2883 = vmatpush1.bf16.msra.mxu0 %v2861
        %2884 = vmatprep.subr.bf16.mxu0 0
        %2885 = vmatpush1.bf16.msra.mxu0 %v2860
        %2886 = vmatprep.subr.bf16.mxu0 0
        %2887 = vmatpush1.bf16.msra.mxu0 %v2859
        %2888 = vmatprep.subr.bf16.mxu0 0
        %2889 = vmatpush1.bf16.msra.mxu0 %v2858
        %2890 = vmatprep.subr.bf16.mxu0 0
        %2891 = vmatpush2.bf16.msra.mxu0 0
        %2892 = vmatprep.subr.bf16.mxu0 0
        %2893 = vmatpush2.bf16.msra.mxu0 0
        %2894 = vmatprep.subr.bf16.mxu0 0
        %2895 = vmatpush2.bf16.msra.mxu0 0
        %2896 = vmatprep.subr.bf16.mxu0 0
        %2897 = vmatpush2.bf16.msra.mxu0 0
        %2898 = vmatprep.subr.bf16.mxu0 0
        %2899 = vmatpush2.bf16.msra.mxu0 0
        %2900 = vmatprep.subr.bf16.mxu0 0
        %2901 = vmatpush2.bf16.msra.mxu0 0
        %2902 = vmatprep.subr.bf16.mxu0 0
        %2903 = vmatpush2.bf16.msra.mxu0 0
        %2904 = vmatprep.subr.bf16.mxu0 0
        %2905 = vmatpush2.bf16.msra.mxu0 0
        %2906 = vmatprep.mubr.bf16.mxu0 0
        %2907 = vmatmul.mubr.bf16.gmra.mxu0 %v2671
        %v2908 = vpop.f32.mrf.mxu0
        %v2909 = vadd.f32 0.0, %v2908
        %v2910 = vpop.f32.mrf.mxu0
        %v2911 = vpop.f32.mrf.mxu0
        %v2912 = vadd.f32 0.0, %v2911
        %v2913 = vpop.f32.mrf.mxu0
        %2914 = vmatprep.mubr.bf16.mxu0 0
        %2915 = vmatmul.mubr.bf16.gmra.mxu0 %v2679
        %v2916 = vpop.f32.mrf.mxu0
        %v2917 = vadd.f32 0.0, %v2916
        %v2918 = vpop.f32.mrf.mxu0
        %v2919 = vpop.f32.mrf.mxu0
        %v2920 = vadd.f32 0.0, %v2919
        %v2921 = vpop.f32.mrf.mxu0
        %2922 = vmatprep.mubr.bf16.mxu0 0
        %2923 = vmatmul.mubr.bf16.gmra.mxu0 %v2687
        %v2924 = vpop.f32.mrf.mxu0
        %v2925 = vadd.f32 0.0, %v2924
        %v2926 = vpop.f32.mrf.mxu0
        %v2927 = vpop.f32.mrf.mxu0
        %v2928 = vadd.f32 0.0, %v2927
        %v2929 = vpop.f32.mrf.mxu0
        %2930 = vmatprep.mubr.bf16.mxu0 0
        %2931 = vmatmul.mubr.bf16.gmra.mxu0 %v2695
        %v2932 = vpop.f32.mrf.mxu0
        %v2933 = vadd.f32 0.0, %v2932
        %v2934 = vpop.f32.mrf.mxu0
        %v2935 = vpop.f32.mrf.mxu0
        %v2936 = vadd.f32 0.0, %v2935
        %v2937 = vpop.f32.mrf.mxu0
        %2938 = vmatprep.mubr.bf16.mxu0 0
        %2939 = vmatmul.mubr.bf16.gmra.mxu0 %v2703
        %v2940 = vpop.f32.mrf.mxu0
        %v2941 = vadd.f32 0.0, %v2940
        %v2942 = vpop.f32.mrf.mxu0
        %v2943 = vpop.f32.mrf.mxu0
        %v2944 = vadd.f32 0.0, %v2943
        %v2945 = vpop.f32.mrf.mxu0
        %2946 = vmatprep.mubr.bf16.mxu0 0
        %2947 = vmatmul.mubr.bf16.gmra.mxu0 %v2711
        %v2948 = vpop.f32.mrf.mxu0
        %v2949 = vadd.f32 0.0, %v2948
        %v2950 = vpop.f32.mrf.mxu0
        %v2951 = vpop.f32.mrf.mxu0
        %v2952 = vadd.f32 0.0, %v2951
        %v2953 = vpop.f32.mrf.mxu0
        %2954 = vmatprep.mubr.bf16.mxu0 0
        %2955 = vmatmul.mubr.bf16.gmra.mxu0 %v2719
        %v2956 = vpop.f32.mrf.mxu0
        %v2957 = vadd.f32 0.0, %v2956
        %v2958 = vpop.f32.mrf.mxu0
        %v2959 = vpop.f32.mrf.mxu0
        %v2960 = vadd.f32 0.0, %v2959
        %v2961 = vpop.f32.mrf.mxu0
        %2962 = vmatprep.mubr.bf16.mxu0 0
        %2963 = vmatmul.mubr.bf16.gmra.mxu0 %v2727
        %v2964 = vpop.f32.mrf.mxu0
        %v2965 = vadd.f32 0.0, %v2964
        %v2966 = vpop.f32.mrf.mxu0
        %v2967 = vpop.f32.mrf.mxu0
        %v2968 = vadd.f32 0.0, %v2967
        %v2969 = vpop.f32.mrf.mxu0
        %2970 = vmatprep.mubr.bf16.mxu0 0
        %2971 = vmatmul.mubr.bf16.gmra.mxu0 %v2735
        %v2972 = vpop.f32.mrf.mxu0
        %v2973 = vadd.f32 0.0, %v2972
        %v2974 = vpop.f32.mrf.mxu0
        %v2975 = vpop.f32.mrf.mxu0
        %v2976 = vadd.f32 0.0, %v2975
        %v2977 = vpop.f32.mrf.mxu0
        %2978 = vmatprep.mubr.bf16.mxu0 0
        %2979 = vmatmul.mubr.bf16.gmra.mxu0 %v2743
        %v2980 = vpop.f32.mrf.mxu0
        %v2981 = vadd.f32 0.0, %v2980
        %v2982 = vpop.f32.mrf.mxu0
        %v2983 = vpop.f32.mrf.mxu0
        %v2984 = vadd.f32 0.0, %v2983
        %v2985 = vpop.f32.mrf.mxu0
        %2986 = vmatprep.mubr.bf16.mxu0 0
        %2987 = vmatmul.mubr.bf16.gmra.mxu0 %v2751
        %v2988 = vpop.f32.mrf.mxu0
        %v2989 = vadd.f32 0.0, %v2988
        %v2990 = vpop.f32.mrf.mxu0
        %v2991 = vpop.f32.mrf.mxu0
        %v2992 = vadd.f32 0.0, %v2991
        %v2993 = vpop.f32.mrf.mxu0
        %2994 = vmatprep.mubr.bf16.mxu0 0
        %2995 = vmatmul.mubr.bf16.gmra.mxu0 %v2759
        %v2996 = vpop.f32.mrf.mxu0
        %v2997 = vadd.f32 0.0, %v2996
        %v2998 = vpop.f32.mrf.mxu0
        %v2999 = vpop.f32.mrf.mxu0
        %v3000 = vadd.f32 0.0, %v2999
        %v3001 = vpop.f32.mrf.mxu0
        %3002 = vmatprep.mubr.bf16.mxu0 0
        %3003 = vmatmul.mubr.bf16.gmra.mxu0 %v2767
        %v3004 = vpop.f32.mrf.mxu0
        %v3005 = vadd.f32 0.0, %v3004
        %v3006 = vpop.f32.mrf.mxu0
        %v3007 = vpop.f32.mrf.mxu0
        %v3008 = vadd.f32 0.0, %v3007
        %v3009 = vpop.f32.mrf.mxu0
        %3010 = vmatprep.mubr.bf16.mxu0 0
        %3011 = vmatmul.mubr.bf16.gmra.mxu0 %v2775
        %v3012 = vpop.f32.mrf.mxu0
        %v3013 = vadd.f32 0.0, %v3012
        %v3014 = vpop.f32.mrf.mxu0
        %v3015 = vpop.f32.mrf.mxu0
        %v3016 = vadd.f32 0.0, %v3015
        %v3017 = vpop.f32.mrf.mxu0
        %3018 = vmatprep.mubr.bf16.mxu0 0
        %3019 = vmatmul.mubr.bf16.gmra.mxu0 %v2783
        %v3020 = vpop.f32.mrf.mxu0
        %v3021 = vadd.f32 0.0, %v3020
        %v3022 = vpop.f32.mrf.mxu0
        %v3023 = vpop.f32.mrf.mxu0
        %v3024 = vadd.f32 0.0, %v3023
        %v3025 = vpop.f32.mrf.mxu0
        %3026 = vmatprep.mubr.bf16.mxu0 0
        %3027 = vmatmul.mubr.bf16.gmra.mxu0 %v2791
        %v3028 = vpop.f32.mrf.mxu0
        %v3029 = vadd.f32 0.0, %v3028
        %v3030 = vpop.f32.mrf.mxu0
        %v3031 = vpop.f32.mrf.mxu0
        %v3032 = vadd.f32 0.0, %v3031
        %v3033 = vpop.f32.mrf.mxu0
        %3034 = vmatprep.mubr.bf16.mxu0 0
        %3035 = vmatmul.mubr.bf16.gmra.mxu0 %v2799
        %v3036 = vpop.f32.mrf.mxu0
        %v3037 = vadd.f32 0.0, %v3036
        %v3038 = vpop.f32.mrf.mxu0
        %v3039 = vpop.f32.mrf.mxu0
        %v3040 = vadd.f32 0.0, %v3039
        %v3041 = vpop.f32.mrf.mxu0
        %3042 = vmatprep.mubr.bf16.mxu0 0
        %3043 = vmatmul.mubr.bf16.gmra.mxu0 %v2807
        %v3044 = vpop.f32.mrf.mxu0
        %v3045 = vadd.f32 0.0, %v3044
        %v3046 = vpop.f32.mrf.mxu0
        %v3047 = vpop.f32.mrf.mxu0
        %v3048 = vadd.f32 0.0, %v3047
        %v3049 = vpop.f32.mrf.mxu0
        %3050 = vdwg.mxu0
        %v3051 = vadd.f32 %v2476, %v2909
        %v3052 = vadd.f32 %v2477, %v2912
        %v3053 = vadd.f32 %v2478, %v2917
        %v3054 = vadd.f32 %v2479, %v2920
        %v3055 = vadd.f32 %v2480, %v2925
        %v3056 = vadd.f32 %v2481, %v2928
        %v3057 = vadd.f32 %v2482, %v2933
        %v3058 = vadd.f32 %v2483, %v2936
        %v3059 = vadd.f32 %v2484, %v2941
        %v3060 = vadd.f32 %v2485, %v2944
        %v3061 = vadd.f32 %v2486, %v2949
        %v3062 = vadd.f32 %v2487, %v2952
        %v3063 = vadd.f32 %v2488, %v2957
        %v3064 = vadd.f32 %v2489, %v2960
        %v3065 = vadd.f32 %v2490, %v2965
        %v3066 = vadd.f32 %v2491, %v2968
        %v3067 = vadd.f32 %v2492, %v2973
        %v3068 = vadd.f32 %v2493, %v2976
        %v3069 = vadd.f32 %v2494, %v2981
        %v3070 = vadd.f32 %v2495, %v2984
        %v3071 = vadd.f32 %v2496, %v2989
        %v3072 = vadd.f32 %v2497, %v2992
        %v3073 = vadd.f32 %v2498, %v2997
        %v3074 = vadd.f32 %v2499, %v3000
        %v3075 = vadd.f32 %v2500, %v3005
        %v3076 = vadd.f32 %v2501, %v3008
        %v3077 = vadd.f32 %v2502, %v3013
        %v3078 = vadd.f32 %v2503, %v3016
        %v3079 = vadd.f32 %v2504, %v3021
        %v3080 = vadd.f32 %v2505, %v3024
        %v3081 = vadd.f32 %v2506, %v3029
        %v3082 = vadd.f32 %v2507, %v3032
        %v3083 = vadd.f32 %v2508, %v3037
        %v3084 = vadd.f32 %v2509, %v3040
        %v3085 = vadd.f32 %v2510, %v3045
        %v3086 = vadd.f32 %v2511, %v3048
        %v3087 = vld [vmem:[%s312 + $0x14] sm:$0xf]
        %v3088 = vld [vmem:[%s312 + $0x18] sm:$0xf]
        %v3089 = vld [vmem:[%s312 + $0x1c] sm:$0xf]
        %v3090 = vld [vmem:[%s312 + $0x20] sm:$0xf]
        %v3091 = vld [vmem:[%s312 + $0x24] sm:$0xf]
        %v3092 = vld [vmem:[%s312 + $0x28] sm:$0xf]
        %v3093 = vld [vmem:[%s312 + $0x2c] sm:$0xf]
        %v3094 = vld [vmem:[%s312 + $0x30] sm:$0xf]
        %v3095 = vld [vmem:[%s312 + $0x34] sm:$0xf]
        %v3096 = vld [vmem:[%s312 + $0x38] sm:$0xf]
        %v3097 = vld [vmem:[%s312 + $0x3c] sm:$0xf]
        %v3098 = vld [vmem:[%s312 + $0x40] sm:$0xf]
        %v3099 = vld [vmem:[%s312 + $0x44] sm:$0xf]
        %v3100 = vld [vmem:[%s312 + $0x48] sm:$0xf]
        %v3101 = vld [vmem:[%s312 + $0x4c] sm:$0xf]
        %v3102 = vld [vmem:[%s312 + $0x50] sm:$0xf]
        %v3103 = vld [vmem:[%s312 + $0x54] sm:$0xf]
        %v3104 = vld [vmem:[%s312 + $0x58] sm:$0xf]
        %v3105 = vld [vmem:[%s312 + $0x5c] sm:$0xf]
        %v3106 = vld [vmem:[%s312 + $0x60] sm:$0xf]
        %v3107 = vld [vmem:[%s312 + $0x64] sm:$0xf]
        %v3108 = vld [vmem:[%s312 + $0x68] sm:$0xf]
        %v3109 = vld [vmem:[%s312 + $0x6c] sm:$0xf]
        %v3110 = vld [vmem:[%s312 + $0x70] sm:$0xf]
        %v3111 = vld [vmem:[%s312 + $0x74] sm:$0xf]
        %v3112 = vld [vmem:[%s312 + $0x78] sm:$0xf]
        %v3113 = vld [vmem:[%s312 + $0x7c] sm:$0xf]
        %v3114 = vld [vmem:[%s312 + $0x80] sm:$0xf]
        %v3115 = vld [vmem:[%s312 + $0x84] sm:$0xf]
        %v3116 = vld [vmem:[%s312 + $0x88] sm:$0xf]
        %v3117 = vld [vmem:[%s312 + $0x8c] sm:$0xf]
        %v3118 = vld [vmem:[%s312 + $0x90] sm:$0xf]
        %v3119 = vld [vmem:[%s312 + $0x94] sm:$0xf]
        %v3120 = vld [vmem:[%s312 + $0x98] sm:$0xf]
        %v3121 = vld [vmem:[%s312 + $0x9c] sm:$0xf]
        %v3122 = vld [vmem:[%s312 + $0xa0] sm:$0xf]
        %v3123 = vld [vmem:[%s312 + $0xa4] sm:$0x1]
        %s3124 = scalar_lea.vmem [#allocation6], 384
        %v3125 = vld [vmem:[%s3124] sm:$0xf]
        %v3126 = vld [vmem:[%s3124 + $0x4] sm:$0xf]
        %v3127 = vld [vmem:[%s3124 + $0x8] sm:$0xf]
        %v3128 = vld [vmem:[%s3124 + $0xc] sm:$0xf]
        %v3129 = vld [vmem:[%s3124 + $0x10] sm:$0xf]
        %v3130 = vld [vmem:[%s3124 + $0x14] sm:$0xf]
        %v3131 = vld [vmem:[%s3124 + $0x18] sm:$0xf]
        %v3132 = vld [vmem:[%s3124 + $0x1c] sm:$0xf]
        %v3133 = vld [vmem:[%s3124 + $0x20] sm:$0xf]
        %v3134 = vld [vmem:[%s3124 + $0x24] sm:$0xf]
        %v3135 = vld [vmem:[%s3124 + $0x28] sm:$0xf]
        %v3136 = vld [vmem:[%s3124 + $0x2c] sm:$0xf]
        %v3137 = vld [vmem:[%s3124 + $0x30] sm:$0xf]
        %v3138 = vld [vmem:[%s3124 + $0x34] sm:$0xf]
        %v3139 = vld [vmem:[%s3124 + $0x38] sm:$0xf]
        %v3140 = vld [vmem:[%s3124 + $0x3c] sm:$0xf]
        %v3178 = vunpack.c.l.b16 %v3087
        %v3179 = vunpack.c.l.b16 %v3088
        %v3180 = vunpack.c.l.b16 %v3089
        %v3181 = vunpack.c.l.b16 %v3090
        %v3182 = vunpack.c.l.b16 %v3091
        %v3183 = vunpack.c.l.b16 %v3092
        %v3184 = vunpack.c.l.b16 %v3093
        %v3185 = vunpack.c.l.b16 %v3094
        %v3186 = vunpack.c.l.b16 %v3095
        %v3187 = vunpack.c.l.b16 %v3096
        %v3188 = vunpack.c.l.b16 %v3097
        %v3189 = vunpack.c.l.b16 %v3098
        %v3190 = vunpack.c.l.b16 %v3099
        %v3191 = vunpack.c.l.b16 %v3100
        %v3192 = vunpack.c.l.b16 %v3101
        %v3193 = vunpack.c.l.b16 %v3102
        %v3194 = vunpack.c.l.b16 %v3103
        %v3195 = vunpack.c.l.b16 %v3104
        %v3196 = vunpack.c.l.b16 %v3105
        %v3197 = vunpack.c.l.b16 %v3106
        %v3198 = vunpack.c.l.b16 %v3107
        %v3199 = vunpack.c.l.b16 %v3108
        %v3200 = vunpack.c.l.b16 %v3109
        %v3201 = vunpack.c.l.b16 %v3110
        %v3202 = vunpack.c.l.b16 %v3111
        %v3203 = vunpack.c.l.b16 %v3112
        %v3204 = vunpack.c.l.b16 %v3113
        %v3205 = vunpack.c.l.b16 %v3114
        %v3206 = vunpack.c.l.b16 %v3115
        %v3207 = vunpack.c.l.b16 %v3116
        %v3208 = vunpack.c.l.b16 %v3117
        %v3209 = vunpack.c.l.b16 %v3118
        %v3210 = vunpack.c.l.b16 %v3119
        %v3211 = vunpack.c.l.b16 %v3120
        %v3212 = vunpack.c.l.b16 %v3121
        %v3213 = vunpack.c.l.b16 %v3122
        %v3214 = vunpack.c.l.b16 %v3123
        %v3215 = vpack.c.b16 %v3179, %v3178
        %v3216 = vpack.c.b16 %v3181, %v3180
        %v3217 = vpack.c.b16 %v3183, %v3182
        %v3218 = vpack.c.b16 %v3185, %v3184
        %v3219 = vpack.c.b16 %v3187, %v3186
        %v3220 = vpack.c.b16 %v3189, %v3188
        %v3221 = vpack.c.b16 %v3191, %v3190
        %v3222 = vpack.c.b16 %v3193, %v3192
        %v3223 = vpack.c.b16 %v3195, %v3194
        %v3224 = vpack.c.b16 %v3197, %v3196
        %v3225 = vpack.c.b16 %v3199, %v3198
        %v3226 = vpack.c.b16 %v3201, %v3200
        %v3227 = vpack.c.b16 %v3203, %v3202
        %v3228 = vpack.c.b16 %v3205, %v3204
        %v3229 = vpack.c.b16 %v3207, %v3206
        %v3230 = vpack.c.b16 %v3209, %v3208
        %v3231 = vpack.c.b16 %v3211, %v3210
        %v3232 = vpack.c.b16 %v3213, %v3212
        %v3233 = vpack.c.b16 %v3214, %v3214
        %v3235 = vshrl.u32 %v3215, 16
        %v3237 = vshll.u32 %v3215, 16
        %v3239 = vrot.slane %v3237, 1
        %v3240 = vor.u32 %v3235, %v3239
        %v3242 = vshll.u32 %v3216, 16
        %v3244 = vrot.slane %v3242, 1
        %v3245 = vsel %vm2659, %v3240, %v3244
        %v3246 = vshrl.u32 %v3216, 16
        %v3248 = vor.u32 %v3246, %v3244
        %v3250 = vshll.u32 %v3217, 16
        %v3252 = vrot.slane %v3250, 1
        %v3253 = vsel %vm2659, %v3248, %v3252
        %v3254 = vshrl.u32 %v3217, 16
        %v3256 = vor.u32 %v3254, %v3252
        %v3258 = vshll.u32 %v3218, 16
        %v3260 = vrot.slane %v3258, 1
        %v3261 = vsel %vm2659, %v3256, %v3260
        %v3262 = vshrl.u32 %v3218, 16
        %v3264 = vor.u32 %v3262, %v3260
        %v3266 = vshll.u32 %v3219, 16
        %v3268 = vrot.slane %v3266, 1
        %v3269 = vsel %vm2659, %v3264, %v3268
        %v3270 = vshrl.u32 %v3219, 16
        %v3272 = vor.u32 %v3270, %v3268
        %v3274 = vshll.u32 %v3220, 16
        %v3276 = vrot.slane %v3274, 1
        %v3277 = vsel %vm2659, %v3272, %v3276
        %v3278 = vshrl.u32 %v3220, 16
        %v3280 = vor.u32 %v3278, %v3276
        %v3282 = vshll.u32 %v3221, 16
        %v3284 = vrot.slane %v3282, 1
        %v3285 = vsel %vm2659, %v3280, %v3284
        %v3286 = vshrl.u32 %v3221, 16
        %v3288 = vor.u32 %v3286, %v3284
        %v3290 = vshll.u32 %v3222, 16
        %v3292 = vrot.slane %v3290, 1
        %v3293 = vsel %vm2659, %v3288, %v3292
        %v3294 = vshrl.u32 %v3222, 16
        %v3296 = vor.u32 %v3294, %v3292
        %v3298 = vshll.u32 %v3223, 16
        %v3300 = vrot.slane %v3298, 1
        %v3301 = vsel %vm2659, %v3296, %v3300
        %v3302 = vshrl.u32 %v3223, 16
        %v3304 = vor.u32 %v3302, %v3300
        %v3306 = vshll.u32 %v3224, 16
        %v3308 = vrot.slane %v3306, 1
        %v3309 = vsel %vm2659, %v3304, %v3308
        %v3310 = vshrl.u32 %v3224, 16
        %v3312 = vor.u32 %v3310, %v3308
        %v3314 = vshll.u32 %v3225, 16
        %v3316 = vrot.slane %v3314, 1
        %v3317 = vsel %vm2659, %v3312, %v3316
        %v3318 = vshrl.u32 %v3225, 16
        %v3320 = vor.u32 %v3318, %v3316
        %v3322 = vshll.u32 %v3226, 16
        %v3324 = vrot.slane %v3322, 1
        %v3325 = vsel %vm2659, %v3320, %v3324
        %v3326 = vshrl.u32 %v3226, 16
        %v3328 = vor.u32 %v3326, %v3324
        %v3330 = vshll.u32 %v3227, 16
        %v3332 = vrot.slane %v3330, 1
        %v3333 = vsel %vm2659, %v3328, %v3332
        %v3334 = vshrl.u32 %v3227, 16
        %v3336 = vor.u32 %v3334, %v3332
        %v3338 = vshll.u32 %v3228, 16
        %v3340 = vrot.slane %v3338, 1
        %v3341 = vsel %vm2659, %v3336, %v3340
        %v3342 = vshrl.u32 %v3228, 16
        %v3344 = vor.u32 %v3342, %v3340
        %v3346 = vshll.u32 %v3229, 16
        %v3348 = vrot.slane %v3346, 1
        %v3349 = vsel %vm2659, %v3344, %v3348
        %v3350 = vshrl.u32 %v3229, 16
        %v3352 = vor.u32 %v3350, %v3348
        %v3354 = vshll.u32 %v3230, 16
        %v3356 = vrot.slane %v3354, 1
        %v3357 = vsel %vm2659, %v3352, %v3356
        %v3358 = vshrl.u32 %v3230, 16
        %v3360 = vor.u32 %v3358, %v3356
        %v3362 = vshll.u32 %v3231, 16
        %v3364 = vrot.slane %v3362, 1
        %v3365 = vsel %vm2659, %v3360, %v3364
        %v3366 = vshrl.u32 %v3231, 16
        %v3368 = vor.u32 %v3366, %v3364
        %v3370 = vshll.u32 %v3232, 16
        %v3372 = vrot.slane %v3370, 1
        %v3373 = vsel %vm2659, %v3368, %v3372
        %v3374 = vshrl.u32 %v3232, 16
        %v3376 = vor.u32 %v3374, %v3372
        %v3378 = vshll.u32 %v3233, 16
        %v3380 = vrot.slane %v3378, 1
        %v3381 = vsel %vm2659, %v3376, %v3380
        %v3416 = vunpack.c.l.b16 %v3125
        %v3417 = vunpack.c.l.b16 %v3126
        %v3418 = vunpack.c.l.b16 %v3127
        %v3419 = vunpack.c.l.b16 %v3128
        %v3420 = vunpack.c.l.b16 %v3129
        %v3421 = vunpack.c.l.b16 %v3130
        %v3422 = vunpack.c.l.b16 %v3131
        %v3423 = vunpack.c.l.b16 %v3132
        %v3424 = vunpack.c.l.b16 %v3133
        %v3425 = vunpack.c.l.b16 %v3134
        %v3426 = vunpack.c.l.b16 %v3135
        %v3427 = vunpack.c.l.b16 %v3136
        %v3428 = vunpack.c.l.b16 %v3137
        %v3429 = vunpack.c.l.b16 %v3138
        %v3430 = vunpack.c.l.b16 %v3139
        %v3431 = vunpack.c.l.b16 %v3140
        %v3432 = vpack.c.b16 %v3417, %v3416
        %v3433 = vpack.c.b16 %v3419, %v3418
        %v3434 = vpack.c.b16 %v3421, %v3420
        %v3435 = vpack.c.b16 %v3423, %v3422
        %v3436 = vpack.c.b16 %v3425, %v3424
        %v3437 = vpack.c.b16 %v3427, %v3426
        %v3438 = vpack.c.b16 %v3429, %v3428
        %v3439 = vpack.c.b16 %v3431, %v3430
        %3448 = vmatprep.subr.bf16.mxu0 0
        %3449 = vmatpush1.bf16.msra.mxu0 %v3439
        %3450 = vmatprep.subr.bf16.mxu0 0
        %3451 = vmatpush1.bf16.msra.mxu0 %v3438
        %3452 = vmatprep.subr.bf16.mxu0 0
        %3453 = vmatpush1.bf16.msra.mxu0 %v3437
        %3454 = vmatprep.subr.bf16.mxu0 0
        %3455 = vmatpush1.bf16.msra.mxu0 %v3436
        %3456 = vmatprep.subr.bf16.mxu0 0
        %3457 = vmatpush1.bf16.msra.mxu0 %v3435
        %3458 = vmatprep.subr.bf16.mxu0 0
        %3459 = vmatpush1.bf16.msra.mxu0 %v3434
        %3460 = vmatprep.subr.bf16.mxu0 0
        %3461 = vmatpush1.bf16.msra.mxu0 %v3433
        %3462 = vmatprep.subr.bf16.mxu0 0
        %3463 = vmatpush1.bf16.msra.mxu0 %v3432
        %3464 = vmatprep.subr.bf16.mxu0 0
        %3465 = vmatpush2.bf16.msra.mxu0 0
        %3466 = vmatprep.subr.bf16.mxu0 0
        %3467 = vmatpush2.bf16.msra.mxu0 0
        %3468 = vmatprep.subr.bf16.mxu0 0
        %3469 = vmatpush2.bf16.msra.mxu0 0
        %3470 = vmatprep.subr.bf16.mxu0 0
        %3471 = vmatpush2.bf16.msra.mxu0 0
        %3472 = vmatprep.subr.bf16.mxu0 0
        %3473 = vmatpush2.bf16.msra.mxu0 0
        %3474 = vmatprep.subr.bf16.mxu0 0
        %3475 = vmatpush2.bf16.msra.mxu0 0
        %3476 = vmatprep.subr.bf16.mxu0 0
        %3477 = vmatpush2.bf16.msra.mxu0 0
        %3478 = vmatprep.subr.bf16.mxu0 0
        %3479 = vmatpush2.bf16.msra.mxu0 0
        %3480 = vmatprep.mubr.bf16.mxu0 0
        %3481 = vmatmul.mubr.bf16.gmra.mxu0 %v3245
        %v3482 = vpop.f32.mrf.mxu0
        %v3483 = vadd.f32 0.0, %v3482
        %v3484 = vpop.f32.mrf.mxu0
        %v3485 = vpop.f32.mrf.mxu0
        %v3486 = vadd.f32 0.0, %v3485
        %v3487 = vpop.f32.mrf.mxu0
        %3488 = vmatprep.mubr.bf16.mxu0 0
        %3489 = vmatmul.mubr.bf16.gmra.mxu0 %v3253
        %v3490 = vpop.f32.mrf.mxu0
        %v3491 = vadd.f32 0.0, %v3490
        %v3492 = vpop.f32.mrf.mxu0
        %v3493 = vpop.f32.mrf.mxu0
        %v3494 = vadd.f32 0.0, %v3493
        %v3495 = vpop.f32.mrf.mxu0
        %3496 = vmatprep.mubr.bf16.mxu0 0
        %3497 = vmatmul.mubr.bf16.gmra.mxu0 %v3261
        %v3498 = vpop.f32.mrf.mxu0
        %v3499 = vadd.f32 0.0, %v3498
        %v3500 = vpop.f32.mrf.mxu0
        %v3501 = vpop.f32.mrf.mxu0
        %v3502 = vadd.f32 0.0, %v3501
        %v3503 = vpop.f32.mrf.mxu0
        %3504 = vmatprep.mubr.bf16.mxu0 0
        %3505 = vmatmul.mubr.bf16.gmra.mxu0 %v3269
        %v3506 = vpop.f32.mrf.mxu0
        %v3507 = vadd.f32 0.0, %v3506
        %v3508 = vpop.f32.mrf.mxu0
        %v3509 = vpop.f32.mrf.mxu0
        %v3510 = vadd.f32 0.0, %v3509
        %v3511 = vpop.f32.mrf.mxu0
        %3512 = vmatprep.mubr.bf16.mxu0 0
        %3513 = vmatmul.mubr.bf16.gmra.mxu0 %v3277
        %v3514 = vpop.f32.mrf.mxu0
        %v3515 = vadd.f32 0.0, %v3514
        %v3516 = vpop.f32.mrf.mxu0
        %v3517 = vpop.f32.mrf.mxu0
        %v3518 = vadd.f32 0.0, %v3517
        %v3519 = vpop.f32.mrf.mxu0
        %3520 = vmatprep.mubr.bf16.mxu0 0
        %3521 = vmatmul.mubr.bf16.gmra.mxu0 %v3285
        %v3522 = vpop.f32.mrf.mxu0
        %v3523 = vadd.f32 0.0, %v3522
        %v3524 = vpop.f32.mrf.mxu0
        %v3525 = vpop.f32.mrf.mxu0
        %v3526 = vadd.f32 0.0, %v3525
        %v3527 = vpop.f32.mrf.mxu0
        %3528 = vmatprep.mubr.bf16.mxu0 0
        %3529 = vmatmul.mubr.bf16.gmra.mxu0 %v3293
        %v3530 = vpop.f32.mrf.mxu0
        %v3531 = vadd.f32 0.0, %v3530
        %v3532 = vpop.f32.mrf.mxu0
        %v3533 = vpop.f32.mrf.mxu0
        %v3534 = vadd.f32 0.0, %v3533
        %v3535 = vpop.f32.mrf.mxu0
        %3536 = vmatprep.mubr.bf16.mxu0 0
        %3537 = vmatmul.mubr.bf16.gmra.mxu0 %v3301
        %v3538 = vpop.f32.mrf.mxu0
        %v3539 = vadd.f32 0.0, %v3538
        %v3540 = vpop.f32.mrf.mxu0
        %v3541 = vpop.f32.mrf.mxu0
        %v3542 = vadd.f32 0.0, %v3541
        %v3543 = vpop.f32.mrf.mxu0
        %3544 = vmatprep.mubr.bf16.mxu0 0
        %3545 = vmatmul.mubr.bf16.gmra.mxu0 %v3309
        %v3546 = vpop.f32.mrf.mxu0
        %v3547 = vadd.f32 0.0, %v3546
        %v3548 = vpop.f32.mrf.mxu0
        %v3549 = vpop.f32.mrf.mxu0
        %v3550 = vadd.f32 0.0, %v3549
        %v3551 = vpop.f32.mrf.mxu0
        %3552 = vmatprep.mubr.bf16.mxu0 0
        %3553 = vmatmul.mubr.bf16.gmra.mxu0 %v3317
        %v3554 = vpop.f32.mrf.mxu0
        %v3555 = vadd.f32 0.0, %v3554
        %v3556 = vpop.f32.mrf.mxu0
        %v3557 = vpop.f32.mrf.mxu0
        %v3558 = vadd.f32 0.0, %v3557
        %v3559 = vpop.f32.mrf.mxu0
        %3560 = vmatprep.mubr.bf16.mxu0 0
        %3561 = vmatmul.mubr.bf16.gmra.mxu0 %v3325
        %v3562 = vpop.f32.mrf.mxu0
        %v3563 = vadd.f32 0.0, %v3562
        %v3564 = vpop.f32.mrf.mxu0
        %v3565 = vpop.f32.mrf.mxu0
        %v3566 = vadd.f32 0.0, %v3565
        %v3567 = vpop.f32.mrf.mxu0
        %3568 = vmatprep.mubr.bf16.mxu0 0
        %3569 = vmatmul.mubr.bf16.gmra.mxu0 %v3333
        %v3570 = vpop.f32.mrf.mxu0
        %v3571 = vadd.f32 0.0, %v3570
        %v3572 = vpop.f32.mrf.mxu0
        %v3573 = vpop.f32.mrf.mxu0
        %v3574 = vadd.f32 0.0, %v3573
        %v3575 = vpop.f32.mrf.mxu0
        %3576 = vmatprep.mubr.bf16.mxu0 0
        %3577 = vmatmul.mubr.bf16.gmra.mxu0 %v3341
        %v3578 = vpop.f32.mrf.mxu0
        %v3579 = vadd.f32 0.0, %v3578
        %v3580 = vpop.f32.mrf.mxu0
        %v3581 = vpop.f32.mrf.mxu0
        %v3582 = vadd.f32 0.0, %v3581
        %v3583 = vpop.f32.mrf.mxu0
        %3584 = vmatprep.mubr.bf16.mxu0 0
        %3585 = vmatmul.mubr.bf16.gmra.mxu0 %v3349
        %v3586 = vpop.f32.mrf.mxu0
        %v3587 = vadd.f32 0.0, %v3586
        %v3588 = vpop.f32.mrf.mxu0
        %v3589 = vpop.f32.mrf.mxu0
        %v3590 = vadd.f32 0.0, %v3589
        %v3591 = vpop.f32.mrf.mxu0
        %3592 = vmatprep.mubr.bf16.mxu0 0
        %3593 = vmatmul.mubr.bf16.gmra.mxu0 %v3357
        %v3594 = vpop.f32.mrf.mxu0
        %v3595 = vadd.f32 0.0, %v3594
        %v3596 = vpop.f32.mrf.mxu0
        %v3597 = vpop.f32.mrf.mxu0
        %v3598 = vadd.f32 0.0, %v3597
        %v3599 = vpop.f32.mrf.mxu0
        %3600 = vmatprep.mubr.bf16.mxu0 0
        %3601 = vmatmul.mubr.bf16.gmra.mxu0 %v3365
        %v3602 = vpop.f32.mrf.mxu0
        %v3603 = vadd.f32 0.0, %v3602
        %v3604 = vpop.f32.mrf.mxu0
        %v3605 = vpop.f32.mrf.mxu0
        %v3606 = vadd.f32 0.0, %v3605
        %v3607 = vpop.f32.mrf.mxu0
        %3608 = vmatprep.mubr.bf16.mxu0 0
        %3609 = vmatmul.mubr.bf16.gmra.mxu0 %v3373
        %v3610 = vpop.f32.mrf.mxu0
        %v3611 = vadd.f32 0.0, %v3610
        %v3612 = vpop.f32.mrf.mxu0
        %v3613 = vpop.f32.mrf.mxu0
        %v3614 = vadd.f32 0.0, %v3613
        %v3615 = vpop.f32.mrf.mxu0
        %3616 = vmatprep.mubr.bf16.mxu0 0
        %3617 = vmatmul.mubr.bf16.gmra.mxu0 %v3381
        %v3618 = vpop.f32.mrf.mxu0
        %v3619 = vadd.f32 0.0, %v3618
        %v3620 = vpop.f32.mrf.mxu0
        %v3621 = vpop.f32.mrf.mxu0
        %v3622 = vadd.f32 0.0, %v3621
        %v3623 = vpop.f32.mrf.mxu0
        %3624 = vdwg.mxu0
        %v3625 = vadd.f32 %v3051, %v3483
        %v3626 = vadd.f32 %v3052, %v3486
        %v3627 = vadd.f32 %v3053, %v3491
        %v3628 = vadd.f32 %v3054, %v3494
        %v3629 = vadd.f32 %v3055, %v3499
        %v3630 = vadd.f32 %v3056, %v3502
        %v3631 = vadd.f32 %v3057, %v3507
        %v3632 = vadd.f32 %v3058, %v3510
        %v3633 = vadd.f32 %v3059, %v3515
        %v3634 = vadd.f32 %v3060, %v3518
        %v3635 = vadd.f32 %v3061, %v3523
        %v3636 = vadd.f32 %v3062, %v3526
        %v3637 = vadd.f32 %v3063, %v3531
        %v3638 = vadd.f32 %v3064, %v3534
        %v3639 = vadd.f32 %v3065, %v3539
        %v3640 = vadd.f32 %v3066, %v3542
        %v3641 = vadd.f32 %v3067, %v3547
        %v3642 = vadd.f32 %v3068, %v3550
        %v3643 = vadd.f32 %v3069, %v3555
        %v3644 = vadd.f32 %v3070, %v3558
        %v3645 = vadd.f32 %v3071, %v3563
        %v3646 = vadd.f32 %v3072, %v3566
        %v3647 = vadd.f32 %v3073, %v3571
        %v3648 = vadd.f32 %v3074, %v3574
        %v3649 = vadd.f32 %v3075, %v3579
        %v3650 = vadd.f32 %v3076, %v3582
        %v3651 = vadd.f32 %v3077, %v3587
        %v3652 = vadd.f32 %v3078, %v3590
        %v3653 = vadd.f32 %v3079, %v3595
        %v3654 = vadd.f32 %v3080, %v3598
        %v3655 = vadd.f32 %v3081, %v3603
        %v3656 = vadd.f32 %v3082, %v3606
        %v3657 = vadd.f32 %v3083, %v3611
        %v3658 = vadd.f32 %v3084, %v3614
        %v3659 = vadd.f32 %v3085, %v3619
        %v3660 = vadd.f32 %v3086, %v3622
        %v3661 = vld [vmem:[%s312 + $0x14] sm:$0xe]
        %s3662 = scalar_lea.vmem [#allocation6], 448
        %v3663 = vld [vmem:[%s3662] sm:$0xf]
        %v3664 = vld [vmem:[%s3662 + $0x4] sm:$0xf]
        %v3665 = vld [vmem:[%s3662 + $0x8] sm:$0xf]
        %v3666 = vld [vmem:[%s3662 + $0xc] sm:$0xf]
        %v3667 = vld [vmem:[%s3662 + $0x10] sm:$0xf]
        %v3668 = vld [vmem:[%s3662 + $0x14] sm:$0xf]
        %v3669 = vld [vmem:[%s3662 + $0x18] sm:$0xf]
        %v3670 = vld [vmem:[%s3662 + $0x1c] sm:$0xf]
        %v3671 = vld [vmem:[%s3662 + $0x20] sm:$0xf]
        %v3672 = vld [vmem:[%s3662 + $0x24] sm:$0xf]
        %v3673 = vld [vmem:[%s3662 + $0x28] sm:$0xf]
        %v3674 = vld [vmem:[%s3662 + $0x2c] sm:$0xf]
        %v3675 = vld [vmem:[%s3662 + $0x30] sm:$0xf]
        %v3676 = vld [vmem:[%s3662 + $0x34] sm:$0xf]
        %v3677 = vld [vmem:[%s3662 + $0x38] sm:$0xf]
        %v3678 = vld [vmem:[%s3662 + $0x3c] sm:$0xf]
        %v3680 = vunpack.c.l.b16 %v3661
        %v3681 = vpack.c.b16 %v3179, %v3680
        %vm3682 = vcmask 1046528
        %v3683 = vrot.slane %v3681, 1
        %v3684 = vrot.slane %v3216, 1
        %v3685 = vsel %vm3682, %v3683, %v3684
        %v3686 = vrot.slane %v3217, 1
        %v3687 = vsel %vm3682, %v3684, %v3686
        %v3688 = vrot.slane %v3218, 1
        %v3689 = vsel %vm3682, %v3686, %v3688
        %v3690 = vrot.slane %v3219, 1
        %v3691 = vsel %vm3682, %v3688, %v3690
        %v3692 = vrot.slane %v3220, 1
        %v3693 = vsel %vm3682, %v3690, %v3692
        %v3694 = vrot.slane %v3221, 1
        %v3695 = vsel %vm3682, %v3692, %v3694
        %v3696 = vrot.slane %v3222, 1
        %v3697 = vsel %vm3682, %v3694, %v3696
        %v3698 = vrot.slane %v3223, 1
        %v3699 = vsel %vm3682, %v3696, %v3698
        %v3700 = vrot.slane %v3224, 1
        %v3701 = vsel %vm3682, %v3698, %v3700
        %v3702 = vrot.slane %v3225, 1
        %v3703 = vsel %vm3682, %v3700, %v3702
        %v3704 = vrot.slane %v3226, 1
        %v3705 = vsel %vm3682, %v3702, %v3704
        %v3706 = vrot.slane %v3227, 1
        %v3707 = vsel %vm3682, %v3704, %v3706
        %v3708 = vrot.slane %v3228, 1
        %v3709 = vsel %vm3682, %v3706, %v3708
        %v3710 = vrot.slane %v3229, 1
        %v3711 = vsel %vm3682, %v3708, %v3710
        %v3712 = vrot.slane %v3230, 1
        %v3713 = vsel %vm3682, %v3710, %v3712
        %v3714 = vrot.slane %v3231, 1
        %v3715 = vsel %vm3682, %v3712, %v3714
        %v3716 = vrot.slane %v3232, 1
        %v3717 = vsel %vm3682, %v3714, %v3716
        %v3718 = vrot.slane %v3233, 1
        %v3719 = vsel %vm3682, %v3716, %v3718
        %v3754 = vunpack.c.l.b16 %v3663
        %v3755 = vunpack.c.l.b16 %v3664
        %v3756 = vunpack.c.l.b16 %v3665
        %v3757 = vunpack.c.l.b16 %v3666
        %v3758 = vunpack.c.l.b16 %v3667
        %v3759 = vunpack.c.l.b16 %v3668
        %v3760 = vunpack.c.l.b16 %v3669
        %v3761 = vunpack.c.l.b16 %v3670
        %v3762 = vunpack.c.l.b16 %v3671
        %v3763 = vunpack.c.l.b16 %v3672
        %v3764 = vunpack.c.l.b16 %v3673
        %v3765 = vunpack.c.l.b16 %v3674
        %v3766 = vunpack.c.l.b16 %v3675
        %v3767 = vunpack.c.l.b16 %v3676
        %v3768 = vunpack.c.l.b16 %v3677
        %v3769 = vunpack.c.l.b16 %v3678
        %v3770 = vpack.c.b16 %v3755, %v3754
        %v3771 = vpack.c.b16 %v3757, %v3756
        %v3772 = vpack.c.b16 %v3759, %v3758
        %v3773 = vpack.c.b16 %v3761, %v3760
        %v3774 = vpack.c.b16 %v3763, %v3762
        %v3775 = vpack.c.b16 %v3765, %v3764
        %v3776 = vpack.c.b16 %v3767, %v3766
        %v3777 = vpack.c.b16 %v3769, %v3768
        %3786 = vmatprep.subr.bf16.mxu0 0
        %3787 = vmatpush1.bf16.msra.mxu0 %v3777
        %3788 = vmatprep.subr.bf16.mxu0 0
        %3789 = vmatpush1.bf16.msra.mxu0 %v3776
        %3790 = vmatprep.subr.bf16.mxu0 0
        %3791 = vmatpush1.bf16.msra.mxu0 %v3775
        %3792 = vmatprep.subr.bf16.mxu0 0
        %3793 = vmatpush1.bf16.msra.mxu0 %v3774
        %3794 = vmatprep.subr.bf16.mxu0 0
        %3795 = vmatpush1.bf16.msra.mxu0 %v3773
        %3796 = vmatprep.subr.bf16.mxu0 0
        %3797 = vmatpush1.bf16.msra.mxu0 %v3772
        %3798 = vmatprep.subr.bf16.mxu0 0
        %3799 = vmatpush1.bf16.msra.mxu0 %v3771
        %3800 = vmatprep.subr.bf16.mxu0 0
        %3801 = vmatpush1.bf16.msra.mxu0 %v3770
        %3802 = vmatprep.subr.bf16.mxu0 0
        %3803 = vmatpush2.bf16.msra.mxu0 0
        %3804 = vmatprep.subr.bf16.mxu0 0
        %3805 = vmatpush2.bf16.msra.mxu0 0
        %3806 = vmatprep.subr.bf16.mxu0 0
        %3807 = vmatpush2.bf16.msra.mxu0 0
        %3808 = vmatprep.subr.bf16.mxu0 0
        %3809 = vmatpush2.bf16.msra.mxu0 0
        %3810 = vmatprep.subr.bf16.mxu0 0
        %3811 = vmatpush2.bf16.msra.mxu0 0
        %3812 = vmatprep.subr.bf16.mxu0 0
        %3813 = vmatpush2.bf16.msra.mxu0 0
        %3814 = vmatprep.subr.bf16.mxu0 0
        %3815 = vmatpush2.bf16.msra.mxu0 0
        %3816 = vmatprep.subr.bf16.mxu0 0
        %3817 = vmatpush2.bf16.msra.mxu0 0
        %3818 = vmatprep.mubr.bf16.mxu0 0
        %3819 = vmatmul.mubr.bf16.gmra.mxu0 %v3685
        %v3820 = vpop.f32.mrf.mxu0
        %v3821 = vadd.f32 0.0, %v3820
        %v3822 = vpop.f32.mrf.mxu0
        %v3823 = vpop.f32.mrf.mxu0
        %v3824 = vadd.f32 0.0, %v3823
        %v3825 = vpop.f32.mrf.mxu0
        %3826 = vmatprep.mubr.bf16.mxu0 0
        %3827 = vmatmul.mubr.bf16.gmra.mxu0 %v3687
        %v3828 = vpop.f32.mrf.mxu0
        %v3829 = vadd.f32 0.0, %v3828
        %v3830 = vpop.f32.mrf.mxu0
        %v3831 = vpop.f32.mrf.mxu0
        %v3832 = vadd.f32 0.0, %v3831
        %v3833 = vpop.f32.mrf.mxu0
        %3834 = vmatprep.mubr.bf16.mxu0 0
        %3835 = vmatmul.mubr.bf16.gmra.mxu0 %v3689
        %v3836 = vpop.f32.mrf.mxu0
        %v3837 = vadd.f32 0.0, %v3836
        %v3838 = vpop.f32.mrf.mxu0
        %v3839 = vpop.f32.mrf.mxu0
        %v3840 = vadd.f32 0.0, %v3839
        %v3841 = vpop.f32.mrf.mxu0
        %3842 = vmatprep.mubr.bf16.mxu0 0
        %3843 = vmatmul.mubr.bf16.gmra.mxu0 %v3691
        %v3844 = vpop.f32.mrf.mxu0
        %v3845 = vadd.f32 0.0, %v3844
        %v3846 = vpop.f32.mrf.mxu0
        %v3847 = vpop.f32.mrf.mxu0
        %v3848 = vadd.f32 0.0, %v3847
        %v3849 = vpop.f32.mrf.mxu0
        %3850 = vmatprep.mubr.bf16.mxu0 0
        %3851 = vmatmul.mubr.bf16.gmra.mxu0 %v3693
        %v3852 = vpop.f32.mrf.mxu0
        %v3853 = vadd.f32 0.0, %v3852
        %v3854 = vpop.f32.mrf.mxu0
        %v3855 = vpop.f32.mrf.mxu0
        %v3856 = vadd.f32 0.0, %v3855
        %v3857 = vpop.f32.mrf.mxu0
        %3858 = vmatprep.mubr.bf16.mxu0 0
        %3859 = vmatmul.mubr.bf16.gmra.mxu0 %v3695
        %v3860 = vpop.f32.mrf.mxu0
        %v3861 = vadd.f32 0.0, %v3860
        %v3862 = vpop.f32.mrf.mxu0
        %v3863 = vpop.f32.mrf.mxu0
        %v3864 = vadd.f32 0.0, %v3863
        %v3865 = vpop.f32.mrf.mxu0
        %3866 = vmatprep.mubr.bf16.mxu0 0
        %3867 = vmatmul.mubr.bf16.gmra.mxu0 %v3697
        %v3868 = vpop.f32.mrf.mxu0
        %v3869 = vadd.f32 0.0, %v3868
        %v3870 = vpop.f32.mrf.mxu0
        %v3871 = vpop.f32.mrf.mxu0
        %v3872 = vadd.f32 0.0, %v3871
        %v3873 = vpop.f32.mrf.mxu0
        %3874 = vmatprep.mubr.bf16.mxu0 0
        %3875 = vmatmul.mubr.bf16.gmra.mxu0 %v3699
        %v3876 = vpop.f32.mrf.mxu0
        %v3877 = vadd.f32 0.0, %v3876
        %v3878 = vpop.f32.mrf.mxu0
        %v3879 = vpop.f32.mrf.mxu0
        %v3880 = vadd.f32 0.0, %v3879
        %v3881 = vpop.f32.mrf.mxu0
        %3882 = vmatprep.mubr.bf16.mxu0 0
        %3883 = vmatmul.mubr.bf16.gmra.mxu0 %v3701
        %v3884 = vpop.f32.mrf.mxu0
        %v3885 = vadd.f32 0.0, %v3884
        %v3886 = vpop.f32.mrf.mxu0
        %v3887 = vpop.f32.mrf.mxu0
        %v3888 = vadd.f32 0.0, %v3887
        %v3889 = vpop.f32.mrf.mxu0
        %3890 = vmatprep.mubr.bf16.mxu0 0
        %3891 = vmatmul.mubr.bf16.gmra.mxu0 %v3703
        %v3892 = vpop.f32.mrf.mxu0
        %v3893 = vadd.f32 0.0, %v3892
        %v3894 = vpop.f32.mrf.mxu0
        %v3895 = vpop.f32.mrf.mxu0
        %v3896 = vadd.f32 0.0, %v3895
        %v3897 = vpop.f32.mrf.mxu0
        %3898 = vmatprep.mubr.bf16.mxu0 0
        %3899 = vmatmul.mubr.bf16.gmra.mxu0 %v3705
        %v3900 = vpop.f32.mrf.mxu0
        %v3901 = vadd.f32 0.0, %v3900
        %v3902 = vpop.f32.mrf.mxu0
        %v3903 = vpop.f32.mrf.mxu0
        %v3904 = vadd.f32 0.0, %v3903
        %v3905 = vpop.f32.mrf.mxu0
        %3906 = vmatprep.mubr.bf16.mxu0 0
        %3907 = vmatmul.mubr.bf16.gmra.mxu0 %v3707
        %v3908 = vpop.f32.mrf.mxu0
        %v3909 = vadd.f32 0.0, %v3908
        %v3910 = vpop.f32.mrf.mxu0
        %v3911 = vpop.f32.mrf.mxu0
        %v3912 = vadd.f32 0.0, %v3911
        %v3913 = vpop.f32.mrf.mxu0
        %3914 = vmatprep.mubr.bf16.mxu0 0
        %3915 = vmatmul.mubr.bf16.gmra.mxu0 %v3709
        %v3916 = vpop.f32.mrf.mxu0
        %v3917 = vadd.f32 0.0, %v3916
        %v3918 = vpop.f32.mrf.mxu0
        %v3919 = vpop.f32.mrf.mxu0
        %v3920 = vadd.f32 0.0, %v3919
        %v3921 = vpop.f32.mrf.mxu0
        %3922 = vmatprep.mubr.bf16.mxu0 0
        %3923 = vmatmul.mubr.bf16.gmra.mxu0 %v3711
        %v3924 = vpop.f32.mrf.mxu0
        %v3925 = vadd.f32 0.0, %v3924
        %v3926 = vpop.f32.mrf.mxu0
        %v3927 = vpop.f32.mrf.mxu0
        %v3928 = vadd.f32 0.0, %v3927
        %v3929 = vpop.f32.mrf.mxu0
        %3930 = vmatprep.mubr.bf16.mxu0 0
        %3931 = vmatmul.mubr.bf16.gmra.mxu0 %v3713
        %v3932 = vpop.f32.mrf.mxu0
        %v3933 = vadd.f32 0.0, %v3932
        %v3934 = vpop.f32.mrf.mxu0
        %v3935 = vpop.f32.mrf.mxu0
        %v3936 = vadd.f32 0.0, %v3935
        %v3937 = vpop.f32.mrf.mxu0
        %3938 = vmatprep.mubr.bf16.mxu0 0
        %3939 = vmatmul.mubr.bf16.gmra.mxu0 %v3715
        %v3940 = vpop.f32.mrf.mxu0
        %v3941 = vadd.f32 0.0, %v3940
        %v3942 = vpop.f32.mrf.mxu0
        %v3943 = vpop.f32.mrf.mxu0
        %v3944 = vadd.f32 0.0, %v3943
        %v3945 = vpop.f32.mrf.mxu0
        %3946 = vmatprep.mubr.bf16.mxu0 0
        %3947 = vmatmul.mubr.bf16.gmra.mxu0 %v3717
        %v3948 = vpop.f32.mrf.mxu0
        %v3949 = vadd.f32 0.0, %v3948
        %v3950 = vpop.f32.mrf.mxu0
        %v3951 = vpop.f32.mrf.mxu0
        %v3952 = vadd.f32 0.0, %v3951
        %v3953 = vpop.f32.mrf.mxu0
        %3954 = vmatprep.mubr.bf16.mxu0 0
        %3955 = vmatmul.mubr.bf16.gmra.mxu0 %v3719
        %v3956 = vpop.f32.mrf.mxu0
        %v3957 = vadd.f32 0.0, %v3956
        %v3958 = vpop.f32.mrf.mxu0
        %v3959 = vpop.f32.mrf.mxu0
        %v3960 = vadd.f32 0.0, %v3959
        %v3961 = vpop.f32.mrf.mxu0
        %3962 = vdwg.mxu0
        %v3963 = vadd.f32 %v3625, %v3821
        %v3964 = vadd.f32 %v3626, %v3824
        %v3965 = vadd.f32 %v3627, %v3829
        %v3966 = vadd.f32 %v3628, %v3832
        %v3967 = vadd.f32 %v3629, %v3837
        %v3968 = vadd.f32 %v3630, %v3840
        %v3969 = vadd.f32 %v3631, %v3845
        %v3970 = vadd.f32 %v3632, %v3848
        %v3971 = vadd.f32 %v3633, %v3853
        %v3972 = vadd.f32 %v3634, %v3856
        %v3973 = vadd.f32 %v3635, %v3861
        %v3974 = vadd.f32 %v3636, %v3864
        %v3975 = vadd.f32 %v3637, %v3869
        %v3976 = vadd.f32 %v3638, %v3872
        %v3977 = vadd.f32 %v3639, %v3877
        %v3978 = vadd.f32 %v3640, %v3880
        %v3979 = vadd.f32 %v3641, %v3885
        %v3980 = vadd.f32 %v3642, %v3888
        %v3981 = vadd.f32 %v3643, %v3893
        %v3982 = vadd.f32 %v3644, %v3896
        %v3983 = vadd.f32 %v3645, %v3901
        %v3984 = vadd.f32 %v3646, %v3904
        %v3985 = vadd.f32 %v3647, %v3909
        %v3986 = vadd.f32 %v3648, %v3912
        %v3987 = vadd.f32 %v3649, %v3917
        %v3988 = vadd.f32 %v3650, %v3920
        %v3989 = vadd.f32 %v3651, %v3925
        %v3990 = vadd.f32 %v3652, %v3928
        %v3991 = vadd.f32 %v3653, %v3933
        %v3992 = vadd.f32 %v3654, %v3936
        %v3993 = vadd.f32 %v3655, %v3941
        %v3994 = vadd.f32 %v3656, %v3944
        %v3995 = vadd.f32 %v3657, %v3949
        %v3996 = vadd.f32 %v3658, %v3952
        %v3997 = vadd.f32 %v3659, %v3957
        %v3998 = vadd.f32 %v3660, %v3960
        %v3999 = vld [vmem:[%s312 + $0xa4] sm:$0x3]
        %s4000 = scalar_lea.vmem [#allocation6], 512
        %v4001 = vld [vmem:[%s4000] sm:$0xf]
        %v4002 = vld [vmem:[%s4000 + $0x4] sm:$0xf]
        %v4003 = vld [vmem:[%s4000 + $0x8] sm:$0xf]
        %v4004 = vld [vmem:[%s4000 + $0xc] sm:$0xf]
        %v4005 = vld [vmem:[%s4000 + $0x10] sm:$0xf]
        %v4006 = vld [vmem:[%s4000 + $0x14] sm:$0xf]
        %v4007 = vld [vmem:[%s4000 + $0x18] sm:$0xf]
        %v4008 = vld [vmem:[%s4000 + $0x1c] sm:$0xf]
        %v4009 = vld [vmem:[%s4000 + $0x20] sm:$0xf]
        %v4010 = vld [vmem:[%s4000 + $0x24] sm:$0xf]
        %v4011 = vld [vmem:[%s4000 + $0x28] sm:$0xf]
        %v4012 = vld [vmem:[%s4000 + $0x2c] sm:$0xf]
        %v4013 = vld [vmem:[%s4000 + $0x30] sm:$0xf]
        %v4014 = vld [vmem:[%s4000 + $0x34] sm:$0xf]
        %v4015 = vld [vmem:[%s4000 + $0x38] sm:$0xf]
        %v4016 = vld [vmem:[%s4000 + $0x3c] sm:$0xf]
        %v4018 = vunpack.c.l.b16 %v3999
        %v4019 = vpack.c.b16 %v4018, %v4018
        %vm4020 = vsmask.f32 6400
        %v4022 = vshrl.u32 %v3681, 16
        %v4024 = vrot.slane %v4022, 1
        %v4025 = vshll.u32 %v3681, 16
        %v4027 = vrot.slane %v4025, 2
        %v4028 = vor.u32 %v4024, %v4027
        %v4029 = vrot.slane %v3246, 1
        %v4030 = vrot.slane %v3242, 2
        %v4031 = vor.u32 %v4029, %v4030
        %v4032 = vsel %vm4020, %v4028, %v4031
        %v4033 = vrot.slane %v3254, 1
        %v4034 = vrot.slane %v3250, 2
        %v4035 = vor.u32 %v4033, %v4034
        %v4036 = vsel %vm4020, %v4031, %v4035
        %v4037 = vrot.slane %v3262, 1
        %v4038 = vrot.slane %v3258, 2
        %v4039 = vor.u32 %v4037, %v4038
        %v4040 = vsel %vm4020, %v4035, %v4039
        %v4041 = vrot.slane %v3270, 1
        %v4042 = vrot.slane %v3266, 2
        %v4043 = vor.u32 %v4041, %v4042
        %v4044 = vsel %vm4020, %v4039, %v4043
        %v4045 = vrot.slane %v3278, 1
        %v4046 = vrot.slane %v3274, 2
        %v4047 = vor.u32 %v4045, %v4046
        %v4048 = vsel %vm4020, %v4043, %v4047
        %v4049 = vrot.slane %v3286, 1
        %v4050 = vrot.slane %v3282, 2
        %v4051 = vor.u32 %v4049, %v4050
        %v4052 = vsel %vm4020, %v4047, %v4051
        %v4053 = vrot.slane %v3294, 1
        %v4054 = vrot.slane %v3290, 2
        %v4055 = vor.u32 %v4053, %v4054
        %v4056 = vsel %vm4020, %v4051, %v4055
        %v4057 = vrot.slane %v3302, 1
        %v4058 = vrot.slane %v3298, 2
        %v4059 = vor.u32 %v4057, %v4058
        %v4060 = vsel %vm4020, %v4055, %v4059
        %v4061 = vrot.slane %v3310, 1
        %v4062 = vrot.slane %v3306, 2
        %v4063 = vor.u32 %v4061, %v4062
        %v4064 = vsel %vm4020, %v4059, %v4063
        %v4065 = vrot.slane %v3318, 1
        %v4066 = vrot.slane %v3314, 2
        %v4067 = vor.u32 %v4065, %v4066
        %v4068 = vsel %vm4020, %v4063, %v4067
        %v4069 = vrot.slane %v3326, 1
        %v4070 = vrot.slane %v3322, 2
        %v4071 = vor.u32 %v4069, %v4070
        %v4072 = vsel %vm4020, %v4067, %v4071
        %v4073 = vrot.slane %v3334, 1
        %v4074 = vrot.slane %v3330, 2
        %v4075 = vor.u32 %v4073, %v4074
        %v4076 = vsel %vm4020, %v4071, %v4075
        %v4077 = vrot.slane %v3342, 1
        %v4078 = vrot.slane %v3338, 2
        %v4079 = vor.u32 %v4077, %v4078
        %v4080 = vsel %vm4020, %v4075, %v4079
        %v4081 = vrot.slane %v3350, 1
        %v4082 = vrot.slane %v3346, 2
        %v4083 = vor.u32 %v4081, %v4082
        %v4084 = vsel %vm4020, %v4079, %v4083
        %v4085 = vrot.slane %v3358, 1
        %v4086 = vrot.slane %v3354, 2
        %v4087 = vor.u32 %v4085, %v4086
        %v4088 = vsel %vm4020, %v4083, %v4087
        %v4089 = vrot.slane %v3366, 1
        %v4090 = vrot.slane %v3362, 2
        %v4091 = vor.u32 %v4089, %v4090
        %v4092 = vsel %vm4020, %v4087, %v4091
        %v4093 = vrot.slane %v3374, 1
        %v4094 = vrot.slane %v3370, 2
        %v4095 = vor.u32 %v4093, %v4094
        %v4096 = vsel %vm4020, %v4091, %v4095
        %v4098 = vshrl.u32 %v4019, 16
        %v4100 = vrot.slane %v4098, 1
        %v4101 = vshll.u32 %v4019, 16
        %v4103 = vrot.slane %v4101, 2
        %v4104 = vor.u32 %v4100, %v4103
        %v4105 = vsel %vm4020, %v4095, %v4104
        %v4140 = vunpack.c.l.b16 %v4001
        %v4141 = vunpack.c.l.b16 %v4002
        %v4142 = vunpack.c.l.b16 %v4003
        %v4143 = vunpack.c.l.b16 %v4004
        %v4144 = vunpack.c.l.b16 %v4005
        %v4145 = vunpack.c.l.b16 %v4006
        %v4146 = vunpack.c.l.b16 %v4007
        %v4147 = vunpack.c.l.b16 %v4008
        %v4148 = vunpack.c.l.b16 %v4009
        %v4149 = vunpack.c.l.b16 %v4010
        %v4150 = vunpack.c.l.b16 %v4011
        %v4151 = vunpack.c.l.b16 %v4012
        %v4152 = vunpack.c.l.b16 %v4013
        %v4153 = vunpack.c.l.b16 %v4014
        %v4154 = vunpack.c.l.b16 %v4015
        %v4155 = vunpack.c.l.b16 %v4016
        %v4156 = vpack.c.b16 %v4141, %v4140
        %v4157 = vpack.c.b16 %v4143, %v4142
        %v4158 = vpack.c.b16 %v4145, %v4144
        %v4159 = vpack.c.b16 %v4147, %v4146
        %v4160 = vpack.c.b16 %v4149, %v4148
        %v4161 = vpack.c.b16 %v4151, %v4150
        %v4162 = vpack.c.b16 %v4153, %v4152
        %v4163 = vpack.c.b16 %v4155, %v4154
        %4172 = vmatprep.subr.bf16.mxu0 0
        %4173 = vmatpush1.bf16.msra.mxu0 %v4163
        %4174 = vmatprep.subr.bf16.mxu0 0
        %4175 = vmatpush1.bf16.msra.mxu0 %v4162
        %4176 = vmatprep.subr.bf16.mxu0 0
        %4177 = vmatpush1.bf16.msra.mxu0 %v4161
        %4178 = vmatprep.subr.bf16.mxu0 0
        %4179 = vmatpush1.bf16.msra.mxu0 %v4160
        %4180 = vmatprep.subr.bf16.mxu0 0
        %4181 = vmatpush1.bf16.msra.mxu0 %v4159
        %4182 = vmatprep.subr.bf16.mxu0 0
        %4183 = vmatpush1.bf16.msra.mxu0 %v4158
        %4184 = vmatprep.subr.bf16.mxu0 0
        %4185 = vmatpush1.bf16.msra.mxu0 %v4157
        %4186 = vmatprep.subr.bf16.mxu0 0
        %4187 = vmatpush1.bf16.msra.mxu0 %v4156
        %4188 = vmatprep.subr.bf16.mxu0 0
        %4189 = vmatpush2.bf16.msra.mxu0 0
        %4190 = vmatprep.subr.bf16.mxu0 0
        %4191 = vmatpush2.bf16.msra.mxu0 0
        %4192 = vmatprep.subr.bf16.mxu0 0
        %4193 = vmatpush2.bf16.msra.mxu0 0
        %4194 = vmatprep.subr.bf16.mxu0 0
        %4195 = vmatpush2.bf16.msra.mxu0 0
        %4196 = vmatprep.subr.bf16.mxu0 0
        %4197 = vmatpush2.bf16.msra.mxu0 0
        %4198 = vmatprep.subr.bf16.mxu0 0
        %4199 = vmatpush2.bf16.msra.mxu0 0
        %4200 = vmatprep.subr.bf16.mxu0 0
        %4201 = vmatpush2.bf16.msra.mxu0 0
        %4202 = vmatprep.subr.bf16.mxu0 0
        %4203 = vmatpush2.bf16.msra.mxu0 0
        %4204 = vmatprep.mubr.bf16.mxu0 0
        %4205 = vmatmul.mubr.bf16.gmra.mxu0 %v4032
        %v4206 = vpop.f32.mrf.mxu0
        %v4207 = vadd.f32 0.0, %v4206
        %v4208 = vpop.f32.mrf.mxu0
        %v4209 = vpop.f32.mrf.mxu0
        %v4210 = vadd.f32 0.0, %v4209
        %v4211 = vpop.f32.mrf.mxu0
        %4212 = vmatprep.mubr.bf16.mxu0 0
        %4213 = vmatmul.mubr.bf16.gmra.mxu0 %v4036
        %v4214 = vpop.f32.mrf.mxu0
        %v4215 = vadd.f32 0.0, %v4214
        %v4216 = vpop.f32.mrf.mxu0
        %v4217 = vpop.f32.mrf.mxu0
        %v4218 = vadd.f32 0.0, %v4217
        %v4219 = vpop.f32.mrf.mxu0
        %4220 = vmatprep.mubr.bf16.mxu0 0
        %4221 = vmatmul.mubr.bf16.gmra.mxu0 %v4040
        %v4222 = vpop.f32.mrf.mxu0
        %v4223 = vadd.f32 0.0, %v4222
        %v4224 = vpop.f32.mrf.mxu0
        %v4225 = vpop.f32.mrf.mxu0
        %v4226 = vadd.f32 0.0, %v4225
        %v4227 = vpop.f32.mrf.mxu0
        %4228 = vmatprep.mubr.bf16.mxu0 0
        %4229 = vmatmul.mubr.bf16.gmra.mxu0 %v4044
        %v4230 = vpop.f32.mrf.mxu0
        %v4231 = vadd.f32 0.0, %v4230
        %v4232 = vpop.f32.mrf.mxu0
        %v4233 = vpop.f32.mrf.mxu0
        %v4234 = vadd.f32 0.0, %v4233
        %v4235 = vpop.f32.mrf.mxu0
        %4236 = vmatprep.mubr.bf16.mxu0 0
        %4237 = vmatmul.mubr.bf16.gmra.mxu0 %v4048
        %v4238 = vpop.f32.mrf.mxu0
        %v4239 = vadd.f32 0.0, %v4238
        %v4240 = vpop.f32.mrf.mxu0
        %v4241 = vpop.f32.mrf.mxu0
        %v4242 = vadd.f32 0.0, %v4241
        %v4243 = vpop.f32.mrf.mxu0
        %4244 = vmatprep.mubr.bf16.mxu0 0
        %4245 = vmatmul.mubr.bf16.gmra.mxu0 %v4052
        %v4246 = vpop.f32.mrf.mxu0
        %v4247 = vadd.f32 0.0, %v4246
        %v4248 = vpop.f32.mrf.mxu0
        %v4249 = vpop.f32.mrf.mxu0
        %v4250 = vadd.f32 0.0, %v4249
        %v4251 = vpop.f32.mrf.mxu0
        %4252 = vmatprep.mubr.bf16.mxu0 0
        %4253 = vmatmul.mubr.bf16.gmra.mxu0 %v4056
        %v4254 = vpop.f32.mrf.mxu0
        %v4255 = vadd.f32 0.0, %v4254
        %v4256 = vpop.f32.mrf.mxu0
        %v4257 = vpop.f32.mrf.mxu0
        %v4258 = vadd.f32 0.0, %v4257
        %v4259 = vpop.f32.mrf.mxu0
        %4260 = vmatprep.mubr.bf16.mxu0 0
        %4261 = vmatmul.mubr.bf16.gmra.mxu0 %v4060
        %v4262 = vpop.f32.mrf.mxu0
        %v4263 = vadd.f32 0.0, %v4262
        %v4264 = vpop.f32.mrf.mxu0
        %v4265 = vpop.f32.mrf.mxu0
        %v4266 = vadd.f32 0.0, %v4265
        %v4267 = vpop.f32.mrf.mxu0
        %4268 = vmatprep.mubr.bf16.mxu0 0
        %4269 = vmatmul.mubr.bf16.gmra.mxu0 %v4064
        %v4270 = vpop.f32.mrf.mxu0
        %v4271 = vadd.f32 0.0, %v4270
        %v4272 = vpop.f32.mrf.mxu0
        %v4273 = vpop.f32.mrf.mxu0
        %v4274 = vadd.f32 0.0, %v4273
        %v4275 = vpop.f32.mrf.mxu0
        %4276 = vmatprep.mubr.bf16.mxu0 0
        %4277 = vmatmul.mubr.bf16.gmra.mxu0 %v4068
        %v4278 = vpop.f32.mrf.mxu0
        %v4279 = vadd.f32 0.0, %v4278
        %v4280 = vpop.f32.mrf.mxu0
        %v4281 = vpop.f32.mrf.mxu0
        %v4282 = vadd.f32 0.0, %v4281
        %v4283 = vpop.f32.mrf.mxu0
        %4284 = vmatprep.mubr.bf16.mxu0 0
        %4285 = vmatmul.mubr.bf16.gmra.mxu0 %v4072
        %v4286 = vpop.f32.mrf.mxu0
        %v4287 = vadd.f32 0.0, %v4286
        %v4288 = vpop.f32.mrf.mxu0
        %v4289 = vpop.f32.mrf.mxu0
        %v4290 = vadd.f32 0.0, %v4289
        %v4291 = vpop.f32.mrf.mxu0
        %4292 = vmatprep.mubr.bf16.mxu0 0
        %4293 = vmatmul.mubr.bf16.gmra.mxu0 %v4076
        %v4294 = vpop.f32.mrf.mxu0
        %v4295 = vadd.f32 0.0, %v4294
        %v4296 = vpop.f32.mrf.mxu0
        %v4297 = vpop.f32.mrf.mxu0
        %v4298 = vadd.f32 0.0, %v4297
        %v4299 = vpop.f32.mrf.mxu0
        %4300 = vmatprep.mubr.bf16.mxu0 0
        %4301 = vmatmul.mubr.bf16.gmra.mxu0 %v4080
        %v4302 = vpop.f32.mrf.mxu0
        %v4303 = vadd.f32 0.0, %v4302
        %v4304 = vpop.f32.mrf.mxu0
        %v4305 = vpop.f32.mrf.mxu0
        %v4306 = vadd.f32 0.0, %v4305
        %v4307 = vpop.f32.mrf.mxu0
        %4308 = vmatprep.mubr.bf16.mxu0 0
        %4309 = vmatmul.mubr.bf16.gmra.mxu0 %v4084
        %v4310 = vpop.f32.mrf.mxu0
        %v4311 = vadd.f32 0.0, %v4310
        %v4312 = vpop.f32.mrf.mxu0
        %v4313 = vpop.f32.mrf.mxu0
        %v4314 = vadd.f32 0.0, %v4313
        %v4315 = vpop.f32.mrf.mxu0
        %4316 = vmatprep.mubr.bf16.mxu0 0
        %4317 = vmatmul.mubr.bf16.gmra.mxu0 %v4088
        %v4318 = vpop.f32.mrf.mxu0
        %v4319 = vadd.f32 0.0, %v4318
        %v4320 = vpop.f32.mrf.mxu0
        %v4321 = vpop.f32.mrf.mxu0
        %v4322 = vadd.f32 0.0, %v4321
        %v4323 = vpop.f32.mrf.mxu0
        %4324 = vmatprep.mubr.bf16.mxu0 0
        %4325 = vmatmul.mubr.bf16.gmra.mxu0 %v4092
        %v4326 = vpop.f32.mrf.mxu0
        %v4327 = vadd.f32 0.0, %v4326
        %v4328 = vpop.f32.mrf.mxu0
        %v4329 = vpop.f32.mrf.mxu0
        %v4330 = vadd.f32 0.0, %v4329
        %v4331 = vpop.f32.mrf.mxu0
        %4332 = vmatprep.mubr.bf16.mxu0 0
        %4333 = vmatmul.mubr.bf16.gmra.mxu0 %v4096
        %v4334 = vpop.f32.mrf.mxu0
        %v4335 = vadd.f32 0.0, %v4334
        %v4336 = vpop.f32.mrf.mxu0
        %v4337 = vpop.f32.mrf.mxu0
        %v4338 = vadd.f32 0.0, %v4337
        %v4339 = vpop.f32.mrf.mxu0
        %4340 = vmatprep.mubr.bf16.mxu0 0
        %4341 = vmatmul.mubr.bf16.gmra.mxu0 %v4105
        %v4342 = vpop.f32.mrf.mxu0
        %v4343 = vadd.f32 0.0, %v4342
        %v4344 = vpop.f32.mrf.mxu0
        %v4345 = vpop.f32.mrf.mxu0
        %v4346 = vadd.f32 0.0, %v4345
        %v4347 = vpop.f32.mrf.mxu0
        %4348 = vdwg.mxu0
        %v4349 = vadd.f32 %v3963, %v4207
        %v4350 = vadd.f32 %v3964, %v4210
        %v4351 = vadd.f32 %v3965, %v4215
        %v4352 = vadd.f32 %v3966, %v4218
        %v4353 = vadd.f32 %v3967, %v4223
        %v4354 = vadd.f32 %v3968, %v4226
        %v4355 = vadd.f32 %v3969, %v4231
        %v4356 = vadd.f32 %v3970, %v4234
        %v4357 = vadd.f32 %v3971, %v4239
        %v4358 = vadd.f32 %v3972, %v4242
        %v4359 = vadd.f32 %v3973, %v4247
        %v4360 = vadd.f32 %v3974, %v4250
        %v4361 = vadd.f32 %v3975, %v4255
        %v4362 = vadd.f32 %v3976, %v4258
        %v4363 = vadd.f32 %v3977, %v4263
        %v4364 = vadd.f32 %v3978, %v4266
        %v4365 = vadd.f32 %v3979, %v4271
        %v4366 = vadd.f32 %v3980, %v4274
        %v4367 = vadd.f32 %v3981, %v4279
        %v4368 = vadd.f32 %v3982, %v4282
        %v4369 = vadd.f32 %v3983, %v4287
        %v4370 = vadd.f32 %v3984, %v4290
        %v4371 = vadd.f32 %v3985, %v4295
        %v4372 = vadd.f32 %v3986, %v4298
        %v4373 = vadd.f32 %v3987, %v4303
        %v4374 = vadd.f32 %v3988, %v4306
        %v4375 = vadd.f32 %v3989, %v4311
        %v4376 = vadd.f32 %v3990, %v4314
        %v4377 = vadd.f32 %v3991, %v4319
        %v4378 = vadd.f32 %v3992, %v4322
        %v4379 = vadd.f32 %v3993, %v4327
        %v4380 = vadd.f32 %v3994, %v4330
        %v4381 = vadd.f32 %v3995, %v4335
        %v4382 = vadd.f32 %v3996, %v4338
        %v4383 = vadd.f32 %v3997, %v4343
        %v4384 = vadd.f32 %v3998, %v4346
        %v4385 = vld [vmem:[%s3] sm:$0x1]
        %v4387 = vlaneseq
        %v4388 = vshrl.u32 %v4387, 7
        %v4389 = vsub.s32 0, %v4388
        %v4390 = vrot.slane %v4385, %v4389
        %v4392 = vmul.f32 %v4349, %v4390
        %v4393 = vmul.f32 %v4350, %v4390
        %v4394 = vmul.f32 %v4351, %v4390
        %v4395 = vmul.f32 %v4352, %v4390
        %v4396 = vmul.f32 %v4353, %v4390
        %v4397 = vmul.f32 %v4354, %v4390
        %v4398 = vmul.f32 %v4355, %v4390
        %v4399 = vmul.f32 %v4356, %v4390
        %v4400 = vmul.f32 %v4357, %v4390
        %v4401 = vmul.f32 %v4358, %v4390
        %v4402 = vmul.f32 %v4359, %v4390
        %v4403 = vmul.f32 %v4360, %v4390
        %v4404 = vmul.f32 %v4361, %v4390
        %v4405 = vmul.f32 %v4362, %v4390
        %v4406 = vmul.f32 %v4363, %v4390
        %v4407 = vmul.f32 %v4364, %v4390
        %v4408 = vmul.f32 %v4365, %v4390
        %v4409 = vmul.f32 %v4366, %v4390
        %v4410 = vmul.f32 %v4367, %v4390
        %v4411 = vmul.f32 %v4368, %v4390
        %v4412 = vmul.f32 %v4369, %v4390
        %v4413 = vmul.f32 %v4370, %v4390
        %v4414 = vmul.f32 %v4371, %v4390
        %v4415 = vmul.f32 %v4372, %v4390
        %v4416 = vmul.f32 %v4373, %v4390
        %v4417 = vmul.f32 %v4374, %v4390
        %v4418 = vmul.f32 %v4375, %v4390
        %v4419 = vmul.f32 %v4376, %v4390
        %v4420 = vmul.f32 %v4377, %v4390
        %v4421 = vmul.f32 %v4378, %v4390
        %v4422 = vmul.f32 %v4379, %v4390
        %v4423 = vmul.f32 %v4380, %v4390
        %v4424 = vmul.f32 %v4381, %v4390
        %v4425 = vmul.f32 %v4382, %v4390
        %v4426 = vmul.f32 %v4383, %v4390
        %v4427 = vmul.f32 %v4384, %v4390
        %v4428 = vld [vmem:[%s4] sm:$0x1]
        %v4430 = vlaneseq
        %v4431 = vshrl.u32 %v4430, 7
        %v4432 = vsub.s32 0, %v4431
        %v4433 = vrot.slane %v4428, %v4432
        %v4435 = vadd.f32 %v4392, %v4433
        %v4436 = vadd.f32 %v4393, %v4433
        %v4437 = vadd.f32 %v4394, %v4433
        %v4438 = vadd.f32 %v4395, %v4433
        %v4439 = vadd.f32 %v4396, %v4433
        %v4440 = vadd.f32 %v4397, %v4433
        %v4441 = vadd.f32 %v4398, %v4433
        %v4442 = vadd.f32 %v4399, %v4433
        %v4443 = vadd.f32 %v4400, %v4433
        %v4444 = vadd.f32 %v4401, %v4433
        %v4445 = vadd.f32 %v4402, %v4433
        %v4446 = vadd.f32 %v4403, %v4433
        %v4447 = vadd.f32 %v4404, %v4433
        %v4448 = vadd.f32 %v4405, %v4433
        %v4449 = vadd.f32 %v4406, %v4433
        %v4450 = vadd.f32 %v4407, %v4433
        %v4451 = vadd.f32 %v4408, %v4433
        %v4452 = vadd.f32 %v4409, %v4433
        %v4453 = vadd.f32 %v4410, %v4433
        %v4454 = vadd.f32 %v4411, %v4433
        %v4455 = vadd.f32 %v4412, %v4433
        %v4456 = vadd.f32 %v4413, %v4433
        %v4457 = vadd.f32 %v4414, %v4433
        %v4458 = vadd.f32 %v4415, %v4433
        %v4459 = vadd.f32 %v4416, %v4433
        %v4460 = vadd.f32 %v4417, %v4433
        %v4461 = vadd.f32 %v4418, %v4433
        %v4462 = vadd.f32 %v4419, %v4433
        %v4463 = vadd.f32 %v4420, %v4433
        %v4464 = vadd.f32 %v4421, %v4433
        %v4465 = vadd.f32 %v4422, %v4433
        %v4466 = vadd.f32 %v4423, %v4433
        %v4467 = vadd.f32 %v4424, %v4433
        %v4468 = vadd.f32 %v4425, %v4433
        %v4469 = vadd.f32 %v4426, %v4433
        %v4470 = vadd.f32 %v4427, %v4433
        %v4471 = vmax.f32 %v4435, 0.0
        %v4472 = vmax.f32 %v4436, 0.0
        %v4473 = vmax.f32 %v4437, 0.0
        %v4474 = vmax.f32 %v4438, 0.0
        %v4475 = vmax.f32 %v4439, 0.0
        %v4476 = vmax.f32 %v4440, 0.0
        %v4477 = vmax.f32 %v4441, 0.0
        %v4478 = vmax.f32 %v4442, 0.0
        %v4479 = vmax.f32 %v4443, 0.0
        %v4480 = vmax.f32 %v4444, 0.0
        %v4481 = vmax.f32 %v4445, 0.0
        %v4482 = vmax.f32 %v4446, 0.0
        %v4483 = vmax.f32 %v4447, 0.0
        %v4484 = vmax.f32 %v4448, 0.0
        %v4485 = vmax.f32 %v4449, 0.0
        %v4486 = vmax.f32 %v4450, 0.0
        %v4487 = vmax.f32 %v4451, 0.0
        %v4488 = vmax.f32 %v4452, 0.0
        %v4489 = vmax.f32 %v4453, 0.0
        %v4490 = vmax.f32 %v4454, 0.0
        %v4491 = vmax.f32 %v4455, 0.0
        %v4492 = vmax.f32 %v4456, 0.0
        %v4493 = vmax.f32 %v4457, 0.0
        %v4494 = vmax.f32 %v4458, 0.0
        %v4495 = vmax.f32 %v4459, 0.0
        %v4496 = vmax.f32 %v4460, 0.0
        %v4497 = vmax.f32 %v4461, 0.0
        %v4498 = vmax.f32 %v4462, 0.0
        %v4499 = vmax.f32 %v4463, 0.0
        %v4500 = vmax.f32 %v4464, 0.0
        %v4501 = vmax.f32 %v4465, 0.0
        %v4502 = vmax.f32 %v4466, 0.0
        %v4503 = vmax.f32 %v4467, 0.0
        %v4504 = vmax.f32 %v4468, 0.0
        %v4505 = vmax.f32 %v4469, 0.0
        %v4506 = vmax.f32 %v4470, 0.0
        %v4507 = vld [vmem:[%s7] sm:$0xff]
        %v4508 = vld [vmem:[%s7 + $0x8] sm:$0xff]
        %v4509 = vld [vmem:[%s7 + $0x10] sm:$0xff]
        %v4510 = vld [vmem:[%s7 + $0x18] sm:$0xff]
        %v4511 = vld [vmem:[%s7 + $0x20] sm:$0xff]
        %v4512 = vld [vmem:[%s7 + $0x28] sm:$0xff]
        %v4513 = vld [vmem:[%s7 + $0x30] sm:$0xff]
        %v4514 = vld [vmem:[%s7 + $0x38] sm:$0xff]
        %v4515 = vld [vmem:[%s7 + $0x40] sm:$0xff]
        %v4516 = vld [vmem:[%s7 + $0x48] sm:$0xff]
        %v4517 = vld [vmem:[%s7 + $0x50] sm:$0xff]
        %v4518 = vld [vmem:[%s7 + $0x58] sm:$0xff]
        %v4519 = vld [vmem:[%s7 + $0x60] sm:$0xff]
        %v4520 = vld [vmem:[%s7 + $0x68] sm:$0xff]
        %v4521 = vld [vmem:[%s7 + $0x70] sm:$0xff]
        %v4522 = vld [vmem:[%s7 + $0x78] sm:$0xff]
        %v4523 = vld [vmem:[%s7 + $0x80] sm:$0xff]
        %v4524 = vld [vmem:[%s7 + $0x88] sm:$0xff]
        %v4525 = vld [vmem:[%s7 + $0x90] sm:$0xff]
        %v4526 = vld [vmem:[%s7 + $0x98] sm:$0xff]
        %v4527 = vld [vmem:[%s7 + $0xa0] sm:$0xff]
        %v4528 = vld [vmem:[%s7 + $0xa8] sm:$0xff]
        %v4529 = vld [vmem:[%s7 + $0xb0] sm:$0xff]
        %v4530 = vld [vmem:[%s7 + $0xb8] sm:$0xff]
        %v4531 = vld [vmem:[%s7 + $0xc0] sm:$0xff]
        %v4532 = vld [vmem:[%s7 + $0xc8] sm:$0xff]
        %v4533 = vld [vmem:[%s7 + $0xd0] sm:$0xff]
        %v4534 = vld [vmem:[%s7 + $0xd8] sm:$0xff]
        %v4535 = vld [vmem:[%s7 + $0xe0] sm:$0xff]
        %v4536 = vld [vmem:[%s7 + $0xe8] sm:$0xff]
        %v4537 = vld [vmem:[%s7 + $0xf0] sm:$0xff]
        %v4538 = vld [vmem:[%s7 + $0xf8] sm:$0xff]
        %v4539 = vld [vmem:[%s7 + $0x100] sm:$0xff]
        %v4540 = vld [vmem:[%s7 + $0x108] sm:$0xff]
        %v4541 = vld [vmem:[%s7 + $0x110] sm:$0xff]
        %v4542 = vld [vmem:[%s7 + $0x118] sm:$0xff]
        %4544 = vset.pattern.permute.xlu0 0
        %4545 = vperm.xlu0 %4544, %v4507
        %v4546 = vpop.permute.xlu0 %4545
        %4549 = vset.pattern.permute.xlu0 0
        %4550 = vperm.xlu0 %4549, %v4508
        %v4551 = vpop.permute.xlu0 %4550
        %4554 = vset.pattern.permute.xlu0 0
        %4555 = vperm.xlu0 %4554, %v4509
        %v4556 = vpop.permute.xlu0 %4555
        %4559 = vset.pattern.permute.xlu0 0
        %4560 = vperm.xlu0 %4559, %v4510
        %v4561 = vpop.permute.xlu0 %4560
        %4564 = vset.pattern.permute.xlu0 0
        %4565 = vperm.xlu0 %4564, %v4511
        %v4566 = vpop.permute.xlu0 %4565
        %4569 = vset.pattern.permute.xlu0 0
        %4570 = vperm.xlu0 %4569, %v4512
        %v4571 = vpop.permute.xlu0 %4570
        %4574 = vset.pattern.permute.xlu0 0
        %4575 = vperm.xlu0 %4574, %v4513
        %v4576 = vpop.permute.xlu0 %4575
        %4579 = vset.pattern.permute.xlu0 0
        %4580 = vperm.xlu0 %4579, %v4514
        %v4581 = vpop.permute.xlu0 %4580
        %4584 = vset.pattern.permute.xlu0 0
        %4585 = vperm.xlu0 %4584, %v4515
        %v4586 = vpop.permute.xlu0 %4585
        %4589 = vset.pattern.permute.xlu0 0
        %4590 = vperm.xlu0 %4589, %v4516
        %v4591 = vpop.permute.xlu0 %4590
        %4594 = vset.pattern.permute.xlu0 0
        %4595 = vperm.xlu0 %4594, %v4517
        %v4596 = vpop.permute.xlu0 %4595
        %4599 = vset.pattern.permute.xlu0 0
        %4600 = vperm.xlu0 %4599, %v4518
        %v4601 = vpop.permute.xlu0 %4600
        %4604 = vset.pattern.permute.xlu0 0
        %4605 = vperm.xlu0 %4604, %v4519
        %v4606 = vpop.permute.xlu0 %4605
        %4609 = vset.pattern.permute.xlu0 0
        %4610 = vperm.xlu0 %4609, %v4520
        %v4611 = vpop.permute.xlu0 %4610
        %4614 = vset.pattern.permute.xlu0 0
        %4615 = vperm.xlu0 %4614, %v4521
        %v4616 = vpop.permute.xlu0 %4615
        %4619 = vset.pattern.permute.xlu0 0
        %4620 = vperm.xlu0 %4619, %v4522
        %v4621 = vpop.permute.xlu0 %4620
        %4624 = vset.pattern.permute.xlu0 0
        %4625 = vperm.xlu0 %4624, %v4523
        %v4626 = vpop.permute.xlu0 %4625
        %4629 = vset.pattern.permute.xlu0 0
        %4630 = vperm.xlu0 %4629, %v4524
        %v4631 = vpop.permute.xlu0 %4630
        %4634 = vset.pattern.permute.xlu0 0
        %4635 = vperm.xlu0 %4634, %v4525
        %v4636 = vpop.permute.xlu0 %4635
        %4639 = vset.pattern.permute.xlu0 0
        %4640 = vperm.xlu0 %4639, %v4526
        %v4641 = vpop.permute.xlu0 %4640
        %4644 = vset.pattern.permute.xlu0 0
        %4645 = vperm.xlu0 %4644, %v4527
        %v4646 = vpop.permute.xlu0 %4645
        %4649 = vset.pattern.permute.xlu0 0
        %4650 = vperm.xlu0 %4649, %v4528
        %v4651 = vpop.permute.xlu0 %4650
        %4654 = vset.pattern.permute.xlu0 0
        %4655 = vperm.xlu0 %4654, %v4529
        %v4656 = vpop.permute.xlu0 %4655
        %4659 = vset.pattern.permute.xlu0 0
        %4660 = vperm.xlu0 %4659, %v4530
        %v4661 = vpop.permute.xlu0 %4660
        %4664 = vset.pattern.permute.xlu0 0
        %4665 = vperm.xlu0 %4664, %v4531
        %v4666 = vpop.permute.xlu0 %4665
        %4669 = vset.pattern.permute.xlu0 0
        %4670 = vperm.xlu0 %4669, %v4532
        %v4671 = vpop.permute.xlu0 %4670
        %4674 = vset.pattern.permute.xlu0 0
        %4675 = vperm.xlu0 %4674, %v4533
        %v4676 = vpop.permute.xlu0 %4675
        %4679 = vset.pattern.permute.xlu0 0
        %4680 = vperm.xlu0 %4679, %v4534
        %v4681 = vpop.permute.xlu0 %4680
        %4684 = vset.pattern.permute.xlu0 0
        %4685 = vperm.xlu0 %4684, %v4535
        %v4686 = vpop.permute.xlu0 %4685
        %4689 = vset.pattern.permute.xlu0 0
        %4690 = vperm.xlu0 %4689, %v4536
        %v4691 = vpop.permute.xlu0 %4690
        %4694 = vset.pattern.permute.xlu0 0
        %4695 = vperm.xlu0 %4694, %v4537
        %v4696 = vpop.permute.xlu0 %4695
        %4699 = vset.pattern.permute.xlu0 0
        %4700 = vperm.xlu0 %4699, %v4538
        %v4701 = vpop.permute.xlu0 %4700
        %4704 = vset.pattern.permute.xlu0 0
        %4705 = vperm.xlu0 %4704, %v4539
        %v4706 = vpop.permute.xlu0 %4705
        %4709 = vset.pattern.permute.xlu0 0
        %4710 = vperm.xlu0 %4709, %v4540
        %v4711 = vpop.permute.xlu0 %4710
        %4714 = vset.pattern.permute.xlu0 0
        %4715 = vperm.xlu0 %4714, %v4541
        %v4716 = vpop.permute.xlu0 %4715
        %4719 = vset.pattern.permute.xlu0 0
        %4720 = vperm.xlu0 %4719, %v4542
        %v4721 = vpop.permute.xlu0 %4720
        %v4723 = vmul.f32 %v4471, %v4546
        %v4724 = vmul.f32 %v4472, %v4551
        %v4725 = vmul.f32 %v4473, %v4556
        %v4726 = vmul.f32 %v4474, %v4561
        %v4727 = vmul.f32 %v4475, %v4566
        %v4728 = vmul.f32 %v4476, %v4571
        %v4729 = vmul.f32 %v4477, %v4576
        %v4730 = vmul.f32 %v4478, %v4581
        %v4731 = vmul.f32 %v4479, %v4586
        %v4732 = vmul.f32 %v4480, %v4591
        %v4733 = vmul.f32 %v4481, %v4596
        %v4734 = vmul.f32 %v4482, %v4601
        %v4735 = vmul.f32 %v4483, %v4606
        %v4736 = vmul.f32 %v4484, %v4611
        %v4737 = vmul.f32 %v4485, %v4616
        %v4738 = vmul.f32 %v4486, %v4621
        %v4739 = vmul.f32 %v4487, %v4626
        %v4740 = vmul.f32 %v4488, %v4631
        %v4741 = vmul.f32 %v4489, %v4636
        %v4742 = vmul.f32 %v4490, %v4641
        %v4743 = vmul.f32 %v4491, %v4646
        %v4744 = vmul.f32 %v4492, %v4651
        %v4745 = vmul.f32 %v4493, %v4656
        %v4746 = vmul.f32 %v4494, %v4661
        %v4747 = vmul.f32 %v4495, %v4666
        %v4748 = vmul.f32 %v4496, %v4671
        %v4749 = vmul.f32 %v4497, %v4676
        %v4750 = vmul.f32 %v4498, %v4681
        %v4751 = vmul.f32 %v4499, %v4686
        %v4752 = vmul.f32 %v4500, %v4691
        %v4753 = vmul.f32 %v4501, %v4696
        %v4754 = vmul.f32 %v4502, %v4701
        %v4755 = vmul.f32 %v4503, %v4706
        %v4756 = vmul.f32 %v4504, %v4711
        %v4757 = vmul.f32 %v4505, %v4716
        %v4758 = vmul.f32 %v4506, %v4721
        %4759 = vst [vmem:[#allocation2] sm:$0xf] 0
        %4760 = vst [vmem:[#allocation2 + $0x4] sm:$0xf] 0
        %4761 = vst [vmem:[#allocation2 + $0x8] sm:$0xf] 0
        %4762 = vst [vmem:[#allocation2 + $0x9c] sm:$0xf] 0
        %4763 = vst [vmem:[#allocation2 + $0xa0] sm:$0xf] 0
        %4764 = vst [vmem:[#allocation2 + $0xa4] sm:$0xf] 0
        %v4765 = vpack.c.bf16 %v4724, %v4723
        %v4766 = vpack.c.bf16 %v4726, %v4725
        %v4767 = vpack.c.bf16 %v4728, %v4727
        %v4768 = vpack.c.bf16 %v4730, %v4729
        %v4769 = vpack.c.bf16 %v4732, %v4731
        %v4770 = vpack.c.bf16 %v4734, %v4733
        %v4771 = vpack.c.bf16 %v4736, %v4735
        %v4772 = vpack.c.bf16 %v4738, %v4737
        %v4773 = vpack.c.bf16 %v4740, %v4739
        %v4774 = vpack.c.bf16 %v4742, %v4741
        %v4775 = vpack.c.bf16 %v4744, %v4743
        %v4776 = vpack.c.bf16 %v4746, %v4745
        %v4777 = vpack.c.bf16 %v4748, %v4747
        %v4778 = vpack.c.bf16 %v4750, %v4749
        %v4779 = vpack.c.bf16 %v4752, %v4751
        %v4780 = vpack.c.bf16 %v4754, %v4753
        %v4781 = vpack.c.bf16 %v4756, %v4755
        %v4782 = vpack.c.bf16 %v4758, %v4757
        %v4801 = vunpack.c.l.b16 %v4765
        %v4802 = vunpack.c.h.b16 %v4765
        %v4803 = vunpack.c.l.b16 %v4766
        %v4804 = vunpack.c.h.b16 %v4766
        %v4805 = vunpack.c.l.b16 %v4767
        %v4806 = vunpack.c.h.b16 %v4767
        %v4807 = vunpack.c.l.b16 %v4768
        %v4808 = vunpack.c.h.b16 %v4768
        %v4809 = vunpack.c.l.b16 %v4769
        %v4810 = vunpack.c.h.b16 %v4769
        %v4811 = vunpack.c.l.b16 %v4770
        %v4812 = vunpack.c.h.b16 %v4770
        %v4813 = vunpack.c.l.b16 %v4771
        %v4814 = vunpack.c.h.b16 %v4771
        %v4815 = vunpack.c.l.b16 %v4772
        %v4816 = vunpack.c.h.b16 %v4772
        %v4817 = vunpack.c.l.b16 %v4773
        %v4818 = vunpack.c.h.b16 %v4773
        %v4819 = vunpack.c.l.b16 %v4774
        %v4820 = vunpack.c.h.b16 %v4774
        %v4821 = vunpack.c.l.b16 %v4775
        %v4822 = vunpack.c.h.b16 %v4775
        %v4823 = vunpack.c.l.b16 %v4776
        %v4824 = vunpack.c.h.b16 %v4776
        %v4825 = vunpack.c.l.b16 %v4777
        %v4826 = vunpack.c.h.b16 %v4777
        %v4827 = vunpack.c.l.b16 %v4778
        %v4828 = vunpack.c.h.b16 %v4778
        %v4829 = vunpack.c.l.b16 %v4779
        %v4830 = vunpack.c.h.b16 %v4779
        %v4831 = vunpack.c.l.b16 %v4780
        %v4832 = vunpack.c.h.b16 %v4780
        %v4833 = vunpack.c.l.b16 %v4781
        %v4834 = vunpack.c.h.b16 %v4781
        %v4835 = vunpack.c.l.b16 %v4782
        %v4836 = vunpack.c.h.b16 %v4782
        %v4837 = vpack.c.b16 %v4801, %v4801
        %v4838 = vpack.c.b16 %v4802, %v4802
        %v4839 = vpack.c.b16 %v4803, %v4803
        %v4840 = vpack.c.b16 %v4804, %v4804
        %v4841 = vpack.c.b16 %v4805, %v4805
        %v4842 = vpack.c.b16 %v4806, %v4806
        %v4843 = vpack.c.b16 %v4807, %v4807
        %v4844 = vpack.c.b16 %v4808, %v4808
        %v4845 = vpack.c.b16 %v4809, %v4809
        %v4846 = vpack.c.b16 %v4810, %v4810
        %v4847 = vpack.c.b16 %v4811, %v4811
        %v4848 = vpack.c.b16 %v4812, %v4812
        %v4849 = vpack.c.b16 %v4813, %v4813
        %v4850 = vpack.c.b16 %v4814, %v4814
        %v4851 = vpack.c.b16 %v4815, %v4815
        %v4852 = vpack.c.b16 %v4816, %v4816
        %v4853 = vpack.c.b16 %v4817, %v4817
        %v4854 = vpack.c.b16 %v4818, %v4818
        %v4855 = vpack.c.b16 %v4819, %v4819
        %v4856 = vpack.c.b16 %v4820, %v4820
        %v4857 = vpack.c.b16 %v4821, %v4821
        %v4858 = vpack.c.b16 %v4822, %v4822
        %v4859 = vpack.c.b16 %v4823, %v4823
        %v4860 = vpack.c.b16 %v4824, %v4824
        %v4861 = vpack.c.b16 %v4825, %v4825
        %v4862 = vpack.c.b16 %v4826, %v4826
        %v4863 = vpack.c.b16 %v4827, %v4827
        %v4864 = vpack.c.b16 %v4828, %v4828
        %v4865 = vpack.c.b16 %v4829, %v4829
        %v4866 = vpack.c.b16 %v4830, %v4830
        %v4867 = vpack.c.b16 %v4831, %v4831
        %v4868 = vpack.c.b16 %v4832, %v4832
        %v4869 = vpack.c.b16 %v4833, %v4833
        %v4870 = vpack.c.b16 %v4834, %v4834
        %v4871 = vpack.c.b16 %v4835, %v4835
        %v4872 = vpack.c.b16 %v4836, %v4836
        %4909 = vst [vmem:[#allocation2 + $0xc] sm:$0xf] %v4837
        %4910 = vst [vmem:[#allocation2 + $0x10] sm:$0xf] %v4838
        %4911 = vst [vmem:[#allocation2 + $0x14] sm:$0xf] %v4839
        %4912 = vst [vmem:[#allocation2 + $0x18] sm:$0xf] %v4840
        %4913 = vst [vmem:[#allocation2 + $0x1c] sm:$0xf] %v4841
        %4914 = vst [vmem:[#allocation2 + $0x20] sm:$0xf] %v4842
        %4915 = vst [vmem:[#allocation2 + $0x24] sm:$0xf] %v4843
        %4916 = vst [vmem:[#allocation2 + $0x28] sm:$0xf] %v4844
        %4917 = vst [vmem:[#allocation2 + $0x2c] sm:$0xf] %v4845
        %4918 = vst [vmem:[#allocation2 + $0x30] sm:$0xf] %v4846
        %4919 = vst [vmem:[#allocation2 + $0x34] sm:$0xf] %v4847
        %4920 = vst [vmem:[#allocation2 + $0x38] sm:$0xf] %v4848
        %4921 = vst [vmem:[#allocation2 + $0x3c] sm:$0xf] %v4849
        %4922 = vst [vmem:[#allocation2 + $0x40] sm:$0xf] %v4850
        %4923 = vst [vmem:[#allocation2 + $0x44] sm:$0xf] %v4851
        %4924 = vst [vmem:[#allocation2 + $0x48] sm:$0xf] %v4852
        %4925 = vst [vmem:[#allocation2 + $0x4c] sm:$0xf] %v4853
        %4926 = vst [vmem:[#allocation2 + $0x50] sm:$0xf] %v4854
        %4927 = vst [vmem:[#allocation2 + $0x54] sm:$0xf] %v4855
        %4928 = vst [vmem:[#allocation2 + $0x58] sm:$0xf] %v4856
        %4929 = vst [vmem:[#allocation2 + $0x5c] sm:$0xf] %v4857
        %4930 = vst [vmem:[#allocation2 + $0x60] sm:$0xf] %v4858
        %4931 = vst [vmem:[#allocation2 + $0x64] sm:$0xf] %v4859
        %4932 = vst [vmem:[#allocation2 + $0x68] sm:$0xf] %v4860
        %4933 = vst [vmem:[#allocation2 + $0x6c] sm:$0xf] %v4861
        %4934 = vst [vmem:[#allocation2 + $0x70] sm:$0xf] %v4862
        %4935 = vst [vmem:[#allocation2 + $0x74] sm:$0xf] %v4863
        %4936 = vst [vmem:[#allocation2 + $0x78] sm:$0xf] %v4864
        %4937 = vst [vmem:[#allocation2 + $0x7c] sm:$0xf] %v4865
        %4938 = vst [vmem:[#allocation2 + $0x80] sm:$0xf] %v4866
        %4939 = vst [vmem:[#allocation2 + $0x84] sm:$0xf] %v4867
        %4940 = vst [vmem:[#allocation2 + $0x88] sm:$0xf] %v4868
        %4941 = vst [vmem:[#allocation2 + $0x8c] sm:$0xf] %v4869
        %4942 = vst [vmem:[#allocation2 + $0x90] sm:$0xf] %v4870
        %4943 = vst [vmem:[#allocation2 + $0x94] sm:$0xf] %v4871
        %4944 = vst [vmem:[#allocation2 + $0x98] sm:$0xf] %v4872
        %v4945 = vld [vmem:[#allocation2] sm:$0xc]
        %v4946 = vld [vmem:[#allocation2 + $0x4] sm:$0xf]
        %v4947 = vld [vmem:[#allocation2 + $0x8] sm:$0xf]
        %v4948 = vld [vmem:[#allocation2 + $0xc] sm:$0xf]
        %v4949 = vld [vmem:[#allocation2 + $0x10] sm:$0xf]
        %v4950 = vld [vmem:[#allocation2 + $0x14] sm:$0xf]
        %v4951 = vld [vmem:[#allocation2 + $0x18] sm:$0xf]
        %v4952 = vld [vmem:[#allocation2 + $0x1c] sm:$0xf]
        %v4953 = vld [vmem:[#allocation2 + $0x20] sm:$0xf]
        %v4954 = vld [vmem:[#allocation2 + $0x24] sm:$0xf]
        %v4955 = vld [vmem:[#allocation2 + $0x28] sm:$0xf]
        %v4956 = vld [vmem:[#allocation2 + $0x2c] sm:$0xf]
        %v4957 = vld [vmem:[#allocation2 + $0x30] sm:$0xf]
        %v4958 = vld [vmem:[#allocation2 + $0x34] sm:$0xf]
        %v4959 = vld [vmem:[#allocation2 + $0x38] sm:$0xf]
        %v4960 = vld [vmem:[#allocation2 + $0x3c] sm:$0xf]
        %v4961 = vld [vmem:[#allocation2 + $0x40] sm:$0xf]
        %v4962 = vld [vmem:[#allocation2 + $0x44] sm:$0xf]
        %v4963 = vld [vmem:[#allocation2 + $0x48] sm:$0xf]
        %v4964 = vld [vmem:[#allocation2 + $0x4c] sm:$0xf]
        %v4965 = vld [vmem:[#allocation2 + $0x50] sm:$0xf]
        %v4966 = vld [vmem:[#allocation2 + $0x54] sm:$0xf]
        %v4967 = vld [vmem:[#allocation2 + $0x58] sm:$0xf]
        %v4968 = vld [vmem:[#allocation2 + $0x5c] sm:$0xf]
        %v4969 = vld [vmem:[#allocation2 + $0x60] sm:$0xf]
        %v4970 = vld [vmem:[#allocation2 + $0x64] sm:$0xf]
        %v4971 = vld [vmem:[#allocation2 + $0x68] sm:$0xf]
        %v4972 = vld [vmem:[#allocation2 + $0x6c] sm:$0xf]
        %v4973 = vld [vmem:[#allocation2 + $0x70] sm:$0xf]
        %v4974 = vld [vmem:[#allocation2 + $0x74] sm:$0xf]
        %v4975 = vld [vmem:[#allocation2 + $0x78] sm:$0xf]
        %v4976 = vld [vmem:[#allocation2 + $0x7c] sm:$0xf]
        %v4977 = vld [vmem:[#allocation2 + $0x80] sm:$0xf]
        %v4978 = vld [vmem:[#allocation2 + $0x84] sm:$0xf]
        %v4979 = vld [vmem:[#allocation2 + $0x88] sm:$0xf]
        %v4980 = vld [vmem:[#allocation2 + $0x8c] sm:$0xf]
        %v4981 = vld [vmem:[#allocation2 + $0x90] sm:$0x7]
        %v4982 = vld [vmem:[#allocation8] sm:$0xf]
        %v4983 = vld [vmem:[#allocation8 + $0x4] sm:$0xf]
        %v4984 = vld [vmem:[#allocation8 + $0x8] sm:$0xf]
        %v4985 = vld [vmem:[#allocation8 + $0xc] sm:$0xf]
        %v4986 = vld [vmem:[#allocation8 + $0x10] sm:$0xf]
        %v4987 = vld [vmem:[#allocation8 + $0x14] sm:$0xf]
        %v4988 = vld [vmem:[#allocation8 + $0x18] sm:$0xf]
        %v4989 = vld [vmem:[#allocation8 + $0x1c] sm:$0xf]
        %v4990 = vld [vmem:[#allocation8 + $0x20] sm:$0xf]
        %v4991 = vld [vmem:[#allocation8 + $0x24] sm:$0xf]
        %v4992 = vld [vmem:[#allocation8 + $0x28] sm:$0xf]
        %v4993 = vld [vmem:[#allocation8 + $0x2c] sm:$0xf]
        %v4994 = vld [vmem:[#allocation8 + $0x30] sm:$0xf]
        %v4995 = vld [vmem:[#allocation8 + $0x34] sm:$0xf]
        %v4996 = vld [vmem:[#allocation8 + $0x38] sm:$0xf]
        %v4997 = vld [vmem:[#allocation8 + $0x3c] sm:$0xf]
        %v4998 = vld [vmem:[#allocation2] sm:$0x8]
        %s4999 = scalar_lea.vmem [#allocation8], 64
        %v5000 = vld [vmem:[%s4999] sm:$0xf]
        %v5001 = vld [vmem:[%s4999 + $0x4] sm:$0xf]
        %v5002 = vld [vmem:[%s4999 + $0x8] sm:$0xf]
        %v5003 = vld [vmem:[%s4999 + $0xc] sm:$0xf]
        %v5004 = vld [vmem:[%s4999 + $0x10] sm:$0xf]
        %v5005 = vld [vmem:[%s4999 + $0x14] sm:$0xf]
        %v5006 = vld [vmem:[%s4999 + $0x18] sm:$0xf]
        %v5007 = vld [vmem:[%s4999 + $0x1c] sm:$0xf]
        %v5008 = vld [vmem:[%s4999 + $0x20] sm:$0xf]
        %v5009 = vld [vmem:[%s4999 + $0x24] sm:$0xf]
        %v5010 = vld [vmem:[%s4999 + $0x28] sm:$0xf]
        %v5011 = vld [vmem:[%s4999 + $0x2c] sm:$0xf]
        %v5012 = vld [vmem:[%s4999 + $0x30] sm:$0xf]
        %v5013 = vld [vmem:[%s4999 + $0x34] sm:$0xf]
        %v5014 = vld [vmem:[%s4999 + $0x38] sm:$0xf]
        %v5015 = vld [vmem:[%s4999 + $0x3c] sm:$0xf]
        %v5053 = vunpack.c.l.b16 %v4998
        %v5054 = vunpack.c.l.b16 %v4946
        %v5055 = vunpack.c.l.b16 %v4947
        %v5056 = vunpack.c.l.b16 %v4948
        %v5057 = vunpack.c.l.b16 %v4949
        %v5058 = vunpack.c.l.b16 %v4950
        %v5059 = vunpack.c.l.b16 %v4951
        %v5060 = vunpack.c.l.b16 %v4952
        %v5061 = vunpack.c.l.b16 %v4953
        %v5062 = vunpack.c.l.b16 %v4954
        %v5063 = vunpack.c.l.b16 %v4955
        %v5064 = vunpack.c.l.b16 %v4956
        %v5065 = vunpack.c.l.b16 %v4957
        %v5066 = vunpack.c.l.b16 %v4958
        %v5067 = vunpack.c.l.b16 %v4959
        %v5068 = vunpack.c.l.b16 %v4960
        %v5069 = vunpack.c.l.b16 %v4961
        %v5070 = vunpack.c.l.b16 %v4962
        %v5071 = vunpack.c.l.b16 %v4963
        %v5072 = vunpack.c.l.b16 %v4964
        %v5073 = vunpack.c.l.b16 %v4965
        %v5074 = vunpack.c.l.b16 %v4966
        %v5075 = vunpack.c.l.b16 %v4967
        %v5076 = vunpack.c.l.b16 %v4968
        %v5077 = vunpack.c.l.b16 %v4969
        %v5078 = vunpack.c.l.b16 %v4970
        %v5079 = vunpack.c.l.b16 %v4971
        %v5080 = vunpack.c.l.b16 %v4972
        %v5081 = vunpack.c.l.b16 %v4973
        %v5082 = vunpack.c.l.b16 %v4974
        %v5083 = vunpack.c.l.b16 %v4975
        %v5084 = vunpack.c.l.b16 %v4976
        %v5085 = vunpack.c.l.b16 %v4977
        %v5086 = vunpack.c.l.b16 %v4978
        %v5087 = vunpack.c.l.b16 %v4979
        %v5088 = vunpack.c.l.b16 %v4980
        %v5089 = vunpack.c.l.b16 %v4981
        %v5090 = vpack.c.b16 %v5054, %v5053
        %v5091 = vpack.c.b16 %v5056, %v5055
        %v5092 = vpack.c.b16 %v5058, %v5057
        %v5093 = vpack.c.b16 %v5060, %v5059
        %v5094 = vpack.c.b16 %v5062, %v5061
        %v5095 = vpack.c.b16 %v5064, %v5063
        %v5096 = vpack.c.b16 %v5066, %v5065
        %v5097 = vpack.c.b16 %v5068, %v5067
        %v5098 = vpack.c.b16 %v5070, %v5069
        %v5099 = vpack.c.b16 %v5072, %v5071
        %v5100 = vpack.c.b16 %v5074, %v5073
        %v5101 = vpack.c.b16 %v5076, %v5075
        %v5102 = vpack.c.b16 %v5078, %v5077
        %v5103 = vpack.c.b16 %v5080, %v5079
        %v5104 = vpack.c.b16 %v5082, %v5081
        %v5105 = vpack.c.b16 %v5084, %v5083
        %v5106 = vpack.c.b16 %v5086, %v5085
        %v5107 = vpack.c.b16 %v5088, %v5087
        %v5108 = vpack.c.b16 %v5089, %v5089
        %v5109 = vrot.slane %v5090, 3
        %v5110 = vrot.slane %v5091, 3
        %v5111 = vsel %vm518, %v5109, %v5110
        %v5112 = vrot.slane %v5092, 3
        %v5113 = vsel %vm518, %v5110, %v5112
        %v5114 = vrot.slane %v5093, 3
        %v5115 = vsel %vm518, %v5112, %v5114
        %v5116 = vrot.slane %v5094, 3
        %v5117 = vsel %vm518, %v5114, %v5116
        %v5118 = vrot.slane %v5095, 3
        %v5119 = vsel %vm518, %v5116, %v5118
        %v5120 = vrot.slane %v5096, 3
        %v5121 = vsel %vm518, %v5118, %v5120
        %v5122 = vrot.slane %v5097, 3
        %v5123 = vsel %vm518, %v5120, %v5122
        %v5124 = vrot.slane %v5098, 3
        %v5125 = vsel %vm518, %v5122, %v5124
        %v5126 = vrot.slane %v5099, 3
        %v5127 = vsel %vm518, %v5124, %v5126
        %v5128 = vrot.slane %v5100, 3
        %v5129 = vsel %vm518, %v5126, %v5128
        %v5130 = vrot.slane %v5101, 3
        %v5131 = vsel %vm518, %v5128, %v5130
        %v5132 = vrot.slane %v5102, 3
        %v5133 = vsel %vm518, %v5130, %v5132
        %v5134 = vrot.slane %v5103, 3
        %v5135 = vsel %vm518, %v5132, %v5134
        %v5136 = vrot.slane %v5104, 3
        %v5137 = vsel %vm518, %v5134, %v5136
        %v5138 = vrot.slane %v5105, 3
        %v5139 = vsel %vm518, %v5136, %v5138
        %v5140 = vrot.slane %v5106, 3
        %v5141 = vsel %vm518, %v5138, %v5140
        %v5142 = vrot.slane %v5107, 3
        %v5143 = vsel %vm518, %v5140, %v5142
        %v5144 = vrot.slane %v5108, 3
        %v5145 = vsel %vm518, %v5142, %v5144
        %v5180 = vunpack.c.l.b16 %v5000
        %v5181 = vunpack.c.l.b16 %v5001
        %v5182 = vunpack.c.l.b16 %v5002
        %v5183 = vunpack.c.l.b16 %v5003
        %v5184 = vunpack.c.l.b16 %v5004
        %v5185 = vunpack.c.l.b16 %v5005
        %v5186 = vunpack.c.l.b16 %v5006
        %v5187 = vunpack.c.l.b16 %v5007
        %v5188 = vunpack.c.l.b16 %v5008
        %v5189 = vunpack.c.l.b16 %v5009
        %v5190 = vunpack.c.l.b16 %v5010
        %v5191 = vunpack.c.l.b16 %v5011
        %v5192 = vunpack.c.l.b16 %v5012
        %v5193 = vunpack.c.l.b16 %v5013
        %v5194 = vunpack.c.l.b16 %v5014
        %v5195 = vunpack.c.l.b16 %v5015
        %v5196 = vpack.c.b16 %v5181, %v5180
        %v5197 = vpack.c.b16 %v5183, %v5182
        %v5198 = vpack.c.b16 %v5185, %v5184
        %v5199 = vpack.c.b16 %v5187, %v5186
        %v5200 = vpack.c.b16 %v5189, %v5188
        %v5201 = vpack.c.b16 %v5191, %v5190
        %v5202 = vpack.c.b16 %v5193, %v5192
        %v5203 = vpack.c.b16 %v5195, %v5194
        %5212 = vmatprep.subr.bf16.mxu0 0
        %5213 = vmatpush1.bf16.msra.mxu0 %v5203
        %5214 = vmatprep.subr.bf16.mxu0 0
        %5215 = vmatpush1.bf16.msra.mxu0 %v5202
        %5216 = vmatprep.subr.bf16.mxu0 0
        %5217 = vmatpush1.bf16.msra.mxu0 %v5201
        %5218 = vmatprep.subr.bf16.mxu0 0
        %5219 = vmatpush1.bf16.msra.mxu0 %v5200
        %5220 = vmatprep.subr.bf16.mxu0 0
        %5221 = vmatpush1.bf16.msra.mxu0 %v5199
        %5222 = vmatprep.subr.bf16.mxu0 0
        %5223 = vmatpush1.bf16.msra.mxu0 %v5198
        %5224 = vmatprep.subr.bf16.mxu0 0
        %5225 = vmatpush1.bf16.msra.mxu0 %v5197
        %5226 = vmatprep.subr.bf16.mxu0 0
        %5227 = vmatpush1.bf16.msra.mxu0 %v5196
        %5228 = vmatprep.subr.bf16.mxu0 0
        %5229 = vmatpush2.bf16.msra.mxu0 0
        %5230 = vmatprep.subr.bf16.mxu0 0
        %5231 = vmatpush2.bf16.msra.mxu0 0
        %5232 = vmatprep.subr.bf16.mxu0 0
        %5233 = vmatpush2.bf16.msra.mxu0 0
        %5234 = vmatprep.subr.bf16.mxu0 0
        %5235 = vmatpush2.bf16.msra.mxu0 0
        %5236 = vmatprep.subr.bf16.mxu0 0
        %5237 = vmatpush2.bf16.msra.mxu0 0
        %5238 = vmatprep.subr.bf16.mxu0 0
        %5239 = vmatpush2.bf16.msra.mxu0 0
        %5240 = vmatprep.subr.bf16.mxu0 0
        %5241 = vmatpush2.bf16.msra.mxu0 0
        %5242 = vmatprep.subr.bf16.mxu0 0
        %5243 = vmatpush2.bf16.msra.mxu0 0
        %5244 = vmatprep.mubr.bf16.mxu0 0
        %5245 = vmatmul.mubr.bf16.gmra.mxu0 %v5111
        %v5246 = vpop.f32.mrf.mxu0
        %v5247 = vadd.f32 0.0, %v5246
        %v5248 = vpop.f32.mrf.mxu0
        %v5249 = vpop.f32.mrf.mxu0
        %v5250 = vadd.f32 0.0, %v5249
        %v5251 = vpop.f32.mrf.mxu0
        %5252 = vmatprep.mubr.bf16.mxu0 0
        %5253 = vmatmul.mubr.bf16.gmra.mxu0 %v5113
        %v5254 = vpop.f32.mrf.mxu0
        %v5255 = vadd.f32 0.0, %v5254
        %v5256 = vpop.f32.mrf.mxu0
        %v5257 = vpop.f32.mrf.mxu0
        %v5258 = vadd.f32 0.0, %v5257
        %v5259 = vpop.f32.mrf.mxu0
        %5260 = vmatprep.mubr.bf16.mxu0 0
        %5261 = vmatmul.mubr.bf16.gmra.mxu0 %v5115
        %v5262 = vpop.f32.mrf.mxu0
        %v5263 = vadd.f32 0.0, %v5262
        %v5264 = vpop.f32.mrf.mxu0
        %v5265 = vpop.f32.mrf.mxu0
        %v5266 = vadd.f32 0.0, %v5265
        %v5267 = vpop.f32.mrf.mxu0
        %5268 = vmatprep.mubr.bf16.mxu0 0
        %5269 = vmatmul.mubr.bf16.gmra.mxu0 %v5117
        %v5270 = vpop.f32.mrf.mxu0
        %v5271 = vadd.f32 0.0, %v5270
        %v5272 = vpop.f32.mrf.mxu0
        %v5273 = vpop.f32.mrf.mxu0
        %v5274 = vadd.f32 0.0, %v5273
        %v5275 = vpop.f32.mrf.mxu0
        %5276 = vmatprep.mubr.bf16.mxu0 0
        %5277 = vmatmul.mubr.bf16.gmra.mxu0 %v5119
        %v5278 = vpop.f32.mrf.mxu0
        %v5279 = vadd.f32 0.0, %v5278
        %v5280 = vpop.f32.mrf.mxu0
        %v5281 = vpop.f32.mrf.mxu0
        %v5282 = vadd.f32 0.0, %v5281
        %v5283 = vpop.f32.mrf.mxu0
        %5284 = vmatprep.mubr.bf16.mxu0 0
        %5285 = vmatmul.mubr.bf16.gmra.mxu0 %v5121
        %v5286 = vpop.f32.mrf.mxu0
        %v5287 = vadd.f32 0.0, %v5286
        %v5288 = vpop.f32.mrf.mxu0
        %v5289 = vpop.f32.mrf.mxu0
        %v5290 = vadd.f32 0.0, %v5289
        %v5291 = vpop.f32.mrf.mxu0
        %5292 = vmatprep.mubr.bf16.mxu0 0
        %5293 = vmatmul.mubr.bf16.gmra.mxu0 %v5123
        %v5294 = vpop.f32.mrf.mxu0
        %v5295 = vadd.f32 0.0, %v5294
        %v5296 = vpop.f32.mrf.mxu0
        %v5297 = vpop.f32.mrf.mxu0
        %v5298 = vadd.f32 0.0, %v5297
        %v5299 = vpop.f32.mrf.mxu0
        %5300 = vmatprep.mubr.bf16.mxu0 0
        %5301 = vmatmul.mubr.bf16.gmra.mxu0 %v5125
        %v5302 = vpop.f32.mrf.mxu0
        %v5303 = vadd.f32 0.0, %v5302
        %v5304 = vpop.f32.mrf.mxu0
        %v5305 = vpop.f32.mrf.mxu0
        %v5306 = vadd.f32 0.0, %v5305
        %v5307 = vpop.f32.mrf.mxu0
        %5308 = vmatprep.mubr.bf16.mxu0 0
        %5309 = vmatmul.mubr.bf16.gmra.mxu0 %v5127
        %v5310 = vpop.f32.mrf.mxu0
        %v5311 = vadd.f32 0.0, %v5310
        %v5312 = vpop.f32.mrf.mxu0
        %v5313 = vpop.f32.mrf.mxu0
        %v5314 = vadd.f32 0.0, %v5313
        %v5315 = vpop.f32.mrf.mxu0
        %5316 = vmatprep.mubr.bf16.mxu0 0
        %5317 = vmatmul.mubr.bf16.gmra.mxu0 %v5129
        %v5318 = vpop.f32.mrf.mxu0
        %v5319 = vadd.f32 0.0, %v5318
        %v5320 = vpop.f32.mrf.mxu0
        %v5321 = vpop.f32.mrf.mxu0
        %v5322 = vadd.f32 0.0, %v5321
        %v5323 = vpop.f32.mrf.mxu0
        %5324 = vmatprep.mubr.bf16.mxu0 0
        %5325 = vmatmul.mubr.bf16.gmra.mxu0 %v5131
        %v5326 = vpop.f32.mrf.mxu0
        %v5327 = vadd.f32 0.0, %v5326
        %v5328 = vpop.f32.mrf.mxu0
        %v5329 = vpop.f32.mrf.mxu0
        %v5330 = vadd.f32 0.0, %v5329
        %v5331 = vpop.f32.mrf.mxu0
        %5332 = vmatprep.mubr.bf16.mxu0 0
        %5333 = vmatmul.mubr.bf16.gmra.mxu0 %v5133
        %v5334 = vpop.f32.mrf.mxu0
        %v5335 = vadd.f32 0.0, %v5334
        %v5336 = vpop.f32.mrf.mxu0
        %v5337 = vpop.f32.mrf.mxu0
        %v5338 = vadd.f32 0.0, %v5337
        %v5339 = vpop.f32.mrf.mxu0
        %5340 = vmatprep.mubr.bf16.mxu0 0
        %5341 = vmatmul.mubr.bf16.gmra.mxu0 %v5135
        %v5342 = vpop.f32.mrf.mxu0
        %v5343 = vadd.f32 0.0, %v5342
        %v5344 = vpop.f32.mrf.mxu0
        %v5345 = vpop.f32.mrf.mxu0
        %v5346 = vadd.f32 0.0, %v5345
        %v5347 = vpop.f32.mrf.mxu0
        %5348 = vmatprep.mubr.bf16.mxu0 0
        %5349 = vmatmul.mubr.bf16.gmra.mxu0 %v5137
        %v5350 = vpop.f32.mrf.mxu0
        %v5351 = vadd.f32 0.0, %v5350
        %v5352 = vpop.f32.mrf.mxu0
        %v5353 = vpop.f32.mrf.mxu0
        %v5354 = vadd.f32 0.0, %v5353
        %v5355 = vpop.f32.mrf.mxu0
        %5356 = vmatprep.mubr.bf16.mxu0 0
        %5357 = vmatmul.mubr.bf16.gmra.mxu0 %v5139
        %v5358 = vpop.f32.mrf.mxu0
        %v5359 = vadd.f32 0.0, %v5358
        %v5360 = vpop.f32.mrf.mxu0
        %v5361 = vpop.f32.mrf.mxu0
        %v5362 = vadd.f32 0.0, %v5361
        %v5363 = vpop.f32.mrf.mxu0
        %5364 = vmatprep.mubr.bf16.mxu0 0
        %5365 = vmatmul.mubr.bf16.gmra.mxu0 %v5141
        %v5366 = vpop.f32.mrf.mxu0
        %v5367 = vadd.f32 0.0, %v5366
        %v5368 = vpop.f32.mrf.mxu0
        %v5369 = vpop.f32.mrf.mxu0
        %v5370 = vadd.f32 0.0, %v5369
        %v5371 = vpop.f32.mrf.mxu0
        %5372 = vmatprep.mubr.bf16.mxu0 0
        %5373 = vmatmul.mubr.bf16.gmra.mxu0 %v5143
        %v5374 = vpop.f32.mrf.mxu0
        %v5375 = vadd.f32 0.0, %v5374
        %v5376 = vpop.f32.mrf.mxu0
        %v5377 = vpop.f32.mrf.mxu0
        %v5378 = vadd.f32 0.0, %v5377
        %v5379 = vpop.f32.mrf.mxu0
        %5380 = vmatprep.mubr.bf16.mxu0 0
        %5381 = vmatmul.mubr.bf16.gmra.mxu0 %v5145
        %v5382 = vpop.f32.mrf.mxu0
        %v5383 = vadd.f32 0.0, %v5382
        %v5384 = vpop.f32.mrf.mxu0
        %v5385 = vpop.f32.mrf.mxu0
        %v5386 = vadd.f32 0.0, %v5385
        %v5387 = vpop.f32.mrf.mxu0
        %5388 = vdwg.mxu0
        %v5390 = vunpack.c.l.b16 %v4945
        %v5391 = vpack.c.b16 %v5054, %v5390
        %v5393 = vshrl.u32 %v5391, 16
        %v5395 = vrot.slane %v5393, 2
        %v5396 = vshll.u32 %v5391, 16
        %v5398 = vrot.slane %v5396, 3
        %v5399 = vor.u32 %v5395, %v5398
        %v5401 = vshrl.u32 %v5091, 16
        %v5403 = vrot.slane %v5401, 2
        %v5404 = vshll.u32 %v5091, 16
        %v5406 = vrot.slane %v5404, 3
        %v5407 = vor.u32 %v5403, %v5406
        %v5408 = vsel %vm802, %v5399, %v5407
        %v5410 = vshrl.u32 %v5092, 16
        %v5412 = vrot.slane %v5410, 2
        %v5413 = vshll.u32 %v5092, 16
        %v5415 = vrot.slane %v5413, 3
        %v5416 = vor.u32 %v5412, %v5415
        %v5417 = vsel %vm802, %v5407, %v5416
        %v5419 = vshrl.u32 %v5093, 16
        %v5421 = vrot.slane %v5419, 2
        %v5422 = vshll.u32 %v5093, 16
        %v5424 = vrot.slane %v5422, 3
        %v5425 = vor.u32 %v5421, %v5424
        %v5426 = vsel %vm802, %v5416, %v5425
        %v5428 = vshrl.u32 %v5094, 16
        %v5430 = vrot.slane %v5428, 2
        %v5431 = vshll.u32 %v5094, 16
        %v5433 = vrot.slane %v5431, 3
        %v5434 = vor.u32 %v5430, %v5433
        %v5435 = vsel %vm802, %v5425, %v5434
        %v5437 = vshrl.u32 %v5095, 16
        %v5439 = vrot.slane %v5437, 2
        %v5440 = vshll.u32 %v5095, 16
        %v5442 = vrot.slane %v5440, 3
        %v5443 = vor.u32 %v5439, %v5442
        %v5444 = vsel %vm802, %v5434, %v5443
        %v5446 = vshrl.u32 %v5096, 16
        %v5448 = vrot.slane %v5446, 2
        %v5449 = vshll.u32 %v5096, 16
        %v5451 = vrot.slane %v5449, 3
        %v5452 = vor.u32 %v5448, %v5451
        %v5453 = vsel %vm802, %v5443, %v5452
        %v5455 = vshrl.u32 %v5097, 16
        %v5457 = vrot.slane %v5455, 2
        %v5458 = vshll.u32 %v5097, 16
        %v5460 = vrot.slane %v5458, 3
        %v5461 = vor.u32 %v5457, %v5460
        %v5462 = vsel %vm802, %v5452, %v5461
        %v5464 = vshrl.u32 %v5098, 16
        %v5466 = vrot.slane %v5464, 2
        %v5467 = vshll.u32 %v5098, 16
        %v5469 = vrot.slane %v5467, 3
        %v5470 = vor.u32 %v5466, %v5469
        %v5471 = vsel %vm802, %v5461, %v5470
        %v5473 = vshrl.u32 %v5099, 16
        %v5475 = vrot.slane %v5473, 2
        %v5476 = vshll.u32 %v5099, 16
        %v5478 = vrot.slane %v5476, 3
        %v5479 = vor.u32 %v5475, %v5478
        %v5480 = vsel %vm802, %v5470, %v5479
        %v5482 = vshrl.u32 %v5100, 16
        %v5484 = vrot.slane %v5482, 2
        %v5485 = vshll.u32 %v5100, 16
        %v5487 = vrot.slane %v5485, 3
        %v5488 = vor.u32 %v5484, %v5487
        %v5489 = vsel %vm802, %v5479, %v5488
        %v5491 = vshrl.u32 %v5101, 16
        %v5493 = vrot.slane %v5491, 2
        %v5494 = vshll.u32 %v5101, 16
        %v5496 = vrot.slane %v5494, 3
        %v5497 = vor.u32 %v5493, %v5496
        %v5498 = vsel %vm802, %v5488, %v5497
        %v5500 = vshrl.u32 %v5102, 16
        %v5502 = vrot.slane %v5500, 2
        %v5503 = vshll.u32 %v5102, 16
        %v5505 = vrot.slane %v5503, 3
        %v5506 = vor.u32 %v5502, %v5505
        %v5507 = vsel %vm802, %v5497, %v5506
        %v5509 = vshrl.u32 %v5103, 16
        %v5511 = vrot.slane %v5509, 2
        %v5512 = vshll.u32 %v5103, 16
        %v5514 = vrot.slane %v5512, 3
        %v5515 = vor.u32 %v5511, %v5514
        %v5516 = vsel %vm802, %v5506, %v5515
        %v5518 = vshrl.u32 %v5104, 16
        %v5520 = vrot.slane %v5518, 2
        %v5521 = vshll.u32 %v5104, 16
        %v5523 = vrot.slane %v5521, 3
        %v5524 = vor.u32 %v5520, %v5523
        %v5525 = vsel %vm802, %v5515, %v5524
        %v5527 = vshrl.u32 %v5105, 16
        %v5529 = vrot.slane %v5527, 2
        %v5530 = vshll.u32 %v5105, 16
        %v5532 = vrot.slane %v5530, 3
        %v5533 = vor.u32 %v5529, %v5532
        %v5534 = vsel %vm802, %v5524, %v5533
        %v5536 = vshrl.u32 %v5106, 16
        %v5538 = vrot.slane %v5536, 2
        %v5539 = vshll.u32 %v5106, 16
        %v5541 = vrot.slane %v5539, 3
        %v5542 = vor.u32 %v5538, %v5541
        %v5543 = vsel %vm802, %v5533, %v5542
        %v5545 = vshrl.u32 %v5107, 16
        %v5547 = vrot.slane %v5545, 2
        %v5548 = vshll.u32 %v5107, 16
        %v5550 = vrot.slane %v5548, 3
        %v5551 = vor.u32 %v5547, %v5550
        %v5552 = vsel %vm802, %v5542, %v5551
        %v5554 = vshrl.u32 %v5108, 16
        %v5556 = vrot.slane %v5554, 2
        %v5557 = vshll.u32 %v5108, 16
        %v5559 = vrot.slane %v5557, 3
        %v5560 = vor.u32 %v5556, %v5559
        %v5561 = vsel %vm802, %v5551, %v5560
        %v5596 = vunpack.c.l.b16 %v4982
        %v5597 = vunpack.c.l.b16 %v4983
        %v5598 = vunpack.c.l.b16 %v4984
        %v5599 = vunpack.c.l.b16 %v4985
        %v5600 = vunpack.c.l.b16 %v4986
        %v5601 = vunpack.c.l.b16 %v4987
        %v5602 = vunpack.c.l.b16 %v4988
        %v5603 = vunpack.c.l.b16 %v4989
        %v5604 = vunpack.c.l.b16 %v4990
        %v5605 = vunpack.c.l.b16 %v4991
        %v5606 = vunpack.c.l.b16 %v4992
        %v5607 = vunpack.c.l.b16 %v4993
        %v5608 = vunpack.c.l.b16 %v4994
        %v5609 = vunpack.c.l.b16 %v4995
        %v5610 = vunpack.c.l.b16 %v4996
        %v5611 = vunpack.c.l.b16 %v4997
        %v5612 = vpack.c.b16 %v5597, %v5596
        %v5613 = vpack.c.b16 %v5599, %v5598
        %v5614 = vpack.c.b16 %v5601, %v5600
        %v5615 = vpack.c.b16 %v5603, %v5602
        %v5616 = vpack.c.b16 %v5605, %v5604
        %v5617 = vpack.c.b16 %v5607, %v5606
        %v5618 = vpack.c.b16 %v5609, %v5608
        %v5619 = vpack.c.b16 %v5611, %v5610
        %5628 = vmatprep.subr.bf16.mxu0 0
        %5629 = vmatpush1.bf16.msra.mxu0 %v5619
        %5630 = vmatprep.subr.bf16.mxu0 0
        %5631 = vmatpush1.bf16.msra.mxu0 %v5618
        %5632 = vmatprep.subr.bf16.mxu0 0
        %5633 = vmatpush1.bf16.msra.mxu0 %v5617
        %5634 = vmatprep.subr.bf16.mxu0 0
        %5635 = vmatpush1.bf16.msra.mxu0 %v5616
        %5636 = vmatprep.subr.bf16.mxu0 0
        %5637 = vmatpush1.bf16.msra.mxu0 %v5615
        %5638 = vmatprep.subr.bf16.mxu0 0
        %5639 = vmatpush1.bf16.msra.mxu0 %v5614
        %5640 = vmatprep.subr.bf16.mxu0 0
        %5641 = vmatpush1.bf16.msra.mxu0 %v5613
        %5642 = vmatprep.subr.bf16.mxu0 0
        %5643 = vmatpush1.bf16.msra.mxu0 %v5612
        %5644 = vmatprep.subr.bf16.mxu0 0
        %5645 = vmatpush2.bf16.msra.mxu0 0
        %5646 = vmatprep.subr.bf16.mxu0 0
        %5647 = vmatpush2.bf16.msra.mxu0 0
        %5648 = vmatprep.subr.bf16.mxu0 0
        %5649 = vmatpush2.bf16.msra.mxu0 0
        %5650 = vmatprep.subr.bf16.mxu0 0
        %5651 = vmatpush2.bf16.msra.mxu0 0
        %5652 = vmatprep.subr.bf16.mxu0 0
        %5653 = vmatpush2.bf16.msra.mxu0 0
        %5654 = vmatprep.subr.bf16.mxu0 0
        %5655 = vmatpush2.bf16.msra.mxu0 0
        %5656 = vmatprep.subr.bf16.mxu0 0
        %5657 = vmatpush2.bf16.msra.mxu0 0
        %5658 = vmatprep.subr.bf16.mxu0 0
        %5659 = vmatpush2.bf16.msra.mxu0 0
        %5660 = vmatprep.mubr.bf16.mxu0 0
        %5661 = vmatmul.mubr.bf16.gmra.mxu0 %v5408
        %v5662 = vpop.f32.mrf.mxu0
        %v5663 = vadd.f32 %v5247, %v5662
        %v5664 = vpop.f32.mrf.mxu0
        %v5665 = vpop.f32.mrf.mxu0
        %v5666 = vadd.f32 %v5250, %v5665
        %v5667 = vpop.f32.mrf.mxu0
        %5668 = vmatprep.mubr.bf16.mxu0 0
        %5669 = vmatmul.mubr.bf16.gmra.mxu0 %v5417
        %v5670 = vpop.f32.mrf.mxu0
        %v5671 = vadd.f32 %v5255, %v5670
        %v5672 = vpop.f32.mrf.mxu0
        %v5673 = vpop.f32.mrf.mxu0
        %v5674 = vadd.f32 %v5258, %v5673
        %v5675 = vpop.f32.mrf.mxu0
        %5676 = vmatprep.mubr.bf16.mxu0 0
        %5677 = vmatmul.mubr.bf16.gmra.mxu0 %v5426
        %v5678 = vpop.f32.mrf.mxu0
        %v5679 = vadd.f32 %v5263, %v5678
        %v5680 = vpop.f32.mrf.mxu0
        %v5681 = vpop.f32.mrf.mxu0
        %v5682 = vadd.f32 %v5266, %v5681
        %v5683 = vpop.f32.mrf.mxu0
        %5684 = vmatprep.mubr.bf16.mxu0 0
        %5685 = vmatmul.mubr.bf16.gmra.mxu0 %v5435
        %v5686 = vpop.f32.mrf.mxu0
        %v5687 = vadd.f32 %v5271, %v5686
        %v5688 = vpop.f32.mrf.mxu0
        %v5689 = vpop.f32.mrf.mxu0
        %v5690 = vadd.f32 %v5274, %v5689
        %v5691 = vpop.f32.mrf.mxu0
        %5692 = vmatprep.mubr.bf16.mxu0 0
        %5693 = vmatmul.mubr.bf16.gmra.mxu0 %v5444
        %v5694 = vpop.f32.mrf.mxu0
        %v5695 = vadd.f32 %v5279, %v5694
        %v5696 = vpop.f32.mrf.mxu0
        %v5697 = vpop.f32.mrf.mxu0
        %v5698 = vadd.f32 %v5282, %v5697
        %v5699 = vpop.f32.mrf.mxu0
        %5700 = vmatprep.mubr.bf16.mxu0 0
        %5701 = vmatmul.mubr.bf16.gmra.mxu0 %v5453
        %v5702 = vpop.f32.mrf.mxu0
        %v5703 = vadd.f32 %v5287, %v5702
        %v5704 = vpop.f32.mrf.mxu0
        %v5705 = vpop.f32.mrf.mxu0
        %v5706 = vadd.f32 %v5290, %v5705
        %v5707 = vpop.f32.mrf.mxu0
        %5708 = vmatprep.mubr.bf16.mxu0 0
        %5709 = vmatmul.mubr.bf16.gmra.mxu0 %v5462
        %v5710 = vpop.f32.mrf.mxu0
        %v5711 = vadd.f32 %v5295, %v5710
        %v5712 = vpop.f32.mrf.mxu0
        %v5713 = vpop.f32.mrf.mxu0
        %v5714 = vadd.f32 %v5298, %v5713
        %v5715 = vpop.f32.mrf.mxu0
        %5716 = vmatprep.mubr.bf16.mxu0 0
        %5717 = vmatmul.mubr.bf16.gmra.mxu0 %v5471
        %v5718 = vpop.f32.mrf.mxu0
        %v5719 = vadd.f32 %v5303, %v5718
        %v5720 = vpop.f32.mrf.mxu0
        %v5721 = vpop.f32.mrf.mxu0
        %v5722 = vadd.f32 %v5306, %v5721
        %v5723 = vpop.f32.mrf.mxu0
        %5724 = vmatprep.mubr.bf16.mxu0 0
        %5725 = vmatmul.mubr.bf16.gmra.mxu0 %v5480
        %v5726 = vpop.f32.mrf.mxu0
        %v5727 = vadd.f32 %v5311, %v5726
        %v5728 = vpop.f32.mrf.mxu0
        %v5729 = vpop.f32.mrf.mxu0
        %v5730 = vadd.f32 %v5314, %v5729
        %v5731 = vpop.f32.mrf.mxu0
        %5732 = vmatprep.mubr.bf16.mxu0 0
        %5733 = vmatmul.mubr.bf16.gmra.mxu0 %v5489
        %v5734 = vpop.f32.mrf.mxu0
        %v5735 = vadd.f32 %v5319, %v5734
        %v5736 = vpop.f32.mrf.mxu0
        %v5737 = vpop.f32.mrf.mxu0
        %v5738 = vadd.f32 %v5322, %v5737
        %v5739 = vpop.f32.mrf.mxu0
        %5740 = vmatprep.mubr.bf16.mxu0 0
        %5741 = vmatmul.mubr.bf16.gmra.mxu0 %v5498
        %v5742 = vpop.f32.mrf.mxu0
        %v5743 = vadd.f32 %v5327, %v5742
        %v5744 = vpop.f32.mrf.mxu0
        %v5745 = vpop.f32.mrf.mxu0
        %v5746 = vadd.f32 %v5330, %v5745
        %v5747 = vpop.f32.mrf.mxu0
        %5748 = vmatprep.mubr.bf16.mxu0 0
        %5749 = vmatmul.mubr.bf16.gmra.mxu0 %v5507
        %v5750 = vpop.f32.mrf.mxu0
        %v5751 = vadd.f32 %v5335, %v5750
        %v5752 = vpop.f32.mrf.mxu0
        %v5753 = vpop.f32.mrf.mxu0
        %v5754 = vadd.f32 %v5338, %v5753
        %v5755 = vpop.f32.mrf.mxu0
        %5756 = vmatprep.mubr.bf16.mxu0 0
        %5757 = vmatmul.mubr.bf16.gmra.mxu0 %v5516
        %v5758 = vpop.f32.mrf.mxu0
        %v5759 = vadd.f32 %v5343, %v5758
        %v5760 = vpop.f32.mrf.mxu0
        %v5761 = vpop.f32.mrf.mxu0
        %v5762 = vadd.f32 %v5346, %v5761
        %v5763 = vpop.f32.mrf.mxu0
        %5764 = vmatprep.mubr.bf16.mxu0 0
        %5765 = vmatmul.mubr.bf16.gmra.mxu0 %v5525
        %v5766 = vpop.f32.mrf.mxu0
        %v5767 = vadd.f32 %v5351, %v5766
        %v5768 = vpop.f32.mrf.mxu0
        %v5769 = vpop.f32.mrf.mxu0
        %v5770 = vadd.f32 %v5354, %v5769
        %v5771 = vpop.f32.mrf.mxu0
        %5772 = vmatprep.mubr.bf16.mxu0 0
        %5773 = vmatmul.mubr.bf16.gmra.mxu0 %v5534
        %v5774 = vpop.f32.mrf.mxu0
        %v5775 = vadd.f32 %v5359, %v5774
        %v5776 = vpop.f32.mrf.mxu0
        %v5777 = vpop.f32.mrf.mxu0
        %v5778 = vadd.f32 %v5362, %v5777
        %v5779 = vpop.f32.mrf.mxu0
        %5780 = vmatprep.mubr.bf16.mxu0 0
        %5781 = vmatmul.mubr.bf16.gmra.mxu0 %v5543
        %v5782 = vpop.f32.mrf.mxu0
        %v5783 = vadd.f32 %v5367, %v5782
        %v5784 = vpop.f32.mrf.mxu0
        %v5785 = vpop.f32.mrf.mxu0
        %v5786 = vadd.f32 %v5370, %v5785
        %v5787 = vpop.f32.mrf.mxu0
        %5788 = vmatprep.mubr.bf16.mxu0 0
        %5789 = vmatmul.mubr.bf16.gmra.mxu0 %v5552
        %v5790 = vpop.f32.mrf.mxu0
        %v5791 = vadd.f32 %v5375, %v5790
        %v5792 = vpop.f32.mrf.mxu0
        %v5793 = vpop.f32.mrf.mxu0
        %v5794 = vadd.f32 %v5378, %v5793
        %v5795 = vpop.f32.mrf.mxu0
        %5796 = vmatprep.mubr.bf16.mxu0 0
        %5797 = vmatmul.mubr.bf16.gmra.mxu0 %v5561
        %v5798 = vpop.f32.mrf.mxu0
        %v5799 = vadd.f32 %v5383, %v5798
        %v5800 = vpop.f32.mrf.mxu0
        %v5801 = vpop.f32.mrf.mxu0
        %v5802 = vadd.f32 %v5386, %v5801
        %v5803 = vpop.f32.mrf.mxu0
        %5804 = vdwg.mxu0
        %v5805 = vld [vmem:[#allocation2 + $0x90] sm:$0xf]
        %s5806 = scalar_lea.vmem [#allocation8], 128
        %v5807 = vld [vmem:[%s5806] sm:$0xf]
        %v5808 = vld [vmem:[%s5806 + $0x4] sm:$0xf]
        %v5809 = vld [vmem:[%s5806 + $0x8] sm:$0xf]
        %v5810 = vld [vmem:[%s5806 + $0xc] sm:$0xf]
        %v5811 = vld [vmem:[%s5806 + $0x10] sm:$0xf]
        %v5812 = vld [vmem:[%s5806 + $0x14] sm:$0xf]
        %v5813 = vld [vmem:[%s5806 + $0x18] sm:$0xf]
        %v5814 = vld [vmem:[%s5806 + $0x1c] sm:$0xf]
        %v5815 = vld [vmem:[%s5806 + $0x20] sm:$0xf]
        %v5816 = vld [vmem:[%s5806 + $0x24] sm:$0xf]
        %v5817 = vld [vmem:[%s5806 + $0x28] sm:$0xf]
        %v5818 = vld [vmem:[%s5806 + $0x2c] sm:$0xf]
        %v5819 = vld [vmem:[%s5806 + $0x30] sm:$0xf]
        %v5820 = vld [vmem:[%s5806 + $0x34] sm:$0xf]
        %v5821 = vld [vmem:[%s5806 + $0x38] sm:$0xf]
        %v5822 = vld [vmem:[%s5806 + $0x3c] sm:$0xf]
        %v5824 = vunpack.c.l.b16 %v5805
        %v5825 = vpack.c.b16 %v5824, %v5824
        %v5827 = vshrl.u32 %v5090, 16
        %v5829 = vrot.slane %v5827, 3
        %v5830 = vshll.u32 %v5090, 16
        %v5832 = vrot.slane %v5830, 4
        %v5833 = vor.u32 %v5829, %v5832
        %v5834 = vrot.slane %v5401, 3
        %v5835 = vrot.slane %v5404, 4
        %v5836 = vor.u32 %v5834, %v5835
        %v5837 = vsel %vm1237, %v5833, %v5836
        %v5838 = vrot.slane %v5410, 3
        %v5839 = vrot.slane %v5413, 4
        %v5840 = vor.u32 %v5838, %v5839
        %v5841 = vsel %vm1237, %v5836, %v5840
        %v5842 = vrot.slane %v5419, 3
        %v5843 = vrot.slane %v5422, 4
        %v5844 = vor.u32 %v5842, %v5843
        %v5845 = vsel %vm1237, %v5840, %v5844
        %v5846 = vrot.slane %v5428, 3
        %v5847 = vrot.slane %v5431, 4
        %v5848 = vor.u32 %v5846, %v5847
        %v5849 = vsel %vm1237, %v5844, %v5848
        %v5850 = vrot.slane %v5437, 3
        %v5851 = vrot.slane %v5440, 4
        %v5852 = vor.u32 %v5850, %v5851
        %v5853 = vsel %vm1237, %v5848, %v5852
        %v5854 = vrot.slane %v5446, 3
        %v5855 = vrot.slane %v5449, 4
        %v5856 = vor.u32 %v5854, %v5855
        %v5857 = vsel %vm1237, %v5852, %v5856
        %v5858 = vrot.slane %v5455, 3
        %v5859 = vrot.slane %v5458, 4
        %v5860 = vor.u32 %v5858, %v5859
        %v5861 = vsel %vm1237, %v5856, %v5860
        %v5862 = vrot.slane %v5464, 3
        %v5863 = vrot.slane %v5467, 4
        %v5864 = vor.u32 %v5862, %v5863
        %v5865 = vsel %vm1237, %v5860, %v5864
        %v5866 = vrot.slane %v5473, 3
        %v5867 = vrot.slane %v5476, 4
        %v5868 = vor.u32 %v5866, %v5867
        %v5869 = vsel %vm1237, %v5864, %v5868
        %v5870 = vrot.slane %v5482, 3
        %v5871 = vrot.slane %v5485, 4
        %v5872 = vor.u32 %v5870, %v5871
        %v5873 = vsel %vm1237, %v5868, %v5872
        %v5874 = vrot.slane %v5491, 3
        %v5875 = vrot.slane %v5494, 4
        %v5876 = vor.u32 %v5874, %v5875
        %v5877 = vsel %vm1237, %v5872, %v5876
        %v5878 = vrot.slane %v5500, 3
        %v5879 = vrot.slane %v5503, 4
        %v5880 = vor.u32 %v5878, %v5879
        %v5881 = vsel %vm1237, %v5876, %v5880
        %v5882 = vrot.slane %v5509, 3
        %v5883 = vrot.slane %v5512, 4
        %v5884 = vor.u32 %v5882, %v5883
        %v5885 = vsel %vm1237, %v5880, %v5884
        %v5886 = vrot.slane %v5518, 3
        %v5887 = vrot.slane %v5521, 4
        %v5888 = vor.u32 %v5886, %v5887
        %v5889 = vsel %vm1237, %v5884, %v5888
        %v5890 = vrot.slane %v5527, 3
        %v5891 = vrot.slane %v5530, 4
        %v5892 = vor.u32 %v5890, %v5891
        %v5893 = vsel %vm1237, %v5888, %v5892
        %v5894 = vrot.slane %v5536, 3
        %v5895 = vrot.slane %v5539, 4
        %v5896 = vor.u32 %v5894, %v5895
        %v5897 = vsel %vm1237, %v5892, %v5896
        %v5898 = vrot.slane %v5545, 3
        %v5899 = vrot.slane %v5548, 4
        %v5900 = vor.u32 %v5898, %v5899
        %v5901 = vsel %vm1237, %v5896, %v5900
        %v5903 = vshrl.u32 %v5825, 16
        %v5905 = vrot.slane %v5903, 3
        %v5906 = vshll.u32 %v5825, 16
        %v5908 = vrot.slane %v5906, 4
        %v5909 = vor.u32 %v5905, %v5908
        %v5910 = vsel %vm1237, %v5900, %v5909
        %v5945 = vunpack.c.l.b16 %v5807
        %v5946 = vunpack.c.l.b16 %v5808
        %v5947 = vunpack.c.l.b16 %v5809
        %v5948 = vunpack.c.l.b16 %v5810
        %v5949 = vunpack.c.l.b16 %v5811
        %v5950 = vunpack.c.l.b16 %v5812
        %v5951 = vunpack.c.l.b16 %v5813
        %v5952 = vunpack.c.l.b16 %v5814
        %v5953 = vunpack.c.l.b16 %v5815
        %v5954 = vunpack.c.l.b16 %v5816
        %v5955 = vunpack.c.l.b16 %v5817
        %v5956 = vunpack.c.l.b16 %v5818
        %v5957 = vunpack.c.l.b16 %v5819
        %v5958 = vunpack.c.l.b16 %v5820
        %v5959 = vunpack.c.l.b16 %v5821
        %v5960 = vunpack.c.l.b16 %v5822
        %v5961 = vpack.c.b16 %v5946, %v5945
        %v5962 = vpack.c.b16 %v5948, %v5947
        %v5963 = vpack.c.b16 %v5950, %v5949
        %v5964 = vpack.c.b16 %v5952, %v5951
        %v5965 = vpack.c.b16 %v5954, %v5953
        %v5966 = vpack.c.b16 %v5956, %v5955
        %v5967 = vpack.c.b16 %v5958, %v5957
        %v5968 = vpack.c.b16 %v5960, %v5959
        %5977 = vmatprep.subr.bf16.mxu0 0
        %5978 = vmatpush1.bf16.msra.mxu0 %v5968
        %5979 = vmatprep.subr.bf16.mxu0 0
        %5980 = vmatpush1.bf16.msra.mxu0 %v5967
        %5981 = vmatprep.subr.bf16.mxu0 0
        %5982 = vmatpush1.bf16.msra.mxu0 %v5966
        %5983 = vmatprep.subr.bf16.mxu0 0
        %5984 = vmatpush1.bf16.msra.mxu0 %v5965
        %5985 = vmatprep.subr.bf16.mxu0 0
        %5986 = vmatpush1.bf16.msra.mxu0 %v5964
        %5987 = vmatprep.subr.bf16.mxu0 0
        %5988 = vmatpush1.bf16.msra.mxu0 %v5963
        %5989 = vmatprep.subr.bf16.mxu0 0
        %5990 = vmatpush1.bf16.msra.mxu0 %v5962
        %5991 = vmatprep.subr.bf16.mxu0 0
        %5992 = vmatpush1.bf16.msra.mxu0 %v5961
        %5993 = vmatprep.subr.bf16.mxu0 0
        %5994 = vmatpush2.bf16.msra.mxu0 0
        %5995 = vmatprep.subr.bf16.mxu0 0
        %5996 = vmatpush2.bf16.msra.mxu0 0
        %5997 = vmatprep.subr.bf16.mxu0 0
        %5998 = vmatpush2.bf16.msra.mxu0 0
        %5999 = vmatprep.subr.bf16.mxu0 0
        %6000 = vmatpush2.bf16.msra.mxu0 0
        %6001 = vmatprep.subr.bf16.mxu0 0
        %6002 = vmatpush2.bf16.msra.mxu0 0
        %6003 = vmatprep.subr.bf16.mxu0 0
        %6004 = vmatpush2.bf16.msra.mxu0 0
        %6005 = vmatprep.subr.bf16.mxu0 0
        %6006 = vmatpush2.bf16.msra.mxu0 0
        %6007 = vmatprep.subr.bf16.mxu0 0
        %6008 = vmatpush2.bf16.msra.mxu0 0
        %6009 = vmatprep.mubr.bf16.mxu0 0
        %6010 = vmatmul.mubr.bf16.gmra.mxu0 %v5837
        %v6011 = vpop.f32.mrf.mxu0
        %v6012 = vadd.f32 0.0, %v6011
        %v6013 = vpop.f32.mrf.mxu0
        %v6014 = vpop.f32.mrf.mxu0
        %v6015 = vadd.f32 0.0, %v6014
        %v6016 = vpop.f32.mrf.mxu0
        %6017 = vmatprep.mubr.bf16.mxu0 0
        %6018 = vmatmul.mubr.bf16.gmra.mxu0 %v5841
        %v6019 = vpop.f32.mrf.mxu0
        %v6020 = vadd.f32 0.0, %v6019
        %v6021 = vpop.f32.mrf.mxu0
        %v6022 = vpop.f32.mrf.mxu0
        %v6023 = vadd.f32 0.0, %v6022
        %v6024 = vpop.f32.mrf.mxu0
        %6025 = vmatprep.mubr.bf16.mxu0 0
        %6026 = vmatmul.mubr.bf16.gmra.mxu0 %v5845
        %v6027 = vpop.f32.mrf.mxu0
        %v6028 = vadd.f32 0.0, %v6027
        %v6029 = vpop.f32.mrf.mxu0
        %v6030 = vpop.f32.mrf.mxu0
        %v6031 = vadd.f32 0.0, %v6030
        %v6032 = vpop.f32.mrf.mxu0
        %6033 = vmatprep.mubr.bf16.mxu0 0
        %6034 = vmatmul.mubr.bf16.gmra.mxu0 %v5849
        %v6035 = vpop.f32.mrf.mxu0
        %v6036 = vadd.f32 0.0, %v6035
        %v6037 = vpop.f32.mrf.mxu0
        %v6038 = vpop.f32.mrf.mxu0
        %v6039 = vadd.f32 0.0, %v6038
        %v6040 = vpop.f32.mrf.mxu0
        %6041 = vmatprep.mubr.bf16.mxu0 0
        %6042 = vmatmul.mubr.bf16.gmra.mxu0 %v5853
        %v6043 = vpop.f32.mrf.mxu0
        %v6044 = vadd.f32 0.0, %v6043
        %v6045 = vpop.f32.mrf.mxu0
        %v6046 = vpop.f32.mrf.mxu0
        %v6047 = vadd.f32 0.0, %v6046
        %v6048 = vpop.f32.mrf.mxu0
        %6049 = vmatprep.mubr.bf16.mxu0 0
        %6050 = vmatmul.mubr.bf16.gmra.mxu0 %v5857
        %v6051 = vpop.f32.mrf.mxu0
        %v6052 = vadd.f32 0.0, %v6051
        %v6053 = vpop.f32.mrf.mxu0
        %v6054 = vpop.f32.mrf.mxu0
        %v6055 = vadd.f32 0.0, %v6054
        %v6056 = vpop.f32.mrf.mxu0
        %6057 = vmatprep.mubr.bf16.mxu0 0
        %6058 = vmatmul.mubr.bf16.gmra.mxu0 %v5861
        %v6059 = vpop.f32.mrf.mxu0
        %v6060 = vadd.f32 0.0, %v6059
        %v6061 = vpop.f32.mrf.mxu0
        %v6062 = vpop.f32.mrf.mxu0
        %v6063 = vadd.f32 0.0, %v6062
        %v6064 = vpop.f32.mrf.mxu0
        %6065 = vmatprep.mubr.bf16.mxu0 0
        %6066 = vmatmul.mubr.bf16.gmra.mxu0 %v5865
        %v6067 = vpop.f32.mrf.mxu0
        %v6068 = vadd.f32 0.0, %v6067
        %v6069 = vpop.f32.mrf.mxu0
        %v6070 = vpop.f32.mrf.mxu0
        %v6071 = vadd.f32 0.0, %v6070
        %v6072 = vpop.f32.mrf.mxu0
        %6073 = vmatprep.mubr.bf16.mxu0 0
        %6074 = vmatmul.mubr.bf16.gmra.mxu0 %v5869
        %v6075 = vpop.f32.mrf.mxu0
        %v6076 = vadd.f32 0.0, %v6075
        %v6077 = vpop.f32.mrf.mxu0
        %v6078 = vpop.f32.mrf.mxu0
        %v6079 = vadd.f32 0.0, %v6078
        %v6080 = vpop.f32.mrf.mxu0
        %6081 = vmatprep.mubr.bf16.mxu0 0
        %6082 = vmatmul.mubr.bf16.gmra.mxu0 %v5873
        %v6083 = vpop.f32.mrf.mxu0
        %v6084 = vadd.f32 0.0, %v6083
        %v6085 = vpop.f32.mrf.mxu0
        %v6086 = vpop.f32.mrf.mxu0
        %v6087 = vadd.f32 0.0, %v6086
        %v6088 = vpop.f32.mrf.mxu0
        %6089 = vmatprep.mubr.bf16.mxu0 0
        %6090 = vmatmul.mubr.bf16.gmra.mxu0 %v5877
        %v6091 = vpop.f32.mrf.mxu0
        %v6092 = vadd.f32 0.0, %v6091
        %v6093 = vpop.f32.mrf.mxu0
        %v6094 = vpop.f32.mrf.mxu0
        %v6095 = vadd.f32 0.0, %v6094
        %v6096 = vpop.f32.mrf.mxu0
        %6097 = vmatprep.mubr.bf16.mxu0 0
        %6098 = vmatmul.mubr.bf16.gmra.mxu0 %v5881
        %v6099 = vpop.f32.mrf.mxu0
        %v6100 = vadd.f32 0.0, %v6099
        %v6101 = vpop.f32.mrf.mxu0
        %v6102 = vpop.f32.mrf.mxu0
        %v6103 = vadd.f32 0.0, %v6102
        %v6104 = vpop.f32.mrf.mxu0
        %6105 = vmatprep.mubr.bf16.mxu0 0
        %6106 = vmatmul.mubr.bf16.gmra.mxu0 %v5885
        %v6107 = vpop.f32.mrf.mxu0
        %v6108 = vadd.f32 0.0, %v6107
        %v6109 = vpop.f32.mrf.mxu0
        %v6110 = vpop.f32.mrf.mxu0
        %v6111 = vadd.f32 0.0, %v6110
        %v6112 = vpop.f32.mrf.mxu0
        %6113 = vmatprep.mubr.bf16.mxu0 0
        %6114 = vmatmul.mubr.bf16.gmra.mxu0 %v5889
        %v6115 = vpop.f32.mrf.mxu0
        %v6116 = vadd.f32 0.0, %v6115
        %v6117 = vpop.f32.mrf.mxu0
        %v6118 = vpop.f32.mrf.mxu0
        %v6119 = vadd.f32 0.0, %v6118
        %v6120 = vpop.f32.mrf.mxu0
        %6121 = vmatprep.mubr.bf16.mxu0 0
        %6122 = vmatmul.mubr.bf16.gmra.mxu0 %v5893
        %v6123 = vpop.f32.mrf.mxu0
        %v6124 = vadd.f32 0.0, %v6123
        %v6125 = vpop.f32.mrf.mxu0
        %v6126 = vpop.f32.mrf.mxu0
        %v6127 = vadd.f32 0.0, %v6126
        %v6128 = vpop.f32.mrf.mxu0
        %6129 = vmatprep.mubr.bf16.mxu0 0
        %6130 = vmatmul.mubr.bf16.gmra.mxu0 %v5897
        %v6131 = vpop.f32.mrf.mxu0
        %v6132 = vadd.f32 0.0, %v6131
        %v6133 = vpop.f32.mrf.mxu0
        %v6134 = vpop.f32.mrf.mxu0
        %v6135 = vadd.f32 0.0, %v6134
        %v6136 = vpop.f32.mrf.mxu0
        %6137 = vmatprep.mubr.bf16.mxu0 0
        %6138 = vmatmul.mubr.bf16.gmra.mxu0 %v5901
        %v6139 = vpop.f32.mrf.mxu0
        %v6140 = vadd.f32 0.0, %v6139
        %v6141 = vpop.f32.mrf.mxu0
        %v6142 = vpop.f32.mrf.mxu0
        %v6143 = vadd.f32 0.0, %v6142
        %v6144 = vpop.f32.mrf.mxu0
        %6145 = vmatprep.mubr.bf16.mxu0 0
        %6146 = vmatmul.mubr.bf16.gmra.mxu0 %v5910
        %v6147 = vpop.f32.mrf.mxu0
        %v6148 = vadd.f32 0.0, %v6147
        %v6149 = vpop.f32.mrf.mxu0
        %v6150 = vpop.f32.mrf.mxu0
        %v6151 = vadd.f32 0.0, %v6150
        %v6152 = vpop.f32.mrf.mxu0
        %6153 = vdwg.mxu0
        %v6154 = vadd.f32 %v5663, %v6012
        %v6155 = vadd.f32 %v5666, %v6015
        %v6156 = vadd.f32 %v5671, %v6020
        %v6157 = vadd.f32 %v5674, %v6023
        %v6158 = vadd.f32 %v5679, %v6028
        %v6159 = vadd.f32 %v5682, %v6031
        %v6160 = vadd.f32 %v5687, %v6036
        %v6161 = vadd.f32 %v5690, %v6039
        %v6162 = vadd.f32 %v5695, %v6044
        %v6163 = vadd.f32 %v5698, %v6047
        %v6164 = vadd.f32 %v5703, %v6052
        %v6165 = vadd.f32 %v5706, %v6055
        %v6166 = vadd.f32 %v5711, %v6060
        %v6167 = vadd.f32 %v5714, %v6063
        %v6168 = vadd.f32 %v5719, %v6068
        %v6169 = vadd.f32 %v5722, %v6071
        %v6170 = vadd.f32 %v5727, %v6076
        %v6171 = vadd.f32 %v5730, %v6079
        %v6172 = vadd.f32 %v5735, %v6084
        %v6173 = vadd.f32 %v5738, %v6087
        %v6174 = vadd.f32 %v5743, %v6092
        %v6175 = vadd.f32 %v5746, %v6095
        %v6176 = vadd.f32 %v5751, %v6100
        %v6177 = vadd.f32 %v5754, %v6103
        %v6178 = vadd.f32 %v5759, %v6108
        %v6179 = vadd.f32 %v5762, %v6111
        %v6180 = vadd.f32 %v5767, %v6116
        %v6181 = vadd.f32 %v5770, %v6119
        %v6182 = vadd.f32 %v5775, %v6124
        %v6183 = vadd.f32 %v5778, %v6127
        %v6184 = vadd.f32 %v5783, %v6132
        %v6185 = vadd.f32 %v5786, %v6135
        %v6186 = vadd.f32 %v5791, %v6140
        %v6187 = vadd.f32 %v5794, %v6143
        %v6188 = vadd.f32 %v5799, %v6148
        %v6189 = vadd.f32 %v5802, %v6151
        %v6190 = vld [vmem:[#allocation2 + $0x8] sm:$0x8]
        %v6191 = vld [vmem:[#allocation2 + $0xc] sm:$0xf]
        %v6192 = vld [vmem:[#allocation2 + $0x10] sm:$0xf]
        %v6193 = vld [vmem:[#allocation2 + $0x14] sm:$0xf]
        %v6194 = vld [vmem:[#allocation2 + $0x18] sm:$0xf]
        %v6195 = vld [vmem:[#allocation2 + $0x1c] sm:$0xf]
        %v6196 = vld [vmem:[#allocation2 + $0x20] sm:$0xf]
        %v6197 = vld [vmem:[#allocation2 + $0x24] sm:$0xf]
        %v6198 = vld [vmem:[#allocation2 + $0x28] sm:$0xf]
        %v6199 = vld [vmem:[#allocation2 + $0x2c] sm:$0xf]
        %v6200 = vld [vmem:[#allocation2 + $0x30] sm:$0xf]
        %v6201 = vld [vmem:[#allocation2 + $0x34] sm:$0xf]
        %v6202 = vld [vmem:[#allocation2 + $0x38] sm:$0xf]
        %v6203 = vld [vmem:[#allocation2 + $0x3c] sm:$0xf]
        %v6204 = vld [vmem:[#allocation2 + $0x40] sm:$0xf]
        %v6205 = vld [vmem:[#allocation2 + $0x44] sm:$0xf]
        %v6206 = vld [vmem:[#allocation2 + $0x48] sm:$0xf]
        %v6207 = vld [vmem:[#allocation2 + $0x4c] sm:$0xf]
        %v6208 = vld [vmem:[#allocation2 + $0x50] sm:$0xf]
        %v6209 = vld [vmem:[#allocation2 + $0x54] sm:$0xf]
        %v6210 = vld [vmem:[#allocation2 + $0x58] sm:$0xf]
        %v6211 = vld [vmem:[#allocation2 + $0x5c] sm:$0xf]
        %v6212 = vld [vmem:[#allocation2 + $0x60] sm:$0xf]
        %v6213 = vld [vmem:[#allocation2 + $0x64] sm:$0xf]
        %v6214 = vld [vmem:[#allocation2 + $0x68] sm:$0xf]
        %v6215 = vld [vmem:[#allocation2 + $0x6c] sm:$0xf]
        %v6216 = vld [vmem:[#allocation2 + $0x70] sm:$0xf]
        %v6217 = vld [vmem:[#allocation2 + $0x74] sm:$0xf]
        %v6218 = vld [vmem:[#allocation2 + $0x78] sm:$0xf]
        %v6219 = vld [vmem:[#allocation2 + $0x7c] sm:$0xf]
        %v6220 = vld [vmem:[#allocation2 + $0x80] sm:$0xf]
        %v6221 = vld [vmem:[#allocation2 + $0x84] sm:$0xf]
        %v6222 = vld [vmem:[#allocation2 + $0x88] sm:$0xf]
        %v6223 = vld [vmem:[#allocation2 + $0x8c] sm:$0xf]
        %v6224 = vld [vmem:[#allocation2 + $0x90] sm:$0xf]
        %v6225 = vld [vmem:[#allocation2 + $0x94] sm:$0xf]
        %v6226 = vld [vmem:[#allocation2 + $0x98] sm:$0xf]
        %s6227 = scalar_lea.vmem [#allocation8], 192
        %v6228 = vld [vmem:[%s6227] sm:$0xf]
        %v6229 = vld [vmem:[%s6227 + $0x4] sm:$0xf]
        %v6230 = vld [vmem:[%s6227 + $0x8] sm:$0xf]
        %v6231 = vld [vmem:[%s6227 + $0xc] sm:$0xf]
        %v6232 = vld [vmem:[%s6227 + $0x10] sm:$0xf]
        %v6233 = vld [vmem:[%s6227 + $0x14] sm:$0xf]
        %v6234 = vld [vmem:[%s6227 + $0x18] sm:$0xf]
        %v6235 = vld [vmem:[%s6227 + $0x1c] sm:$0xf]
        %v6236 = vld [vmem:[%s6227 + $0x20] sm:$0xf]
        %v6237 = vld [vmem:[%s6227 + $0x24] sm:$0xf]
        %v6238 = vld [vmem:[%s6227 + $0x28] sm:$0xf]
        %v6239 = vld [vmem:[%s6227 + $0x2c] sm:$0xf]
        %v6240 = vld [vmem:[%s6227 + $0x30] sm:$0xf]
        %v6241 = vld [vmem:[%s6227 + $0x34] sm:$0xf]
        %v6242 = vld [vmem:[%s6227 + $0x38] sm:$0xf]
        %v6243 = vld [vmem:[%s6227 + $0x3c] sm:$0xf]
        %v6281 = vunpack.c.l.b16 %v6190
        %v6282 = vunpack.c.l.b16 %v6191
        %v6283 = vunpack.c.l.b16 %v6192
        %v6284 = vunpack.c.l.b16 %v6193
        %v6285 = vunpack.c.l.b16 %v6194
        %v6286 = vunpack.c.l.b16 %v6195
        %v6287 = vunpack.c.l.b16 %v6196
        %v6288 = vunpack.c.l.b16 %v6197
        %v6289 = vunpack.c.l.b16 %v6198
        %v6290 = vunpack.c.l.b16 %v6199
        %v6291 = vunpack.c.l.b16 %v6200
        %v6292 = vunpack.c.l.b16 %v6201
        %v6293 = vunpack.c.l.b16 %v6202
        %v6294 = vunpack.c.l.b16 %v6203
        %v6295 = vunpack.c.l.b16 %v6204
        %v6296 = vunpack.c.l.b16 %v6205
        %v6297 = vunpack.c.l.b16 %v6206
        %v6298 = vunpack.c.l.b16 %v6207
        %v6299 = vunpack.c.l.b16 %v6208
        %v6300 = vunpack.c.l.b16 %v6209
        %v6301 = vunpack.c.l.b16 %v6210
        %v6302 = vunpack.c.l.b16 %v6211
        %v6303 = vunpack.c.l.b16 %v6212
        %v6304 = vunpack.c.l.b16 %v6213
        %v6305 = vunpack.c.l.b16 %v6214
        %v6306 = vunpack.c.l.b16 %v6215
        %v6307 = vunpack.c.l.b16 %v6216
        %v6308 = vunpack.c.l.b16 %v6217
        %v6309 = vunpack.c.l.b16 %v6218
        %v6310 = vunpack.c.l.b16 %v6219
        %v6311 = vunpack.c.l.b16 %v6220
        %v6312 = vunpack.c.l.b16 %v6221
        %v6313 = vunpack.c.l.b16 %v6222
        %v6314 = vunpack.c.l.b16 %v6223
        %v6315 = vunpack.c.l.b16 %v6224
        %v6316 = vunpack.c.l.b16 %v6225
        %v6317 = vunpack.c.l.b16 %v6226
        %v6318 = vpack.c.b16 %v6282, %v6281
        %v6319 = vpack.c.b16 %v6284, %v6283
        %v6320 = vpack.c.b16 %v6286, %v6285
        %v6321 = vpack.c.b16 %v6288, %v6287
        %v6322 = vpack.c.b16 %v6290, %v6289
        %v6323 = vpack.c.b16 %v6292, %v6291
        %v6324 = vpack.c.b16 %v6294, %v6293
        %v6325 = vpack.c.b16 %v6296, %v6295
        %v6326 = vpack.c.b16 %v6298, %v6297
        %v6327 = vpack.c.b16 %v6300, %v6299
        %v6328 = vpack.c.b16 %v6302, %v6301
        %v6329 = vpack.c.b16 %v6304, %v6303
        %v6330 = vpack.c.b16 %v6306, %v6305
        %v6331 = vpack.c.b16 %v6308, %v6307
        %v6332 = vpack.c.b16 %v6310, %v6309
        %v6333 = vpack.c.b16 %v6312, %v6311
        %v6334 = vpack.c.b16 %v6314, %v6313
        %v6335 = vpack.c.b16 %v6316, %v6315
        %v6336 = vpack.c.b16 %v6317, %v6317
        %v6338 = vshrl.u32 %v6318, 16
        %v6340 = vrot.slane %v6338, 3
        %v6341 = vshll.u32 %v6318, 16
        %v6343 = vrot.slane %v6341, 4
        %v6344 = vor.u32 %v6340, %v6343
        %v6346 = vshrl.u32 %v6319, 16
        %v6348 = vrot.slane %v6346, 3
        %v6349 = vshll.u32 %v6319, 16
        %v6351 = vrot.slane %v6349, 4
        %v6352 = vor.u32 %v6348, %v6351
        %v6353 = vsel %vm1237, %v6344, %v6352
        %v6355 = vshrl.u32 %v6320, 16
        %v6357 = vrot.slane %v6355, 3
        %v6358 = vshll.u32 %v6320, 16
        %v6360 = vrot.slane %v6358, 4
        %v6361 = vor.u32 %v6357, %v6360
        %v6362 = vsel %vm1237, %v6352, %v6361
        %v6364 = vshrl.u32 %v6321, 16
        %v6366 = vrot.slane %v6364, 3
        %v6367 = vshll.u32 %v6321, 16
        %v6369 = vrot.slane %v6367, 4
        %v6370 = vor.u32 %v6366, %v6369
        %v6371 = vsel %vm1237, %v6361, %v6370
        %v6373 = vshrl.u32 %v6322, 16
        %v6375 = vrot.slane %v6373, 3
        %v6376 = vshll.u32 %v6322, 16
        %v6378 = vrot.slane %v6376, 4
        %v6379 = vor.u32 %v6375, %v6378
        %v6380 = vsel %vm1237, %v6370, %v6379
        %v6382 = vshrl.u32 %v6323, 16
        %v6384 = vrot.slane %v6382, 3
        %v6385 = vshll.u32 %v6323, 16
        %v6387 = vrot.slane %v6385, 4
        %v6388 = vor.u32 %v6384, %v6387
        %v6389 = vsel %vm1237, %v6379, %v6388
        %v6391 = vshrl.u32 %v6324, 16
        %v6393 = vrot.slane %v6391, 3
        %v6394 = vshll.u32 %v6324, 16
        %v6396 = vrot.slane %v6394, 4
        %v6397 = vor.u32 %v6393, %v6396
        %v6398 = vsel %vm1237, %v6388, %v6397
        %v6400 = vshrl.u32 %v6325, 16
        %v6402 = vrot.slane %v6400, 3
        %v6403 = vshll.u32 %v6325, 16
        %v6405 = vrot.slane %v6403, 4
        %v6406 = vor.u32 %v6402, %v6405
        %v6407 = vsel %vm1237, %v6397, %v6406
        %v6409 = vshrl.u32 %v6326, 16
        %v6411 = vrot.slane %v6409, 3
        %v6412 = vshll.u32 %v6326, 16
        %v6414 = vrot.slane %v6412, 4
        %v6415 = vor.u32 %v6411, %v6414
        %v6416 = vsel %vm1237, %v6406, %v6415
        %v6418 = vshrl.u32 %v6327, 16
        %v6420 = vrot.slane %v6418, 3
        %v6421 = vshll.u32 %v6327, 16
        %v6423 = vrot.slane %v6421, 4
        %v6424 = vor.u32 %v6420, %v6423
        %v6425 = vsel %vm1237, %v6415, %v6424
        %v6427 = vshrl.u32 %v6328, 16
        %v6429 = vrot.slane %v6427, 3
        %v6430 = vshll.u32 %v6328, 16
        %v6432 = vrot.slane %v6430, 4
        %v6433 = vor.u32 %v6429, %v6432
        %v6434 = vsel %vm1237, %v6424, %v6433
        %v6436 = vshrl.u32 %v6329, 16
        %v6438 = vrot.slane %v6436, 3
        %v6439 = vshll.u32 %v6329, 16
        %v6441 = vrot.slane %v6439, 4
        %v6442 = vor.u32 %v6438, %v6441
        %v6443 = vsel %vm1237, %v6433, %v6442
        %v6445 = vshrl.u32 %v6330, 16
        %v6447 = vrot.slane %v6445, 3
        %v6448 = vshll.u32 %v6330, 16
        %v6450 = vrot.slane %v6448, 4
        %v6451 = vor.u32 %v6447, %v6450
        %v6452 = vsel %vm1237, %v6442, %v6451
        %v6454 = vshrl.u32 %v6331, 16
        %v6456 = vrot.slane %v6454, 3
        %v6457 = vshll.u32 %v6331, 16
        %v6459 = vrot.slane %v6457, 4
        %v6460 = vor.u32 %v6456, %v6459
        %v6461 = vsel %vm1237, %v6451, %v6460
        %v6463 = vshrl.u32 %v6332, 16
        %v6465 = vrot.slane %v6463, 3
        %v6466 = vshll.u32 %v6332, 16
        %v6468 = vrot.slane %v6466, 4
        %v6469 = vor.u32 %v6465, %v6468
        %v6470 = vsel %vm1237, %v6460, %v6469
        %v6472 = vshrl.u32 %v6333, 16
        %v6474 = vrot.slane %v6472, 3
        %v6475 = vshll.u32 %v6333, 16
        %v6477 = vrot.slane %v6475, 4
        %v6478 = vor.u32 %v6474, %v6477
        %v6479 = vsel %vm1237, %v6469, %v6478
        %v6481 = vshrl.u32 %v6334, 16
        %v6483 = vrot.slane %v6481, 3
        %v6484 = vshll.u32 %v6334, 16
        %v6486 = vrot.slane %v6484, 4
        %v6487 = vor.u32 %v6483, %v6486
        %v6488 = vsel %vm1237, %v6478, %v6487
        %v6490 = vshrl.u32 %v6335, 16
        %v6492 = vrot.slane %v6490, 3
        %v6493 = vshll.u32 %v6335, 16
        %v6495 = vrot.slane %v6493, 4
        %v6496 = vor.u32 %v6492, %v6495
        %v6497 = vsel %vm1237, %v6487, %v6496
        %v6499 = vshrl.u32 %v6336, 16
        %v6501 = vrot.slane %v6499, 3
        %v6502 = vshll.u32 %v6336, 16
        %v6504 = vrot.slane %v6502, 4
        %v6505 = vor.u32 %v6501, %v6504
        %v6506 = vsel %vm1237, %v6496, %v6505
        %v6541 = vunpack.c.l.b16 %v6228
        %v6542 = vunpack.c.l.b16 %v6229
        %v6543 = vunpack.c.l.b16 %v6230
        %v6544 = vunpack.c.l.b16 %v6231
        %v6545 = vunpack.c.l.b16 %v6232
        %v6546 = vunpack.c.l.b16 %v6233
        %v6547 = vunpack.c.l.b16 %v6234
        %v6548 = vunpack.c.l.b16 %v6235
        %v6549 = vunpack.c.l.b16 %v6236
        %v6550 = vunpack.c.l.b16 %v6237
        %v6551 = vunpack.c.l.b16 %v6238
        %v6552 = vunpack.c.l.b16 %v6239
        %v6553 = vunpack.c.l.b16 %v6240
        %v6554 = vunpack.c.l.b16 %v6241
        %v6555 = vunpack.c.l.b16 %v6242
        %v6556 = vunpack.c.l.b16 %v6243
        %v6557 = vpack.c.b16 %v6542, %v6541
        %v6558 = vpack.c.b16 %v6544, %v6543
        %v6559 = vpack.c.b16 %v6546, %v6545
        %v6560 = vpack.c.b16 %v6548, %v6547
        %v6561 = vpack.c.b16 %v6550, %v6549
        %v6562 = vpack.c.b16 %v6552, %v6551
        %v6563 = vpack.c.b16 %v6554, %v6553
        %v6564 = vpack.c.b16 %v6556, %v6555
        %6573 = vmatprep.subr.bf16.mxu0 0
        %6574 = vmatpush1.bf16.msra.mxu0 %v6564
        %6575 = vmatprep.subr.bf16.mxu0 0
        %6576 = vmatpush1.bf16.msra.mxu0 %v6563
        %6577 = vmatprep.subr.bf16.mxu0 0
        %6578 = vmatpush1.bf16.msra.mxu0 %v6562
        %6579 = vmatprep.subr.bf16.mxu0 0
        %6580 = vmatpush1.bf16.msra.mxu0 %v6561
        %6581 = vmatprep.subr.bf16.mxu0 0
        %6582 = vmatpush1.bf16.msra.mxu0 %v6560
        %6583 = vmatprep.subr.bf16.mxu0 0
        %6584 = vmatpush1.bf16.msra.mxu0 %v6559
        %6585 = vmatprep.subr.bf16.mxu0 0
        %6586 = vmatpush1.bf16.msra.mxu0 %v6558
        %6587 = vmatprep.subr.bf16.mxu0 0
        %6588 = vmatpush1.bf16.msra.mxu0 %v6557
        %6589 = vmatprep.subr.bf16.mxu0 0
        %6590 = vmatpush2.bf16.msra.mxu0 0
        %6591 = vmatprep.subr.bf16.mxu0 0
        %6592 = vmatpush2.bf16.msra.mxu0 0
        %6593 = vmatprep.subr.bf16.mxu0 0
        %6594 = vmatpush2.bf16.msra.mxu0 0
        %6595 = vmatprep.subr.bf16.mxu0 0
        %6596 = vmatpush2.bf16.msra.mxu0 0
        %6597 = vmatprep.subr.bf16.mxu0 0
        %6598 = vmatpush2.bf16.msra.mxu0 0
        %6599 = vmatprep.subr.bf16.mxu0 0
        %6600 = vmatpush2.bf16.msra.mxu0 0
        %6601 = vmatprep.subr.bf16.mxu0 0
        %6602 = vmatpush2.bf16.msra.mxu0 0
        %6603 = vmatprep.subr.bf16.mxu0 0
        %6604 = vmatpush2.bf16.msra.mxu0 0
        %6605 = vmatprep.mubr.bf16.mxu0 0
        %6606 = vmatmul.mubr.bf16.gmra.mxu0 %v6353
        %v6607 = vpop.f32.mrf.mxu0
        %v6608 = vadd.f32 0.0, %v6607
        %v6609 = vpop.f32.mrf.mxu0
        %v6610 = vpop.f32.mrf.mxu0
        %v6611 = vadd.f32 0.0, %v6610
        %v6612 = vpop.f32.mrf.mxu0
        %6613 = vmatprep.mubr.bf16.mxu0 0
        %6614 = vmatmul.mubr.bf16.gmra.mxu0 %v6362
        %v6615 = vpop.f32.mrf.mxu0
        %v6616 = vadd.f32 0.0, %v6615
        %v6617 = vpop.f32.mrf.mxu0
        %v6618 = vpop.f32.mrf.mxu0
        %v6619 = vadd.f32 0.0, %v6618
        %v6620 = vpop.f32.mrf.mxu0
        %6621 = vmatprep.mubr.bf16.mxu0 0
        %6622 = vmatmul.mubr.bf16.gmra.mxu0 %v6371
        %v6623 = vpop.f32.mrf.mxu0
        %v6624 = vadd.f32 0.0, %v6623
        %v6625 = vpop.f32.mrf.mxu0
        %v6626 = vpop.f32.mrf.mxu0
        %v6627 = vadd.f32 0.0, %v6626
        %v6628 = vpop.f32.mrf.mxu0
        %6629 = vmatprep.mubr.bf16.mxu0 0
        %6630 = vmatmul.mubr.bf16.gmra.mxu0 %v6380
        %v6631 = vpop.f32.mrf.mxu0
        %v6632 = vadd.f32 0.0, %v6631
        %v6633 = vpop.f32.mrf.mxu0
        %v6634 = vpop.f32.mrf.mxu0
        %v6635 = vadd.f32 0.0, %v6634
        %v6636 = vpop.f32.mrf.mxu0
        %6637 = vmatprep.mubr.bf16.mxu0 0
        %6638 = vmatmul.mubr.bf16.gmra.mxu0 %v6389
        %v6639 = vpop.f32.mrf.mxu0
        %v6640 = vadd.f32 0.0, %v6639
        %v6641 = vpop.f32.mrf.mxu0
        %v6642 = vpop.f32.mrf.mxu0
        %v6643 = vadd.f32 0.0, %v6642
        %v6644 = vpop.f32.mrf.mxu0
        %6645 = vmatprep.mubr.bf16.mxu0 0
        %6646 = vmatmul.mubr.bf16.gmra.mxu0 %v6398
        %v6647 = vpop.f32.mrf.mxu0
        %v6648 = vadd.f32 0.0, %v6647
        %v6649 = vpop.f32.mrf.mxu0
        %v6650 = vpop.f32.mrf.mxu0
        %v6651 = vadd.f32 0.0, %v6650
        %v6652 = vpop.f32.mrf.mxu0
        %6653 = vmatprep.mubr.bf16.mxu0 0
        %6654 = vmatmul.mubr.bf16.gmra.mxu0 %v6407
        %v6655 = vpop.f32.mrf.mxu0
        %v6656 = vadd.f32 0.0, %v6655
        %v6657 = vpop.f32.mrf.mxu0
        %v6658 = vpop.f32.mrf.mxu0
        %v6659 = vadd.f32 0.0, %v6658
        %v6660 = vpop.f32.mrf.mxu0
        %6661 = vmatprep.mubr.bf16.mxu0 0
        %6662 = vmatmul.mubr.bf16.gmra.mxu0 %v6416
        %v6663 = vpop.f32.mrf.mxu0
        %v6664 = vadd.f32 0.0, %v6663
        %v6665 = vpop.f32.mrf.mxu0
        %v6666 = vpop.f32.mrf.mxu0
        %v6667 = vadd.f32 0.0, %v6666
        %v6668 = vpop.f32.mrf.mxu0
        %6669 = vmatprep.mubr.bf16.mxu0 0
        %6670 = vmatmul.mubr.bf16.gmra.mxu0 %v6425
        %v6671 = vpop.f32.mrf.mxu0
        %v6672 = vadd.f32 0.0, %v6671
        %v6673 = vpop.f32.mrf.mxu0
        %v6674 = vpop.f32.mrf.mxu0
        %v6675 = vadd.f32 0.0, %v6674
        %v6676 = vpop.f32.mrf.mxu0
        %6677 = vmatprep.mubr.bf16.mxu0 0
        %6678 = vmatmul.mubr.bf16.gmra.mxu0 %v6434
        %v6679 = vpop.f32.mrf.mxu0
        %v6680 = vadd.f32 0.0, %v6679
        %v6681 = vpop.f32.mrf.mxu0
        %v6682 = vpop.f32.mrf.mxu0
        %v6683 = vadd.f32 0.0, %v6682
        %v6684 = vpop.f32.mrf.mxu0
        %6685 = vmatprep.mubr.bf16.mxu0 0
        %6686 = vmatmul.mubr.bf16.gmra.mxu0 %v6443
        %v6687 = vpop.f32.mrf.mxu0
        %v6688 = vadd.f32 0.0, %v6687
        %v6689 = vpop.f32.mrf.mxu0
        %v6690 = vpop.f32.mrf.mxu0
        %v6691 = vadd.f32 0.0, %v6690
        %v6692 = vpop.f32.mrf.mxu0
        %6693 = vmatprep.mubr.bf16.mxu0 0
        %6694 = vmatmul.mubr.bf16.gmra.mxu0 %v6452
        %v6695 = vpop.f32.mrf.mxu0
        %v6696 = vadd.f32 0.0, %v6695
        %v6697 = vpop.f32.mrf.mxu0
        %v6698 = vpop.f32.mrf.mxu0
        %v6699 = vadd.f32 0.0, %v6698
        %v6700 = vpop.f32.mrf.mxu0
        %6701 = vmatprep.mubr.bf16.mxu0 0
        %6702 = vmatmul.mubr.bf16.gmra.mxu0 %v6461
        %v6703 = vpop.f32.mrf.mxu0
        %v6704 = vadd.f32 0.0, %v6703
        %v6705 = vpop.f32.mrf.mxu0
        %v6706 = vpop.f32.mrf.mxu0
        %v6707 = vadd.f32 0.0, %v6706
        %v6708 = vpop.f32.mrf.mxu0
        %6709 = vmatprep.mubr.bf16.mxu0 0
        %6710 = vmatmul.mubr.bf16.gmra.mxu0 %v6470
        %v6711 = vpop.f32.mrf.mxu0
        %v6712 = vadd.f32 0.0, %v6711
        %v6713 = vpop.f32.mrf.mxu0
        %v6714 = vpop.f32.mrf.mxu0
        %v6715 = vadd.f32 0.0, %v6714
        %v6716 = vpop.f32.mrf.mxu0
        %6717 = vmatprep.mubr.bf16.mxu0 0
        %6718 = vmatmul.mubr.bf16.gmra.mxu0 %v6479
        %v6719 = vpop.f32.mrf.mxu0
        %v6720 = vadd.f32 0.0, %v6719
        %v6721 = vpop.f32.mrf.mxu0
        %v6722 = vpop.f32.mrf.mxu0
        %v6723 = vadd.f32 0.0, %v6722
        %v6724 = vpop.f32.mrf.mxu0
        %6725 = vmatprep.mubr.bf16.mxu0 0
        %6726 = vmatmul.mubr.bf16.gmra.mxu0 %v6488
        %v6727 = vpop.f32.mrf.mxu0
        %v6728 = vadd.f32 0.0, %v6727
        %v6729 = vpop.f32.mrf.mxu0
        %v6730 = vpop.f32.mrf.mxu0
        %v6731 = vadd.f32 0.0, %v6730
        %v6732 = vpop.f32.mrf.mxu0
        %6733 = vmatprep.mubr.bf16.mxu0 0
        %6734 = vmatmul.mubr.bf16.gmra.mxu0 %v6497
        %v6735 = vpop.f32.mrf.mxu0
        %v6736 = vadd.f32 0.0, %v6735
        %v6737 = vpop.f32.mrf.mxu0
        %v6738 = vpop.f32.mrf.mxu0
        %v6739 = vadd.f32 0.0, %v6738
        %v6740 = vpop.f32.mrf.mxu0
        %6741 = vmatprep.mubr.bf16.mxu0 0
        %6742 = vmatmul.mubr.bf16.gmra.mxu0 %v6506
        %v6743 = vpop.f32.mrf.mxu0
        %v6744 = vadd.f32 0.0, %v6743
        %v6745 = vpop.f32.mrf.mxu0
        %v6746 = vpop.f32.mrf.mxu0
        %v6747 = vadd.f32 0.0, %v6746
        %v6748 = vpop.f32.mrf.mxu0
        %6749 = vdwg.mxu0
        %v6750 = vadd.f32 %v6154, %v6608
        %v6751 = vadd.f32 %v6155, %v6611
        %v6752 = vadd.f32 %v6156, %v6616
        %v6753 = vadd.f32 %v6157, %v6619
        %v6754 = vadd.f32 %v6158, %v6624
        %v6755 = vadd.f32 %v6159, %v6627
        %v6756 = vadd.f32 %v6160, %v6632
        %v6757 = vadd.f32 %v6161, %v6635
        %v6758 = vadd.f32 %v6162, %v6640
        %v6759 = vadd.f32 %v6163, %v6643
        %v6760 = vadd.f32 %v6164, %v6648
        %v6761 = vadd.f32 %v6165, %v6651
        %v6762 = vadd.f32 %v6166, %v6656
        %v6763 = vadd.f32 %v6167, %v6659
        %v6764 = vadd.f32 %v6168, %v6664
        %v6765 = vadd.f32 %v6169, %v6667
        %v6766 = vadd.f32 %v6170, %v6672
        %v6767 = vadd.f32 %v6171, %v6675
        %v6768 = vadd.f32 %v6172, %v6680
        %v6769 = vadd.f32 %v6173, %v6683
        %v6770 = vadd.f32 %v6174, %v6688
        %v6771 = vadd.f32 %v6175, %v6691
        %v6772 = vadd.f32 %v6176, %v6696
        %v6773 = vadd.f32 %v6177, %v6699
        %v6774 = vadd.f32 %v6178, %v6704
        %v6775 = vadd.f32 %v6179, %v6707
        %v6776 = vadd.f32 %v6180, %v6712
        %v6777 = vadd.f32 %v6181, %v6715
        %v6778 = vadd.f32 %v6182, %v6720
        %v6779 = vadd.f32 %v6183, %v6723
        %v6780 = vadd.f32 %v6184, %v6728
        %v6781 = vadd.f32 %v6185, %v6731
        %v6782 = vadd.f32 %v6186, %v6736
        %v6783 = vadd.f32 %v6187, %v6739
        %v6784 = vadd.f32 %v6188, %v6744
        %v6785 = vadd.f32 %v6189, %v6747
        %s6786 = scalar_lea.vmem [#allocation8], 256
        %v6787 = vld [vmem:[%s6786] sm:$0xf]
        %v6788 = vld [vmem:[%s6786 + $0x4] sm:$0xf]
        %v6789 = vld [vmem:[%s6786 + $0x8] sm:$0xf]
        %v6790 = vld [vmem:[%s6786 + $0xc] sm:$0xf]
        %v6791 = vld [vmem:[%s6786 + $0x10] sm:$0xf]
        %v6792 = vld [vmem:[%s6786 + $0x14] sm:$0xf]
        %v6793 = vld [vmem:[%s6786 + $0x18] sm:$0xf]
        %v6794 = vld [vmem:[%s6786 + $0x1c] sm:$0xf]
        %v6795 = vld [vmem:[%s6786 + $0x20] sm:$0xf]
        %v6796 = vld [vmem:[%s6786 + $0x24] sm:$0xf]
        %v6797 = vld [vmem:[%s6786 + $0x28] sm:$0xf]
        %v6798 = vld [vmem:[%s6786 + $0x2c] sm:$0xf]
        %v6799 = vld [vmem:[%s6786 + $0x30] sm:$0xf]
        %v6800 = vld [vmem:[%s6786 + $0x34] sm:$0xf]
        %v6801 = vld [vmem:[%s6786 + $0x38] sm:$0xf]
        %v6802 = vld [vmem:[%s6786 + $0x3c] sm:$0xf]
        %v6803 = vpack.c.b16 %v6283, %v6282
        %v6804 = vpack.c.b16 %v6285, %v6284
        %v6805 = vpack.c.b16 %v6287, %v6286
        %v6806 = vpack.c.b16 %v6289, %v6288
        %v6807 = vpack.c.b16 %v6291, %v6290
        %v6808 = vpack.c.b16 %v6293, %v6292
        %v6809 = vpack.c.b16 %v6295, %v6294
        %v6810 = vpack.c.b16 %v6297, %v6296
        %v6811 = vpack.c.b16 %v6299, %v6298
        %v6812 = vpack.c.b16 %v6301, %v6300
        %v6813 = vpack.c.b16 %v6303, %v6302
        %v6814 = vpack.c.b16 %v6305, %v6304
        %v6815 = vpack.c.b16 %v6307, %v6306
        %v6816 = vpack.c.b16 %v6309, %v6308
        %v6817 = vpack.c.b16 %v6311, %v6310
        %v6818 = vpack.c.b16 %v6313, %v6312
        %v6819 = vpack.c.b16 %v6315, %v6314
        %v6820 = vpack.c.b16 %v6317, %v6316
        %v6855 = vunpack.c.l.b16 %v6787
        %v6856 = vunpack.c.l.b16 %v6788
        %v6857 = vunpack.c.l.b16 %v6789
        %v6858 = vunpack.c.l.b16 %v6790
        %v6859 = vunpack.c.l.b16 %v6791
        %v6860 = vunpack.c.l.b16 %v6792
        %v6861 = vunpack.c.l.b16 %v6793
        %v6862 = vunpack.c.l.b16 %v6794
        %v6863 = vunpack.c.l.b16 %v6795
        %v6864 = vunpack.c.l.b16 %v6796
        %v6865 = vunpack.c.l.b16 %v6797
        %v6866 = vunpack.c.l.b16 %v6798
        %v6867 = vunpack.c.l.b16 %v6799
        %v6868 = vunpack.c.l.b16 %v6800
        %v6869 = vunpack.c.l.b16 %v6801
        %v6870 = vunpack.c.l.b16 %v6802
        %v6871 = vpack.c.b16 %v6856, %v6855
        %v6872 = vpack.c.b16 %v6858, %v6857
        %v6873 = vpack.c.b16 %v6860, %v6859
        %v6874 = vpack.c.b16 %v6862, %v6861
        %v6875 = vpack.c.b16 %v6864, %v6863
        %v6876 = vpack.c.b16 %v6866, %v6865
        %v6877 = vpack.c.b16 %v6868, %v6867
        %v6878 = vpack.c.b16 %v6870, %v6869
        %6887 = vmatprep.subr.bf16.mxu0 0
        %6888 = vmatpush1.bf16.msra.mxu0 %v6878
        %6889 = vmatprep.subr.bf16.mxu0 0
        %6890 = vmatpush1.bf16.msra.mxu0 %v6877
        %6891 = vmatprep.subr.bf16.mxu0 0
        %6892 = vmatpush1.bf16.msra.mxu0 %v6876
        %6893 = vmatprep.subr.bf16.mxu0 0
        %6894 = vmatpush1.bf16.msra.mxu0 %v6875
        %6895 = vmatprep.subr.bf16.mxu0 0
        %6896 = vmatpush1.bf16.msra.mxu0 %v6874
        %6897 = vmatprep.subr.bf16.mxu0 0
        %6898 = vmatpush1.bf16.msra.mxu0 %v6873
        %6899 = vmatprep.subr.bf16.mxu0 0
        %6900 = vmatpush1.bf16.msra.mxu0 %v6872
        %6901 = vmatprep.subr.bf16.mxu0 0
        %6902 = vmatpush1.bf16.msra.mxu0 %v6871
        %6903 = vmatprep.subr.bf16.mxu0 0
        %6904 = vmatpush2.bf16.msra.mxu0 0
        %6905 = vmatprep.subr.bf16.mxu0 0
        %6906 = vmatpush2.bf16.msra.mxu0 0
        %6907 = vmatprep.subr.bf16.mxu0 0
        %6908 = vmatpush2.bf16.msra.mxu0 0
        %6909 = vmatprep.subr.bf16.mxu0 0
        %6910 = vmatpush2.bf16.msra.mxu0 0
        %6911 = vmatprep.subr.bf16.mxu0 0
        %6912 = vmatpush2.bf16.msra.mxu0 0
        %6913 = vmatprep.subr.bf16.mxu0 0
        %6914 = vmatpush2.bf16.msra.mxu0 0
        %6915 = vmatprep.subr.bf16.mxu0 0
        %6916 = vmatpush2.bf16.msra.mxu0 0
        %6917 = vmatprep.subr.bf16.mxu0 0
        %6918 = vmatpush2.bf16.msra.mxu0 0
        %6919 = vmatprep.mubr.bf16.mxu0 0
        %6920 = vmatmul.mubr.bf16.gmra.mxu0 %v6803
        %v6921 = vpop.f32.mrf.mxu0
        %v6922 = vadd.f32 0.0, %v6921
        %v6923 = vpop.f32.mrf.mxu0
        %v6924 = vpop.f32.mrf.mxu0
        %v6925 = vadd.f32 0.0, %v6924
        %v6926 = vpop.f32.mrf.mxu0
        %6927 = vmatprep.mubr.bf16.mxu0 0
        %6928 = vmatmul.mubr.bf16.gmra.mxu0 %v6804
        %v6929 = vpop.f32.mrf.mxu0
        %v6930 = vadd.f32 0.0, %v6929
        %v6931 = vpop.f32.mrf.mxu0
        %v6932 = vpop.f32.mrf.mxu0
        %v6933 = vadd.f32 0.0, %v6932
        %v6934 = vpop.f32.mrf.mxu0
        %6935 = vmatprep.mubr.bf16.mxu0 0
        %6936 = vmatmul.mubr.bf16.gmra.mxu0 %v6805
        %v6937 = vpop.f32.mrf.mxu0
        %v6938 = vadd.f32 0.0, %v6937
        %v6939 = vpop.f32.mrf.mxu0
        %v6940 = vpop.f32.mrf.mxu0
        %v6941 = vadd.f32 0.0, %v6940
        %v6942 = vpop.f32.mrf.mxu0
        %6943 = vmatprep.mubr.bf16.mxu0 0
        %6944 = vmatmul.mubr.bf16.gmra.mxu0 %v6806
        %v6945 = vpop.f32.mrf.mxu0
        %v6946 = vadd.f32 0.0, %v6945
        %v6947 = vpop.f32.mrf.mxu0
        %v6948 = vpop.f32.mrf.mxu0
        %v6949 = vadd.f32 0.0, %v6948
        %v6950 = vpop.f32.mrf.mxu0
        %6951 = vmatprep.mubr.bf16.mxu0 0
        %6952 = vmatmul.mubr.bf16.gmra.mxu0 %v6807
        %v6953 = vpop.f32.mrf.mxu0
        %v6954 = vadd.f32 0.0, %v6953
        %v6955 = vpop.f32.mrf.mxu0
        %v6956 = vpop.f32.mrf.mxu0
        %v6957 = vadd.f32 0.0, %v6956
        %v6958 = vpop.f32.mrf.mxu0
        %6959 = vmatprep.mubr.bf16.mxu0 0
        %6960 = vmatmul.mubr.bf16.gmra.mxu0 %v6808
        %v6961 = vpop.f32.mrf.mxu0
        %v6962 = vadd.f32 0.0, %v6961
        %v6963 = vpop.f32.mrf.mxu0
        %v6964 = vpop.f32.mrf.mxu0
        %v6965 = vadd.f32 0.0, %v6964
        %v6966 = vpop.f32.mrf.mxu0
        %6967 = vmatprep.mubr.bf16.mxu0 0
        %6968 = vmatmul.mubr.bf16.gmra.mxu0 %v6809
        %v6969 = vpop.f32.mrf.mxu0
        %v6970 = vadd.f32 0.0, %v6969
        %v6971 = vpop.f32.mrf.mxu0
        %v6972 = vpop.f32.mrf.mxu0
        %v6973 = vadd.f32 0.0, %v6972
        %v6974 = vpop.f32.mrf.mxu0
        %6975 = vmatprep.mubr.bf16.mxu0 0
        %6976 = vmatmul.mubr.bf16.gmra.mxu0 %v6810
        %v6977 = vpop.f32.mrf.mxu0
        %v6978 = vadd.f32 0.0, %v6977
        %v6979 = vpop.f32.mrf.mxu0
        %v6980 = vpop.f32.mrf.mxu0
        %v6981 = vadd.f32 0.0, %v6980
        %v6982 = vpop.f32.mrf.mxu0
        %6983 = vmatprep.mubr.bf16.mxu0 0
        %6984 = vmatmul.mubr.bf16.gmra.mxu0 %v6811
        %v6985 = vpop.f32.mrf.mxu0
        %v6986 = vadd.f32 0.0, %v6985
        %v6987 = vpop.f32.mrf.mxu0
        %v6988 = vpop.f32.mrf.mxu0
        %v6989 = vadd.f32 0.0, %v6988
        %v6990 = vpop.f32.mrf.mxu0
        %6991 = vmatprep.mubr.bf16.mxu0 0
        %6992 = vmatmul.mubr.bf16.gmra.mxu0 %v6812
        %v6993 = vpop.f32.mrf.mxu0
        %v6994 = vadd.f32 0.0, %v6993
        %v6995 = vpop.f32.mrf.mxu0
        %v6996 = vpop.f32.mrf.mxu0
        %v6997 = vadd.f32 0.0, %v6996
        %v6998 = vpop.f32.mrf.mxu0
        %6999 = vmatprep.mubr.bf16.mxu0 0
        %7000 = vmatmul.mubr.bf16.gmra.mxu0 %v6813
        %v7001 = vpop.f32.mrf.mxu0
        %v7002 = vadd.f32 0.0, %v7001
        %v7003 = vpop.f32.mrf.mxu0
        %v7004 = vpop.f32.mrf.mxu0
        %v7005 = vadd.f32 0.0, %v7004
        %v7006 = vpop.f32.mrf.mxu0
        %7007 = vmatprep.mubr.bf16.mxu0 0
        %7008 = vmatmul.mubr.bf16.gmra.mxu0 %v6814
        %v7009 = vpop.f32.mrf.mxu0
        %v7010 = vadd.f32 0.0, %v7009
        %v7011 = vpop.f32.mrf.mxu0
        %v7012 = vpop.f32.mrf.mxu0
        %v7013 = vadd.f32 0.0, %v7012
        %v7014 = vpop.f32.mrf.mxu0
        %7015 = vmatprep.mubr.bf16.mxu0 0
        %7016 = vmatmul.mubr.bf16.gmra.mxu0 %v6815
        %v7017 = vpop.f32.mrf.mxu0
        %v7018 = vadd.f32 0.0, %v7017
        %v7019 = vpop.f32.mrf.mxu0
        %v7020 = vpop.f32.mrf.mxu0
        %v7021 = vadd.f32 0.0, %v7020
        %v7022 = vpop.f32.mrf.mxu0
        %7023 = vmatprep.mubr.bf16.mxu0 0
        %7024 = vmatmul.mubr.bf16.gmra.mxu0 %v6816
        %v7025 = vpop.f32.mrf.mxu0
        %v7026 = vadd.f32 0.0, %v7025
        %v7027 = vpop.f32.mrf.mxu0
        %v7028 = vpop.f32.mrf.mxu0
        %v7029 = vadd.f32 0.0, %v7028
        %v7030 = vpop.f32.mrf.mxu0
        %7031 = vmatprep.mubr.bf16.mxu0 0
        %7032 = vmatmul.mubr.bf16.gmra.mxu0 %v6817
        %v7033 = vpop.f32.mrf.mxu0
        %v7034 = vadd.f32 0.0, %v7033
        %v7035 = vpop.f32.mrf.mxu0
        %v7036 = vpop.f32.mrf.mxu0
        %v7037 = vadd.f32 0.0, %v7036
        %v7038 = vpop.f32.mrf.mxu0
        %7039 = vmatprep.mubr.bf16.mxu0 0
        %7040 = vmatmul.mubr.bf16.gmra.mxu0 %v6818
        %v7041 = vpop.f32.mrf.mxu0
        %v7042 = vadd.f32 0.0, %v7041
        %v7043 = vpop.f32.mrf.mxu0
        %v7044 = vpop.f32.mrf.mxu0
        %v7045 = vadd.f32 0.0, %v7044
        %v7046 = vpop.f32.mrf.mxu0
        %7047 = vmatprep.mubr.bf16.mxu0 0
        %7048 = vmatmul.mubr.bf16.gmra.mxu0 %v6819
        %v7049 = vpop.f32.mrf.mxu0
        %v7050 = vadd.f32 0.0, %v7049
        %v7051 = vpop.f32.mrf.mxu0
        %v7052 = vpop.f32.mrf.mxu0
        %v7053 = vadd.f32 0.0, %v7052
        %v7054 = vpop.f32.mrf.mxu0
        %7055 = vmatprep.mubr.bf16.mxu0 0
        %7056 = vmatmul.mubr.bf16.gmra.mxu0 %v6820
        %v7057 = vpop.f32.mrf.mxu0
        %v7058 = vadd.f32 0.0, %v7057
        %v7059 = vpop.f32.mrf.mxu0
        %v7060 = vpop.f32.mrf.mxu0
        %v7061 = vadd.f32 0.0, %v7060
        %v7062 = vpop.f32.mrf.mxu0
        %7063 = vdwg.mxu0
        %v7064 = vadd.f32 %v6750, %v6922
        %v7065 = vadd.f32 %v6751, %v6925
        %v7066 = vadd.f32 %v6752, %v6930
        %v7067 = vadd.f32 %v6753, %v6933
        %v7068 = vadd.f32 %v6754, %v6938
        %v7069 = vadd.f32 %v6755, %v6941
        %v7070 = vadd.f32 %v6756, %v6946
        %v7071 = vadd.f32 %v6757, %v6949
        %v7072 = vadd.f32 %v6758, %v6954
        %v7073 = vadd.f32 %v6759, %v6957
        %v7074 = vadd.f32 %v6760, %v6962
        %v7075 = vadd.f32 %v6761, %v6965
        %v7076 = vadd.f32 %v6762, %v6970
        %v7077 = vadd.f32 %v6763, %v6973
        %v7078 = vadd.f32 %v6764, %v6978
        %v7079 = vadd.f32 %v6765, %v6981
        %v7080 = vadd.f32 %v6766, %v6986
        %v7081 = vadd.f32 %v6767, %v6989
        %v7082 = vadd.f32 %v6768, %v6994
        %v7083 = vadd.f32 %v6769, %v6997
        %v7084 = vadd.f32 %v6770, %v7002
        %v7085 = vadd.f32 %v6771, %v7005
        %v7086 = vadd.f32 %v6772, %v7010
        %v7087 = vadd.f32 %v6773, %v7013
        %v7088 = vadd.f32 %v6774, %v7018
        %v7089 = vadd.f32 %v6775, %v7021
        %v7090 = vadd.f32 %v6776, %v7026
        %v7091 = vadd.f32 %v6777, %v7029
        %v7092 = vadd.f32 %v6778, %v7034
        %v7093 = vadd.f32 %v6779, %v7037
        %v7094 = vadd.f32 %v6780, %v7042
        %v7095 = vadd.f32 %v6781, %v7045
        %v7096 = vadd.f32 %v6782, %v7050
        %v7097 = vadd.f32 %v6783, %v7053
        %v7098 = vadd.f32 %v6784, %v7058
        %v7099 = vadd.f32 %v6785, %v7061
        %v7100 = vld [vmem:[#allocation2 + $0xc] sm:$0xf]
        %v7101 = vld [vmem:[#allocation2 + $0x10] sm:$0xf]
        %v7102 = vld [vmem:[#allocation2 + $0x14] sm:$0xf]
        %v7103 = vld [vmem:[#allocation2 + $0x18] sm:$0xf]
        %v7104 = vld [vmem:[#allocation2 + $0x1c] sm:$0xf]
        %v7105 = vld [vmem:[#allocation2 + $0x20] sm:$0xf]
        %v7106 = vld [vmem:[#allocation2 + $0x24] sm:$0xf]
        %v7107 = vld [vmem:[#allocation2 + $0x28] sm:$0xf]
        %v7108 = vld [vmem:[#allocation2 + $0x2c] sm:$0xf]
        %v7109 = vld [vmem:[#allocation2 + $0x30] sm:$0xf]
        %v7110 = vld [vmem:[#allocation2 + $0x34] sm:$0xf]
        %v7111 = vld [vmem:[#allocation2 + $0x38] sm:$0xf]
        %v7112 = vld [vmem:[#allocation2 + $0x3c] sm:$0xf]
        %v7113 = vld [vmem:[#allocation2 + $0x40] sm:$0xf]
        %v7114 = vld [vmem:[#allocation2 + $0x44] sm:$0xf]
        %v7115 = vld [vmem:[#allocation2 + $0x48] sm:$0xf]
        %v7116 = vld [vmem:[#allocation2 + $0x4c] sm:$0xf]
        %v7117 = vld [vmem:[#allocation2 + $0x50] sm:$0xf]
        %v7118 = vld [vmem:[#allocation2 + $0x54] sm:$0xf]
        %v7119 = vld [vmem:[#allocation2 + $0x58] sm:$0xf]
        %v7120 = vld [vmem:[#allocation2 + $0x5c] sm:$0xf]
        %v7121 = vld [vmem:[#allocation2 + $0x60] sm:$0xf]
        %v7122 = vld [vmem:[#allocation2 + $0x64] sm:$0xf]
        %v7123 = vld [vmem:[#allocation2 + $0x68] sm:$0xf]
        %v7124 = vld [vmem:[#allocation2 + $0x6c] sm:$0xf]
        %v7125 = vld [vmem:[#allocation2 + $0x70] sm:$0xf]
        %v7126 = vld [vmem:[#allocation2 + $0x74] sm:$0xf]
        %v7127 = vld [vmem:[#allocation2 + $0x78] sm:$0xf]
        %v7128 = vld [vmem:[#allocation2 + $0x7c] sm:$0xf]
        %v7129 = vld [vmem:[#allocation2 + $0x80] sm:$0xf]
        %v7130 = vld [vmem:[#allocation2 + $0x84] sm:$0xf]
        %v7131 = vld [vmem:[#allocation2 + $0x88] sm:$0xf]
        %v7132 = vld [vmem:[#allocation2 + $0x8c] sm:$0xf]
        %v7133 = vld [vmem:[#allocation2 + $0x90] sm:$0xf]
        %v7134 = vld [vmem:[#allocation2 + $0x94] sm:$0xf]
        %v7135 = vld [vmem:[#allocation2 + $0x98] sm:$0xf]
        %v7136 = vld [vmem:[#allocation2 + $0x9c] sm:$0x1]
        %s7137 = scalar_lea.vmem [#allocation8], 320
        %v7138 = vld [vmem:[%s7137] sm:$0xf]
        %v7139 = vld [vmem:[%s7137 + $0x4] sm:$0xf]
        %v7140 = vld [vmem:[%s7137 + $0x8] sm:$0xf]
        %v7141 = vld [vmem:[%s7137 + $0xc] sm:$0xf]
        %v7142 = vld [vmem:[%s7137 + $0x10] sm:$0xf]
        %v7143 = vld [vmem:[%s7137 + $0x14] sm:$0xf]
        %v7144 = vld [vmem:[%s7137 + $0x18] sm:$0xf]
        %v7145 = vld [vmem:[%s7137 + $0x1c] sm:$0xf]
        %v7146 = vld [vmem:[%s7137 + $0x20] sm:$0xf]
        %v7147 = vld [vmem:[%s7137 + $0x24] sm:$0xf]
        %v7148 = vld [vmem:[%s7137 + $0x28] sm:$0xf]
        %v7149 = vld [vmem:[%s7137 + $0x2c] sm:$0xf]
        %v7150 = vld [vmem:[%s7137 + $0x30] sm:$0xf]
        %v7151 = vld [vmem:[%s7137 + $0x34] sm:$0xf]
        %v7152 = vld [vmem:[%s7137 + $0x38] sm:$0xf]
        %v7153 = vld [vmem:[%s7137 + $0x3c] sm:$0xf]
        %v7191 = vunpack.c.l.b16 %v7100
        %v7192 = vunpack.c.l.b16 %v7101
        %v7193 = vunpack.c.l.b16 %v7102
        %v7194 = vunpack.c.l.b16 %v7103
        %v7195 = vunpack.c.l.b16 %v7104
        %v7196 = vunpack.c.l.b16 %v7105
        %v7197 = vunpack.c.l.b16 %v7106
        %v7198 = vunpack.c.l.b16 %v7107
        %v7199 = vunpack.c.l.b16 %v7108
        %v7200 = vunpack.c.l.b16 %v7109
        %v7201 = vunpack.c.l.b16 %v7110
        %v7202 = vunpack.c.l.b16 %v7111
        %v7203 = vunpack.c.l.b16 %v7112
        %v7204 = vunpack.c.l.b16 %v7113
        %v7205 = vunpack.c.l.b16 %v7114
        %v7206 = vunpack.c.l.b16 %v7115
        %v7207 = vunpack.c.l.b16 %v7116
        %v7208 = vunpack.c.l.b16 %v7117
        %v7209 = vunpack.c.l.b16 %v7118
        %v7210 = vunpack.c.l.b16 %v7119
        %v7211 = vunpack.c.l.b16 %v7120
        %v7212 = vunpack.c.l.b16 %v7121
        %v7213 = vunpack.c.l.b16 %v7122
        %v7214 = vunpack.c.l.b16 %v7123
        %v7215 = vunpack.c.l.b16 %v7124
        %v7216 = vunpack.c.l.b16 %v7125
        %v7217 = vunpack.c.l.b16 %v7126
        %v7218 = vunpack.c.l.b16 %v7127
        %v7219 = vunpack.c.l.b16 %v7128
        %v7220 = vunpack.c.l.b16 %v7129
        %v7221 = vunpack.c.l.b16 %v7130
        %v7222 = vunpack.c.l.b16 %v7131
        %v7223 = vunpack.c.l.b16 %v7132
        %v7224 = vunpack.c.l.b16 %v7133
        %v7225 = vunpack.c.l.b16 %v7134
        %v7226 = vunpack.c.l.b16 %v7135
        %v7227 = vunpack.c.l.b16 %v7136
        %v7228 = vpack.c.b16 %v7192, %v7191
        %v7229 = vpack.c.b16 %v7194, %v7193
        %v7230 = vpack.c.b16 %v7196, %v7195
        %v7231 = vpack.c.b16 %v7198, %v7197
        %v7232 = vpack.c.b16 %v7200, %v7199
        %v7233 = vpack.c.b16 %v7202, %v7201
        %v7234 = vpack.c.b16 %v7204, %v7203
        %v7235 = vpack.c.b16 %v7206, %v7205
        %v7236 = vpack.c.b16 %v7208, %v7207
        %v7237 = vpack.c.b16 %v7210, %v7209
        %v7238 = vpack.c.b16 %v7212, %v7211
        %v7239 = vpack.c.b16 %v7214, %v7213
        %v7240 = vpack.c.b16 %v7216, %v7215
        %v7241 = vpack.c.b16 %v7218, %v7217
        %v7242 = vpack.c.b16 %v7220, %v7219
        %v7243 = vpack.c.b16 %v7222, %v7221
        %v7244 = vpack.c.b16 %v7224, %v7223
        %v7245 = vpack.c.b16 %v7226, %v7225
        %v7246 = vpack.c.b16 %v7227, %v7227
        %v7248 = vshrl.u32 %v7228, 16
        %v7250 = vshll.u32 %v7228, 16
        %v7252 = vrot.slane %v7250, 1
        %v7253 = vor.u32 %v7248, %v7252
        %v7255 = vshll.u32 %v7229, 16
        %v7257 = vrot.slane %v7255, 1
        %v7258 = vsel %vm2659, %v7253, %v7257
        %v7259 = vshrl.u32 %v7229, 16
        %v7261 = vor.u32 %v7259, %v7257
        %v7263 = vshll.u32 %v7230, 16
        %v7265 = vrot.slane %v7263, 1
        %v7266 = vsel %vm2659, %v7261, %v7265
        %v7267 = vshrl.u32 %v7230, 16
        %v7269 = vor.u32 %v7267, %v7265
        %v7271 = vshll.u32 %v7231, 16
        %v7273 = vrot.slane %v7271, 1
        %v7274 = vsel %vm2659, %v7269, %v7273
        %v7275 = vshrl.u32 %v7231, 16
        %v7277 = vor.u32 %v7275, %v7273
        %v7279 = vshll.u32 %v7232, 16
        %v7281 = vrot.slane %v7279, 1
        %v7282 = vsel %vm2659, %v7277, %v7281
        %v7283 = vshrl.u32 %v7232, 16
        %v7285 = vor.u32 %v7283, %v7281
        %v7287 = vshll.u32 %v7233, 16
        %v7289 = vrot.slane %v7287, 1
        %v7290 = vsel %vm2659, %v7285, %v7289
        %v7291 = vshrl.u32 %v7233, 16
        %v7293 = vor.u32 %v7291, %v7289
        %v7295 = vshll.u32 %v7234, 16
        %v7297 = vrot.slane %v7295, 1
        %v7298 = vsel %vm2659, %v7293, %v7297
        %v7299 = vshrl.u32 %v7234, 16
        %v7301 = vor.u32 %v7299, %v7297
        %v7303 = vshll.u32 %v7235, 16
        %v7305 = vrot.slane %v7303, 1
        %v7306 = vsel %vm2659, %v7301, %v7305
        %v7307 = vshrl.u32 %v7235, 16
        %v7309 = vor.u32 %v7307, %v7305
        %v7311 = vshll.u32 %v7236, 16
        %v7313 = vrot.slane %v7311, 1
        %v7314 = vsel %vm2659, %v7309, %v7313
        %v7315 = vshrl.u32 %v7236, 16
        %v7317 = vor.u32 %v7315, %v7313
        %v7319 = vshll.u32 %v7237, 16
        %v7321 = vrot.slane %v7319, 1
        %v7322 = vsel %vm2659, %v7317, %v7321
        %v7323 = vshrl.u32 %v7237, 16
        %v7325 = vor.u32 %v7323, %v7321
        %v7327 = vshll.u32 %v7238, 16
        %v7329 = vrot.slane %v7327, 1
        %v7330 = vsel %vm2659, %v7325, %v7329
        %v7331 = vshrl.u32 %v7238, 16
        %v7333 = vor.u32 %v7331, %v7329
        %v7335 = vshll.u32 %v7239, 16
        %v7337 = vrot.slane %v7335, 1
        %v7338 = vsel %vm2659, %v7333, %v7337
        %v7339 = vshrl.u32 %v7239, 16
        %v7341 = vor.u32 %v7339, %v7337
        %v7343 = vshll.u32 %v7240, 16
        %v7345 = vrot.slane %v7343, 1
        %v7346 = vsel %vm2659, %v7341, %v7345
        %v7347 = vshrl.u32 %v7240, 16
        %v7349 = vor.u32 %v7347, %v7345
        %v7351 = vshll.u32 %v7241, 16
        %v7353 = vrot.slane %v7351, 1
        %v7354 = vsel %vm2659, %v7349, %v7353
        %v7355 = vshrl.u32 %v7241, 16
        %v7357 = vor.u32 %v7355, %v7353
        %v7359 = vshll.u32 %v7242, 16
        %v7361 = vrot.slane %v7359, 1
        %v7362 = vsel %vm2659, %v7357, %v7361
        %v7363 = vshrl.u32 %v7242, 16
        %v7365 = vor.u32 %v7363, %v7361
        %v7367 = vshll.u32 %v7243, 16
        %v7369 = vrot.slane %v7367, 1
        %v7370 = vsel %vm2659, %v7365, %v7369
        %v7371 = vshrl.u32 %v7243, 16
        %v7373 = vor.u32 %v7371, %v7369
        %v7375 = vshll.u32 %v7244, 16
        %v7377 = vrot.slane %v7375, 1
        %v7378 = vsel %vm2659, %v7373, %v7377
        %v7379 = vshrl.u32 %v7244, 16
        %v7381 = vor.u32 %v7379, %v7377
        %v7383 = vshll.u32 %v7245, 16
        %v7385 = vrot.slane %v7383, 1
        %v7386 = vsel %vm2659, %v7381, %v7385
        %v7387 = vshrl.u32 %v7245, 16
        %v7389 = vor.u32 %v7387, %v7385
        %v7391 = vshll.u32 %v7246, 16
        %v7393 = vrot.slane %v7391, 1
        %v7394 = vsel %vm2659, %v7389, %v7393
        %v7429 = vunpack.c.l.b16 %v7138
        %v7430 = vunpack.c.l.b16 %v7139
        %v7431 = vunpack.c.l.b16 %v7140
        %v7432 = vunpack.c.l.b16 %v7141
        %v7433 = vunpack.c.l.b16 %v7142
        %v7434 = vunpack.c.l.b16 %v7143
        %v7435 = vunpack.c.l.b16 %v7144
        %v7436 = vunpack.c.l.b16 %v7145
        %v7437 = vunpack.c.l.b16 %v7146
        %v7438 = vunpack.c.l.b16 %v7147
        %v7439 = vunpack.c.l.b16 %v7148
        %v7440 = vunpack.c.l.b16 %v7149
        %v7441 = vunpack.c.l.b16 %v7150
        %v7442 = vunpack.c.l.b16 %v7151
        %v7443 = vunpack.c.l.b16 %v7152
        %v7444 = vunpack.c.l.b16 %v7153
        %v7445 = vpack.c.b16 %v7430, %v7429
        %v7446 = vpack.c.b16 %v7432, %v7431
        %v7447 = vpack.c.b16 %v7434, %v7433
        %v7448 = vpack.c.b16 %v7436, %v7435
        %v7449 = vpack.c.b16 %v7438, %v7437
        %v7450 = vpack.c.b16 %v7440, %v7439
        %v7451 = vpack.c.b16 %v7442, %v7441
        %v7452 = vpack.c.b16 %v7444, %v7443
        %7461 = vmatprep.subr.bf16.mxu0 0
        %7462 = vmatpush1.bf16.msra.mxu0 %v7452
        %7463 = vmatprep.subr.bf16.mxu0 0
        %7464 = vmatpush1.bf16.msra.mxu0 %v7451
        %7465 = vmatprep.subr.bf16.mxu0 0
        %7466 = vmatpush1.bf16.msra.mxu0 %v7450
        %7467 = vmatprep.subr.bf16.mxu0 0
        %7468 = vmatpush1.bf16.msra.mxu0 %v7449
        %7469 = vmatprep.subr.bf16.mxu0 0
        %7470 = vmatpush1.bf16.msra.mxu0 %v7448
        %7471 = vmatprep.subr.bf16.mxu0 0
        %7472 = vmatpush1.bf16.msra.mxu0 %v7447
        %7473 = vmatprep.subr.bf16.mxu0 0
        %7474 = vmatpush1.bf16.msra.mxu0 %v7446
        %7475 = vmatprep.subr.bf16.mxu0 0
        %7476 = vmatpush1.bf16.msra.mxu0 %v7445
        %7477 = vmatprep.subr.bf16.mxu0 0
        %7478 = vmatpush2.bf16.msra.mxu0 0
        %7479 = vmatprep.subr.bf16.mxu0 0
        %7480 = vmatpush2.bf16.msra.mxu0 0
        %7481 = vmatprep.subr.bf16.mxu0 0
        %7482 = vmatpush2.bf16.msra.mxu0 0
        %7483 = vmatprep.subr.bf16.mxu0 0
        %7484 = vmatpush2.bf16.msra.mxu0 0
        %7485 = vmatprep.subr.bf16.mxu0 0
        %7486 = vmatpush2.bf16.msra.mxu0 0
        %7487 = vmatprep.subr.bf16.mxu0 0
        %7488 = vmatpush2.bf16.msra.mxu0 0
        %7489 = vmatprep.subr.bf16.mxu0 0
        %7490 = vmatpush2.bf16.msra.mxu0 0
        %7491 = vmatprep.subr.bf16.mxu0 0
        %7492 = vmatpush2.bf16.msra.mxu0 0
        %7493 = vmatprep.mubr.bf16.mxu0 0
        %7494 = vmatmul.mubr.bf16.gmra.mxu0 %v7258
        %v7495 = vpop.f32.mrf.mxu0
        %v7496 = vadd.f32 0.0, %v7495
        %v7497 = vpop.f32.mrf.mxu0
        %v7498 = vpop.f32.mrf.mxu0
        %v7499 = vadd.f32 0.0, %v7498
        %v7500 = vpop.f32.mrf.mxu0
        %7501 = vmatprep.mubr.bf16.mxu0 0
        %7502 = vmatmul.mubr.bf16.gmra.mxu0 %v7266
        %v7503 = vpop.f32.mrf.mxu0
        %v7504 = vadd.f32 0.0, %v7503
        %v7505 = vpop.f32.mrf.mxu0
        %v7506 = vpop.f32.mrf.mxu0
        %v7507 = vadd.f32 0.0, %v7506
        %v7508 = vpop.f32.mrf.mxu0
        %7509 = vmatprep.mubr.bf16.mxu0 0
        %7510 = vmatmul.mubr.bf16.gmra.mxu0 %v7274
        %v7511 = vpop.f32.mrf.mxu0
        %v7512 = vadd.f32 0.0, %v7511
        %v7513 = vpop.f32.mrf.mxu0
        %v7514 = vpop.f32.mrf.mxu0
        %v7515 = vadd.f32 0.0, %v7514
        %v7516 = vpop.f32.mrf.mxu0
        %7517 = vmatprep.mubr.bf16.mxu0 0
        %7518 = vmatmul.mubr.bf16.gmra.mxu0 %v7282
        %v7519 = vpop.f32.mrf.mxu0
        %v7520 = vadd.f32 0.0, %v7519
        %v7521 = vpop.f32.mrf.mxu0
        %v7522 = vpop.f32.mrf.mxu0
        %v7523 = vadd.f32 0.0, %v7522
        %v7524 = vpop.f32.mrf.mxu0
        %7525 = vmatprep.mubr.bf16.mxu0 0
        %7526 = vmatmul.mubr.bf16.gmra.mxu0 %v7290
        %v7527 = vpop.f32.mrf.mxu0
        %v7528 = vadd.f32 0.0, %v7527
        %v7529 = vpop.f32.mrf.mxu0
        %v7530 = vpop.f32.mrf.mxu0
        %v7531 = vadd.f32 0.0, %v7530
        %v7532 = vpop.f32.mrf.mxu0
        %7533 = vmatprep.mubr.bf16.mxu0 0
        %7534 = vmatmul.mubr.bf16.gmra.mxu0 %v7298
        %v7535 = vpop.f32.mrf.mxu0
        %v7536 = vadd.f32 0.0, %v7535
        %v7537 = vpop.f32.mrf.mxu0
        %v7538 = vpop.f32.mrf.mxu0
        %v7539 = vadd.f32 0.0, %v7538
        %v7540 = vpop.f32.mrf.mxu0
        %7541 = vmatprep.mubr.bf16.mxu0 0
        %7542 = vmatmul.mubr.bf16.gmra.mxu0 %v7306
        %v7543 = vpop.f32.mrf.mxu0
        %v7544 = vadd.f32 0.0, %v7543
        %v7545 = vpop.f32.mrf.mxu0
        %v7546 = vpop.f32.mrf.mxu0
        %v7547 = vadd.f32 0.0, %v7546
        %v7548 = vpop.f32.mrf.mxu0
        %7549 = vmatprep.mubr.bf16.mxu0 0
        %7550 = vmatmul.mubr.bf16.gmra.mxu0 %v7314
        %v7551 = vpop.f32.mrf.mxu0
        %v7552 = vadd.f32 0.0, %v7551
        %v7553 = vpop.f32.mrf.mxu0
        %v7554 = vpop.f32.mrf.mxu0
        %v7555 = vadd.f32 0.0, %v7554
        %v7556 = vpop.f32.mrf.mxu0
        %7557 = vmatprep.mubr.bf16.mxu0 0
        %7558 = vmatmul.mubr.bf16.gmra.mxu0 %v7322
        %v7559 = vpop.f32.mrf.mxu0
        %v7560 = vadd.f32 0.0, %v7559
        %v7561 = vpop.f32.mrf.mxu0
        %v7562 = vpop.f32.mrf.mxu0
        %v7563 = vadd.f32 0.0, %v7562
        %v7564 = vpop.f32.mrf.mxu0
        %7565 = vmatprep.mubr.bf16.mxu0 0
        %7566 = vmatmul.mubr.bf16.gmra.mxu0 %v7330
        %v7567 = vpop.f32.mrf.mxu0
        %v7568 = vadd.f32 0.0, %v7567
        %v7569 = vpop.f32.mrf.mxu0
        %v7570 = vpop.f32.mrf.mxu0
        %v7571 = vadd.f32 0.0, %v7570
        %v7572 = vpop.f32.mrf.mxu0
        %7573 = vmatprep.mubr.bf16.mxu0 0
        %7574 = vmatmul.mubr.bf16.gmra.mxu0 %v7338
        %v7575 = vpop.f32.mrf.mxu0
        %v7576 = vadd.f32 0.0, %v7575
        %v7577 = vpop.f32.mrf.mxu0
        %v7578 = vpop.f32.mrf.mxu0
        %v7579 = vadd.f32 0.0, %v7578
        %v7580 = vpop.f32.mrf.mxu0
        %7581 = vmatprep.mubr.bf16.mxu0 0
        %7582 = vmatmul.mubr.bf16.gmra.mxu0 %v7346
        %v7583 = vpop.f32.mrf.mxu0
        %v7584 = vadd.f32 0.0, %v7583
        %v7585 = vpop.f32.mrf.mxu0
        %v7586 = vpop.f32.mrf.mxu0
        %v7587 = vadd.f32 0.0, %v7586
        %v7588 = vpop.f32.mrf.mxu0
        %7589 = vmatprep.mubr.bf16.mxu0 0
        %7590 = vmatmul.mubr.bf16.gmra.mxu0 %v7354
        %v7591 = vpop.f32.mrf.mxu0
        %v7592 = vadd.f32 0.0, %v7591
        %v7593 = vpop.f32.mrf.mxu0
        %v7594 = vpop.f32.mrf.mxu0
        %v7595 = vadd.f32 0.0, %v7594
        %v7596 = vpop.f32.mrf.mxu0
        %7597 = vmatprep.mubr.bf16.mxu0 0
        %7598 = vmatmul.mubr.bf16.gmra.mxu0 %v7362
        %v7599 = vpop.f32.mrf.mxu0
        %v7600 = vadd.f32 0.0, %v7599
        %v7601 = vpop.f32.mrf.mxu0
        %v7602 = vpop.f32.mrf.mxu0
        %v7603 = vadd.f32 0.0, %v7602
        %v7604 = vpop.f32.mrf.mxu0
        %7605 = vmatprep.mubr.bf16.mxu0 0
        %7606 = vmatmul.mubr.bf16.gmra.mxu0 %v7370
        %v7607 = vpop.f32.mrf.mxu0
        %v7608 = vadd.f32 0.0, %v7607
        %v7609 = vpop.f32.mrf.mxu0
        %v7610 = vpop.f32.mrf.mxu0
        %v7611 = vadd.f32 0.0, %v7610
        %v7612 = vpop.f32.mrf.mxu0
        %7613 = vmatprep.mubr.bf16.mxu0 0
        %7614 = vmatmul.mubr.bf16.gmra.mxu0 %v7378
        %v7615 = vpop.f32.mrf.mxu0
        %v7616 = vadd.f32 0.0, %v7615
        %v7617 = vpop.f32.mrf.mxu0
        %v7618 = vpop.f32.mrf.mxu0
        %v7619 = vadd.f32 0.0, %v7618
        %v7620 = vpop.f32.mrf.mxu0
        %7621 = vmatprep.mubr.bf16.mxu0 0
        %7622 = vmatmul.mubr.bf16.gmra.mxu0 %v7386
        %v7623 = vpop.f32.mrf.mxu0
        %v7624 = vadd.f32 0.0, %v7623
        %v7625 = vpop.f32.mrf.mxu0
        %v7626 = vpop.f32.mrf.mxu0
        %v7627 = vadd.f32 0.0, %v7626
        %v7628 = vpop.f32.mrf.mxu0
        %7629 = vmatprep.mubr.bf16.mxu0 0
        %7630 = vmatmul.mubr.bf16.gmra.mxu0 %v7394
        %v7631 = vpop.f32.mrf.mxu0
        %v7632 = vadd.f32 0.0, %v7631
        %v7633 = vpop.f32.mrf.mxu0
        %v7634 = vpop.f32.mrf.mxu0
        %v7635 = vadd.f32 0.0, %v7634
        %v7636 = vpop.f32.mrf.mxu0
        %7637 = vdwg.mxu0
        %v7638 = vadd.f32 %v7064, %v7496
        %v7639 = vadd.f32 %v7065, %v7499
        %v7640 = vadd.f32 %v7066, %v7504
        %v7641 = vadd.f32 %v7067, %v7507
        %v7642 = vadd.f32 %v7068, %v7512
        %v7643 = vadd.f32 %v7069, %v7515
        %v7644 = vadd.f32 %v7070, %v7520
        %v7645 = vadd.f32 %v7071, %v7523
        %v7646 = vadd.f32 %v7072, %v7528
        %v7647 = vadd.f32 %v7073, %v7531
        %v7648 = vadd.f32 %v7074, %v7536
        %v7649 = vadd.f32 %v7075, %v7539
        %v7650 = vadd.f32 %v7076, %v7544
        %v7651 = vadd.f32 %v7077, %v7547
        %v7652 = vadd.f32 %v7078, %v7552
        %v7653 = vadd.f32 %v7079, %v7555
        %v7654 = vadd.f32 %v7080, %v7560
        %v7655 = vadd.f32 %v7081, %v7563
        %v7656 = vadd.f32 %v7082, %v7568
        %v7657 = vadd.f32 %v7083, %v7571
        %v7658 = vadd.f32 %v7084, %v7576
        %v7659 = vadd.f32 %v7085, %v7579
        %v7660 = vadd.f32 %v7086, %v7584
        %v7661 = vadd.f32 %v7087, %v7587
        %v7662 = vadd.f32 %v7088, %v7592
        %v7663 = vadd.f32 %v7089, %v7595
        %v7664 = vadd.f32 %v7090, %v7600
        %v7665 = vadd.f32 %v7091, %v7603
        %v7666 = vadd.f32 %v7092, %v7608
        %v7667 = vadd.f32 %v7093, %v7611
        %v7668 = vadd.f32 %v7094, %v7616
        %v7669 = vadd.f32 %v7095, %v7619
        %v7670 = vadd.f32 %v7096, %v7624
        %v7671 = vadd.f32 %v7097, %v7627
        %v7672 = vadd.f32 %v7098, %v7632
        %v7673 = vadd.f32 %v7099, %v7635
        %v7674 = vld [vmem:[#allocation2 + $0x14] sm:$0xf]
        %v7675 = vld [vmem:[#allocation2 + $0x18] sm:$0xf]
        %v7676 = vld [vmem:[#allocation2 + $0x1c] sm:$0xf]
        %v7677 = vld [vmem:[#allocation2 + $0x20] sm:$0xf]
        %v7678 = vld [vmem:[#allocation2 + $0x24] sm:$0xf]
        %v7679 = vld [vmem:[#allocation2 + $0x28] sm:$0xf]
        %v7680 = vld [vmem:[#allocation2 + $0x2c] sm:$0xf]
        %v7681 = vld [vmem:[#allocation2 + $0x30] sm:$0xf]
        %v7682 = vld [vmem:[#allocation2 + $0x34] sm:$0xf]
        %v7683 = vld [vmem:[#allocation2 + $0x38] sm:$0xf]
        %v7684 = vld [vmem:[#allocation2 + $0x3c] sm:$0xf]
        %v7685 = vld [vmem:[#allocation2 + $0x40] sm:$0xf]
        %v7686 = vld [vmem:[#allocation2 + $0x44] sm:$0xf]
        %v7687 = vld [vmem:[#allocation2 + $0x48] sm:$0xf]
        %v7688 = vld [vmem:[#allocation2 + $0x4c] sm:$0xf]
        %v7689 = vld [vmem:[#allocation2 + $0x50] sm:$0xf]
        %v7690 = vld [vmem:[#allocation2 + $0x54] sm:$0xf]
        %v7691 = vld [vmem:[#allocation2 + $0x58] sm:$0xf]
        %v7692 = vld [vmem:[#allocation2 + $0x5c] sm:$0xf]
        %v7693 = vld [vmem:[#allocation2 + $0x60] sm:$0xf]
        %v7694 = vld [vmem:[#allocation2 + $0x64] sm:$0xf]
        %v7695 = vld [vmem:[#allocation2 + $0x68] sm:$0xf]
        %v7696 = vld [vmem:[#allocation2 + $0x6c] sm:$0xf]
        %v7697 = vld [vmem:[#allocation2 + $0x70] sm:$0xf]
        %v7698 = vld [vmem:[#allocation2 + $0x74] sm:$0xf]
        %v7699 = vld [vmem:[#allocation2 + $0x78] sm:$0xf]
        %v7700 = vld [vmem:[#allocation2 + $0x7c] sm:$0xf]
        %v7701 = vld [vmem:[#allocation2 + $0x80] sm:$0xf]
        %v7702 = vld [vmem:[#allocation2 + $0x84] sm:$0xf]
        %v7703 = vld [vmem:[#allocation2 + $0x88] sm:$0xf]
        %v7704 = vld [vmem:[#allocation2 + $0x8c] sm:$0xf]
        %v7705 = vld [vmem:[#allocation2 + $0x90] sm:$0xf]
        %v7706 = vld [vmem:[#allocation2 + $0x94] sm:$0xf]
        %v7707 = vld [vmem:[#allocation2 + $0x98] sm:$0xf]
        %v7708 = vld [vmem:[#allocation2 + $0x9c] sm:$0xf]
        %v7709 = vld [vmem:[#allocation2 + $0xa0] sm:$0xf]
        %v7710 = vld [vmem:[#allocation2 + $0xa4] sm:$0x1]
        %s7711 = scalar_lea.vmem [#allocation8], 384
        %v7712 = vld [vmem:[%s7711] sm:$0xf]
        %v7713 = vld [vmem:[%s7711 + $0x4] sm:$0xf]
        %v7714 = vld [vmem:[%s7711 + $0x8] sm:$0xf]
        %v7715 = vld [vmem:[%s7711 + $0xc] sm:$0xf]
        %v7716 = vld [vmem:[%s7711 + $0x10] sm:$0xf]
        %v7717 = vld [vmem:[%s7711 + $0x14] sm:$0xf]
        %v7718 = vld [vmem:[%s7711 + $0x18] sm:$0xf]
        %v7719 = vld [vmem:[%s7711 + $0x1c] sm:$0xf]
        %v7720 = vld [vmem:[%s7711 + $0x20] sm:$0xf]
        %v7721 = vld [vmem:[%s7711 + $0x24] sm:$0xf]
        %v7722 = vld [vmem:[%s7711 + $0x28] sm:$0xf]
        %v7723 = vld [vmem:[%s7711 + $0x2c] sm:$0xf]
        %v7724 = vld [vmem:[%s7711 + $0x30] sm:$0xf]
        %v7725 = vld [vmem:[%s7711 + $0x34] sm:$0xf]
        %v7726 = vld [vmem:[%s7711 + $0x38] sm:$0xf]
        %v7727 = vld [vmem:[%s7711 + $0x3c] sm:$0xf]
        %v7765 = vunpack.c.l.b16 %v7674
        %v7766 = vunpack.c.l.b16 %v7675
        %v7767 = vunpack.c.l.b16 %v7676
        %v7768 = vunpack.c.l.b16 %v7677
        %v7769 = vunpack.c.l.b16 %v7678
        %v7770 = vunpack.c.l.b16 %v7679
        %v7771 = vunpack.c.l.b16 %v7680
        %v7772 = vunpack.c.l.b16 %v7681
        %v7773 = vunpack.c.l.b16 %v7682
        %v7774 = vunpack.c.l.b16 %v7683
        %v7775 = vunpack.c.l.b16 %v7684
        %v7776 = vunpack.c.l.b16 %v7685
        %v7777 = vunpack.c.l.b16 %v7686
        %v7778 = vunpack.c.l.b16 %v7687
        %v7779 = vunpack.c.l.b16 %v7688
        %v7780 = vunpack.c.l.b16 %v7689
        %v7781 = vunpack.c.l.b16 %v7690
        %v7782 = vunpack.c.l.b16 %v7691
        %v7783 = vunpack.c.l.b16 %v7692
        %v7784 = vunpack.c.l.b16 %v7693
        %v7785 = vunpack.c.l.b16 %v7694
        %v7786 = vunpack.c.l.b16 %v7695
        %v7787 = vunpack.c.l.b16 %v7696
        %v7788 = vunpack.c.l.b16 %v7697
        %v7789 = vunpack.c.l.b16 %v7698
        %v7790 = vunpack.c.l.b16 %v7699
        %v7791 = vunpack.c.l.b16 %v7700
        %v7792 = vunpack.c.l.b16 %v7701
        %v7793 = vunpack.c.l.b16 %v7702
        %v7794 = vunpack.c.l.b16 %v7703
        %v7795 = vunpack.c.l.b16 %v7704
        %v7796 = vunpack.c.l.b16 %v7705
        %v7797 = vunpack.c.l.b16 %v7706
        %v7798 = vunpack.c.l.b16 %v7707
        %v7799 = vunpack.c.l.b16 %v7708
        %v7800 = vunpack.c.l.b16 %v7709
        %v7801 = vunpack.c.l.b16 %v7710
        %v7802 = vpack.c.b16 %v7766, %v7765
        %v7803 = vpack.c.b16 %v7768, %v7767
        %v7804 = vpack.c.b16 %v7770, %v7769
        %v7805 = vpack.c.b16 %v7772, %v7771
        %v7806 = vpack.c.b16 %v7774, %v7773
        %v7807 = vpack.c.b16 %v7776, %v7775
        %v7808 = vpack.c.b16 %v7778, %v7777
        %v7809 = vpack.c.b16 %v7780, %v7779
        %v7810 = vpack.c.b16 %v7782, %v7781
        %v7811 = vpack.c.b16 %v7784, %v7783
        %v7812 = vpack.c.b16 %v7786, %v7785
        %v7813 = vpack.c.b16 %v7788, %v7787
        %v7814 = vpack.c.b16 %v7790, %v7789
        %v7815 = vpack.c.b16 %v7792, %v7791
        %v7816 = vpack.c.b16 %v7794, %v7793
        %v7817 = vpack.c.b16 %v7796, %v7795
        %v7818 = vpack.c.b16 %v7798, %v7797
        %v7819 = vpack.c.b16 %v7800, %v7799
        %v7820 = vpack.c.b16 %v7801, %v7801
        %v7822 = vshrl.u32 %v7802, 16
        %v7824 = vshll.u32 %v7802, 16
        %v7826 = vrot.slane %v7824, 1
        %v7827 = vor.u32 %v7822, %v7826
        %v7829 = vshll.u32 %v7803, 16
        %v7831 = vrot.slane %v7829, 1
        %v7832 = vsel %vm2659, %v7827, %v7831
        %v7833 = vshrl.u32 %v7803, 16
        %v7835 = vor.u32 %v7833, %v7831
        %v7837 = vshll.u32 %v7804, 16
        %v7839 = vrot.slane %v7837, 1
        %v7840 = vsel %vm2659, %v7835, %v7839
        %v7841 = vshrl.u32 %v7804, 16
        %v7843 = vor.u32 %v7841, %v7839
        %v7845 = vshll.u32 %v7805, 16
        %v7847 = vrot.slane %v7845, 1
        %v7848 = vsel %vm2659, %v7843, %v7847
        %v7849 = vshrl.u32 %v7805, 16
        %v7851 = vor.u32 %v7849, %v7847
        %v7853 = vshll.u32 %v7806, 16
        %v7855 = vrot.slane %v7853, 1
        %v7856 = vsel %vm2659, %v7851, %v7855
        %v7857 = vshrl.u32 %v7806, 16
        %v7859 = vor.u32 %v7857, %v7855
        %v7861 = vshll.u32 %v7807, 16
        %v7863 = vrot.slane %v7861, 1
        %v7864 = vsel %vm2659, %v7859, %v7863
        %v7865 = vshrl.u32 %v7807, 16
        %v7867 = vor.u32 %v7865, %v7863
        %v7869 = vshll.u32 %v7808, 16
        %v7871 = vrot.slane %v7869, 1
        %v7872 = vsel %vm2659, %v7867, %v7871
        %v7873 = vshrl.u32 %v7808, 16
        %v7875 = vor.u32 %v7873, %v7871
        %v7877 = vshll.u32 %v7809, 16
        %v7879 = vrot.slane %v7877, 1
        %v7880 = vsel %vm2659, %v7875, %v7879
        %v7881 = vshrl.u32 %v7809, 16
        %v7883 = vor.u32 %v7881, %v7879
        %v7885 = vshll.u32 %v7810, 16
        %v7887 = vrot.slane %v7885, 1
        %v7888 = vsel %vm2659, %v7883, %v7887
        %v7889 = vshrl.u32 %v7810, 16
        %v7891 = vor.u32 %v7889, %v7887
        %v7893 = vshll.u32 %v7811, 16
        %v7895 = vrot.slane %v7893, 1
        %v7896 = vsel %vm2659, %v7891, %v7895
        %v7897 = vshrl.u32 %v7811, 16
        %v7899 = vor.u32 %v7897, %v7895
        %v7901 = vshll.u32 %v7812, 16
        %v7903 = vrot.slane %v7901, 1
        %v7904 = vsel %vm2659, %v7899, %v7903
        %v7905 = vshrl.u32 %v7812, 16
        %v7907 = vor.u32 %v7905, %v7903
        %v7909 = vshll.u32 %v7813, 16
        %v7911 = vrot.slane %v7909, 1
        %v7912 = vsel %vm2659, %v7907, %v7911
        %v7913 = vshrl.u32 %v7813, 16
        %v7915 = vor.u32 %v7913, %v7911
        %v7917 = vshll.u32 %v7814, 16
        %v7919 = vrot.slane %v7917, 1
        %v7920 = vsel %vm2659, %v7915, %v7919
        %v7921 = vshrl.u32 %v7814, 16
        %v7923 = vor.u32 %v7921, %v7919
        %v7925 = vshll.u32 %v7815, 16
        %v7927 = vrot.slane %v7925, 1
        %v7928 = vsel %vm2659, %v7923, %v7927
        %v7929 = vshrl.u32 %v7815, 16
        %v7931 = vor.u32 %v7929, %v7927
        %v7933 = vshll.u32 %v7816, 16
        %v7935 = vrot.slane %v7933, 1
        %v7936 = vsel %vm2659, %v7931, %v7935
        %v7937 = vshrl.u32 %v7816, 16
        %v7939 = vor.u32 %v7937, %v7935
        %v7941 = vshll.u32 %v7817, 16
        %v7943 = vrot.slane %v7941, 1
        %v7944 = vsel %vm2659, %v7939, %v7943
        %v7945 = vshrl.u32 %v7817, 16
        %v7947 = vor.u32 %v7945, %v7943
        %v7949 = vshll.u32 %v7818, 16
        %v7951 = vrot.slane %v7949, 1
        %v7952 = vsel %vm2659, %v7947, %v7951
        %v7953 = vshrl.u32 %v7818, 16
        %v7955 = vor.u32 %v7953, %v7951
        %v7957 = vshll.u32 %v7819, 16
        %v7959 = vrot.slane %v7957, 1
        %v7960 = vsel %vm2659, %v7955, %v7959
        %v7961 = vshrl.u32 %v7819, 16
        %v7963 = vor.u32 %v7961, %v7959
        %v7965 = vshll.u32 %v7820, 16
        %v7967 = vrot.slane %v7965, 1
        %v7968 = vsel %vm2659, %v7963, %v7967
        %v8003 = vunpack.c.l.b16 %v7712
        %v8004 = vunpack.c.l.b16 %v7713
        %v8005 = vunpack.c.l.b16 %v7714
        %v8006 = vunpack.c.l.b16 %v7715
        %v8007 = vunpack.c.l.b16 %v7716
        %v8008 = vunpack.c.l.b16 %v7717
        %v8009 = vunpack.c.l.b16 %v7718
        %v8010 = vunpack.c.l.b16 %v7719
        %v8011 = vunpack.c.l.b16 %v7720
        %v8012 = vunpack.c.l.b16 %v7721
        %v8013 = vunpack.c.l.b16 %v7722
        %v8014 = vunpack.c.l.b16 %v7723
        %v8015 = vunpack.c.l.b16 %v7724
        %v8016 = vunpack.c.l.b16 %v7725
        %v8017 = vunpack.c.l.b16 %v7726
        %v8018 = vunpack.c.l.b16 %v7727
        %v8019 = vpack.c.b16 %v8004, %v8003
        %v8020 = vpack.c.b16 %v8006, %v8005
        %v8021 = vpack.c.b16 %v8008, %v8007
        %v8022 = vpack.c.b16 %v8010, %v8009
        %v8023 = vpack.c.b16 %v8012, %v8011
        %v8024 = vpack.c.b16 %v8014, %v8013
        %v8025 = vpack.c.b16 %v8016, %v8015
        %v8026 = vpack.c.b16 %v8018, %v8017
        %8035 = vmatprep.subr.bf16.mxu0 0
        %8036 = vmatpush1.bf16.msra.mxu0 %v8026
        %8037 = vmatprep.subr.bf16.mxu0 0
        %8038 = vmatpush1.bf16.msra.mxu0 %v8025
        %8039 = vmatprep.subr.bf16.mxu0 0
        %8040 = vmatpush1.bf16.msra.mxu0 %v8024
        %8041 = vmatprep.subr.bf16.mxu0 0
        %8042 = vmatpush1.bf16.msra.mxu0 %v8023
        %8043 = vmatprep.subr.bf16.mxu0 0
        %8044 = vmatpush1.bf16.msra.mxu0 %v8022
        %8045 = vmatprep.subr.bf16.mxu0 0
        %8046 = vmatpush1.bf16.msra.mxu0 %v8021
        %8047 = vmatprep.subr.bf16.mxu0 0
        %8048 = vmatpush1.bf16.msra.mxu0 %v8020
        %8049 = vmatprep.subr.bf16.mxu0 0
        %8050 = vmatpush1.bf16.msra.mxu0 %v8019
        %8051 = vmatprep.subr.bf16.mxu0 0
        %8052 = vmatpush2.bf16.msra.mxu0 0
        %8053 = vmatprep.subr.bf16.mxu0 0
        %8054 = vmatpush2.bf16.msra.mxu0 0
        %8055 = vmatprep.subr.bf16.mxu0 0
        %8056 = vmatpush2.bf16.msra.mxu0 0
        %8057 = vmatprep.subr.bf16.mxu0 0
        %8058 = vmatpush2.bf16.msra.mxu0 0
        %8059 = vmatprep.subr.bf16.mxu0 0
        %8060 = vmatpush2.bf16.msra.mxu0 0
        %8061 = vmatprep.subr.bf16.mxu0 0
        %8062 = vmatpush2.bf16.msra.mxu0 0
        %8063 = vmatprep.subr.bf16.mxu0 0
        %8064 = vmatpush2.bf16.msra.mxu0 0
        %8065 = vmatprep.subr.bf16.mxu0 0
        %8066 = vmatpush2.bf16.msra.mxu0 0
        %8067 = vmatprep.mubr.bf16.mxu0 0
        %8068 = vmatmul.mubr.bf16.gmra.mxu0 %v7832
        %v8069 = vpop.f32.mrf.mxu0
        %v8070 = vadd.f32 0.0, %v8069
        %v8071 = vpop.f32.mrf.mxu0
        %v8072 = vpop.f32.mrf.mxu0
        %v8073 = vadd.f32 0.0, %v8072
        %v8074 = vpop.f32.mrf.mxu0
        %8075 = vmatprep.mubr.bf16.mxu0 0
        %8076 = vmatmul.mubr.bf16.gmra.mxu0 %v7840
        %v8077 = vpop.f32.mrf.mxu0
        %v8078 = vadd.f32 0.0, %v8077
        %v8079 = vpop.f32.mrf.mxu0
        %v8080 = vpop.f32.mrf.mxu0
        %v8081 = vadd.f32 0.0, %v8080
        %v8082 = vpop.f32.mrf.mxu0
        %8083 = vmatprep.mubr.bf16.mxu0 0
        %8084 = vmatmul.mubr.bf16.gmra.mxu0 %v7848
        %v8085 = vpop.f32.mrf.mxu0
        %v8086 = vadd.f32 0.0, %v8085
        %v8087 = vpop.f32.mrf.mxu0
        %v8088 = vpop.f32.mrf.mxu0
        %v8089 = vadd.f32 0.0, %v8088
        %v8090 = vpop.f32.mrf.mxu0
        %8091 = vmatprep.mubr.bf16.mxu0 0
        %8092 = vmatmul.mubr.bf16.gmra.mxu0 %v7856
        %v8093 = vpop.f32.mrf.mxu0
        %v8094 = vadd.f32 0.0, %v8093
        %v8095 = vpop.f32.mrf.mxu0
        %v8096 = vpop.f32.mrf.mxu0
        %v8097 = vadd.f32 0.0, %v8096
        %v8098 = vpop.f32.mrf.mxu0
        %8099 = vmatprep.mubr.bf16.mxu0 0
        %8100 = vmatmul.mubr.bf16.gmra.mxu0 %v7864
        %v8101 = vpop.f32.mrf.mxu0
        %v8102 = vadd.f32 0.0, %v8101
        %v8103 = vpop.f32.mrf.mxu0
        %v8104 = vpop.f32.mrf.mxu0
        %v8105 = vadd.f32 0.0, %v8104
        %v8106 = vpop.f32.mrf.mxu0
        %8107 = vmatprep.mubr.bf16.mxu0 0
        %8108 = vmatmul.mubr.bf16.gmra.mxu0 %v7872
        %v8109 = vpop.f32.mrf.mxu0
        %v8110 = vadd.f32 0.0, %v8109
        %v8111 = vpop.f32.mrf.mxu0
        %v8112 = vpop.f32.mrf.mxu0
        %v8113 = vadd.f32 0.0, %v8112
        %v8114 = vpop.f32.mrf.mxu0
        %8115 = vmatprep.mubr.bf16.mxu0 0
        %8116 = vmatmul.mubr.bf16.gmra.mxu0 %v7880
        %v8117 = vpop.f32.mrf.mxu0
        %v8118 = vadd.f32 0.0, %v8117
        %v8119 = vpop.f32.mrf.mxu0
        %v8120 = vpop.f32.mrf.mxu0
        %v8121 = vadd.f32 0.0, %v8120
        %v8122 = vpop.f32.mrf.mxu0
        %8123 = vmatprep.mubr.bf16.mxu0 0
        %8124 = vmatmul.mubr.bf16.gmra.mxu0 %v7888
        %v8125 = vpop.f32.mrf.mxu0
        %v8126 = vadd.f32 0.0, %v8125
        %v8127 = vpop.f32.mrf.mxu0
        %v8128 = vpop.f32.mrf.mxu0
        %v8129 = vadd.f32 0.0, %v8128
        %v8130 = vpop.f32.mrf.mxu0
        %8131 = vmatprep.mubr.bf16.mxu0 0
        %8132 = vmatmul.mubr.bf16.gmra.mxu0 %v7896
        %v8133 = vpop.f32.mrf.mxu0
        %v8134 = vadd.f32 0.0, %v8133
        %v8135 = vpop.f32.mrf.mxu0
        %v8136 = vpop.f32.mrf.mxu0
        %v8137 = vadd.f32 0.0, %v8136
        %v8138 = vpop.f32.mrf.mxu0
        %8139 = vmatprep.mubr.bf16.mxu0 0
        %8140 = vmatmul.mubr.bf16.gmra.mxu0 %v7904
        %v8141 = vpop.f32.mrf.mxu0
        %v8142 = vadd.f32 0.0, %v8141
        %v8143 = vpop.f32.mrf.mxu0
        %v8144 = vpop.f32.mrf.mxu0
        %v8145 = vadd.f32 0.0, %v8144
        %v8146 = vpop.f32.mrf.mxu0
        %8147 = vmatprep.mubr.bf16.mxu0 0
        %8148 = vmatmul.mubr.bf16.gmra.mxu0 %v7912
        %v8149 = vpop.f32.mrf.mxu0
        %v8150 = vadd.f32 0.0, %v8149
        %v8151 = vpop.f32.mrf.mxu0
        %v8152 = vpop.f32.mrf.mxu0
        %v8153 = vadd.f32 0.0, %v8152
        %v8154 = vpop.f32.mrf.mxu0
        %8155 = vmatprep.mubr.bf16.mxu0 0
        %8156 = vmatmul.mubr.bf16.gmra.mxu0 %v7920
        %v8157 = vpop.f32.mrf.mxu0
        %v8158 = vadd.f32 0.0, %v8157
        %v8159 = vpop.f32.mrf.mxu0
        %v8160 = vpop.f32.mrf.mxu0
        %v8161 = vadd.f32 0.0, %v8160
        %v8162 = vpop.f32.mrf.mxu0
        %8163 = vmatprep.mubr.bf16.mxu0 0
        %8164 = vmatmul.mubr.bf16.gmra.mxu0 %v7928
        %v8165 = vpop.f32.mrf.mxu0
        %v8166 = vadd.f32 0.0, %v8165
        %v8167 = vpop.f32.mrf.mxu0
        %v8168 = vpop.f32.mrf.mxu0
        %v8169 = vadd.f32 0.0, %v8168
        %v8170 = vpop.f32.mrf.mxu0
        %8171 = vmatprep.mubr.bf16.mxu0 0
        %8172 = vmatmul.mubr.bf16.gmra.mxu0 %v7936
        %v8173 = vpop.f32.mrf.mxu0
        %v8174 = vadd.f32 0.0, %v8173
        %v8175 = vpop.f32.mrf.mxu0
        %v8176 = vpop.f32.mrf.mxu0
        %v8177 = vadd.f32 0.0, %v8176
        %v8178 = vpop.f32.mrf.mxu0
        %8179 = vmatprep.mubr.bf16.mxu0 0
        %8180 = vmatmul.mubr.bf16.gmra.mxu0 %v7944
        %v8181 = vpop.f32.mrf.mxu0
        %v8182 = vadd.f32 0.0, %v8181
        %v8183 = vpop.f32.mrf.mxu0
        %v8184 = vpop.f32.mrf.mxu0
        %v8185 = vadd.f32 0.0, %v8184
        %v8186 = vpop.f32.mrf.mxu0
        %8187 = vmatprep.mubr.bf16.mxu0 0
        %8188 = vmatmul.mubr.bf16.gmra.mxu0 %v7952
        %v8189 = vpop.f32.mrf.mxu0
        %v8190 = vadd.f32 0.0, %v8189
        %v8191 = vpop.f32.mrf.mxu0
        %v8192 = vpop.f32.mrf.mxu0
        %v8193 = vadd.f32 0.0, %v8192
        %v8194 = vpop.f32.mrf.mxu0
        %8195 = vmatprep.mubr.bf16.mxu0 0
        %8196 = vmatmul.mubr.bf16.gmra.mxu0 %v7960
        %v8197 = vpop.f32.mrf.mxu0
        %v8198 = vadd.f32 0.0, %v8197
        %v8199 = vpop.f32.mrf.mxu0
        %v8200 = vpop.f32.mrf.mxu0
        %v8201 = vadd.f32 0.0, %v8200
        %v8202 = vpop.f32.mrf.mxu0
        %8203 = vmatprep.mubr.bf16.mxu0 0
        %8204 = vmatmul.mubr.bf16.gmra.mxu0 %v7968
        %v8205 = vpop.f32.mrf.mxu0
        %v8206 = vadd.f32 0.0, %v8205
        %v8207 = vpop.f32.mrf.mxu0
        %v8208 = vpop.f32.mrf.mxu0
        %v8209 = vadd.f32 0.0, %v8208
        %v8210 = vpop.f32.mrf.mxu0
        %8211 = vdwg.mxu0
        %v8212 = vadd.f32 %v7638, %v8070
        %v8213 = vadd.f32 %v7639, %v8073
        %v8214 = vadd.f32 %v7640, %v8078
        %v8215 = vadd.f32 %v7641, %v8081
        %v8216 = vadd.f32 %v7642, %v8086
        %v8217 = vadd.f32 %v7643, %v8089
        %v8218 = vadd.f32 %v7644, %v8094
        %v8219 = vadd.f32 %v7645, %v8097
        %v8220 = vadd.f32 %v7646, %v8102
        %v8221 = vadd.f32 %v7647, %v8105
        %v8222 = vadd.f32 %v7648, %v8110
        %v8223 = vadd.f32 %v7649, %v8113
        %v8224 = vadd.f32 %v7650, %v8118
        %v8225 = vadd.f32 %v7651, %v8121
        %v8226 = vadd.f32 %v7652, %v8126
        %v8227 = vadd.f32 %v7653, %v8129
        %v8228 = vadd.f32 %v7654, %v8134
        %v8229 = vadd.f32 %v7655, %v8137
        %v8230 = vadd.f32 %v7656, %v8142
        %v8231 = vadd.f32 %v7657, %v8145
        %v8232 = vadd.f32 %v7658, %v8150
        %v8233 = vadd.f32 %v7659, %v8153
        %v8234 = vadd.f32 %v7660, %v8158
        %v8235 = vadd.f32 %v7661, %v8161
        %v8236 = vadd.f32 %v7662, %v8166
        %v8237 = vadd.f32 %v7663, %v8169
        %v8238 = vadd.f32 %v7664, %v8174
        %v8239 = vadd.f32 %v7665, %v8177
        %v8240 = vadd.f32 %v7666, %v8182
        %v8241 = vadd.f32 %v7667, %v8185
        %v8242 = vadd.f32 %v7668, %v8190
        %v8243 = vadd.f32 %v7669, %v8193
        %v8244 = vadd.f32 %v7670, %v8198
        %v8245 = vadd.f32 %v7671, %v8201
        %v8246 = vadd.f32 %v7672, %v8206
        %v8247 = vadd.f32 %v7673, %v8209
        %v8248 = vld [vmem:[#allocation2 + $0x14] sm:$0xe]
        %s8249 = scalar_lea.vmem [#allocation8], 448
        %v8250 = vld [vmem:[%s8249] sm:$0xf]
        %v8251 = vld [vmem:[%s8249 + $0x4] sm:$0xf]
        %v8252 = vld [vmem:[%s8249 + $0x8] sm:$0xf]
        %v8253 = vld [vmem:[%s8249 + $0xc] sm:$0xf]
        %v8254 = vld [vmem:[%s8249 + $0x10] sm:$0xf]
        %v8255 = vld [vmem:[%s8249 + $0x14] sm:$0xf]
        %v8256 = vld [vmem:[%s8249 + $0x18] sm:$0xf]
        %v8257 = vld [vmem:[%s8249 + $0x1c] sm:$0xf]
        %v8258 = vld [vmem:[%s8249 + $0x20] sm:$0xf]
        %v8259 = vld [vmem:[%s8249 + $0x24] sm:$0xf]
        %v8260 = vld [vmem:[%s8249 + $0x28] sm:$0xf]
        %v8261 = vld [vmem:[%s8249 + $0x2c] sm:$0xf]
        %v8262 = vld [vmem:[%s8249 + $0x30] sm:$0xf]
        %v8263 = vld [vmem:[%s8249 + $0x34] sm:$0xf]
        %v8264 = vld [vmem:[%s8249 + $0x38] sm:$0xf]
        %v8265 = vld [vmem:[%s8249 + $0x3c] sm:$0xf]
        %v8267 = vunpack.c.l.b16 %v8248
        %v8268 = vpack.c.b16 %v7766, %v8267
        %v8269 = vrot.slane %v8268, 1
        %v8270 = vrot.slane %v7803, 1
        %v8271 = vsel %vm3682, %v8269, %v8270
        %v8272 = vrot.slane %v7804, 1
        %v8273 = vsel %vm3682, %v8270, %v8272
        %v8274 = vrot.slane %v7805, 1
        %v8275 = vsel %vm3682, %v8272, %v8274
        %v8276 = vrot.slane %v7806, 1
        %v8277 = vsel %vm3682, %v8274, %v8276
        %v8278 = vrot.slane %v7807, 1
        %v8279 = vsel %vm3682, %v8276, %v8278
        %v8280 = vrot.slane %v7808, 1
        %v8281 = vsel %vm3682, %v8278, %v8280
        %v8282 = vrot.slane %v7809, 1
        %v8283 = vsel %vm3682, %v8280, %v8282
        %v8284 = vrot.slane %v7810, 1
        %v8285 = vsel %vm3682, %v8282, %v8284
        %v8286 = vrot.slane %v7811, 1
        %v8287 = vsel %vm3682, %v8284, %v8286
        %v8288 = vrot.slane %v7812, 1
        %v8289 = vsel %vm3682, %v8286, %v8288
        %v8290 = vrot.slane %v7813, 1
        %v8291 = vsel %vm3682, %v8288, %v8290
        %v8292 = vrot.slane %v7814, 1
        %v8293 = vsel %vm3682, %v8290, %v8292
        %v8294 = vrot.slane %v7815, 1
        %v8295 = vsel %vm3682, %v8292, %v8294
        %v8296 = vrot.slane %v7816, 1
        %v8297 = vsel %vm3682, %v8294, %v8296
        %v8298 = vrot.slane %v7817, 1
        %v8299 = vsel %vm3682, %v8296, %v8298
        %v8300 = vrot.slane %v7818, 1
        %v8301 = vsel %vm3682, %v8298, %v8300
        %v8302 = vrot.slane %v7819, 1
        %v8303 = vsel %vm3682, %v8300, %v8302
        %v8304 = vrot.slane %v7820, 1
        %v8305 = vsel %vm3682, %v8302, %v8304
        %v8340 = vunpack.c.l.b16 %v8250
        %v8341 = vunpack.c.l.b16 %v8251
        %v8342 = vunpack.c.l.b16 %v8252
        %v8343 = vunpack.c.l.b16 %v8253
        %v8344 = vunpack.c.l.b16 %v8254
        %v8345 = vunpack.c.l.b16 %v8255
        %v8346 = vunpack.c.l.b16 %v8256
        %v8347 = vunpack.c.l.b16 %v8257
        %v8348 = vunpack.c.l.b16 %v8258
        %v8349 = vunpack.c.l.b16 %v8259
        %v8350 = vunpack.c.l.b16 %v8260
        %v8351 = vunpack.c.l.b16 %v8261
        %v8352 = vunpack.c.l.b16 %v8262
        %v8353 = vunpack.c.l.b16 %v8263
        %v8354 = vunpack.c.l.b16 %v8264
        %v8355 = vunpack.c.l.b16 %v8265
        %v8356 = vpack.c.b16 %v8341, %v8340
        %v8357 = vpack.c.b16 %v8343, %v8342
        %v8358 = vpack.c.b16 %v8345, %v8344
        %v8359 = vpack.c.b16 %v8347, %v8346
        %v8360 = vpack.c.b16 %v8349, %v8348
        %v8361 = vpack.c.b16 %v8351, %v8350
        %v8362 = vpack.c.b16 %v8353, %v8352
        %v8363 = vpack.c.b16 %v8355, %v8354
        %8372 = vmatprep.subr.bf16.mxu0 0
        %8373 = vmatpush1.bf16.msra.mxu0 %v8363
        %8374 = vmatprep.subr.bf16.mxu0 0
        %8375 = vmatpush1.bf16.msra.mxu0 %v8362
        %8376 = vmatprep.subr.bf16.mxu0 0
        %8377 = vmatpush1.bf16.msra.mxu0 %v8361
        %8378 = vmatprep.subr.bf16.mxu0 0
        %8379 = vmatpush1.bf16.msra.mxu0 %v8360
        %8380 = vmatprep.subr.bf16.mxu0 0
        %8381 = vmatpush1.bf16.msra.mxu0 %v8359
        %8382 = vmatprep.subr.bf16.mxu0 0
        %8383 = vmatpush1.bf16.msra.mxu0 %v8358
        %8384 = vmatprep.subr.bf16.mxu0 0
        %8385 = vmatpush1.bf16.msra.mxu0 %v8357
        %8386 = vmatprep.subr.bf16.mxu0 0
        %8387 = vmatpush1.bf16.msra.mxu0 %v8356
        %8388 = vmatprep.subr.bf16.mxu0 0
        %8389 = vmatpush2.bf16.msra.mxu0 0
        %8390 = vmatprep.subr.bf16.mxu0 0
        %8391 = vmatpush2.bf16.msra.mxu0 0
        %8392 = vmatprep.subr.bf16.mxu0 0
        %8393 = vmatpush2.bf16.msra.mxu0 0
        %8394 = vmatprep.subr.bf16.mxu0 0
        %8395 = vmatpush2.bf16.msra.mxu0 0
        %8396 = vmatprep.subr.bf16.mxu0 0
        %8397 = vmatpush2.bf16.msra.mxu0 0
        %8398 = vmatprep.subr.bf16.mxu0 0
        %8399 = vmatpush2.bf16.msra.mxu0 0
        %8400 = vmatprep.subr.bf16.mxu0 0
        %8401 = vmatpush2.bf16.msra.mxu0 0
        %8402 = vmatprep.subr.bf16.mxu0 0
        %8403 = vmatpush2.bf16.msra.mxu0 0
        %8404 = vmatprep.mubr.bf16.mxu0 0
        %8405 = vmatmul.mubr.bf16.gmra.mxu0 %v8271
        %v8406 = vpop.f32.mrf.mxu0
        %v8407 = vadd.f32 0.0, %v8406
        %v8408 = vpop.f32.mrf.mxu0
        %v8409 = vpop.f32.mrf.mxu0
        %v8410 = vadd.f32 0.0, %v8409
        %v8411 = vpop.f32.mrf.mxu0
        %8412 = vmatprep.mubr.bf16.mxu0 0
        %8413 = vmatmul.mubr.bf16.gmra.mxu0 %v8273
        %v8414 = vpop.f32.mrf.mxu0
        %v8415 = vadd.f32 0.0, %v8414
        %v8416 = vpop.f32.mrf.mxu0
        %v8417 = vpop.f32.mrf.mxu0
        %v8418 = vadd.f32 0.0, %v8417
        %v8419 = vpop.f32.mrf.mxu0
        %8420 = vmatprep.mubr.bf16.mxu0 0
        %8421 = vmatmul.mubr.bf16.gmra.mxu0 %v8275
        %v8422 = vpop.f32.mrf.mxu0
        %v8423 = vadd.f32 0.0, %v8422
        %v8424 = vpop.f32.mrf.mxu0
        %v8425 = vpop.f32.mrf.mxu0
        %v8426 = vadd.f32 0.0, %v8425
        %v8427 = vpop.f32.mrf.mxu0
        %8428 = vmatprep.mubr.bf16.mxu0 0
        %8429 = vmatmul.mubr.bf16.gmra.mxu0 %v8277
        %v8430 = vpop.f32.mrf.mxu0
        %v8431 = vadd.f32 0.0, %v8430
        %v8432 = vpop.f32.mrf.mxu0
        %v8433 = vpop.f32.mrf.mxu0
        %v8434 = vadd.f32 0.0, %v8433
        %v8435 = vpop.f32.mrf.mxu0
        %8436 = vmatprep.mubr.bf16.mxu0 0
        %8437 = vmatmul.mubr.bf16.gmra.mxu0 %v8279
        %v8438 = vpop.f32.mrf.mxu0
        %v8439 = vadd.f32 0.0, %v8438
        %v8440 = vpop.f32.mrf.mxu0
        %v8441 = vpop.f32.mrf.mxu0
        %v8442 = vadd.f32 0.0, %v8441
        %v8443 = vpop.f32.mrf.mxu0
        %8444 = vmatprep.mubr.bf16.mxu0 0
        %8445 = vmatmul.mubr.bf16.gmra.mxu0 %v8281
        %v8446 = vpop.f32.mrf.mxu0
        %v8447 = vadd.f32 0.0, %v8446
        %v8448 = vpop.f32.mrf.mxu0
        %v8449 = vpop.f32.mrf.mxu0
        %v8450 = vadd.f32 0.0, %v8449
        %v8451 = vpop.f32.mrf.mxu0
        %8452 = vmatprep.mubr.bf16.mxu0 0
        %8453 = vmatmul.mubr.bf16.gmra.mxu0 %v8283
        %v8454 = vpop.f32.mrf.mxu0
        %v8455 = vadd.f32 0.0, %v8454
        %v8456 = vpop.f32.mrf.mxu0
        %v8457 = vpop.f32.mrf.mxu0
        %v8458 = vadd.f32 0.0, %v8457
        %v8459 = vpop.f32.mrf.mxu0
        %8460 = vmatprep.mubr.bf16.mxu0 0
        %8461 = vmatmul.mubr.bf16.gmra.mxu0 %v8285
        %v8462 = vpop.f32.mrf.mxu0
        %v8463 = vadd.f32 0.0, %v8462
        %v8464 = vpop.f32.mrf.mxu0
        %v8465 = vpop.f32.mrf.mxu0
        %v8466 = vadd.f32 0.0, %v8465
        %v8467 = vpop.f32.mrf.mxu0
        %8468 = vmatprep.mubr.bf16.mxu0 0
        %8469 = vmatmul.mubr.bf16.gmra.mxu0 %v8287
        %v8470 = vpop.f32.mrf.mxu0
        %v8471 = vadd.f32 0.0, %v8470
        %v8472 = vpop.f32.mrf.mxu0
        %v8473 = vpop.f32.mrf.mxu0
        %v8474 = vadd.f32 0.0, %v8473
        %v8475 = vpop.f32.mrf.mxu0
        %8476 = vmatprep.mubr.bf16.mxu0 0
        %8477 = vmatmul.mubr.bf16.gmra.mxu0 %v8289
        %v8478 = vpop.f32.mrf.mxu0
        %v8479 = vadd.f32 0.0, %v8478
        %v8480 = vpop.f32.mrf.mxu0
        %v8481 = vpop.f32.mrf.mxu0
        %v8482 = vadd.f32 0.0, %v8481
        %v8483 = vpop.f32.mrf.mxu0
        %8484 = vmatprep.mubr.bf16.mxu0 0
        %8485 = vmatmul.mubr.bf16.gmra.mxu0 %v8291
        %v8486 = vpop.f32.mrf.mxu0
        %v8487 = vadd.f32 0.0, %v8486
        %v8488 = vpop.f32.mrf.mxu0
        %v8489 = vpop.f32.mrf.mxu0
        %v8490 = vadd.f32 0.0, %v8489
        %v8491 = vpop.f32.mrf.mxu0
        %8492 = vmatprep.mubr.bf16.mxu0 0
        %8493 = vmatmul.mubr.bf16.gmra.mxu0 %v8293
        %v8494 = vpop.f32.mrf.mxu0
        %v8495 = vadd.f32 0.0, %v8494
        %v8496 = vpop.f32.mrf.mxu0
        %v8497 = vpop.f32.mrf.mxu0
        %v8498 = vadd.f32 0.0, %v8497
        %v8499 = vpop.f32.mrf.mxu0
        %8500 = vmatprep.mubr.bf16.mxu0 0
        %8501 = vmatmul.mubr.bf16.gmra.mxu0 %v8295
        %v8502 = vpop.f32.mrf.mxu0
        %v8503 = vadd.f32 0.0, %v8502
        %v8504 = vpop.f32.mrf.mxu0
        %v8505 = vpop.f32.mrf.mxu0
        %v8506 = vadd.f32 0.0, %v8505
        %v8507 = vpop.f32.mrf.mxu0
        %8508 = vmatprep.mubr.bf16.mxu0 0
        %8509 = vmatmul.mubr.bf16.gmra.mxu0 %v8297
        %v8510 = vpop.f32.mrf.mxu0
        %v8511 = vadd.f32 0.0, %v8510
        %v8512 = vpop.f32.mrf.mxu0
        %v8513 = vpop.f32.mrf.mxu0
        %v8514 = vadd.f32 0.0, %v8513
        %v8515 = vpop.f32.mrf.mxu0
        %8516 = vmatprep.mubr.bf16.mxu0 0
        %8517 = vmatmul.mubr.bf16.gmra.mxu0 %v8299
        %v8518 = vpop.f32.mrf.mxu0
        %v8519 = vadd.f32 0.0, %v8518
        %v8520 = vpop.f32.mrf.mxu0
        %v8521 = vpop.f32.mrf.mxu0
        %v8522 = vadd.f32 0.0, %v8521
        %v8523 = vpop.f32.mrf.mxu0
        %8524 = vmatprep.mubr.bf16.mxu0 0
        %8525 = vmatmul.mubr.bf16.gmra.mxu0 %v8301
        %v8526 = vpop.f32.mrf.mxu0
        %v8527 = vadd.f32 0.0, %v8526
        %v8528 = vpop.f32.mrf.mxu0
        %v8529 = vpop.f32.mrf.mxu0
        %v8530 = vadd.f32 0.0, %v8529
        %v8531 = vpop.f32.mrf.mxu0
        %8532 = vmatprep.mubr.bf16.mxu0 0
        %8533 = vmatmul.mubr.bf16.gmra.mxu0 %v8303
        %v8534 = vpop.f32.mrf.mxu0
        %v8535 = vadd.f32 0.0, %v8534
        %v8536 = vpop.f32.mrf.mxu0
        %v8537 = vpop.f32.mrf.mxu0
        %v8538 = vadd.f32 0.0, %v8537
        %v8539 = vpop.f32.mrf.mxu0
        %8540 = vmatprep.mubr.bf16.mxu0 0
        %8541 = vmatmul.mubr.bf16.gmra.mxu0 %v8305
        %v8542 = vpop.f32.mrf.mxu0
        %v8543 = vadd.f32 0.0, %v8542
        %v8544 = vpop.f32.mrf.mxu0
        %v8545 = vpop.f32.mrf.mxu0
        %v8546 = vadd.f32 0.0, %v8545
        %v8547 = vpop.f32.mrf.mxu0
        %8548 = vdwg.mxu0
        %v8549 = vadd.f32 %v8212, %v8407
        %v8550 = vadd.f32 %v8213, %v8410
        %v8551 = vadd.f32 %v8214, %v8415
        %v8552 = vadd.f32 %v8215, %v8418
        %v8553 = vadd.f32 %v8216, %v8423
        %v8554 = vadd.f32 %v8217, %v8426
        %v8555 = vadd.f32 %v8218, %v8431
        %v8556 = vadd.f32 %v8219, %v8434
        %v8557 = vadd.f32 %v8220, %v8439
        %v8558 = vadd.f32 %v8221, %v8442
        %v8559 = vadd.f32 %v8222, %v8447
        %v8560 = vadd.f32 %v8223, %v8450
        %v8561 = vadd.f32 %v8224, %v8455
        %v8562 = vadd.f32 %v8225, %v8458
        %v8563 = vadd.f32 %v8226, %v8463
        %v8564 = vadd.f32 %v8227, %v8466
        %v8565 = vadd.f32 %v8228, %v8471
        %v8566 = vadd.f32 %v8229, %v8474
        %v8567 = vadd.f32 %v8230, %v8479
        %v8568 = vadd.f32 %v8231, %v8482
        %v8569 = vadd.f32 %v8232, %v8487
        %v8570 = vadd.f32 %v8233, %v8490
        %v8571 = vadd.f32 %v8234, %v8495
        %v8572 = vadd.f32 %v8235, %v8498
        %v8573 = vadd.f32 %v8236, %v8503
        %v8574 = vadd.f32 %v8237, %v8506
        %v8575 = vadd.f32 %v8238, %v8511
        %v8576 = vadd.f32 %v8239, %v8514
        %v8577 = vadd.f32 %v8240, %v8519
        %v8578 = vadd.f32 %v8241, %v8522
        %v8579 = vadd.f32 %v8242, %v8527
        %v8580 = vadd.f32 %v8243, %v8530
        %v8581 = vadd.f32 %v8244, %v8535
        %v8582 = vadd.f32 %v8245, %v8538
        %v8583 = vadd.f32 %v8246, %v8543
        %v8584 = vadd.f32 %v8247, %v8546
        %v8585 = vld [vmem:[#allocation2 + $0xa4] sm:$0x3]
        %s8586 = scalar_lea.vmem [#allocation8], 512
        %v8587 = vld [vmem:[%s8586] sm:$0xf]
        %v8588 = vld [vmem:[%s8586 + $0x4] sm:$0xf]
        %v8589 = vld [vmem:[%s8586 + $0x8] sm:$0xf]
        %v8590 = vld [vmem:[%s8586 + $0xc] sm:$0xf]
        %v8591 = vld [vmem:[%s8586 + $0x10] sm:$0xf]
        %v8592 = vld [vmem:[%s8586 + $0x14] sm:$0xf]
        %v8593 = vld [vmem:[%s8586 + $0x18] sm:$0xf]
        %v8594 = vld [vmem:[%s8586 + $0x1c] sm:$0xf]
        %v8595 = vld [vmem:[%s8586 + $0x20] sm:$0xf]
        %v8596 = vld [vmem:[%s8586 + $0x24] sm:$0xf]
        %v8597 = vld [vmem:[%s8586 + $0x28] sm:$0xf]
        %v8598 = vld [vmem:[%s8586 + $0x2c] sm:$0xf]
        %v8599 = vld [vmem:[%s8586 + $0x30] sm:$0xf]
        %v8600 = vld [vmem:[%s8586 + $0x34] sm:$0xf]
        %v8601 = vld [vmem:[%s8586 + $0x38] sm:$0xf]
        %v8602 = vld [vmem:[%s8586 + $0x3c] sm:$0xf]
        %v8604 = vunpack.c.l.b16 %v8585
        %v8605 = vpack.c.b16 %v8604, %v8604
        %v8607 = vshrl.u32 %v8268, 16
        %v8609 = vrot.slane %v8607, 1
        %v8610 = vshll.u32 %v8268, 16
        %v8612 = vrot.slane %v8610, 2
        %v8613 = vor.u32 %v8609, %v8612
        %v8614 = vrot.slane %v7833, 1
        %v8615 = vrot.slane %v7829, 2
        %v8616 = vor.u32 %v8614, %v8615
        %v8617 = vsel %vm4020, %v8613, %v8616
        %v8618 = vrot.slane %v7841, 1
        %v8619 = vrot.slane %v7837, 2
        %v8620 = vor.u32 %v8618, %v8619
        %v8621 = vsel %vm4020, %v8616, %v8620
        %v8622 = vrot.slane %v7849, 1
        %v8623 = vrot.slane %v7845, 2
        %v8624 = vor.u32 %v8622, %v8623
        %v8625 = vsel %vm4020, %v8620, %v8624
        %v8626 = vrot.slane %v7857, 1
        %v8627 = vrot.slane %v7853, 2
        %v8628 = vor.u32 %v8626, %v8627
        %v8629 = vsel %vm4020, %v8624, %v8628
        %v8630 = vrot.slane %v7865, 1
        %v8631 = vrot.slane %v7861, 2
        %v8632 = vor.u32 %v8630, %v8631
        %v8633 = vsel %vm4020, %v8628, %v8632
        %v8634 = vrot.slane %v7873, 1
        %v8635 = vrot.slane %v7869, 2
        %v8636 = vor.u32 %v8634, %v8635
        %v8637 = vsel %vm4020, %v8632, %v8636
        %v8638 = vrot.slane %v7881, 1
        %v8639 = vrot.slane %v7877, 2
        %v8640 = vor.u32 %v8638, %v8639
        %v8641 = vsel %vm4020, %v8636, %v8640
        %v8642 = vrot.slane %v7889, 1
        %v8643 = vrot.slane %v7885, 2
        %v8644 = vor.u32 %v8642, %v8643
        %v8645 = vsel %vm4020, %v8640, %v8644
        %v8646 = vrot.slane %v7897, 1
        %v8647 = vrot.slane %v7893, 2
        %v8648 = vor.u32 %v8646, %v8647
        %v8649 = vsel %vm4020, %v8644, %v8648
        %v8650 = vrot.slane %v7905, 1
        %v8651 = vrot.slane %v7901, 2
        %v8652 = vor.u32 %v8650, %v8651
        %v8653 = vsel %vm4020, %v8648, %v8652
        %v8654 = vrot.slane %v7913, 1
        %v8655 = vrot.slane %v7909, 2
        %v8656 = vor.u32 %v8654, %v8655
        %v8657 = vsel %vm4020, %v8652, %v8656
        %v8658 = vrot.slane %v7921, 1
        %v8659 = vrot.slane %v7917, 2
        %v8660 = vor.u32 %v8658, %v8659
        %v8661 = vsel %vm4020, %v8656, %v8660
        %v8662 = vrot.slane %v7929, 1
        %v8663 = vrot.slane %v7925, 2
        %v8664 = vor.u32 %v8662, %v8663
        %v8665 = vsel %vm4020, %v8660, %v8664
        %v8666 = vrot.slane %v7937, 1
        %v8667 = vrot.slane %v7933, 2
        %v8668 = vor.u32 %v8666, %v8667
        %v8669 = vsel %vm4020, %v8664, %v8668
        %v8670 = vrot.slane %v7945, 1
        %v8671 = vrot.slane %v7941, 2
        %v8672 = vor.u32 %v8670, %v8671
        %v8673 = vsel %vm4020, %v8668, %v8672
        %v8674 = vrot.slane %v7953, 1
        %v8675 = vrot.slane %v7949, 2
        %v8676 = vor.u32 %v8674, %v8675
        %v8677 = vsel %vm4020, %v8672, %v8676
        %v8678 = vrot.slane %v7961, 1
        %v8679 = vrot.slane %v7957, 2
        %v8680 = vor.u32 %v8678, %v8679
        %v8681 = vsel %vm4020, %v8676, %v8680
        %v8683 = vshrl.u32 %v8605, 16
        %v8685 = vrot.slane %v8683, 1
        %v8686 = vshll.u32 %v8605, 16
        %v8688 = vrot.slane %v8686, 2
        %v8689 = vor.u32 %v8685, %v8688
        %v8690 = vsel %vm4020, %v8680, %v8689
        %v8725 = vunpack.c.l.b16 %v8587
        %v8726 = vunpack.c.l.b16 %v8588
        %v8727 = vunpack.c.l.b16 %v8589
        %v8728 = vunpack.c.l.b16 %v8590
        %v8729 = vunpack.c.l.b16 %v8591
        %v8730 = vunpack.c.l.b16 %v8592
        %v8731 = vunpack.c.l.b16 %v8593
        %v8732 = vunpack.c.l.b16 %v8594
        %v8733 = vunpack.c.l.b16 %v8595
        %v8734 = vunpack.c.l.b16 %v8596
        %v8735 = vunpack.c.l.b16 %v8597
        %v8736 = vunpack.c.l.b16 %v8598
        %v8737 = vunpack.c.l.b16 %v8599
        %v8738 = vunpack.c.l.b16 %v8600
        %v8739 = vunpack.c.l.b16 %v8601
        %v8740 = vunpack.c.l.b16 %v8602
        %v8741 = vpack.c.b16 %v8726, %v8725
        %v8742 = vpack.c.b16 %v8728, %v8727
        %v8743 = vpack.c.b16 %v8730, %v8729
        %v8744 = vpack.c.b16 %v8732, %v8731
        %v8745 = vpack.c.b16 %v8734, %v8733
        %v8746 = vpack.c.b16 %v8736, %v8735
        %v8747 = vpack.c.b16 %v8738, %v8737
        %v8748 = vpack.c.b16 %v8740, %v8739
        %8757 = vmatprep.subr.bf16.mxu0 0
        %8758 = vmatpush1.bf16.msra.mxu0 %v8748
        %8759 = vmatprep.subr.bf16.mxu0 0
        %8760 = vmatpush1.bf16.msra.mxu0 %v8747
        %8761 = vmatprep.subr.bf16.mxu0 0
        %8762 = vmatpush1.bf16.msra.mxu0 %v8746
        %8763 = vmatprep.subr.bf16.mxu0 0
        %8764 = vmatpush1.bf16.msra.mxu0 %v8745
        %8765 = vmatprep.subr.bf16.mxu0 0
        %8766 = vmatpush1.bf16.msra.mxu0 %v8744
        %8767 = vmatprep.subr.bf16.mxu0 0
        %8768 = vmatpush1.bf16.msra.mxu0 %v8743
        %8769 = vmatprep.subr.bf16.mxu0 0
        %8770 = vmatpush1.bf16.msra.mxu0 %v8742
        %8771 = vmatprep.subr.bf16.mxu0 0
        %8772 = vmatpush1.bf16.msra.mxu0 %v8741
        %8773 = vmatprep.subr.bf16.mxu0 0
        %8774 = vmatpush2.bf16.msra.mxu0 0
        %8775 = vmatprep.subr.bf16.mxu0 0
        %8776 = vmatpush2.bf16.msra.mxu0 0
        %8777 = vmatprep.subr.bf16.mxu0 0
        %8778 = vmatpush2.bf16.msra.mxu0 0
        %8779 = vmatprep.subr.bf16.mxu0 0
        %8780 = vmatpush2.bf16.msra.mxu0 0
        %8781 = vmatprep.subr.bf16.mxu0 0
        %8782 = vmatpush2.bf16.msra.mxu0 0
        %8783 = vmatprep.subr.bf16.mxu0 0
        %8784 = vmatpush2.bf16.msra.mxu0 0
        %8785 = vmatprep.subr.bf16.mxu0 0
        %8786 = vmatpush2.bf16.msra.mxu0 0
        %8787 = vmatprep.subr.bf16.mxu0 0
        %8788 = vmatpush2.bf16.msra.mxu0 0
        %8789 = vmatprep.mubr.bf16.mxu0 0
        %8790 = vmatmul.mubr.bf16.gmra.mxu0 %v8617
        %v8791 = vpop.f32.mrf.mxu0
        %v8792 = vadd.f32 0.0, %v8791
        %v8793 = vpop.f32.mrf.mxu0
        %v8794 = vpop.f32.mrf.mxu0
        %v8795 = vadd.f32 0.0, %v8794
        %v8796 = vpop.f32.mrf.mxu0
        %8797 = vmatprep.mubr.bf16.mxu0 0
        %8798 = vmatmul.mubr.bf16.gmra.mxu0 %v8621
        %v8799 = vpop.f32.mrf.mxu0
        %v8800 = vadd.f32 0.0, %v8799
        %v8801 = vpop.f32.mrf.mxu0
        %v8802 = vpop.f32.mrf.mxu0
        %v8803 = vadd.f32 0.0, %v8802
        %v8804 = vpop.f32.mrf.mxu0
        %8805 = vmatprep.mubr.bf16.mxu0 0
        %8806 = vmatmul.mubr.bf16.gmra.mxu0 %v8625
        %v8807 = vpop.f32.mrf.mxu0
        %v8808 = vadd.f32 0.0, %v8807
        %v8809 = vpop.f32.mrf.mxu0
        %v8810 = vpop.f32.mrf.mxu0
        %v8811 = vadd.f32 0.0, %v8810
        %v8812 = vpop.f32.mrf.mxu0
        %8813 = vmatprep.mubr.bf16.mxu0 0
        %8814 = vmatmul.mubr.bf16.gmra.mxu0 %v8629
        %v8815 = vpop.f32.mrf.mxu0
        %v8816 = vadd.f32 0.0, %v8815
        %v8817 = vpop.f32.mrf.mxu0
        %v8818 = vpop.f32.mrf.mxu0
        %v8819 = vadd.f32 0.0, %v8818
        %v8820 = vpop.f32.mrf.mxu0
        %8821 = vmatprep.mubr.bf16.mxu0 0
        %8822 = vmatmul.mubr.bf16.gmra.mxu0 %v8633
        %v8823 = vpop.f32.mrf.mxu0
        %v8824 = vadd.f32 0.0, %v8823
        %v8825 = vpop.f32.mrf.mxu0
        %v8826 = vpop.f32.mrf.mxu0
        %v8827 = vadd.f32 0.0, %v8826
        %v8828 = vpop.f32.mrf.mxu0
        %8829 = vmatprep.mubr.bf16.mxu0 0
        %8830 = vmatmul.mubr.bf16.gmra.mxu0 %v8637
        %v8831 = vpop.f32.mrf.mxu0
        %v8832 = vadd.f32 0.0, %v8831
        %v8833 = vpop.f32.mrf.mxu0
        %v8834 = vpop.f32.mrf.mxu0
        %v8835 = vadd.f32 0.0, %v8834
        %v8836 = vpop.f32.mrf.mxu0
        %8837 = vmatprep.mubr.bf16.mxu0 0
        %8838 = vmatmul.mubr.bf16.gmra.mxu0 %v8641
        %v8839 = vpop.f32.mrf.mxu0
        %v8840 = vadd.f32 0.0, %v8839
        %v8841 = vpop.f32.mrf.mxu0
        %v8842 = vpop.f32.mrf.mxu0
        %v8843 = vadd.f32 0.0, %v8842
        %v8844 = vpop.f32.mrf.mxu0
        %8845 = vmatprep.mubr.bf16.mxu0 0
        %8846 = vmatmul.mubr.bf16.gmra.mxu0 %v8645
        %v8847 = vpop.f32.mrf.mxu0
        %v8848 = vadd.f32 0.0, %v8847
        %v8849 = vpop.f32.mrf.mxu0
        %v8850 = vpop.f32.mrf.mxu0
        %v8851 = vadd.f32 0.0, %v8850
        %v8852 = vpop.f32.mrf.mxu0
        %8853 = vmatprep.mubr.bf16.mxu0 0
        %8854 = vmatmul.mubr.bf16.gmra.mxu0 %v8649
        %v8855 = vpop.f32.mrf.mxu0
        %v8856 = vadd.f32 0.0, %v8855
        %v8857 = vpop.f32.mrf.mxu0
        %v8858 = vpop.f32.mrf.mxu0
        %v8859 = vadd.f32 0.0, %v8858
        %v8860 = vpop.f32.mrf.mxu0
        %8861 = vmatprep.mubr.bf16.mxu0 0
        %8862 = vmatmul.mubr.bf16.gmra.mxu0 %v8653
        %v8863 = vpop.f32.mrf.mxu0
        %v8864 = vadd.f32 0.0, %v8863
        %v8865 = vpop.f32.mrf.mxu0
        %v8866 = vpop.f32.mrf.mxu0
        %v8867 = vadd.f32 0.0, %v8866
        %v8868 = vpop.f32.mrf.mxu0
        %8869 = vmatprep.mubr.bf16.mxu0 0
        %8870 = vmatmul.mubr.bf16.gmra.mxu0 %v8657
        %v8871 = vpop.f32.mrf.mxu0
        %v8872 = vadd.f32 0.0, %v8871
        %v8873 = vpop.f32.mrf.mxu0
        %v8874 = vpop.f32.mrf.mxu0
        %v8875 = vadd.f32 0.0, %v8874
        %v8876 = vpop.f32.mrf.mxu0
        %8877 = vmatprep.mubr.bf16.mxu0 0
        %8878 = vmatmul.mubr.bf16.gmra.mxu0 %v8661
        %v8879 = vpop.f32.mrf.mxu0
        %v8880 = vadd.f32 0.0, %v8879
        %v8881 = vpop.f32.mrf.mxu0
        %v8882 = vpop.f32.mrf.mxu0
        %v8883 = vadd.f32 0.0, %v8882
        %v8884 = vpop.f32.mrf.mxu0
        %8885 = vmatprep.mubr.bf16.mxu0 0
        %8886 = vmatmul.mubr.bf16.gmra.mxu0 %v8665
        %v8887 = vpop.f32.mrf.mxu0
        %v8888 = vadd.f32 0.0, %v8887
        %v8889 = vpop.f32.mrf.mxu0
        %v8890 = vpop.f32.mrf.mxu0
        %v8891 = vadd.f32 0.0, %v8890
        %v8892 = vpop.f32.mrf.mxu0
        %8893 = vmatprep.mubr.bf16.mxu0 0
        %8894 = vmatmul.mubr.bf16.gmra.mxu0 %v8669
        %v8895 = vpop.f32.mrf.mxu0
        %v8896 = vadd.f32 0.0, %v8895
        %v8897 = vpop.f32.mrf.mxu0
        %v8898 = vpop.f32.mrf.mxu0
        %v8899 = vadd.f32 0.0, %v8898
        %v8900 = vpop.f32.mrf.mxu0
        %8901 = vmatprep.mubr.bf16.mxu0 0
        %8902 = vmatmul.mubr.bf16.gmra.mxu0 %v8673
        %v8903 = vpop.f32.mrf.mxu0
        %v8904 = vadd.f32 0.0, %v8903
        %v8905 = vpop.f32.mrf.mxu0
        %v8906 = vpop.f32.mrf.mxu0
        %v8907 = vadd.f32 0.0, %v8906
        %v8908 = vpop.f32.mrf.mxu0
        %8909 = vmatprep.mubr.bf16.mxu0 0
        %8910 = vmatmul.mubr.bf16.gmra.mxu0 %v8677
        %v8911 = vpop.f32.mrf.mxu0
        %v8912 = vadd.f32 0.0, %v8911
        %v8913 = vpop.f32.mrf.mxu0
        %v8914 = vpop.f32.mrf.mxu0
        %v8915 = vadd.f32 0.0, %v8914
        %v8916 = vpop.f32.mrf.mxu0
        %8917 = vmatprep.mubr.bf16.mxu0 0
        %8918 = vmatmul.mubr.bf16.gmra.mxu0 %v8681
        %v8919 = vpop.f32.mrf.mxu0
        %v8920 = vadd.f32 0.0, %v8919
        %v8921 = vpop.f32.mrf.mxu0
        %v8922 = vpop.f32.mrf.mxu0
        %v8923 = vadd.f32 0.0, %v8922
        %v8924 = vpop.f32.mrf.mxu0
        %8925 = vmatprep.mubr.bf16.mxu0 0
        %8926 = vmatmul.mubr.bf16.gmra.mxu0 %v8690
        %v8927 = vpop.f32.mrf.mxu0
        %v8928 = vadd.f32 0.0, %v8927
        %v8929 = vpop.f32.mrf.mxu0
        %v8930 = vpop.f32.mrf.mxu0
        %v8931 = vadd.f32 0.0, %v8930
        %v8932 = vpop.f32.mrf.mxu0
        %8933 = vdwg.mxu0
        %v8934 = vadd.f32 %v8549, %v8792
        %v8935 = vadd.f32 %v8550, %v8795
        %v8936 = vadd.f32 %v8551, %v8800
        %v8937 = vadd.f32 %v8552, %v8803
        %v8938 = vadd.f32 %v8553, %v8808
        %v8939 = vadd.f32 %v8554, %v8811
        %v8940 = vadd.f32 %v8555, %v8816
        %v8941 = vadd.f32 %v8556, %v8819
        %v8942 = vadd.f32 %v8557, %v8824
        %v8943 = vadd.f32 %v8558, %v8827
        %v8944 = vadd.f32 %v8559, %v8832
        %v8945 = vadd.f32 %v8560, %v8835
        %v8946 = vadd.f32 %v8561, %v8840
        %v8947 = vadd.f32 %v8562, %v8843
        %v8948 = vadd.f32 %v8563, %v8848
        %v8949 = vadd.f32 %v8564, %v8851
        %v8950 = vadd.f32 %v8565, %v8856
        %v8951 = vadd.f32 %v8566, %v8859
        %v8952 = vadd.f32 %v8567, %v8864
        %v8953 = vadd.f32 %v8568, %v8867
        %v8954 = vadd.f32 %v8569, %v8872
        %v8955 = vadd.f32 %v8570, %v8875
        %v8956 = vadd.f32 %v8571, %v8880
        %v8957 = vadd.f32 %v8572, %v8883
        %v8958 = vadd.f32 %v8573, %v8888
        %v8959 = vadd.f32 %v8574, %v8891
        %v8960 = vadd.f32 %v8575, %v8896
        %v8961 = vadd.f32 %v8576, %v8899
        %v8962 = vadd.f32 %v8577, %v8904
        %v8963 = vadd.f32 %v8578, %v8907
        %v8964 = vadd.f32 %v8579, %v8912
        %v8965 = vadd.f32 %v8580, %v8915
        %v8966 = vadd.f32 %v8581, %v8920
        %v8967 = vadd.f32 %v8582, %v8923
        %v8968 = vadd.f32 %v8583, %v8928
        %v8969 = vadd.f32 %v8584, %v8931
        %v8970 = vld [vmem:[%s312 + $0xc] sm:$0xf]
        %v8971 = vld [vmem:[%s312 + $0x10] sm:$0xf]
        %v8972 = vld [vmem:[%s312 + $0x14] sm:$0xf]
        %v8973 = vld [vmem:[%s312 + $0x18] sm:$0xf]
        %v8974 = vld [vmem:[%s312 + $0x1c] sm:$0xf]
        %v8975 = vld [vmem:[%s312 + $0x20] sm:$0xf]
        %v8976 = vld [vmem:[%s312 + $0x24] sm:$0xf]
        %v8977 = vld [vmem:[%s312 + $0x28] sm:$0xf]
        %v8978 = vld [vmem:[%s312 + $0x2c] sm:$0xf]
        %v8979 = vld [vmem:[%s312 + $0x30] sm:$0xf]
        %v8980 = vld [vmem:[%s312 + $0x34] sm:$0xf]
        %v8981 = vld [vmem:[%s312 + $0x38] sm:$0xf]
        %v8982 = vld [vmem:[%s312 + $0x3c] sm:$0xf]
        %v8983 = vld [vmem:[%s312 + $0x40] sm:$0xf]
        %v8984 = vld [vmem:[%s312 + $0x44] sm:$0xf]
        %v8985 = vld [vmem:[%s312 + $0x48] sm:$0xf]
        %v8986 = vld [vmem:[%s312 + $0x4c] sm:$0xf]
        %v8987 = vld [vmem:[%s312 + $0x50] sm:$0xf]
        %v8988 = vld [vmem:[%s312 + $0x54] sm:$0xf]
        %v8989 = vld [vmem:[%s312 + $0x58] sm:$0xf]
        %v8990 = vld [vmem:[%s312 + $0x5c] sm:$0xf]
        %v8991 = vld [vmem:[%s312 + $0x60] sm:$0xf]
        %v8992 = vld [vmem:[%s312 + $0x64] sm:$0xf]
        %v8993 = vld [vmem:[%s312 + $0x68] sm:$0xf]
        %v8994 = vld [vmem:[%s312 + $0x6c] sm:$0xf]
        %v8995 = vld [vmem:[%s312 + $0x70] sm:$0xf]
        %v8996 = vld [vmem:[%s312 + $0x74] sm:$0xf]
        %v8997 = vld [vmem:[%s312 + $0x78] sm:$0xf]
        %v8998 = vld [vmem:[%s312 + $0x7c] sm:$0xf]
        %v8999 = vld [vmem:[%s312 + $0x80] sm:$0xf]
        %v9000 = vld [vmem:[%s312 + $0x84] sm:$0xf]
        %v9001 = vld [vmem:[%s312 + $0x88] sm:$0xf]
        %v9002 = vld [vmem:[%s312 + $0x8c] sm:$0xf]
        %v9003 = vld [vmem:[%s312 + $0x90] sm:$0xf]
        %v9004 = vld [vmem:[%s312 + $0x94] sm:$0xf]
        %v9005 = vld [vmem:[%s312 + $0x98] sm:$0xf]
        %v9006 = vunpack.c.l.bf16 %v8970
        %v9007 = vunpack.c.l.bf16 %v8971
        %v9008 = vunpack.c.l.bf16 %v8972
        %v9009 = vunpack.c.l.bf16 %v8973
        %v9010 = vunpack.c.l.bf16 %v8974
        %v9011 = vunpack.c.l.bf16 %v8975
        %v9012 = vunpack.c.l.bf16 %v8976
        %v9013 = vunpack.c.l.bf16 %v8977
        %v9014 = vunpack.c.l.bf16 %v8978
        %v9015 = vunpack.c.l.bf16 %v8979
        %v9016 = vunpack.c.l.bf16 %v8980
        %v9017 = vunpack.c.l.bf16 %v8981
        %v9018 = vunpack.c.l.bf16 %v8982
        %v9019 = vunpack.c.l.bf16 %v8983
        %v9020 = vunpack.c.l.bf16 %v8984
        %v9021 = vunpack.c.l.bf16 %v8985
        %v9022 = vunpack.c.l.bf16 %v8986
        %v9023 = vunpack.c.l.bf16 %v8987
        %v9024 = vunpack.c.l.bf16 %v8988
        %v9025 = vunpack.c.l.bf16 %v8989
        %v9026 = vunpack.c.l.bf16 %v8990
        %v9027 = vunpack.c.l.bf16 %v8991
        %v9028 = vunpack.c.l.bf16 %v8992
        %v9029 = vunpack.c.l.bf16 %v8993
        %v9030 = vunpack.c.l.bf16 %v8994
        %v9031 = vunpack.c.l.bf16 %v8995
        %v9032 = vunpack.c.l.bf16 %v8996
        %v9033 = vunpack.c.l.bf16 %v8997
        %v9034 = vunpack.c.l.bf16 %v8998
        %v9035 = vunpack.c.l.bf16 %v8999
        %v9036 = vunpack.c.l.bf16 %v9000
        %v9037 = vunpack.c.l.bf16 %v9001
        %v9038 = vunpack.c.l.bf16 %v9002
        %v9039 = vunpack.c.l.bf16 %v9003
        %v9040 = vunpack.c.l.bf16 %v9004
        %v9041 = vunpack.c.l.bf16 %v9005
        %v9042 = vld [vmem:[%s5] sm:$0x1]
        %v9044 = vlaneseq
        %v9045 = vshrl.u32 %v9044, 7
        %v9046 = vsub.s32 0, %v9045
        %v9047 = vrot.slane %v9042, %v9046
        %v9049 = vmul.f32 %v8934, %v9047
        %v9050 = vmul.f32 %v8935, %v9047
        %v9051 = vmul.f32 %v8936, %v9047
        %v9052 = vmul.f32 %v8937, %v9047
        %v9053 = vmul.f32 %v8938, %v9047
        %v9054 = vmul.f32 %v8939, %v9047
        %v9055 = vmul.f32 %v8940, %v9047
        %v9056 = vmul.f32 %v8941, %v9047
        %v9057 = vmul.f32 %v8942, %v9047
        %v9058 = vmul.f32 %v8943, %v9047
        %v9059 = vmul.f32 %v8944, %v9047
        %v9060 = vmul.f32 %v8945, %v9047
        %v9061 = vmul.f32 %v8946, %v9047
        %v9062 = vmul.f32 %v8947, %v9047
        %v9063 = vmul.f32 %v8948, %v9047
        %v9064 = vmul.f32 %v8949, %v9047
        %v9065 = vmul.f32 %v8950, %v9047
        %v9066 = vmul.f32 %v8951, %v9047
        %v9067 = vmul.f32 %v8952, %v9047
        %v9068 = vmul.f32 %v8953, %v9047
        %v9069 = vmul.f32 %v8954, %v9047
        %v9070 = vmul.f32 %v8955, %v9047
        %v9071 = vmul.f32 %v8956, %v9047
        %v9072 = vmul.f32 %v8957, %v9047
        %v9073 = vmul.f32 %v8958, %v9047
        %v9074 = vmul.f32 %v8959, %v9047
        %v9075 = vmul.f32 %v8960, %v9047
        %v9076 = vmul.f32 %v8961, %v9047
        %v9077 = vmul.f32 %v8962, %v9047
        %v9078 = vmul.f32 %v8963, %v9047
        %v9079 = vmul.f32 %v8964, %v9047
        %v9080 = vmul.f32 %v8965, %v9047
        %v9081 = vmul.f32 %v8966, %v9047
        %v9082 = vmul.f32 %v8967, %v9047
        %v9083 = vmul.f32 %v8968, %v9047
        %v9084 = vmul.f32 %v8969, %v9047
        %v9085 = vld [vmem:[%s6] sm:$0x1]
        %v9087 = vlaneseq
        %v9088 = vshrl.u32 %v9087, 7
        %v9089 = vsub.s32 0, %v9088
        %v9090 = vrot.slane %v9085, %v9089
        %v9092 = vadd.f32 %v9049, %v9090
        %v9093 = vadd.f32 %v9050, %v9090
        %v9094 = vadd.f32 %v9051, %v9090
        %v9095 = vadd.f32 %v9052, %v9090
        %v9096 = vadd.f32 %v9053, %v9090
        %v9097 = vadd.f32 %v9054, %v9090
        %v9098 = vadd.f32 %v9055, %v9090
        %v9099 = vadd.f32 %v9056, %v9090
        %v9100 = vadd.f32 %v9057, %v9090
        %v9101 = vadd.f32 %v9058, %v9090
        %v9102 = vadd.f32 %v9059, %v9090
        %v9103 = vadd.f32 %v9060, %v9090
        %v9104 = vadd.f32 %v9061, %v9090
        %v9105 = vadd.f32 %v9062, %v9090
        %v9106 = vadd.f32 %v9063, %v9090
        %v9107 = vadd.f32 %v9064, %v9090
        %v9108 = vadd.f32 %v9065, %v9090
        %v9109 = vadd.f32 %v9066, %v9090
        %v9110 = vadd.f32 %v9067, %v9090
        %v9111 = vadd.f32 %v9068, %v9090
        %v9112 = vadd.f32 %v9069, %v9090
        %v9113 = vadd.f32 %v9070, %v9090
        %v9114 = vadd.f32 %v9071, %v9090
        %v9115 = vadd.f32 %v9072, %v9090
        %v9116 = vadd.f32 %v9073, %v9090
        %v9117 = vadd.f32 %v9074, %v9090
        %v9118 = vadd.f32 %v9075, %v9090
        %v9119 = vadd.f32 %v9076, %v9090
        %v9120 = vadd.f32 %v9077, %v9090
        %v9121 = vadd.f32 %v9078, %v9090
        %v9122 = vadd.f32 %v9079, %v9090
        %v9123 = vadd.f32 %v9080, %v9090
        %v9124 = vadd.f32 %v9081, %v9090
        %v9125 = vadd.f32 %v9082, %v9090
        %v9126 = vadd.f32 %v9083, %v9090
        %v9127 = vadd.f32 %v9084, %v9090
        %v9128 = vadd.f32 %v9092, %v9006
        %v9129 = vadd.f32 %v9093, %v9007
        %v9130 = vadd.f32 %v9094, %v9008
        %v9131 = vadd.f32 %v9095, %v9009
        %v9132 = vadd.f32 %v9096, %v9010
        %v9133 = vadd.f32 %v9097, %v9011
        %v9134 = vadd.f32 %v9098, %v9012
        %v9135 = vadd.f32 %v9099, %v9013
        %v9136 = vadd.f32 %v9100, %v9014
        %v9137 = vadd.f32 %v9101, %v9015
        %v9138 = vadd.f32 %v9102, %v9016
        %v9139 = vadd.f32 %v9103, %v9017
        %v9140 = vadd.f32 %v9104, %v9018
        %v9141 = vadd.f32 %v9105, %v9019
        %v9142 = vadd.f32 %v9106, %v9020
        %v9143 = vadd.f32 %v9107, %v9021
        %v9144 = vadd.f32 %v9108, %v9022
        %v9145 = vadd.f32 %v9109, %v9023
        %v9146 = vadd.f32 %v9110, %v9024
        %v9147 = vadd.f32 %v9111, %v9025
        %v9148 = vadd.f32 %v9112, %v9026
        %v9149 = vadd.f32 %v9113, %v9027
        %v9150 = vadd.f32 %v9114, %v9028
        %v9151 = vadd.f32 %v9115, %v9029
        %v9152 = vadd.f32 %v9116, %v9030
        %v9153 = vadd.f32 %v9117, %v9031
        %v9154 = vadd.f32 %v9118, %v9032
        %v9155 = vadd.f32 %v9119, %v9033
        %v9156 = vadd.f32 %v9120, %v9034
        %v9157 = vadd.f32 %v9121, %v9035
        %v9158 = vadd.f32 %v9122, %v9036
        %v9159 = vadd.f32 %v9123, %v9037
        %v9160 = vadd.f32 %v9124, %v9038
        %v9161 = vadd.f32 %v9125, %v9039
        %v9162 = vadd.f32 %v9126, %v9040
        %v9163 = vadd.f32 %v9127, %v9041
        %v9164 = vmax.f32 %v9128, 0.0
        %v9165 = vmax.f32 %v9129, 0.0
        %v9166 = vmax.f32 %v9130, 0.0
        %v9167 = vmax.f32 %v9131, 0.0
        %v9168 = vmax.f32 %v9132, 0.0
        %v9169 = vmax.f32 %v9133, 0.0
        %v9170 = vmax.f32 %v9134, 0.0
        %v9171 = vmax.f32 %v9135, 0.0
        %v9172 = vmax.f32 %v9136, 0.0
        %v9173 = vmax.f32 %v9137, 0.0
        %v9174 = vmax.f32 %v9138, 0.0
        %v9175 = vmax.f32 %v9139, 0.0
        %v9176 = vmax.f32 %v9140, 0.0
        %v9177 = vmax.f32 %v9141, 0.0
        %v9178 = vmax.f32 %v9142, 0.0
        %v9179 = vmax.f32 %v9143, 0.0
        %v9180 = vmax.f32 %v9144, 0.0
        %v9181 = vmax.f32 %v9145, 0.0
        %v9182 = vmax.f32 %v9146, 0.0
        %v9183 = vmax.f32 %v9147, 0.0
        %v9184 = vmax.f32 %v9148, 0.0
        %v9185 = vmax.f32 %v9149, 0.0
        %v9186 = vmax.f32 %v9150, 0.0
        %v9187 = vmax.f32 %v9151, 0.0
        %v9188 = vmax.f32 %v9152, 0.0
        %v9189 = vmax.f32 %v9153, 0.0
        %v9190 = vmax.f32 %v9154, 0.0
        %v9191 = vmax.f32 %v9155, 0.0
        %v9192 = vmax.f32 %v9156, 0.0
        %v9193 = vmax.f32 %v9157, 0.0
        %v9194 = vmax.f32 %v9158, 0.0
        %v9195 = vmax.f32 %v9159, 0.0
        %v9196 = vmax.f32 %v9160, 0.0
        %v9197 = vmax.f32 %v9161, 0.0
        %v9198 = vmax.f32 %v9162, 0.0
        %v9199 = vmax.f32 %v9163, 0.0
        %v9200 = vpack.c.bf16 %v9165, %v9164
        %v9201 = vpack.c.bf16 %v9167, %v9166
        %v9202 = vpack.c.bf16 %v9169, %v9168
        %v9203 = vpack.c.bf16 %v9171, %v9170
        %v9204 = vpack.c.bf16 %v9173, %v9172
        %v9205 = vpack.c.bf16 %v9175, %v9174
        %v9206 = vpack.c.bf16 %v9177, %v9176
        %v9207 = vpack.c.bf16 %v9179, %v9178
        %v9208 = vpack.c.bf16 %v9181, %v9180
        %v9209 = vpack.c.bf16 %v9183, %v9182
        %v9210 = vpack.c.bf16 %v9185, %v9184
        %v9211 = vpack.c.bf16 %v9187, %v9186
        %v9212 = vpack.c.bf16 %v9189, %v9188
        %v9213 = vpack.c.bf16 %v9191, %v9190
        %v9214 = vpack.c.bf16 %v9193, %v9192
        %v9215 = vpack.c.bf16 %v9195, %v9194
        %v9216 = vpack.c.bf16 %v9197, %v9196
        %v9217 = vpack.c.bf16 %v9199, %v9198
        %v9236 = vunpack.c.l.b16 %v9200
        %v9237 = vunpack.c.h.b16 %v9200
        %v9238 = vunpack.c.l.b16 %v9201
        %v9239 = vunpack.c.h.b16 %v9201
        %v9240 = vunpack.c.l.b16 %v9202
        %v9241 = vunpack.c.h.b16 %v9202
        %v9242 = vunpack.c.l.b16 %v9203
        %v9243 = vunpack.c.h.b16 %v9203
        %v9244 = vunpack.c.l.b16 %v9204
        %v9245 = vunpack.c.h.b16 %v9204
        %v9246 = vunpack.c.l.b16 %v9205
        %v9247 = vunpack.c.h.b16 %v9205
        %v9248 = vunpack.c.l.b16 %v9206
        %v9249 = vunpack.c.h.b16 %v9206
        %v9250 = vunpack.c.l.b16 %v9207
        %v9251 = vunpack.c.h.b16 %v9207
        %v9252 = vunpack.c.l.b16 %v9208
        %v9253 = vunpack.c.h.b16 %v9208
        %v9254 = vunpack.c.l.b16 %v9209
        %v9255 = vunpack.c.h.b16 %v9209
        %v9256 = vunpack.c.l.b16 %v9210
        %v9257 = vunpack.c.h.b16 %v9210
        %v9258 = vunpack.c.l.b16 %v9211
        %v9259 = vunpack.c.h.b16 %v9211
        %v9260 = vunpack.c.l.b16 %v9212
        %v9261 = vunpack.c.h.b16 %v9212
        %v9262 = vunpack.c.l.b16 %v9213
        %v9263 = vunpack.c.h.b16 %v9213
        %v9264 = vunpack.c.l.b16 %v9214
        %v9265 = vunpack.c.h.b16 %v9214
        %v9266 = vunpack.c.l.b16 %v9215
        %v9267 = vunpack.c.h.b16 %v9215
        %v9268 = vunpack.c.l.b16 %v9216
        %v9269 = vunpack.c.h.b16 %v9216
        %v9270 = vunpack.c.l.b16 %v9217
        %v9271 = vunpack.c.h.b16 %v9217
        %v9272 = vpack.c.b16 %v9236, %v9236
        %v9273 = vpack.c.b16 %v9237, %v9237
        %v9274 = vpack.c.b16 %v9238, %v9238
        %v9275 = vpack.c.b16 %v9239, %v9239
        %v9276 = vpack.c.b16 %v9240, %v9240
        %v9277 = vpack.c.b16 %v9241, %v9241
        %v9278 = vpack.c.b16 %v9242, %v9242
        %v9279 = vpack.c.b16 %v9243, %v9243
        %v9280 = vpack.c.b16 %v9244, %v9244
        %v9281 = vpack.c.b16 %v9245, %v9245
        %v9282 = vpack.c.b16 %v9246, %v9246
        %v9283 = vpack.c.b16 %v9247, %v9247
        %v9284 = vpack.c.b16 %v9248, %v9248
        %v9285 = vpack.c.b16 %v9249, %v9249
        %v9286 = vpack.c.b16 %v9250, %v9250
        %v9287 = vpack.c.b16 %v9251, %v9251
        %v9288 = vpack.c.b16 %v9252, %v9252
        %v9289 = vpack.c.b16 %v9253, %v9253
        %v9290 = vpack.c.b16 %v9254, %v9254
        %v9291 = vpack.c.b16 %v9255, %v9255
        %v9292 = vpack.c.b16 %v9256, %v9256
        %v9293 = vpack.c.b16 %v9257, %v9257
        %v9294 = vpack.c.b16 %v9258, %v9258
        %v9295 = vpack.c.b16 %v9259, %v9259
        %v9296 = vpack.c.b16 %v9260, %v9260
        %v9297 = vpack.c.b16 %v9261, %v9261
        %v9298 = vpack.c.b16 %v9262, %v9262
        %v9299 = vpack.c.b16 %v9263, %v9263
        %v9300 = vpack.c.b16 %v9264, %v9264
        %v9301 = vpack.c.b16 %v9265, %v9265
        %v9302 = vpack.c.b16 %v9266, %v9266
        %v9303 = vpack.c.b16 %v9267, %v9267
        %v9304 = vpack.c.b16 %v9268, %v9268
        %v9305 = vpack.c.b16 %v9269, %v9269
        %v9306 = vpack.c.b16 %v9270, %v9270
        %v9307 = vpack.c.b16 %v9271, %v9271
        %9344 = vst [vmem:[%s352] sm:$0xf] %v9272
        %9345 = vst [vmem:[%s352 + $0x4] sm:$0xf] %v9273
        %9346 = vst [vmem:[%s352 + $0x8] sm:$0xf] %v9274
        %9347 = vst [vmem:[%s352 + $0xc] sm:$0xf] %v9275
        %9348 = vst [vmem:[%s352 + $0x10] sm:$0xf] %v9276
        %9349 = vst [vmem:[%s352 + $0x14] sm:$0xf] %v9277
        %9350 = vst [vmem:[%s352 + $0x18] sm:$0xf] %v9278
        %9351 = vst [vmem:[%s352 + $0x1c] sm:$0xf] %v9279
        %9352 = vst [vmem:[%s352 + $0x20] sm:$0xf] %v9280
        %9353 = vst [vmem:[%s352 + $0x24] sm:$0xf] %v9281
        %9354 = vst [vmem:[%s352 + $0x28] sm:$0xf] %v9282
        %9355 = vst [vmem:[%s352 + $0x2c] sm:$0xf] %v9283
        %9356 = vst [vmem:[%s352 + $0x30] sm:$0xf] %v9284
        %9357 = vst [vmem:[%s352 + $0x34] sm:$0xf] %v9285
        %9358 = vst [vmem:[%s352 + $0x38] sm:$0xf] %v9286
        %9359 = vst [vmem:[%s352 + $0x3c] sm:$0xf] %v9287
        %9360 = vst [vmem:[%s352 + $0x40] sm:$0xf] %v9288
        %9361 = vst [vmem:[%s352 + $0x44] sm:$0xf] %v9289
        %9362 = vst [vmem:[%s352 + $0x48] sm:$0xf] %v9290
        %9363 = vst [vmem:[%s352 + $0x4c] sm:$0xf] %v9291
        %9364 = vst [vmem:[%s352 + $0x50] sm:$0xf] %v9292
        %9365 = vst [vmem:[%s352 + $0x54] sm:$0xf] %v9293
        %9366 = vst [vmem:[%s352 + $0x58] sm:$0xf] %v9294
        %9367 = vst [vmem:[%s352 + $0x5c] sm:$0xf] %v9295
        %9368 = vst [vmem:[%s352 + $0x60] sm:$0xf] %v9296
        %9369 = vst [vmem:[%s352 + $0x64] sm:$0xf] %v9297
        %9370 = vst [vmem:[%s352 + $0x68] sm:$0xf] %v9298
        %9371 = vst [vmem:[%s352 + $0x6c] sm:$0xf] %v9299
        %9372 = vst [vmem:[%s352 + $0x70] sm:$0xf] %v9300
        %9373 = vst [vmem:[%s352 + $0x74] sm:$0xf] %v9301
        %9374 = vst [vmem:[%s352 + $0x78] sm:$0xf] %v9302
        %9375 = vst [vmem:[%s352 + $0x7c] sm:$0xf] %v9303
        %9376 = vst [vmem:[%s352 + $0x80] sm:$0xf] %v9304
        %9377 = vst [vmem:[%s352 + $0x84] sm:$0xf] %v9305
        %9378 = vst [vmem:[%s352 + $0x88] sm:$0xf] %v9306
        %9379 = vst [vmem:[%s352 + $0x8c] sm:$0xf] %v9307
        %s9380 = sand.u32 %s207, 1
        %s9381 = scalar_lea.sflag [#allocation5], %s9380
        %s9382 = sand.u32 %s207, 1
        %s9383 = smul.addr %s9382, 144
        %s9384 = scalar_lea.vmem [#allocation9], %s9383
        // Predicated region
        $region65: #{tpu_custom_call.1} parent=51 // pred_check
          %p9385 = pneg %p217
        $region66: #{tpu_custom_call.1} parent=51 // pred_check_branch
          %9387 = sbr.rel (%p9385) target = $region68
        $region67: #{tpu_custom_call.1} parent=51 // pred_region
          %s9389 = ssub.s32 2304, 2304
          %9390 = vsyncadd %s9381, %s9389
          %s9391 = smul.addr %s26, 36
          %s9392 = smul.addr %s9391, 64
          %s9393 = scalar_lea.hbm %s8, %s9392
          %s9394 = sshll.u32 %s9384, 4
          %s9395 = int_to_ptr.vmem [resolvable:$true] %s9394
          %9400 = dma.vmem_to_hbm [thread:$0]  %s9395, 2304, %s9393, %s9381, 64, 64, 4
        $region68: #{tpu_custom_call.1} parent=51 // pred_fallthru
          _
      $region52: #{tpu_custom_call.1} parent=5 // pred_fallthru
        _
      %p9401 = scmp.le.s32.totalorder 2, %s21
      // Predicated region
      $region69: #{tpu_custom_call.1} parent=5 // pred_check
        %p9402 = pneg %p9401
      $region70: #{tpu_custom_call.1} parent=5 // pred_check_branch
        %9404 = sbr.rel (%p9402) target = $region72
      $region71: #{tpu_custom_call.1} parent=5 // pred_region
        %s9405 = ssub.s32 %s21, 2
        // Predicated region
        $region73: #{tpu_custom_call.1} parent=71 // pred_check
          %p9406 = pneg %p223
        $region74: #{tpu_custom_call.1} parent=71 // pred_check_branch
          %9408 = sbr.rel (%p9406) target = $region76
        $region75: #{tpu_custom_call.1} parent=71 // pred_region
          %s9409 = sand.u32 %s208, 1
          %s9410 = scalar_lea.sflag [#allocation5], %s9409
          %s9411 = sand.u32 %s208, 1
          %s9412 = smul.addr %s9411, 144
          %s9413 = scalar_lea.vmem [#allocation9], %s9412
          %9414 = dma.done %s9410, 2304
        $region76: #{tpu_custom_call.1} parent=71 // pred_fallthru
          _
      $region72: #{tpu_custom_call.1} parent=5 // pred_fallthru
        _
    $region6: #{tpu_custom_call.1} parent=1 // loop_footer
      %s25 = sadd.s32 1, %s21
    $region7: #{tpu_custom_call.1} parent=1 // loop_footer_branch
      %20 = sbr.rel target = $region3
    $region8: #{tpu_custom_call.1} parent=1 // loop_exit
      _
    %9415 = vsyncpa [#allocation4], 1
    %s9416 = scalar_lea.sflag [#allocation4], 1
    %9417 = vsyncpa %s9416, 1
    %9418 = vsyncpa [#allocation7], 1
    %9419 = vsyncpa [#allocation5], 1
    %s9420 = scalar_lea.sflag [#allocation5], 1
    %9421 = vsyncpa %s9420, 1

</llo_original>
